<compile_context>
chip_gen: v7x
topology: tpu7x:2x2x1
jax: 0.10.0
libtpu: 0.0.40
codegen_flags: <defaults>
</compile_context>

<pallas_src>
import jax
import jax.numpy as jnp
from jax.experimental import pallas as pl
from jax.experimental.pallas import tpu as pltpu

# ----------------------- model hyper-parameters (from args) -----------------------
HIDDEN = 130          # self.hidden_size
NUM_LAYERS = 2        # args.lstm_num_layers
SR_INPUT_DIM = 8      # args.sr_input_dim
OUTPUT_DIM = 3        # args.output_dim
HORIZON = 4           # args.horizon
SINGLE_MODE = False   # args.single_mode

OUT_TOTAL = OUTPUT_DIM if SINGLE_MODE else OUTPUT_DIM * HORIZON


def _round_up(x, m):
    return (x + m - 1) // m * m


HP = _round_up(HIDDEN, 128)        # padded hidden (256) -> 128-aligned gate bands
OP = _round_up(OUT_TOTAL, 128)     # padded fc output dim (128)
IP = _round_up(SR_INPUT_DIM, 128)  # padded input feature dim (128)


# ------------------------------- fused Pallas kernel -------------------------------
def fused_forward_kernel(x_ref, wih0_ref, b0_ref, whh0_ref, b1_ref, bfc_ref,
                         wih1_hbm, whh1_hbm, wfc_hbm,
                         o_ref,
                         gx0_v, wih1_v, whh1_v, wfc_v, sem):
    """Whole forward pass in one kernel.

    x_ref   : (T*Bp, IP)   raw inputs, time-major rows, feature-padded to 128
    wih0/b0 : (IP, 4*Hp), (1, 4*Hp)   layer-0 input weights / combined bias
    whh0    : (Hp, 4*Hp)   layer-0 recurrent weights (gate bands i,f,g,o)
    b1/bfc  : (1, 4*Hp), (1, OP)
    wih1/whh1/wfc (HBM refs) : layer-1 + FC weights, DMA'd manually into scratch
    o_ref   : (Bp, OP)     sigmoid(fc(h1_last))
    """
    Bp = o_ref.shape[0]
    Hp = whh0_ref.shape[0]
    T = x_ref.shape[0] // Bp

    # ---- fire layer-1 / FC weight DMAs immediately; hide behind layer-0 work ----
    cp_wih1 = pltpu.make_async_copy(wih1_hbm, wih1_v, sem.at[0])
    cp_whh1 = pltpu.make_async_copy(whh1_hbm, whh1_v, sem.at[1])
    cp_wfc = pltpu.make_async_copy(wfc_hbm, wfc_v, sem.at[2])
    cp_wih1.start()
    cp_whh1.start()
    cp_wfc.start()

    def lstm_cell(gates, c):
        i_g = jax.nn.sigmoid(gates[:, 0 * Hp:1 * Hp])
        f_g = jax.nn.sigmoid(gates[:, 1 * Hp:2 * Hp])
        g_g = jnp.tanh(gates[:, 2 * Hp:3 * Hp])
        o_g = jax.nn.sigmoid(gates[:, 3 * Hp:4 * Hp])
        c_new = f_g * c + i_g * g_g
        h_new = o_g * jnp.tanh(c_new)
        return h_new, c_new

    # ---- layer-0 input projection: one (T*Bp,IP)x(IP,4Hp) matmul, off-chain ----
    gx0_v[...] = (jnp.dot(x_ref[...], wih0_ref[...],
                          preferred_element_type=jnp.float32) + b0_ref[...])
    whh0 = whh0_ref[...]

    # ---- layer-0 step 0 (h0 == 0 => gates are just the precomputed projection) ----
    h0, c0 = lstm_cell(gx0_v[0:Bp, :], jnp.zeros((Bp, Hp), jnp.float32))

    # layer-1 input weights needed from wavefront step 0; whh1 only from step 1.
    cp_wih1.wait()
    wih1 = wih1_v[...]
    b1 = b1_ref[...]
    whh1 = None

    h1 = jnp.zeros((Bp, Hp), jnp.float32)
    c1 = jnp.zeros((Bp, Hp), jnp.float32)

    # ---- wavefront: layer-1 step t interleaved with layer-0 step t+1 ----
    # (they only share h0_t, so the VLIW scheduler overlaps them; serial chain
    #  shrinks from 2T to ~T+1 dependent matmul+transcendental stages)
    for t in range(T):                                   # static T -> fully unrolled
        # layer-1 step t (consumes h0 == h0_t)
        g1 = jnp.dot(h0, wih1, preferred_element_type=jnp.float32) + b1
        if t > 0:
            g1 = g1 + jnp.dot(h1, whh1, preferred_element_type=jnp.float32)
        # layer-0 step t+1 (independent of layer-1 step t)
        if t + 1 < T:
            g0 = (gx0_v[(t + 1) * Bp:(t + 2) * Bp, :]    # 8-aligned static slice
                  + jnp.dot(h0, whh0, preferred_element_type=jnp.float32))
            h0_nxt, c0 = lstm_cell(g0, c0)
        h1, c1 = lstm_cell(g1, c1)
        if t + 1 < T:
            h0 = h0_nxt
        if t == 0:
            cp_whh1.wait()                               # first needed at t == 1
            whh1 = whh1_v[...]

    # ------------------- FC + sigmoid on the last hidden state -------------------
    cp_wfc.wait()
    o_ref[...] = jax.nn.sigmoid(
        jnp.dot(h1, wfc_v[...], preferred_element_type=jnp.float32) + bfc_ref[...])


# ----------------------------- parameter construction ------------------------------
def init_params(key):
    """PyTorch-style uniform(-1/sqrt(H), 1/sqrt(H)) init, deterministic."""
    k_lstm = 1.0 / jnp.sqrt(float(HIDDEN))
    raw = {"lstm": [], "fc_w": None, "fc_b": None}
    for layer in range(NUM_LAYERS):
        in_dim = SR_INPUT_DIM if layer == 0 else HIDDEN
        key, k1, k2, k3, k4 = jax.random.split(key, 5)
        w_ih = jax.random.uniform(k1, (4 * HIDDEN, in_dim), jnp.float32, -k_lstm, k_lstm)
        w_hh = jax.random.uniform(k2, (4 * HIDDEN, HIDDEN), jnp.float32, -k_lstm, k_lstm)
        b_ih = jax.random.uniform(k3, (4 * HIDDEN,), jnp.float32, -k_lstm, k_lstm)
        b_hh = jax.random.uniform(k4, (4 * HIDDEN,), jnp.float32, -k_lstm, k_lstm)
        raw["lstm"].append((w_ih, w_hh, b_ih, b_hh))
    k_fc = 1.0 / jnp.sqrt(float(HIDDEN))
    key, k1, k2 = jax.random.split(key, 3)
    raw["fc_w"] = jax.random.uniform(k1, (OUT_TOTAL, HIDDEN), jnp.float32, -k_fc, k_fc)
    raw["fc_b"] = jax.random.uniform(k2, (OUT_TOTAL,), jnp.float32, -k_fc, k_fc)
    return raw


def pack_params(raw):
    """Pad/transpose torch-layout params into 128-aligned, kernel-friendly slabs."""
    def band_w(n_rows, src_w, in_dim):
        dst = jnp.zeros((n_rows, 4 * HP), jnp.float32)
        for k in range(4):  # torch gate order: i, f, g, o
            dst = dst.at[:in_dim, k * HP:k * HP + HIDDEN].set(
                src_w[k * HIDDEN:(k + 1) * HIDDEN, :].T)
        return dst

    def band_b(b_ih, b_hh):
        dst = jnp.zeros((1, 4 * HP), jnp.float32)
        for k in range(4):
            dst = dst.at[0, k * HP:k * HP + HIDDEN].set(
                b_ih[k * HIDDEN:(k + 1) * HIDDEN] + b_hh[k * HIDDEN:(k + 1) * HIDDEN])
        return dst

    (w_ih0, w_hh0, b_ih0, b_hh0) = raw["lstm"][0]
    (w_ih1, w_hh1, b_ih1, b_hh1) = raw["lstm"][1]
    return {
        "wih0": band_w(IP, w_ih0, SR_INPUT_DIM),   # (128, 1024)
        "b0":   band_b(b_ih0, b_hh0),
        "whh0": band_w(HP, w_hh0, HIDDEN),
        "wih1": band_w(HP, w_ih1, HIDDEN),
        "b1":   band_b(b_ih1, b_hh1),
        "whh1": band_w(HP, w_hh1, HIDDEN),
        "wfc":  jnp.zeros((HP, OP), jnp.float32).at[:HIDDEN, :OUT_TOTAL].set(raw["fc_w"].T),
        "bfc":  jnp.zeros((1, OP), jnp.float32).at[0, :OUT_TOTAL].set(raw["fc_b"]),
    }


# ----------------------------------- forward ---------------------------------------
@jax.jit
def mgl4mep_sr_forward(s_and_r, params):
    """s_and_r: [B, T, SR_INPUT_DIM] float32 -> [B, HORIZON, OUTPUT_DIM]."""
    B, T, D = s_and_r.shape
    Bp = _round_up(B, 8)

    # Only trivial layout plumbing in the wrapper: time-major, pad batch->8,
    # pad feature->128 (a ~32 KiB slab; the projection itself happens in-kernel).
    x = jnp.transpose(s_and_r, (1, 0, 2))                      # (T, B, D)
    x = jnp.pad(x, ((0, 0), (0, Bp - B), (0, IP - D)))         # (T, Bp, IP)
    x = x.reshape(T * Bp, IP)

    vmem = pltpu.MemorySpace.VMEM
    out_p = pl.pallas_call(
        fused_forward_kernel,
        out_shape=jax.ShapeDtypeStruct((Bp, OP), jnp.float32),
        in_specs=[
            pl.BlockSpec(memory_space=vmem),     # x
            pl.BlockSpec(memory_space=vmem),     # wih0
            pl.BlockSpec(memory_space=vmem),     # b0
            pl.BlockSpec(memory_space=vmem),     # whh0
            pl.BlockSpec(memory_space=vmem),     # b1
            pl.BlockSpec(memory_space=vmem),     # bfc
            pl.BlockSpec(memory_space=pl.ANY),   # wih1 (stays in HBM, manual DMA)
            pl.BlockSpec(memory_space=pl.ANY),   # whh1 (stays in HBM, manual DMA)
            pl.BlockSpec(memory_space=pl.ANY),   # wfc  (stays in HBM, manual DMA)
        ],
        out_specs=pl.BlockSpec(memory_space=vmem),
        scratch_shapes=[
            pltpu.VMEM((T * Bp, 4 * HP), jnp.float32),   # gx0 (layer-0 gate proj)
            pltpu.VMEM((HP, 4 * HP), jnp.float32),       # wih1 landing buffer
            pltpu.VMEM((HP, 4 * HP), jnp.float32),       # whh1 landing buffer
            pltpu.VMEM((HP, OP), jnp.float32),           # wfc  landing buffer
            pltpu.SemaphoreType.DMA((3,)),
        ],
    )(x, params["wih0"], params["b0"], params["whh0"], params["b1"], params["bfc"],
      params["wih1"], params["whh1"], params["wfc"])

    out = out_p[:B, :OUT_TOTAL]
    if not SINGLE_MODE:
        out = out.reshape(B, HORIZON, OUTPUT_DIM)
    return out


# ------------------------------ pure-JAX reference ----------------------------------
def ref_forward(s_and_r, raw):
    B, T, _ = s_and_r.shape
    h_in = s_and_r
    for (w_ih, w_hh, b_ih, b_hh) in raw["lstm"]:
        h = jnp.zeros((B, HIDDEN), jnp.float32)
        c = jnp.zeros((B, HIDDEN), jnp.float32)
        outs = []
        for t in range(T):
            gates = h_in[:, t, :] @ w_ih.T + b_ih + h @ w_hh.T + b_hh
            i = jax.nn.sigmoid(gates[:, :HIDDEN])
            f = jax.nn.sigmoid(gates[:, HIDDEN:2 * HIDDEN])
            g = jnp.tanh(gates[:, 2 * HIDDEN:3 * HIDDEN])
            o = jax.nn.sigmoid(gates[:, 3 * HIDDEN:])
            c = f * c + i * g
            h = o * jnp.tanh(c)
            outs.append(h)
        h_in = jnp.stack(outs, axis=1)
    out = jax.nn.sigmoid(h_in[:, -1, :] @ raw["fc_w"].T + raw["fc_b"])
    if not SINGLE_MODE:
        out = out.reshape(B, HORIZON, OUTPUT_DIM)
    return out


# ------------------------------------- main -----------------------------------------
if __name__ == "__main__":
    key = jax.random.PRNGKey(0)
    key, k_in = jax.random.split(key)

    B, T = 2, 8
    s_and_r = jax.random.normal(k_in, (B, T, SR_INPUT_DIM), jnp.float32)

    raw = init_params(key)
    packed = pack_params(raw)

    out = mgl4mep_sr_forward(s_and_r, packed)
    out = jax.block_until_ready(out)

    expected = ref_forward(s_and_r, raw)
    assert out.shape == (B, HORIZON, OUTPUT_DIM), out.shape
    assert jnp.allclose(out, expected, rtol=1e-4, atol=1e-5), (
        float(jnp.max(jnp.abs(out - expected))))

    print("KERNEL_OK")
</pallas_src>

<mosaic_0001>
module attributes {stable_mosaic.version = 11 : i64} {
  func.func @fused_forward_kernel(%arg0: memref<64x128xf32, #tpu.memory_space<vmem>>, %arg1: memref<128x1024xf32, #tpu.memory_space<vmem>>, %arg2: memref<1x1024xf32, #tpu.memory_space<vmem>>, %arg3: memref<256x1024xf32, #tpu.memory_space<vmem>>, %arg4: memref<1x1024xf32, #tpu.memory_space<vmem>>, %arg5: memref<1x128xf32, #tpu.memory_space<vmem>>, %arg6: memref<256x1024xf32, #tpu.memory_space<any>>, %arg7: memref<256x1024xf32, #tpu.memory_space<any>>, %arg8: memref<256x128xf32, #tpu.memory_space<any>>, %arg9: memref<8x128xf32, #tpu.memory_space<vmem>>, %arg10: memref<64x1024xf32, #tpu.memory_space<vmem>>, %arg11: memref<256x1024xf32, #tpu.memory_space<vmem>>, %arg12: memref<256x1024xf32, #tpu.memory_space<vmem>>, %arg13: memref<256x128xf32, #tpu.memory_space<vmem>>, %arg14: memref<3x!tpu.dma_semaphore, #tpu.memory_space<semaphore_mem>>) attributes {dimension_semantics = [], scalar_prefetch = 0 : i64, scratch_operands = 5 : i64, tpu.core_type = #tpu.core_type<tc>} {
    %c0_i32 = arith.constant 0 : i32
    %0 = tpu.memref_slice %arg14[%c0_i32] : memref<3x!tpu.dma_semaphore, #tpu.memory_space<semaphore_mem>> -> memref<1x!tpu.dma_semaphore, #tpu.memory_space<semaphore_mem>>
    %1 = tpu.memref_squeeze %0 : memref<1x!tpu.dma_semaphore, #tpu.memory_space<semaphore_mem>> -> memref<!tpu.dma_semaphore, #tpu.memory_space<semaphore_mem>>
    tpu.enqueue_dma source(%arg6 : memref<256x1024xf32, #tpu.memory_space<any>>) target(%arg11 : memref<256x1024xf32, #tpu.memory_space<vmem>>) target_semaphore(%1 : memref<!tpu.dma_semaphore, #tpu.memory_space<semaphore_mem>>)
    %c1_i32 = arith.constant 1 : i32
    %2 = tpu.memref_slice %arg14[%c1_i32] : memref<3x!tpu.dma_semaphore, #tpu.memory_space<semaphore_mem>> -> memref<1x!tpu.dma_semaphore, #tpu.memory_space<semaphore_mem>>
    %3 = tpu.memref_squeeze %2 : memref<1x!tpu.dma_semaphore, #tpu.memory_space<semaphore_mem>> -> memref<!tpu.dma_semaphore, #tpu.memory_space<semaphore_mem>>
    tpu.enqueue_dma source(%arg7 : memref<256x1024xf32, #tpu.memory_space<any>>) target(%arg12 : memref<256x1024xf32, #tpu.memory_space<vmem>>) target_semaphore(%3 : memref<!tpu.dma_semaphore, #tpu.memory_space<semaphore_mem>>)
    %c2_i32 = arith.constant 2 : i32
    %4 = tpu.memref_slice %arg14[%c2_i32] : memref<3x!tpu.dma_semaphore, #tpu.memory_space<semaphore_mem>> -> memref<1x!tpu.dma_semaphore, #tpu.memory_space<semaphore_mem>>
    %5 = tpu.memref_squeeze %4 : memref<1x!tpu.dma_semaphore, #tpu.memory_space<semaphore_mem>> -> memref<!tpu.dma_semaphore, #tpu.memory_space<semaphore_mem>>
    tpu.enqueue_dma source(%arg8 : memref<256x128xf32, #tpu.memory_space<any>>) target(%arg13 : memref<256x128xf32, #tpu.memory_space<vmem>>) target_semaphore(%5 : memref<!tpu.dma_semaphore, #tpu.memory_space<semaphore_mem>>)
    %c0 = arith.constant 0 : index
    %c0_0 = arith.constant 0 : index
    %6 = vector.load %arg0[%c0, %c0_0] : memref<64x128xf32, #tpu.memory_space<vmem>>, vector<64x128xf32>
    %c0_1 = arith.constant 0 : index
    %c0_2 = arith.constant 0 : index
    %7 = vector.load %arg1[%c0_1, %c0_2] : memref<128x1024xf32, #tpu.memory_space<vmem>>, vector<128x1024xf32>
    %cst = arith.constant dense<0.000000e+00> : vector<64x1024xf32>
    %8 = tpu.matmul %6, %7, %cst {dimension_numbers = #tpu.dot_dimension_numbers<[1], [0], [0], [1], [0, 0, 1, 1], [], []>} : vector<64x128xf32>, vector<128x1024xf32>, vector<64x1024xf32> -> vector<64x1024xf32>
    %c0_3 = arith.constant 0 : index
    %c0_4 = arith.constant 0 : index
    %9 = vector.load %arg2[%c0_3, %c0_4] : memref<1x1024xf32, #tpu.memory_space<vmem>>, vector<1x1024xf32>
    %10 = vector.broadcast %9 : vector<1x1024xf32> to vector<64x1024xf32>
    %11 = arith.addf %8, %10 : vector<64x1024xf32>
    %c0_5 = arith.constant 0 : index
    %c0_6 = arith.constant 0 : index
    %12 = vector.load %arg10[%c0_5, %c0_6] : memref<64x1024xf32, #tpu.memory_space<vmem>>, vector<64x1024xf32>
    tpu.vector_store %arg10[%c0_5, %c0_6], %11 {strides = array<i32>} : memref<64x1024xf32, #tpu.memory_space<vmem>>, vector<64x1024xf32>,
    %c0_7 = arith.constant 0 : index
    %c0_8 = arith.constant 0 : index
    %13 = vector.load %arg3[%c0_7, %c0_8] : memref<256x1024xf32, #tpu.memory_space<vmem>>, vector<256x1024xf32>
    %c0_9 = arith.constant 0 : index
    %c0_10 = arith.constant 0 : index
    %14 = vector.load %arg10[%c0_9, %c0_10] : memref<64x1024xf32, #tpu.memory_space<vmem>>, vector<8x1024xf32>
    %cst_11 = arith.constant 0.000000e+00 : f32
    %15 = vector.broadcast %cst_11 : f32 to vector<8x256xf32>
    %16 = vector.extract_strided_slice %14 {offsets = [0, 0], sizes = [8, 256], strides = [1, 1]} : vector<8x1024xf32> to vector<8x256xf32>
    %17 = arith.negf %16 : vector<8x256xf32>
    %18 = math.exp %17 : vector<8x256xf32>
    %cst_12 = arith.constant 1.000000e+00 : f32
    %19 = vector.broadcast %cst_12 : f32 to vector<8x256xf32>
    %20 = arith.addf %19, %18 : vector<8x256xf32>
    %21 = arith.divf %19, %20 : vector<8x256xf32>
    %22 = vector.extract_strided_slice %14 {offsets = [0, 256], sizes = [8, 256], strides = [1, 1]} : vector<8x1024xf32> to vector<8x256xf32>
    %23 = arith.negf %22 : vector<8x256xf32>
    %24 = math.exp %23 : vector<8x256xf32>
    %cst_13 = arith.constant 1.000000e+00 : f32
    %25 = vector.broadcast %cst_13 : f32 to vector<8x256xf32>
    %26 = arith.addf %25, %24 : vector<8x256xf32>
    %27 = arith.divf %25, %26 : vector<8x256xf32>
    %28 = vector.extract_strided_slice %14 {offsets = [0, 512], sizes = [8, 256], strides = [1, 1]} : vector<8x1024xf32> to vector<8x256xf32>
    %29 = math.tanh %28 : vector<8x256xf32>
    %30 = vector.extract_strided_slice %14 {offsets = [0, 768], sizes = [8, 256], strides = [1, 1]} : vector<8x1024xf32> to vector<8x256xf32>
    %31 = arith.negf %30 : vector<8x256xf32>
    %32 = math.exp %31 : vector<8x256xf32>
    %cst_14 = arith.constant 1.000000e+00 : f32
    %33 = vector.broadcast %cst_14 : f32 to vector<8x256xf32>
    %34 = arith.addf %33, %32 : vector<8x256xf32>
    %35 = arith.divf %33, %34 : vector<8x256xf32>
    %36 = arith.mulf %27, %15 : vector<8x256xf32>
    %37 = arith.mulf %21, %29 : vector<8x256xf32>
    %38 = arith.addf %36, %37 : vector<8x256xf32>
    %39 = math.tanh %38 : vector<8x256xf32>
    %40 = arith.mulf %35, %39 : vector<8x256xf32>
    %c0_i32_15 = arith.constant 0 : i32
    %41 = tpu.memref_slice %arg14[%c0_i32_15] : memref<3x!tpu.dma_semaphore, #tpu.memory_space<semaphore_mem>> -> memref<1x!tpu.dma_semaphore, #tpu.memory_space<semaphore_mem>>
    %42 = tpu.memref_squeeze %41 : memref<1x!tpu.dma_semaphore, #tpu.memory_space<semaphore_mem>> -> memref<!tpu.dma_semaphore, #tpu.memory_space<semaphore_mem>>
    tpu.wait_dma2 semaphore(%42 : memref<!tpu.dma_semaphore, #tpu.memory_space<semaphore_mem>>) src(%arg6 : memref<256x1024xf32, #tpu.memory_space<any>>) dst(%arg11 : memref<256x1024xf32, #tpu.memory_space<vmem>>)
    %c0_16 = arith.constant 0 : index
    %c0_17 = arith.constant 0 : index
    %43 = vector.load %arg11[%c0_16, %c0_17] : memref<256x1024xf32, #tpu.memory_space<vmem>>, vector<256x1024xf32>
    %c0_18 = arith.constant 0 : index
    %c0_19 = arith.constant 0 : index
    %44 = vector.load %arg4[%c0_18, %c0_19] : memref<1x1024xf32, #tpu.memory_space<vmem>>, vector<1x1024xf32>
    %cst_20 = arith.constant 0.000000e+00 : f32
    %45 = vector.broadcast %cst_20 : f32 to vector<8x256xf32>
    %cst_21 = arith.constant dense<0.000000e+00> : vector<8x1024xf32>
    %46 = tpu.matmul %40, %43, %cst_21 {dimension_numbers = #tpu.dot_dimension_numbers<[1], [0], [0], [1], [0, 0, 1, 1], [], []>} : vector<8x256xf32>, vector<256x1024xf32>, vector<8x1024xf32> -> vector<8x1024xf32>
    %47 = vector.broadcast %44 : vector<1x1024xf32> to vector<8x1024xf32>
    %48 = arith.addf %46, %47 : vector<8x1024xf32>
    %c8 = arith.constant 8 : index
    %c0_22 = arith.constant 0 : index
    %49 = vector.load %arg10[%c8, %c0_22] : memref<64x1024xf32, #tpu.memory_space<vmem>>, vector<8x1024xf32>
    %cst_23 = arith.constant dense<0.000000e+00> : vector<8x1024xf32>
    %50 = tpu.matmul %40, %13, %cst_23 {dimension_numbers = #tpu.dot_dimension_numbers<[1], [0], [0], [1], [0, 0, 1, 1], [], []>} : vector<8x256xf32>, vector<256x1024xf32>, vector<8x1024xf32> -> vector<8x1024xf32>
    %51 = arith.addf %49, %50 : vector<8x1024xf32>
    %52 = vector.extract_strided_slice %51 {offsets = [0, 0], sizes = [8, 256], strides = [1, 1]} : vector<8x1024xf32> to vector<8x256xf32>
    %53 = arith.negf %52 : vector<8x256xf32>
    %54 = math.exp %53 : vector<8x256xf32>
    %cst_24 = arith.constant 1.000000e+00 : f32
    %55 = vector.broadcast %cst_24 : f32 to vector<8x256xf32>
    %56 = arith.addf %55, %54 : vector<8x256xf32>
    %57 = arith.divf %55, %56 : vector<8x256xf32>
    %58 = vector.extract_strided_slice %51 {offsets = [0, 256], sizes = [8, 256], strides = [1, 1]} : vector<8x1024xf32> to vector<8x256xf32>
    %59 = arith.negf %58 : vector<8x256xf32>
    %60 = math.exp %59 : vector<8x256xf32>
    %cst_25 = arith.constant 1.000000e+00 : f32
    %61 = vector.broadcast %cst_25 : f32 to vector<8x256xf32>
    %62 = arith.addf %61, %60 : vector<8x256xf32>
    %63 = arith.divf %61, %62 : vector<8x256xf32>
    %64 = vector.extract_strided_slice %51 {offsets = [0, 512], sizes = [8, 256], strides = [1, 1]} : vector<8x1024xf32> to vector<8x256xf32>
    %65 = math.tanh %64 : vector<8x256xf32>
    %66 = vector.extract_strided_slice %51 {offsets = [0, 768], sizes = [8, 256], strides = [1, 1]} : vector<8x1024xf32> to vector<8x256xf32>
    %67 = arith.negf %66 : vector<8x256xf32>
    %68 = math.exp %67 : vector<8x256xf32>
    %cst_26 = arith.constant 1.000000e+00 : f32
    %69 = vector.broadcast %cst_26 : f32 to vector<8x256xf32>
    %70 = arith.addf %69, %68 : vector<8x256xf32>
    %71 = arith.divf %69, %70 : vector<8x256xf32>
    %72 = arith.mulf %63, %38 : vector<8x256xf32>
    %73 = arith.mulf %57, %65 : vector<8x256xf32>
    %74 = arith.addf %72, %73 : vector<8x256xf32>
    %75 = math.tanh %74 : vector<8x256xf32>
    %76 = arith.mulf %71, %75 : vector<8x256xf32>
    %77 = vector.extract_strided_slice %48 {offsets = [0, 0], sizes = [8, 256], strides = [1, 1]} : vector<8x1024xf32> to vector<8x256xf32>
    %78 = arith.negf %77 : vector<8x256xf32>
    %79 = math.exp %78 : vector<8x256xf32>
    %cst_27 = arith.constant 1.000000e+00 : f32
    %80 = vector.broadcast %cst_27 : f32 to vector<8x256xf32>
    %81 = arith.addf %80, %79 : vector<8x256xf32>
    %82 = arith.divf %80, %81 : vector<8x256xf32>
    %83 = vector.extract_strided_slice %48 {offsets = [0, 256], sizes = [8, 256], strides = [1, 1]} : vector<8x1024xf32> to vector<8x256xf32>
    %84 = arith.negf %83 : vector<8x256xf32>
    %85 = math.exp %84 : vector<8x256xf32>
    %cst_28 = arith.constant 1.000000e+00 : f32
    %86 = vector.broadcast %cst_28 : f32 to vector<8x256xf32>
    %87 = arith.addf %86, %85 : vector<8x256xf32>
    %88 = arith.divf %86, %87 : vector<8x256xf32>
    %89 = vector.extract_strided_slice %48 {offsets = [0, 512], sizes = [8, 256], strides = [1, 1]} : vector<8x1024xf32> to vector<8x256xf32>
    %90 = math.tanh %89 : vector<8x256xf32>
    %91 = vector.extract_strided_slice %48 {offsets = [0, 768], sizes = [8, 256], strides = [1, 1]} : vector<8x1024xf32> to vector<8x256xf32>
    %92 = arith.negf %91 : vector<8x256xf32>
    %93 = math.exp %92 : vector<8x256xf32>
    %cst_29 = arith.constant 1.000000e+00 : f32
    %94 = vector.broadcast %cst_29 : f32 to vector<8x256xf32>
    %95 = arith.addf %94, %93 : vector<8x256xf32>
    %96 = arith.divf %94, %95 : vector<8x256xf32>
    %97 = arith.mulf %88, %45 : vector<8x256xf32>
    %98 = arith.mulf %82, %90 : vector<8x256xf32>
    %99 = arith.addf %97, %98 : vector<8x256xf32>
    %100 = math.tanh %99 : vector<8x256xf32>
    %101 = arith.mulf %96, %100 : vector<8x256xf32>
    %c1_i32_30 = arith.constant 1 : i32
    %102 = tpu.memref_slice %arg14[%c1_i32_30] : memref<3x!tpu.dma_semaphore, #tpu.memory_space<semaphore_mem>> -> memref<1x!tpu.dma_semaphore, #tpu.memory_space<semaphore_mem>>
    %103 = tpu.memref_squeeze %102 : memref<1x!tpu.dma_semaphore, #tpu.memory_space<semaphore_mem>> -> memref<!tpu.dma_semaphore, #tpu.memory_space<semaphore_mem>>
    tpu.wait_dma2 semaphore(%103 : memref<!tpu.dma_semaphore, #tpu.memory_space<semaphore_mem>>) src(%arg7 : memref<256x1024xf32, #tpu.memory_space<any>>) dst(%arg12 : memref<256x1024xf32, #tpu.memory_space<vmem>>)
    %c0_31 = arith.constant 0 : index
    %c0_32 = arith.constant 0 : index
    %104 = vector.load %arg12[%c0_31, %c0_32] : memref<256x1024xf32, #tpu.memory_space<vmem>>, vector<256x1024xf32>
    %cst_33 = arith.constant dense<0.000000e+00> : vector<8x1024xf32>
    %105 = tpu.matmul %76, %43, %cst_33 {dimension_numbers = #tpu.dot_dimension_numbers<[1], [0], [0], [1], [0, 0, 1, 1], [], []>} : vector<8x256xf32>, vector<256x1024xf32>, vector<8x1024xf32> -> vector<8x1024xf32>
    %106 = vector.broadcast %44 : vector<1x1024xf32> to vector<8x1024xf32>
    %107 = arith.addf %105, %106 : vector<8x1024xf32>
    %cst_34 = arith.constant dense<0.000000e+00> : vector<8x1024xf32>
    %108 = tpu.matmul %101, %104, %cst_34 {dimension_numbers = #tpu.dot_dimension_numbers<[1], [0], [0], [1], [0, 0, 1, 1], [], []>} : vector<8x256xf32>, vector<256x1024xf32>, vector<8x1024xf32> -> vector<8x1024xf32>
    %109 = arith.addf %107, %108 : vector<8x1024xf32>
    %c16 = arith.constant 16 : index
    %c0_35 = arith.constant 0 : index
    %110 = vector.load %arg10[%c16, %c0_35] : memref<64x1024xf32, #tpu.memory_space<vmem>>, vector<8x1024xf32>
    %cst_36 = arith.constant dense<0.000000e+00> : vector<8x1024xf32>
    %111 = tpu.matmul %76, %13, %cst_36 {dimension_numbers = #tpu.dot_dimension_numbers<[1], [0], [0], [1], [0, 0, 1, 1], [], []>} : vector<8x256xf32>, vector<256x1024xf32>, vector<8x1024xf32> -> vector<8x1024xf32>
    %112 = arith.addf %110, %111 : vector<8x1024xf32>
    %113 = vector.extract_strided_slice %112 {offsets = [0, 0], sizes = [8, 256], strides = [1, 1]} : vector<8x1024xf32> to vector<8x256xf32>
    %114 = arith.negf %113 : vector<8x256xf32>
    %115 = math.exp %114 : vector<8x256xf32>
    %cst_37 = arith.constant 1.000000e+00 : f32
    %116 = vector.broadcast %cst_37 : f32 to vector<8x256xf32>
    %117 = arith.addf %116, %115 : vector<8x256xf32>
    %118 = arith.divf %116, %117 : vector<8x256xf32>
    %119 = vector.extract_strided_slice %112 {offsets = [0, 256], sizes = [8, 256], strides = [1, 1]} : vector<8x1024xf32> to vector<8x256xf32>
    %120 = arith.negf %119 : vector<8x256xf32>
    %121 = math.exp %120 : vector<8x256xf32>
    %cst_38 = arith.constant 1.000000e+00 : f32
    %122 = vector.broadcast %cst_38 : f32 to vector<8x256xf32>
    %123 = arith.addf %122, %121 : vector<8x256xf32>
    %124 = arith.divf %122, %123 : vector<8x256xf32>
    %125 = vector.extract_strided_slice %112 {offsets = [0, 512], sizes = [8, 256], strides = [1, 1]} : vector<8x1024xf32> to vector<8x256xf32>
    %126 = math.tanh %125 : vector<8x256xf32>
    %127 = vector.extract_strided_slice %112 {offsets = [0, 768], sizes = [8, 256], strides = [1, 1]} : vector<8x1024xf32> to vector<8x256xf32>
    %128 = arith.negf %127 : vector<8x256xf32>
    %129 = math.exp %128 : vector<8x256xf32>
    %cst_39 = arith.constant 1.000000e+00 : f32
    %130 = vector.broadcast %cst_39 : f32 to vector<8x256xf32>
    %131 = arith.addf %130, %129 : vector<8x256xf32>
    %132 = arith.divf %130, %131 : vector<8x256xf32>
    %133 = arith.mulf %124, %74 : vector<8x256xf32>
    %134 = arith.mulf %118, %126 : vector<8x256xf32>
    %135 = arith.addf %133, %134 : vector<8x256xf32>
    %136 = math.tanh %135 : vector<8x256xf32>
    %137 = arith.mulf %132, %136 : vector<8x256xf32>
    %138 = vector.extract_strided_slice %109 {offsets = [0, 0], sizes = [8, 256], strides = [1, 1]} : vector<8x1024xf32> to vector<8x256xf32>
    %139 = arith.negf %138 : vector<8x256xf32>
    %140 = math.exp %139 : vector<8x256xf32>
    %cst_40 = arith.constant 1.000000e+00 : f32
    %141 = vector.broadcast %cst_40 : f32 to vector<8x256xf32>
    %142 = arith.addf %141, %140 : vector<8x256xf32>
    %143 = arith.divf %141, %142 : vector<8x256xf32>
    %144 = vector.extract_strided_slice %109 {offsets = [0, 256], sizes = [8, 256], strides = [1, 1]} : vector<8x1024xf32> to vector<8x256xf32>
    %145 = arith.negf %144 : vector<8x256xf32>
    %146 = math.exp %145 : vector<8x256xf32>
    %cst_41 = arith.constant 1.000000e+00 : f32
    %147 = vector.broadcast %cst_41 : f32 to vector<8x256xf32>
    %148 = arith.addf %147, %146 : vector<8x256xf32>
    %149 = arith.divf %147, %148 : vector<8x256xf32>
    %150 = vector.extract_strided_slice %109 {offsets = [0, 512], sizes = [8, 256], strides = [1, 1]} : vector<8x1024xf32> to vector<8x256xf32>
    %151 = math.tanh %150 : vector<8x256xf32>
    %152 = vector.extract_strided_slice %109 {offsets = [0, 768], sizes = [8, 256], strides = [1, 1]} : vector<8x1024xf32> to vector<8x256xf32>
    %153 = arith.negf %152 : vector<8x256xf32>
    %154 = math.exp %153 : vector<8x256xf32>
    %cst_42 = arith.constant 1.000000e+00 : f32
    %155 = vector.broadcast %cst_42 : f32 to vector<8x256xf32>
    %156 = arith.addf %155, %154 : vector<8x256xf32>
    %157 = arith.divf %155, %156 : vector<8x256xf32>
    %158 = arith.mulf %149, %99 : vector<8x256xf32>
    %159 = arith.mulf %143, %151 : vector<8x256xf32>
    %160 = arith.addf %158, %159 : vector<8x256xf32>
    %161 = math.tanh %160 : vector<8x256xf32>
    %162 = arith.mulf %157, %161 : vector<8x256xf32>
    %cst_43 = arith.constant dense<0.000000e+00> : vector<8x1024xf32>
    %163 = tpu.matmul %137, %43, %cst_43 {dimension_numbers = #tpu.dot_dimension_numbers<[1], [0], [0], [1], [0, 0, 1, 1], [], []>} : vector<8x256xf32>, vector<256x1024xf32>, vector<8x1024xf32> -> vector<8x1024xf32>
    %164 = vector.broadcast %44 : vector<1x1024xf32> to vector<8x1024xf32>
    %165 = arith.addf %163, %164 : vector<8x1024xf32>
    %cst_44 = arith.constant dense<0.000000e+00> : vector<8x1024xf32>
    %166 = tpu.matmul %162, %104, %cst_44 {dimension_numbers = #tpu.dot_dimension_numbers<[1], [0], [0], [1], [0, 0, 1, 1], [], []>} : vector<8x256xf32>, vector<256x1024xf32>, vector<8x1024xf32> -> vector<8x1024xf32>
    %167 = arith.addf %165, %166 : vector<8x1024xf32>
    %c24 = arith.constant 24 : index
    %c0_45 = arith.constant 0 : index
    %168 = vector.load %arg10[%c24, %c0_45] : memref<64x1024xf32, #tpu.memory_space<vmem>>, vector<8x1024xf32>
    %cst_46 = arith.constant dense<0.000000e+00> : vector<8x1024xf32>
    %169 = tpu.matmul %137, %13, %cst_46 {dimension_numbers = #tpu.dot_dimension_numbers<[1], [0], [0], [1], [0, 0, 1, 1], [], []>} : vector<8x256xf32>, vector<256x1024xf32>, vector<8x1024xf32> -> vector<8x1024xf32>
    %170 = arith.addf %168, %169 : vector<8x1024xf32>
    %171 = vector.extract_strided_slice %170 {offsets = [0, 0], sizes = [8, 256], strides = [1, 1]} : vector<8x1024xf32> to vector<8x256xf32>
    %172 = arith.negf %171 : vector<8x256xf32>
    %173 = math.exp %172 : vector<8x256xf32>
    %cst_47 = arith.constant 1.000000e+00 : f32
    %174 = vector.broadcast %cst_47 : f32 to vector<8x256xf32>
    %175 = arith.addf %174, %173 : vector<8x256xf32>
    %176 = arith.divf %174, %175 : vector<8x256xf32>
    %177 = vector.extract_strided_slice %170 {offsets = [0, 256], sizes = [8, 256], strides = [1, 1]} : vector<8x1024xf32> to vector<8x256xf32>
    %178 = arith.negf %177 : vector<8x256xf32>
    %179 = math.exp %178 : vector<8x256xf32>
    %cst_48 = arith.constant 1.000000e+00 : f32
    %180 = vector.broadcast %cst_48 : f32 to vector<8x256xf32>
    %181 = arith.addf %180, %179 : vector<8x256xf32>
    %182 = arith.divf %180, %181 : vector<8x256xf32>
    %183 = vector.extract_strided_slice %170 {offsets = [0, 512], sizes = [8, 256], strides = [1, 1]} : vector<8x1024xf32> to vector<8x256xf32>
    %184 = math.tanh %183 : vector<8x256xf32>
    %185 = vector.extract_strided_slice %170 {offsets = [0, 768], sizes = [8, 256], strides = [1, 1]} : vector<8x1024xf32> to vector<8x256xf32>
    %186 = arith.negf %185 : vector<8x256xf32>
    %187 = math.exp %186 : vector<8x256xf32>
    %cst_49 = arith.constant 1.000000e+00 : f32
    %188 = vector.broadcast %cst_49 : f32 to vector<8x256xf32>
    %189 = arith.addf %188, %187 : vector<8x256xf32>
    %190 = arith.divf %188, %189 : vector<8x256xf32>
    %191 = arith.mulf %182, %135 : vector<8x256xf32>
    %192 = arith.mulf %176, %184 : vector<8x256xf32>
    %193 = arith.addf %191, %192 : vector<8x256xf32>
    %194 = math.tanh %193 : vector<8x256xf32>
    %195 = arith.mulf %190, %194 : vector<8x256xf32>
    %196 = vector.extract_strided_slice %167 {offsets = [0, 0], sizes = [8, 256], strides = [1, 1]} : vector<8x1024xf32> to vector<8x256xf32>
    %197 = arith.negf %196 : vector<8x256xf32>
    %198 = math.exp %197 : vector<8x256xf32>
    %cst_50 = arith.constant 1.000000e+00 : f32
    %199 = vector.broadcast %cst_50 : f32 to vector<8x256xf32>
    %200 = arith.addf %199, %198 : vector<8x256xf32>
    %201 = arith.divf %199, %200 : vector<8x256xf32>
    %202 = vector.extract_strided_slice %167 {offsets = [0, 256], sizes = [8, 256], strides = [1, 1]} : vector<8x1024xf32> to vector<8x256xf32>
    %203 = arith.negf %202 : vector<8x256xf32>
    %204 = math.exp %203 : vector<8x256xf32>
    %cst_51 = arith.constant 1.000000e+00 : f32
    %205 = vector.broadcast %cst_51 : f32 to vector<8x256xf32>
    %206 = arith.addf %205, %204 : vector<8x256xf32>
    %207 = arith.divf %205, %206 : vector<8x256xf32>
    %208 = vector.extract_strided_slice %167 {offsets = [0, 512], sizes = [8, 256], strides = [1, 1]} : vector<8x1024xf32> to vector<8x256xf32>
    %209 = math.tanh %208 : vector<8x256xf32>
    %210 = vector.extract_strided_slice %167 {offsets = [0, 768], sizes = [8, 256], strides = [1, 1]} : vector<8x1024xf32> to vector<8x256xf32>
    %211 = arith.negf %210 : vector<8x256xf32>
    %212 = math.exp %211 : vector<8x256xf32>
    %cst_52 = arith.constant 1.000000e+00 : f32
    %213 = vector.broadcast %cst_52 : f32 to vector<8x256xf32>
    %214 = arith.addf %213, %212 : vector<8x256xf32>
    %215 = arith.divf %213, %214 : vector<8x256xf32>
    %216 = arith.mulf %207, %160 : vector<8x256xf32>
    %217 = arith.mulf %201, %209 : vector<8x256xf32>
    %218 = arith.addf %216, %217 : vector<8x256xf32>
    %219 = math.tanh %218 : vector<8x256xf32>
    %220 = arith.mulf %215, %219 : vector<8x256xf32>
    %cst_53 = arith.constant dense<0.000000e+00> : vector<8x1024xf32>
    %221 = tpu.matmul %195, %43, %cst_53 {dimension_numbers = #tpu.dot_dimension_numbers<[1], [0], [0], [1], [0, 0, 1, 1], [], []>} : vector<8x256xf32>, vector<256x1024xf32>, vector<8x1024xf32> -> vector<8x1024xf32>
    %222 = vector.broadcast %44 : vector<1x1024xf32> to vector<8x1024xf32>
    %223 = arith.addf %221, %222 : vector<8x1024xf32>
    %cst_54 = arith.constant dense<0.000000e+00> : vector<8x1024xf32>
    %224 = tpu.matmul %220, %104, %cst_54 {dimension_numbers = #tpu.dot_dimension_numbers<[1], [0], [0], [1], [0, 0, 1, 1], [], []>} : vector<8x256xf32>, vector<256x1024xf32>, vector<8x1024xf32> -> vector<8x1024xf32>
    %225 = arith.addf %223, %224 : vector<8x1024xf32>
    %c32 = arith.constant 32 : index
    %c0_55 = arith.constant 0 : index
    %226 = vector.load %arg10[%c32, %c0_55] : memref<64x1024xf32, #tpu.memory_space<vmem>>, vector<8x1024xf32>
    %cst_56 = arith.constant dense<0.000000e+00> : vector<8x1024xf32>
    %227 = tpu.matmul %195, %13, %cst_56 {dimension_numbers = #tpu.dot_dimension_numbers<[1], [0], [0], [1], [0, 0, 1, 1], [], []>} : vector<8x256xf32>, vector<256x1024xf32>, vector<8x1024xf32> -> vector<8x1024xf32>
    %228 = arith.addf %226, %227 : vector<8x1024xf32>
    %229 = vector.extract_strided_slice %228 {offsets = [0, 0], sizes = [8, 256], strides = [1, 1]} : vector<8x1024xf32> to vector<8x256xf32>
    %230 = arith.negf %229 : vector<8x256xf32>
    %231 = math.exp %230 : vector<8x256xf32>
    %cst_57 = arith.constant 1.000000e+00 : f32
    %232 = vector.broadcast %cst_57 : f32 to vector<8x256xf32>
    %233 = arith.addf %232, %231 : vector<8x256xf32>
    %234 = arith.divf %232, %233 : vector<8x256xf32>
    %235 = vector.extract_strided_slice %228 {offsets = [0, 256], sizes = [8, 256], strides = [1, 1]} : vector<8x1024xf32> to vector<8x256xf32>
    %236 = arith.negf %235 : vector<8x256xf32>
    %237 = math.exp %236 : vector<8x256xf32>
    %cst_58 = arith.constant 1.000000e+00 : f32
    %238 = vector.broadcast %cst_58 : f32 to vector<8x256xf32>
    %239 = arith.addf %238, %237 : vector<8x256xf32>
    %240 = arith.divf %238, %239 : vector<8x256xf32>
    %241 = vector.extract_strided_slice %228 {offsets = [0, 512], sizes = [8, 256], strides = [1, 1]} : vector<8x1024xf32> to vector<8x256xf32>
    %242 = math.tanh %241 : vector<8x256xf32>
    %243 = vector.extract_strided_slice %228 {offsets = [0, 768], sizes = [8, 256], strides = [1, 1]} : vector<8x1024xf32> to vector<8x256xf32>
    %244 = arith.negf %243 : vector<8x256xf32>
    %245 = math.exp %244 : vector<8x256xf32>
    %cst_59 = arith.constant 1.000000e+00 : f32
    %246 = vector.broadcast %cst_59 : f32 to vector<8x256xf32>
    %247 = arith.addf %246, %245 : vector<8x256xf32>
    %248 = arith.divf %246, %247 : vector<8x256xf32>
    %249 = arith.mulf %240, %193 : vector<8x256xf32>
    %250 = arith.mulf %234, %242 : vector<8x256xf32>
    %251 = arith.addf %249, %250 : vector<8x256xf32>
    %252 = math.tanh %251 : vector<8x256xf32>
    %253 = arith.mulf %248, %252 : vector<8x256xf32>
    %254 = vector.extract_strided_slice %225 {offsets = [0, 0], sizes = [8, 256], strides = [1, 1]} : vector<8x1024xf32> to vector<8x256xf32>
    %255 = arith.negf %254 : vector<8x256xf32>
    %256 = math.exp %255 : vector<8x256xf32>
    %cst_60 = arith.constant 1.000000e+00 : f32
    %257 = vector.broadcast %cst_60 : f32 to vector<8x256xf32>
    %258 = arith.addf %257, %256 : vector<8x256xf32>
    %259 = arith.divf %257, %258 : vector<8x256xf32>
    %260 = vector.extract_strided_slice %225 {offsets = [0, 256], sizes = [8, 256], strides = [1, 1]} : vector<8x1024xf32> to vector<8x256xf32>
    %261 = arith.negf %260 : vector<8x256xf32>
    %262 = math.exp %261 : vector<8x256xf32>
    %cst_61 = arith.constant 1.000000e+00 : f32
    %263 = vector.broadcast %cst_61 : f32 to vector<8x256xf32>
    %264 = arith.addf %263, %262 : vector<8x256xf32>
    %265 = arith.divf %263, %264 : vector<8x256xf32>
    %266 = vector.extract_strided_slice %225 {offsets = [0, 512], sizes = [8, 256], strides = [1, 1]} : vector<8x1024xf32> to vector<8x256xf32>
    %267 = math.tanh %266 : vector<8x256xf32>
    %268 = vector.extract_strided_slice %225 {offsets = [0, 768], sizes = [8, 256], strides = [1, 1]} : vector<8x1024xf32> to vector<8x256xf32>
    %269 = arith.negf %268 : vector<8x256xf32>
    %270 = math.exp %269 : vector<8x256xf32>
    %cst_62 = arith.constant 1.000000e+00 : f32
    %271 = vector.broadcast %cst_62 : f32 to vector<8x256xf32>
    %272 = arith.addf %271, %270 : vector<8x256xf32>
    %273 = arith.divf %271, %272 : vector<8x256xf32>
    %274 = arith.mulf %265, %218 : vector<8x256xf32>
    %275 = arith.mulf %259, %267 : vector<8x256xf32>
    %276 = arith.addf %274, %275 : vector<8x256xf32>
    %277 = math.tanh %276 : vector<8x256xf32>
    %278 = arith.mulf %273, %277 : vector<8x256xf32>
    %cst_63 = arith.constant dense<0.000000e+00> : vector<8x1024xf32>
    %279 = tpu.matmul %253, %43, %cst_63 {dimension_numbers = #tpu.dot_dimension_numbers<[1], [0], [0], [1], [0, 0, 1, 1], [], []>} : vector<8x256xf32>, vector<256x1024xf32>, vector<8x1024xf32> -> vector<8x1024xf32>
    %280 = vector.broadcast %44 : vector<1x1024xf32> to vector<8x1024xf32>
    %281 = arith.addf %279, %280 : vector<8x1024xf32>
    %cst_64 = arith.constant dense<0.000000e+00> : vector<8x1024xf32>
    %282 = tpu.matmul %278, %104, %cst_64 {dimension_numbers = #tpu.dot_dimension_numbers<[1], [0], [0], [1], [0, 0, 1, 1], [], []>} : vector<8x256xf32>, vector<256x1024xf32>, vector<8x1024xf32> -> vector<8x1024xf32>
    %283 = arith.addf %281, %282 : vector<8x1024xf32>
    %c40 = arith.constant 40 : index
    %c0_65 = arith.constant 0 : index
    %284 = vector.load %arg10[%c40, %c0_65] : memref<64x1024xf32, #tpu.memory_space<vmem>>, vector<8x1024xf32>
    %cst_66 = arith.constant dense<0.000000e+00> : vector<8x1024xf32>
    %285 = tpu.matmul %253, %13, %cst_66 {dimension_numbers = #tpu.dot_dimension_numbers<[1], [0], [0], [1], [0, 0, 1, 1], [], []>} : vector<8x256xf32>, vector<256x1024xf32>, vector<8x1024xf32> -> vector<8x1024xf32>
    %286 = arith.addf %284, %285 : vector<8x1024xf32>
    %287 = vector.extract_strided_slice %286 {offsets = [0, 0], sizes = [8, 256], strides = [1, 1]} : vector<8x1024xf32> to vector<8x256xf32>
    %288 = arith.negf %287 : vector<8x256xf32>
    %289 = math.exp %288 : vector<8x256xf32>
    %cst_67 = arith.constant 1.000000e+00 : f32
    %290 = vector.broadcast %cst_67 : f32 to vector<8x256xf32>
    %291 = arith.addf %290, %289 : vector<8x256xf32>
    %292 = arith.divf %290, %291 : vector<8x256xf32>
    %293 = vector.extract_strided_slice %286 {offsets = [0, 256], sizes = [8, 256], strides = [1, 1]} : vector<8x1024xf32> to vector<8x256xf32>
    %294 = arith.negf %293 : vector<8x256xf32>
    %295 = math.exp %294 : vector<8x256xf32>
    %cst_68 = arith.constant 1.000000e+00 : f32
    %296 = vector.broadcast %cst_68 : f32 to vector<8x256xf32>
    %297 = arith.addf %296, %295 : vector<8x256xf32>
    %298 = arith.divf %296, %297 : vector<8x256xf32>
    %299 = vector.extract_strided_slice %286 {offsets = [0, 512], sizes = [8, 256], strides = [1, 1]} : vector<8x1024xf32> to vector<8x256xf32>
    %300 = math.tanh %299 : vector<8x256xf32>
    %301 = vector.extract_strided_slice %286 {offsets = [0, 768], sizes = [8, 256], strides = [1, 1]} : vector<8x1024xf32> to vector<8x256xf32>
    %302 = arith.negf %301 : vector<8x256xf32>
    %303 = math.exp %302 : vector<8x256xf32>
    %cst_69 = arith.constant 1.000000e+00 : f32
    %304 = vector.broadcast %cst_69 : f32 to vector<8x256xf32>
    %305 = arith.addf %304, %303 : vector<8x256xf32>
    %306 = arith.divf %304, %305 : vector<8x256xf32>
    %307 = arith.mulf %298, %251 : vector<8x256xf32>
    %308 = arith.mulf %292, %300 : vector<8x256xf32>
    %309 = arith.addf %307, %308 : vector<8x256xf32>
    %310 = math.tanh %309 : vector<8x256xf32>
    %311 = arith.mulf %306, %310 : vector<8x256xf32>
    %312 = vector.extract_strided_slice %283 {offsets = [0, 0], sizes = [8, 256], strides = [1, 1]} : vector<8x1024xf32> to vector<8x256xf32>
    %313 = arith.negf %312 : vector<8x256xf32>
    %314 = math.exp %313 : vector<8x256xf32>
    %cst_70 = arith.constant 1.000000e+00 : f32
    %315 = vector.broadcast %cst_70 : f32 to vector<8x256xf32>
    %316 = arith.addf %315, %314 : vector<8x256xf32>
    %317 = arith.divf %315, %316 : vector<8x256xf32>
    %318 = vector.extract_strided_slice %283 {offsets = [0, 256], sizes = [8, 256], strides = [1, 1]} : vector<8x1024xf32> to vector<8x256xf32>
    %319 = arith.negf %318 : vector<8x256xf32>
    %320 = math.exp %319 : vector<8x256xf32>
    %cst_71 = arith.constant 1.000000e+00 : f32
    %321 = vector.broadcast %cst_71 : f32 to vector<8x256xf32>
    %322 = arith.addf %321, %320 : vector<8x256xf32>
    %323 = arith.divf %321, %322 : vector<8x256xf32>
    %324 = vector.extract_strided_slice %283 {offsets = [0, 512], sizes = [8, 256], strides = [1, 1]} : vector<8x1024xf32> to vector<8x256xf32>
    %325 = math.tanh %324 : vector<8x256xf32>
    %326 = vector.extract_strided_slice %283 {offsets = [0, 768], sizes = [8, 256], strides = [1, 1]} : vector<8x1024xf32> to vector<8x256xf32>
    %327 = arith.negf %326 : vector<8x256xf32>
    %328 = math.exp %327 : vector<8x256xf32>
    %cst_72 = arith.constant 1.000000e+00 : f32
    %329 = vector.broadcast %cst_72 : f32 to vector<8x256xf32>
    %330 = arith.addf %329, %328 : vector<8x256xf32>
    %331 = arith.divf %329, %330 : vector<8x256xf32>
    %332 = arith.mulf %323, %276 : vector<8x256xf32>
    %333 = arith.mulf %317, %325 : vector<8x256xf32>
    %334 = arith.addf %332, %333 : vector<8x256xf32>
    %335 = math.tanh %334 : vector<8x256xf32>
    %336 = arith.mulf %331, %335 : vector<8x256xf32>
    %cst_73 = arith.constant dense<0.000000e+00> : vector<8x1024xf32>
    %337 = tpu.matmul %311, %43, %cst_73 {dimension_numbers = #tpu.dot_dimension_numbers<[1], [0], [0], [1], [0, 0, 1, 1], [], []>} : vector<8x256xf32>, vector<256x1024xf32>, vector<8x1024xf32> -> vector<8x1024xf32>
    %338 = vector.broadcast %44 : vector<1x1024xf32> to vector<8x1024xf32>
    %339 = arith.addf %337, %338 : vector<8x1024xf32>
    %cst_74 = arith.constant dense<0.000000e+00> : vector<8x1024xf32>
    %340 = tpu.matmul %336, %104, %cst_74 {dimension_numbers = #tpu.dot_dimension_numbers<[1], [0], [0], [1], [0, 0, 1, 1], [], []>} : vector<8x256xf32>, vector<256x1024xf32>, vector<8x1024xf32> -> vector<8x1024xf32>
    %341 = arith.addf %339, %340 : vector<8x1024xf32>
    %c48 = arith.constant 48 : index
    %c0_75 = arith.constant 0 : index
    %342 = vector.load %arg10[%c48, %c0_75] : memref<64x1024xf32, #tpu.memory_space<vmem>>, vector<8x1024xf32>
    %cst_76 = arith.constant dense<0.000000e+00> : vector<8x1024xf32>
    %343 = tpu.matmul %311, %13, %cst_76 {dimension_numbers = #tpu.dot_dimension_numbers<[1], [0], [0], [1], [0, 0, 1, 1], [], []>} : vector<8x256xf32>, vector<256x1024xf32>, vector<8x1024xf32> -> vector<8x1024xf32>
    %344 = arith.addf %342, %343 : vector<8x1024xf32>
    %345 = vector.extract_strided_slice %344 {offsets = [0, 0], sizes = [8, 256], strides = [1, 1]} : vector<8x1024xf32> to vector<8x256xf32>
    %346 = arith.negf %345 : vector<8x256xf32>
    %347 = math.exp %346 : vector<8x256xf32>
    %cst_77 = arith.constant 1.000000e+00 : f32
    %348 = vector.broadcast %cst_77 : f32 to vector<8x256xf32>
    %349 = arith.addf %348, %347 : vector<8x256xf32>
    %350 = arith.divf %348, %349 : vector<8x256xf32>
    %351 = vector.extract_strided_slice %344 {offsets = [0, 256], sizes = [8, 256], strides = [1, 1]} : vector<8x1024xf32> to vector<8x256xf32>
    %352 = arith.negf %351 : vector<8x256xf32>
    %353 = math.exp %352 : vector<8x256xf32>
    %cst_78 = arith.constant 1.000000e+00 : f32
    %354 = vector.broadcast %cst_78 : f32 to vector<8x256xf32>
    %355 = arith.addf %354, %353 : vector<8x256xf32>
    %356 = arith.divf %354, %355 : vector<8x256xf32>
    %357 = vector.extract_strided_slice %344 {offsets = [0, 512], sizes = [8, 256], strides = [1, 1]} : vector<8x1024xf32> to vector<8x256xf32>
    %358 = math.tanh %357 : vector<8x256xf32>
    %359 = vector.extract_strided_slice %344 {offsets = [0, 768], sizes = [8, 256], strides = [1, 1]} : vector<8x1024xf32> to vector<8x256xf32>
    %360 = arith.negf %359 : vector<8x256xf32>
    %361 = math.exp %360 : vector<8x256xf32>
    %cst_79 = arith.constant 1.000000e+00 : f32
    %362 = vector.broadcast %cst_79 : f32 to vector<8x256xf32>
    %363 = arith.addf %362, %361 : vector<8x256xf32>
    %364 = arith.divf %362, %363 : vector<8x256xf32>
    %365 = arith.mulf %356, %309 : vector<8x256xf32>
    %366 = arith.mulf %350, %358 : vector<8x256xf32>
    %367 = arith.addf %365, %366 : vector<8x256xf32>
    %368 = math.tanh %367 : vector<8x256xf32>
    %369 = arith.mulf %364, %368 : vector<8x256xf32>
    %370 = vector.extract_strided_slice %341 {offsets = [0, 0], sizes = [8, 256], strides = [1, 1]} : vector<8x1024xf32> to vector<8x256xf32>
    %371 = arith.negf %370 : vector<8x256xf32>
    %372 = math.exp %371 : vector<8x256xf32>
    %cst_80 = arith.constant 1.000000e+00 : f32
    %373 = vector.broadcast %cst_80 : f32 to vector<8x256xf32>
    %374 = arith.addf %373, %372 : vector<8x256xf32>
    %375 = arith.divf %373, %374 : vector<8x256xf32>
    %376 = vector.extract_strided_slice %341 {offsets = [0, 256], sizes = [8, 256], strides = [1, 1]} : vector<8x1024xf32> to vector<8x256xf32>
    %377 = arith.negf %376 : vector<8x256xf32>
    %378 = math.exp %377 : vector<8x256xf32>
    %cst_81 = arith.constant 1.000000e+00 : f32
    %379 = vector.broadcast %cst_81 : f32 to vector<8x256xf32>
    %380 = arith.addf %379, %378 : vector<8x256xf32>
    %381 = arith.divf %379, %380 : vector<8x256xf32>
    %382 = vector.extract_strided_slice %341 {offsets = [0, 512], sizes = [8, 256], strides = [1, 1]} : vector<8x1024xf32> to vector<8x256xf32>
    %383 = math.tanh %382 : vector<8x256xf32>
    %384 = vector.extract_strided_slice %341 {offsets = [0, 768], sizes = [8, 256], strides = [1, 1]} : vector<8x1024xf32> to vector<8x256xf32>
    %385 = arith.negf %384 : vector<8x256xf32>
    %386 = math.exp %385 : vector<8x256xf32>
    %cst_82 = arith.constant 1.000000e+00 : f32
    %387 = vector.broadcast %cst_82 : f32 to vector<8x256xf32>
    %388 = arith.addf %387, %386 : vector<8x256xf32>
    %389 = arith.divf %387, %388 : vector<8x256xf32>
    %390 = arith.mulf %381, %334 : vector<8x256xf32>
    %391 = arith.mulf %375, %383 : vector<8x256xf32>
    %392 = arith.addf %390, %391 : vector<8x256xf32>
    %393 = math.tanh %392 : vector<8x256xf32>
    %394 = arith.mulf %389, %393 : vector<8x256xf32>
    %cst_83 = arith.constant dense<0.000000e+00> : vector<8x1024xf32>
    %395 = tpu.matmul %369, %43, %cst_83 {dimension_numbers = #tpu.dot_dimension_numbers<[1], [0], [0], [1], [0, 0, 1, 1], [], []>} : vector<8x256xf32>, vector<256x1024xf32>, vector<8x1024xf32> -> vector<8x1024xf32>
    %396 = vector.broadcast %44 : vector<1x1024xf32> to vector<8x1024xf32>
    %397 = arith.addf %395, %396 : vector<8x1024xf32>
    %cst_84 = arith.constant dense<0.000000e+00> : vector<8x1024xf32>
    %398 = tpu.matmul %394, %104, %cst_84 {dimension_numbers = #tpu.dot_dimension_numbers<[1], [0], [0], [1], [0, 0, 1, 1], [], []>} : vector<8x256xf32>, vector<256x1024xf32>, vector<8x1024xf32> -> vector<8x1024xf32>
    %399 = arith.addf %397, %398 : vector<8x1024xf32>
    %c56 = arith.constant 56 : index
    %c0_85 = arith.constant 0 : index
    %400 = vector.load %arg10[%c56, %c0_85] : memref<64x1024xf32, #tpu.memory_space<vmem>>, vector<8x1024xf32>
    %cst_86 = arith.constant dense<0.000000e+00> : vector<8x1024xf32>
    %401 = tpu.matmul %369, %13, %cst_86 {dimension_numbers = #tpu.dot_dimension_numbers<[1], [0], [0], [1], [0, 0, 1, 1], [], []>} : vector<8x256xf32>, vector<256x1024xf32>, vector<8x1024xf32> -> vector<8x1024xf32>
    %402 = arith.addf %400, %401 : vector<8x1024xf32>
    %403 = vector.extract_strided_slice %402 {offsets = [0, 0], sizes = [8, 256], strides = [1, 1]} : vector<8x1024xf32> to vector<8x256xf32>
    %404 = arith.negf %403 : vector<8x256xf32>
    %405 = math.exp %404 : vector<8x256xf32>
    %cst_87 = arith.constant 1.000000e+00 : f32
    %406 = vector.broadcast %cst_87 : f32 to vector<8x256xf32>
    %407 = arith.addf %406, %405 : vector<8x256xf32>
    %408 = arith.divf %406, %407 : vector<8x256xf32>
    %409 = vector.extract_strided_slice %402 {offsets = [0, 256], sizes = [8, 256], strides = [1, 1]} : vector<8x1024xf32> to vector<8x256xf32>
    %410 = arith.negf %409 : vector<8x256xf32>
    %411 = math.exp %410 : vector<8x256xf32>
    %cst_88 = arith.constant 1.000000e+00 : f32
    %412 = vector.broadcast %cst_88 : f32 to vector<8x256xf32>
    %413 = arith.addf %412, %411 : vector<8x256xf32>
    %414 = arith.divf %412, %413 : vector<8x256xf32>
    %415 = vector.extract_strided_slice %402 {offsets = [0, 512], sizes = [8, 256], strides = [1, 1]} : vector<8x1024xf32> to vector<8x256xf32>
    %416 = math.tanh %415 : vector<8x256xf32>
    %417 = vector.extract_strided_slice %402 {offsets = [0, 768], sizes = [8, 256], strides = [1, 1]} : vector<8x1024xf32> to vector<8x256xf32>
    %418 = arith.negf %417 : vector<8x256xf32>
    %419 = math.exp %418 : vector<8x256xf32>
    %cst_89 = arith.constant 1.000000e+00 : f32
    %420 = vector.broadcast %cst_89 : f32 to vector<8x256xf32>
    %421 = arith.addf %420, %419 : vector<8x256xf32>
    %422 = arith.divf %420, %421 : vector<8x256xf32>
    %423 = arith.mulf %414, %367 : vector<8x256xf32>
    %424 = arith.mulf %408, %416 : vector<8x256xf32>
    %425 = arith.addf %423, %424 : vector<8x256xf32>
    %426 = math.tanh %425 : vector<8x256xf32>
    %427 = arith.mulf %422, %426 : vector<8x256xf32>
    %428 = vector.extract_strided_slice %399 {offsets = [0, 0], sizes = [8, 256], strides = [1, 1]} : vector<8x1024xf32> to vector<8x256xf32>
    %429 = arith.negf %428 : vector<8x256xf32>
    %430 = math.exp %429 : vector<8x256xf32>
    %cst_90 = arith.constant 1.000000e+00 : f32
    %431 = vector.broadcast %cst_90 : f32 to vector<8x256xf32>
    %432 = arith.addf %431, %430 : vector<8x256xf32>
    %433 = arith.divf %431, %432 : vector<8x256xf32>
    %434 = vector.extract_strided_slice %399 {offsets = [0, 256], sizes = [8, 256], strides = [1, 1]} : vector<8x1024xf32> to vector<8x256xf32>
    %435 = arith.negf %434 : vector<8x256xf32>
    %436 = math.exp %435 : vector<8x256xf32>
    %cst_91 = arith.constant 1.000000e+00 : f32
    %437 = vector.broadcast %cst_91 : f32 to vector<8x256xf32>
    %438 = arith.addf %437, %436 : vector<8x256xf32>
    %439 = arith.divf %437, %438 : vector<8x256xf32>
    %440 = vector.extract_strided_slice %399 {offsets = [0, 512], sizes = [8, 256], strides = [1, 1]} : vector<8x1024xf32> to vector<8x256xf32>
    %441 = math.tanh %440 : vector<8x256xf32>
    %442 = vector.extract_strided_slice %399 {offsets = [0, 768], sizes = [8, 256], strides = [1, 1]} : vector<8x1024xf32> to vector<8x256xf32>
    %443 = arith.negf %442 : vector<8x256xf32>
    %444 = math.exp %443 : vector<8x256xf32>
    %cst_92 = arith.constant 1.000000e+00 : f32
    %445 = vector.broadcast %cst_92 : f32 to vector<8x256xf32>
    %446 = arith.addf %445, %444 : vector<8x256xf32>
    %447 = arith.divf %445, %446 : vector<8x256xf32>
    %448 = arith.mulf %439, %392 : vector<8x256xf32>
    %449 = arith.mulf %433, %441 : vector<8x256xf32>
    %450 = arith.addf %448, %449 : vector<8x256xf32>
    %451 = math.tanh %450 : vector<8x256xf32>
    %452 = arith.mulf %447, %451 : vector<8x256xf32>
    %cst_93 = arith.constant dense<0.000000e+00> : vector<8x1024xf32>
    %453 = tpu.matmul %427, %43, %cst_93 {dimension_numbers = #tpu.dot_dimension_numbers<[1], [0], [0], [1], [0, 0, 1, 1], [], []>} : vector<8x256xf32>, vector<256x1024xf32>, vector<8x1024xf32> -> vector<8x1024xf32>
    %454 = vector.broadcast %44 : vector<1x1024xf32> to vector<8x1024xf32>
    %455 = arith.addf %453, %454 : vector<8x1024xf32>
    %cst_94 = arith.constant dense<0.000000e+00> : vector<8x1024xf32>
    %456 = tpu.matmul %452, %104, %cst_94 {dimension_numbers = #tpu.dot_dimension_numbers<[1], [0], [0], [1], [0, 0, 1, 1], [], []>} : vector<8x256xf32>, vector<256x1024xf32>, vector<8x1024xf32> -> vector<8x1024xf32>
    %457 = arith.addf %455, %456 : vector<8x1024xf32>
    %458 = vector.extract_strided_slice %457 {offsets = [0, 0], sizes = [8, 256], strides = [1, 1]} : vector<8x1024xf32> to vector<8x256xf32>
    %459 = arith.negf %458 : vector<8x256xf32>
    %460 = math.exp %459 : vector<8x256xf32>
    %cst_95 = arith.constant 1.000000e+00 : f32
    %461 = vector.broadcast %cst_95 : f32 to vector<8x256xf32>
    %462 = arith.addf %461, %460 : vector<8x256xf32>
    %463 = arith.divf %461, %462 : vector<8x256xf32>
    %464 = vector.extract_strided_slice %457 {offsets = [0, 256], sizes = [8, 256], strides = [1, 1]} : vector<8x1024xf32> to vector<8x256xf32>
    %465 = arith.negf %464 : vector<8x256xf32>
    %466 = math.exp %465 : vector<8x256xf32>
    %cst_96 = arith.constant 1.000000e+00 : f32
    %467 = vector.broadcast %cst_96 : f32 to vector<8x256xf32>
    %468 = arith.addf %467, %466 : vector<8x256xf32>
    %469 = arith.divf %467, %468 : vector<8x256xf32>
    %470 = vector.extract_strided_slice %457 {offsets = [0, 512], sizes = [8, 256], strides = [1, 1]} : vector<8x1024xf32> to vector<8x256xf32>
    %471 = math.tanh %470 : vector<8x256xf32>
    %472 = vector.extract_strided_slice %457 {offsets = [0, 768], sizes = [8, 256], strides = [1, 1]} : vector<8x1024xf32> to vector<8x256xf32>
    %473 = arith.negf %472 : vector<8x256xf32>
    %474 = math.exp %473 : vector<8x256xf32>
    %cst_97 = arith.constant 1.000000e+00 : f32
    %475 = vector.broadcast %cst_97 : f32 to vector<8x256xf32>
    %476 = arith.addf %475, %474 : vector<8x256xf32>
    %477 = arith.divf %475, %476 : vector<8x256xf32>
    %478 = arith.mulf %469, %450 : vector<8x256xf32>
    %479 = arith.mulf %463, %471 : vector<8x256xf32>
    %480 = arith.addf %478, %479 : vector<8x256xf32>
    %481 = math.tanh %480 : vector<8x256xf32>
    %482 = arith.mulf %477, %481 : vector<8x256xf32>
    %c2_i32_98 = arith.constant 2 : i32
    %483 = tpu.memref_slice %arg14[%c2_i32_98] : memref<3x!tpu.dma_semaphore, #tpu.memory_space<semaphore_mem>> -> memref<1x!tpu.dma_semaphore, #tpu.memory_space<semaphore_mem>>
    %484 = tpu.memref_squeeze %483 : memref<1x!tpu.dma_semaphore, #tpu.memory_space<semaphore_mem>> -> memref<!tpu.dma_semaphore, #tpu.memory_space<semaphore_mem>>
    tpu.wait_dma2 semaphore(%484 : memref<!tpu.dma_semaphore, #tpu.memory_space<semaphore_mem>>) src(%arg8 : memref<256x128xf32, #tpu.memory_space<any>>) dst(%arg13 : memref<256x128xf32, #tpu.memory_space<vmem>>)
    %c0_99 = arith.constant 0 : index
    %c0_100 = arith.constant 0 : index
    %485 = vector.load %arg13[%c0_99, %c0_100] : memref<256x128xf32, #tpu.memory_space<vmem>>, vector<256x128xf32>
    %cst_101 = arith.constant dense<0.000000e+00> : vector<8x128xf32>
    %486 = tpu.matmul %482, %485, %cst_101 {dimension_numbers = #tpu.dot_dimension_numbers<[1], [0], [0], [1], [0, 0, 1, 1], [], []>} : vector<8x256xf32>, vector<256x128xf32>, vector<8x128xf32> -> vector<8x128xf32>
    %c0_102 = arith.constant 0 : index
    %c0_103 = arith.constant 0 : index
    %487 = vector.load %arg5[%c0_102, %c0_103] : memref<1x128xf32, #tpu.memory_space<vmem>>, vector<1x128xf32>
    %488 = vector.broadcast %487 : vector<1x128xf32> to vector<8x128xf32>
    %489 = arith.addf %486, %488 : vector<8x128xf32>
    %490 = arith.negf %489 : vector<8x128xf32>
    %491 = math.exp %490 : vector<8x128xf32>
    %cst_104 = arith.constant 1.000000e+00 : f32
    %492 = vector.broadcast %cst_104 : f32 to vector<8x128xf32>
    %493 = arith.addf %492, %491 : vector<8x128xf32>
    %494 = arith.divf %492, %493 : vector<8x128xf32>
    %c0_105 = arith.constant 0 : index
    %c0_106 = arith.constant 0 : index
    %495 = vector.load %arg9[%c0_105, %c0_106] : memref<8x128xf32, #tpu.memory_space<vmem>>, vector<8x128xf32>
    tpu.vector_store %arg9[%c0_105, %c0_106], %494 {strides = array<i32>} : memref<8x128xf32, #tpu.memory_space<vmem>>, vector<8x128xf32>,
    return
  }
}

</mosaic_0001>

<llo_original>
// kernel: mgl4mep_sr_forward.1
$region0: #{mgl4mep_sr_forward.1}
  #allocation0 [shape = 'u32[]', space=smem, size = 0x4, offset = 0x4, fixed_abs, tag = 'smem constant byte address 0x4 - core index']
  #allocation1 [shape = 'u32[144,128]{1,0:T(1,128)}', space=vmem, size = 0x12000, scoped, tag = 'internal scratch']
  #allocation2 [shape = 'f32[64,1024]{1,0:T(8,128)}', space=vmem, size = 0x40000, scoped, tag = 'scratch operand']
  #allocation3 [shape = 'f32[256,1024]{1,0:T(8,128)}', space=vmem, size = 0x100000, scoped, tag = 'scratch operand']
  #allocation4 [shape = 'f32[256,1024]{1,0:T(8,128)}', space=vmem, size = 0x100000, scoped, tag = 'scratch operand']
  #allocation5 [shape = 'f32[256,128]{1,0:T(8,128)}', space=vmem, size = 0x20000, scoped, tag = 'scratch operand']
  #allocation6 [shape = 's32[3]{0}', space=sflag, size = 0xc, scoped, tag = 'scratch operand']
  #allocation11 [shape = 's32[]', space=sflag, size = 0x4, offset = 0, fixed_abs, tag = 'sflag constant byte address 0x0 - dummy sync flag']
  #allocation12 [shape = 's32[]', space=sflag, size = 0x4, offset = 0, fixed_abs, tag = 'sflag constant byte address 0x0 - dummy sync flag']
  #allocation13 [shape = 'u32[]', space=smem, size = 0x4, offset = 0x44, fixed_abs, tag = 'smem constant byte address 0x44 - assertion arg 0']
  #allocation14 [shape = 'u32[]', space=smem, size = 0x4, offset = 0x48, fixed_abs, tag = 'smem constant byte address 0x48 - assertion arg 1']
  #allocation15 [shape = 's32[]', space=sflag, size = 0x4, offset = 0, fixed_abs, tag = 'sflag constant byte address 0x0 - dummy sync flag']
  #allocation16 [shape = 's32[]', space=sflag, size = 0x4, offset = 0, fixed_abs, tag = 'sflag constant byte address 0x0 - dummy sync flag']
  #allocation17 [shape = 's32[]', space=sflag, size = 0x4, offset = 0, fixed_abs, tag = 'sflag constant byte address 0x0 - dummy sync flag']
  #allocation18 [shape = 's32[]', space=sflag, size = 0x4, offset = 0, fixed_abs, tag = 'sflag constant byte address 0x0 - dummy sync flag']
  %s0 = inlined_call_operand.vmem [shape: f32[64,128], index: 0, kind: input, shape index: {}]
  %s1 = inlined_call_operand.hbm [shape: f32[128,1024], index: 1, kind: input, shape index: {}]
  %s2 = inlined_call_operand.vmem [shape: f32[1,1024], index: 2, kind: input, shape index: {}]
  %s3 = inlined_call_operand.hbm [shape: f32[256,1024], index: 3, kind: input, shape index: {}]
  %s4 = inlined_call_operand.vmem [shape: f32[1,1024], index: 4, kind: input, shape index: {}]
  %s5 = inlined_call_operand.vmem [shape: f32[1,128], index: 5, kind: input, shape index: {}]
  %s6 = inlined_call_operand.hbm [shape: f32[256,1024], index: 6, kind: input, shape index: {}]
  %s7 = inlined_call_operand.hbm [shape: f32[256,1024], index: 7, kind: input, shape index: {}]
  %s8 = inlined_call_operand.hbm [shape: f32[256,128], index: 8, kind: input, shape index: {}]
  %s9 = inlined_call_operand.vmem [shape: f32[8,128], index: 9, kind: output, shape index: {}]
  %s10 = sld [smem:[#allocation0]]
  $region54: #{mgl4mep_sr_forward.1} parent=0
    _
  %s12 = ssub.s32 1, %s10
  %s13 = scalar_select 0, %s12, %s10
  $region1: #{mgl4mep_sr_forward.1} parent=0
    #allocation7 [shape = 'u8[524288]{0}', space=vmem, size = 0x80000, scoped, tag = 'input window, operand 1, single buffered']
    #allocation8 [shape = 's32[1]{0}', space=sflag, size = 0x4, scoped, tag = 'scoped memory for mgl4mep_sr_forward.1']
    #allocation9 [shape = 'u8[1048576]{0}', space=vmem, size = 0x100000, scoped, tag = 'input window, operand 3, single buffered']
    #allocation10 [shape = 's32[1]{0}', space=sflag, size = 0x4, scoped, tag = 'scoped memory for mgl4mep_sr_forward.1']
    %14 = vsyncpa [#allocation8], 0
    %15 = vsyncpa [#allocation10], 0
    // Predicated region
    $region2: #{mgl4mep_sr_forward.1} parent=1 // pred_check
      _
    $region3: #{mgl4mep_sr_forward.1} parent=1 // pred_check_branch
      %17 = sbr.rel (0) target = $region5
    $region4: #{mgl4mep_sr_forward.1} parent=1 // pred_region
      _
    $region5: #{mgl4mep_sr_forward.1} parent=1 // pred_fallthru
      _
    // Predicated region
    $region6: #{mgl4mep_sr_forward.1} parent=1 // pred_check
      _
    $region7: #{mgl4mep_sr_forward.1} parent=1 // pred_check_branch
      %19 = sbr.rel (0) target = $region9
    $region8: #{mgl4mep_sr_forward.1} parent=1 // pred_region
      %s21 = ssub.s32 16384, 16384
      %22 = vsyncadd [#allocation8], %s21
      %s23 = sshll.u32 [#allocation7], 4
      %s24 = int_to_ptr.vmem [resolvable:$true] %s23
      %29 = dma.hbm_to_vmem [thread:$0]  %s1, 16384, %s24, [#allocation8], 1024, 1024, 64
    $region9: #{mgl4mep_sr_forward.1} parent=1 // pred_fallthru
      _
    // Predicated region
    $region10: #{mgl4mep_sr_forward.1} parent=1 // pred_check
      _
    $region11: #{mgl4mep_sr_forward.1} parent=1 // pred_check_branch
      %31 = sbr.rel (0) target = $region13
    $region12: #{mgl4mep_sr_forward.1} parent=1 // pred_region
      _
    $region13: #{mgl4mep_sr_forward.1} parent=1 // pred_fallthru
      _
    // Predicated region
    $region14: #{mgl4mep_sr_forward.1} parent=1 // pred_check
      _
    $region15: #{mgl4mep_sr_forward.1} parent=1 // pred_check_branch
      %33 = sbr.rel (0) target = $region17
    $region16: #{mgl4mep_sr_forward.1} parent=1 // pred_region
      %s35 = ssub.s32 32768, 32768
      %36 = vsyncadd [#allocation10], %s35
      %s37 = sshll.u32 [#allocation9], 4
      %s38 = int_to_ptr.vmem [resolvable:$true] %s37
      %43 = dma.hbm_to_vmem [thread:$0]  %s3, 32768, %s38, [#allocation10], 1024, 1024, 64
    $region17: #{mgl4mep_sr_forward.1} parent=1 // pred_fallthru
      _
    // Predicated region
    $region18: #{mgl4mep_sr_forward.1} parent=1 // pred_check
      _
    $region19: #{mgl4mep_sr_forward.1} parent=1 // pred_check_branch
      %45 = sbr.rel (0) target = $region21
    $region20: #{mgl4mep_sr_forward.1} parent=1 // pred_region
      _
    $region21: #{mgl4mep_sr_forward.1} parent=1 // pred_fallthru
      _
    // Predicated region
    $region22: #{mgl4mep_sr_forward.1} parent=1 // pred_check
      _
    $region23: #{mgl4mep_sr_forward.1} parent=1 // pred_check_branch
      %47 = sbr.rel (0) target = $region25
    $region24: #{mgl4mep_sr_forward.1} parent=1 // pred_region
      _
    $region25: #{mgl4mep_sr_forward.1} parent=1 // pred_fallthru
      _
    // Predicated region
    $region26: #{mgl4mep_sr_forward.1} parent=1 // pred_check
      _
    $region27: #{mgl4mep_sr_forward.1} parent=1 // pred_check_branch
      %49 = sbr.rel (0) target = $region29
    $region28: #{mgl4mep_sr_forward.1} parent=1 // pred_region
      %50 = dma.done [#allocation8], 16384
    $region29: #{mgl4mep_sr_forward.1} parent=1 // pred_fallthru
      _
    // Predicated region
    $region30: #{mgl4mep_sr_forward.1} parent=1 // pred_check
      _
    $region31: #{mgl4mep_sr_forward.1} parent=1 // pred_check_branch
      %52 = sbr.rel (0) target = $region33
    $region32: #{mgl4mep_sr_forward.1} parent=1 // pred_region
      %53 = dma.done [#allocation10], 32768
    $region33: #{mgl4mep_sr_forward.1} parent=1 // pred_fallthru
      _
    // Predicated region
    $region34: #{mgl4mep_sr_forward.1} parent=1 // pred_check
      _
    $region35: #{mgl4mep_sr_forward.1} parent=1 // pred_check_branch
      %55 = sbr.rel target = $region37
    $region36: #{mgl4mep_sr_forward.1} parent=1 // pred_region
      %56 = sst [smem:[#allocation13]] [#allocation12]
      %57 = sst [smem:[#allocation14]] [#allocation11]
    $region37: #{mgl4mep_sr_forward.1} parent=1 // pred_fallthru
      _
    %59 = shalt.err (0)
    %s61 = sshll.u32 [#allocation3], 4
    %s62 = int_to_ptr.vmem [resolvable:$true] %s61
    %64 = dma.hbm_to_vmem [thread:$0]  %s6, 32768, %s62, [#allocation6]
    %s65 = scalar_lea.sflag [#allocation6], 1
    // Predicated region
    $region38: #{mgl4mep_sr_forward.1} parent=1 // pred_check
      _
    $region39: #{mgl4mep_sr_forward.1} parent=1 // pred_check_branch
      %67 = sbr.rel target = $region41
    $region40: #{mgl4mep_sr_forward.1} parent=1 // pred_region
      %68 = sst [smem:[#allocation13]] [#allocation16]
      %69 = sst [smem:[#allocation14]] [#allocation15]
    $region41: #{mgl4mep_sr_forward.1} parent=1 // pred_fallthru
      _
    %71 = shalt.err (0)
    %s73 = sshll.u32 [#allocation4], 4
    %s74 = int_to_ptr.vmem [resolvable:$true] %s73
    %76 = dma.hbm_to_vmem [thread:$0]  %s7, 32768, %s74, %s65
    %s77 = scalar_lea.sflag [#allocation6], 2
    // Predicated region
    $region42: #{mgl4mep_sr_forward.1} parent=1 // pred_check
      _
    $region43: #{mgl4mep_sr_forward.1} parent=1 // pred_check_branch
      %79 = sbr.rel target = $region45
    $region44: #{mgl4mep_sr_forward.1} parent=1 // pred_region
      %80 = sst [smem:[#allocation13]] [#allocation18]
      %81 = sst [smem:[#allocation14]] [#allocation17]
    $region45: #{mgl4mep_sr_forward.1} parent=1 // pred_fallthru
      _
    %83 = shalt.err (0)
    %s85 = sshll.u32 [#allocation5], 4
    %s86 = int_to_ptr.vmem [resolvable:$true] %s85
    %88 = dma.hbm_to_vmem [thread:$0]  %s8, 4096, %s86, %s77
    %v89 = vld [vmem:[%s0] sm:$0xff]
    %v90 = vld [vmem:[%s0 + $0x8] sm:$0xff]
    %v91 = vld [vmem:[%s0 + $0x10] sm:$0xff]
    %v92 = vld [vmem:[%s0 + $0x18] sm:$0xff]
    %v93 = vld [vmem:[%s0 + $0x20] sm:$0xff]
    %v94 = vld [vmem:[%s0 + $0x28] sm:$0xff]
    %v95 = vld [vmem:[%s0 + $0x30] sm:$0xff]
    %v96 = vld [vmem:[%s0 + $0x38] sm:$0xff]
    %v97 = vld [vmem:[#allocation7] sm:$0xff]
    %v98 = vld [vmem:[#allocation7 + $0x8] sm:$0xff]
    %v99 = vld [vmem:[#allocation7 + $0x10] sm:$0xff]
    %v100 = vld [vmem:[#allocation7 + $0x18] sm:$0xff]
    %v101 = vld [vmem:[#allocation7 + $0x20] sm:$0xff]
    %v102 = vld [vmem:[#allocation7 + $0x28] sm:$0xff]
    %v103 = vld [vmem:[#allocation7 + $0x30] sm:$0xff]
    %v104 = vld [vmem:[#allocation7 + $0x38] sm:$0xff]
    %v105 = vld [vmem:[#allocation7 + $0x40] sm:$0xff]
    %v106 = vld [vmem:[#allocation7 + $0x48] sm:$0xff]
    %v107 = vld [vmem:[#allocation7 + $0x50] sm:$0xff]
    %v108 = vld [vmem:[#allocation7 + $0x58] sm:$0xff]
    %v109 = vld [vmem:[#allocation7 + $0x60] sm:$0xff]
    %v110 = vld [vmem:[#allocation7 + $0x68] sm:$0xff]
    %v111 = vld [vmem:[#allocation7 + $0x70] sm:$0xff]
    %v112 = vld [vmem:[#allocation7 + $0x78] sm:$0xff]
    %v113 = vld [vmem:[#allocation7 + $0x80] sm:$0xff]
    %v114 = vld [vmem:[#allocation7 + $0x88] sm:$0xff]
    %v115 = vld [vmem:[#allocation7 + $0x90] sm:$0xff]
    %v116 = vld [vmem:[#allocation7 + $0x98] sm:$0xff]
    %v117 = vld [vmem:[#allocation7 + $0xa0] sm:$0xff]
    %v118 = vld [vmem:[#allocation7 + $0xa8] sm:$0xff]
    %v119 = vld [vmem:[#allocation7 + $0xb0] sm:$0xff]
    %v120 = vld [vmem:[#allocation7 + $0xb8] sm:$0xff]
    %v121 = vld [vmem:[#allocation7 + $0xc0] sm:$0xff]
    %v122 = vld [vmem:[#allocation7 + $0xc8] sm:$0xff]
    %v123 = vld [vmem:[#allocation7 + $0xd0] sm:$0xff]
    %v124 = vld [vmem:[#allocation7 + $0xd8] sm:$0xff]
    %v125 = vld [vmem:[#allocation7 + $0xe0] sm:$0xff]
    %v126 = vld [vmem:[#allocation7 + $0xe8] sm:$0xff]
    %v127 = vld [vmem:[#allocation7 + $0xf0] sm:$0xff]
    %v128 = vld [vmem:[#allocation7 + $0xf8] sm:$0xff]
    %v129 = vld [vmem:[#allocation7 + $0x100] sm:$0xff]
    %v130 = vld [vmem:[#allocation7 + $0x108] sm:$0xff]
    %v131 = vld [vmem:[#allocation7 + $0x110] sm:$0xff]
    %v132 = vld [vmem:[#allocation7 + $0x118] sm:$0xff]
    %v133 = vld [vmem:[#allocation7 + $0x120] sm:$0xff]
    %v134 = vld [vmem:[#allocation7 + $0x128] sm:$0xff]
    %v135 = vld [vmem:[#allocation7 + $0x130] sm:$0xff]
    %v136 = vld [vmem:[#allocation7 + $0x138] sm:$0xff]
    %v137 = vld [vmem:[#allocation7 + $0x140] sm:$0xff]
    %v138 = vld [vmem:[#allocation7 + $0x148] sm:$0xff]
    %v139 = vld [vmem:[#allocation7 + $0x150] sm:$0xff]
    %v140 = vld [vmem:[#allocation7 + $0x158] sm:$0xff]
    %v141 = vld [vmem:[#allocation7 + $0x160] sm:$0xff]
    %v142 = vld [vmem:[#allocation7 + $0x168] sm:$0xff]
    %v143 = vld [vmem:[#allocation7 + $0x170] sm:$0xff]
    %v144 = vld [vmem:[#allocation7 + $0x178] sm:$0xff]
    %v145 = vld [vmem:[#allocation7 + $0x180] sm:$0xff]
    %v146 = vld [vmem:[#allocation7 + $0x188] sm:$0xff]
    %v147 = vld [vmem:[#allocation7 + $0x190] sm:$0xff]
    %v148 = vld [vmem:[#allocation7 + $0x198] sm:$0xff]
    %v149 = vld [vmem:[#allocation7 + $0x1a0] sm:$0xff]
    %v150 = vld [vmem:[#allocation7 + $0x1a8] sm:$0xff]
    %v151 = vld [vmem:[#allocation7 + $0x1b0] sm:$0xff]
    %v152 = vld [vmem:[#allocation7 + $0x1b8] sm:$0xff]
    %v153 = vld [vmem:[#allocation7 + $0x1c0] sm:$0xff]
    %v154 = vld [vmem:[#allocation7 + $0x1c8] sm:$0xff]
    %v155 = vld [vmem:[#allocation7 + $0x1d0] sm:$0xff]
    %v156 = vld [vmem:[#allocation7 + $0x1d8] sm:$0xff]
    %v157 = vld [vmem:[#allocation7 + $0x1e0] sm:$0xff]
    %v158 = vld [vmem:[#allocation7 + $0x1e8] sm:$0xff]
    %v159 = vld [vmem:[#allocation7 + $0x1f0] sm:$0xff]
    %v160 = vld [vmem:[#allocation7 + $0x1f8] sm:$0xff]
    %v161 = vld [vmem:[#allocation7 + $0x200] sm:$0xff]
    %v162 = vld [vmem:[#allocation7 + $0x208] sm:$0xff]
    %v163 = vld [vmem:[#allocation7 + $0x210] sm:$0xff]
    %v164 = vld [vmem:[#allocation7 + $0x218] sm:$0xff]
    %v165 = vld [vmem:[#allocation7 + $0x220] sm:$0xff]
    %v166 = vld [vmem:[#allocation7 + $0x228] sm:$0xff]
    %v167 = vld [vmem:[#allocation7 + $0x230] sm:$0xff]
    %v168 = vld [vmem:[#allocation7 + $0x238] sm:$0xff]
    %v169 = vld [vmem:[#allocation7 + $0x240] sm:$0xff]
    %v170 = vld [vmem:[#allocation7 + $0x248] sm:$0xff]
    %v171 = vld [vmem:[#allocation7 + $0x250] sm:$0xff]
    %v172 = vld [vmem:[#allocation7 + $0x258] sm:$0xff]
    %v173 = vld [vmem:[#allocation7 + $0x260] sm:$0xff]
    %v174 = vld [vmem:[#allocation7 + $0x268] sm:$0xff]
    %v175 = vld [vmem:[#allocation7 + $0x270] sm:$0xff]
    %v176 = vld [vmem:[#allocation7 + $0x278] sm:$0xff]
    %v177 = vld [vmem:[#allocation7 + $0x280] sm:$0xff]
    %v178 = vld [vmem:[#allocation7 + $0x288] sm:$0xff]
    %v179 = vld [vmem:[#allocation7 + $0x290] sm:$0xff]
    %v180 = vld [vmem:[#allocation7 + $0x298] sm:$0xff]
    %v181 = vld [vmem:[#allocation7 + $0x2a0] sm:$0xff]
    %v182 = vld [vmem:[#allocation7 + $0x2a8] sm:$0xff]
    %v183 = vld [vmem:[#allocation7 + $0x2b0] sm:$0xff]
    %v184 = vld [vmem:[#allocation7 + $0x2b8] sm:$0xff]
    %v185 = vld [vmem:[#allocation7 + $0x2c0] sm:$0xff]
    %v186 = vld [vmem:[#allocation7 + $0x2c8] sm:$0xff]
    %v187 = vld [vmem:[#allocation7 + $0x2d0] sm:$0xff]
    %v188 = vld [vmem:[#allocation7 + $0x2d8] sm:$0xff]
    %v189 = vld [vmem:[#allocation7 + $0x2e0] sm:$0xff]
    %v190 = vld [vmem:[#allocation7 + $0x2e8] sm:$0xff]
    %v191 = vld [vmem:[#allocation7 + $0x2f0] sm:$0xff]
    %v192 = vld [vmem:[#allocation7 + $0x2f8] sm:$0xff]
    %v193 = vld [vmem:[#allocation7 + $0x300] sm:$0xff]
    %v194 = vld [vmem:[#allocation7 + $0x308] sm:$0xff]
    %v195 = vld [vmem:[#allocation7 + $0x310] sm:$0xff]
    %v196 = vld [vmem:[#allocation7 + $0x318] sm:$0xff]
    %v197 = vld [vmem:[#allocation7 + $0x320] sm:$0xff]
    %v198 = vld [vmem:[#allocation7 + $0x328] sm:$0xff]
    %v199 = vld [vmem:[#allocation7 + $0x330] sm:$0xff]
    %v200 = vld [vmem:[#allocation7 + $0x338] sm:$0xff]
    %v201 = vld [vmem:[#allocation7 + $0x340] sm:$0xff]
    %v202 = vld [vmem:[#allocation7 + $0x348] sm:$0xff]
    %v203 = vld [vmem:[#allocation7 + $0x350] sm:$0xff]
    %v204 = vld [vmem:[#allocation7 + $0x358] sm:$0xff]
    %v205 = vld [vmem:[#allocation7 + $0x360] sm:$0xff]
    %v206 = vld [vmem:[#allocation7 + $0x368] sm:$0xff]
    %v207 = vld [vmem:[#allocation7 + $0x370] sm:$0xff]
    %v208 = vld [vmem:[#allocation7 + $0x378] sm:$0xff]
    %v209 = vld [vmem:[#allocation7 + $0x380] sm:$0xff]
    %v210 = vld [vmem:[#allocation7 + $0x388] sm:$0xff]
    %v211 = vld [vmem:[#allocation7 + $0x390] sm:$0xff]
    %v212 = vld [vmem:[#allocation7 + $0x398] sm:$0xff]
    %v213 = vld [vmem:[#allocation7 + $0x3a0] sm:$0xff]
    %v214 = vld [vmem:[#allocation7 + $0x3a8] sm:$0xff]
    %v215 = vld [vmem:[#allocation7 + $0x3b0] sm:$0xff]
    %v216 = vld [vmem:[#allocation7 + $0x3b8] sm:$0xff]
    %v217 = vld [vmem:[#allocation7 + $0x3c0] sm:$0xff]
    %v218 = vld [vmem:[#allocation7 + $0x3c8] sm:$0xff]
    %v219 = vld [vmem:[#allocation7 + $0x3d0] sm:$0xff]
    %v220 = vld [vmem:[#allocation7 + $0x3d8] sm:$0xff]
    %v221 = vld [vmem:[#allocation7 + $0x3e0] sm:$0xff]
    %v222 = vld [vmem:[#allocation7 + $0x3e8] sm:$0xff]
    %v223 = vld [vmem:[#allocation7 + $0x3f0] sm:$0xff]
    %v224 = vld [vmem:[#allocation7 + $0x3f8] sm:$0xff]
    %v225 = vld [vmem:[%s2] sm:$0xff]
    %v227 = vlaneseq
    %v228 = vshrl.u32 %v227, 7
    %v229 = vsub.s32 0, %v228
    %v230 = vrot.slane %v225, %v229
    %v231 = vlaneseq
    %v232 = vshrl.u32 %v231, 7
    %v233 = vsub.s32 1, %v232
    %v234 = vrot.slane %v225, %v233
    %v235 = vlaneseq
    %v236 = vshrl.u32 %v235, 7
    %v237 = vsub.s32 2, %v236
    %v238 = vrot.slane %v225, %v237
    %v239 = vlaneseq
    %v240 = vshrl.u32 %v239, 7
    %v241 = vsub.s32 3, %v240
    %v242 = vrot.slane %v225, %v241
    %v243 = vlaneseq
    %v244 = vshrl.u32 %v243, 7
    %v245 = vsub.s32 4, %v244
    %v246 = vrot.slane %v225, %v245
    %v247 = vlaneseq
    %v248 = vshrl.u32 %v247, 7
    %v249 = vsub.s32 5, %v248
    %v250 = vrot.slane %v225, %v249
    %v251 = vlaneseq
    %v252 = vshrl.u32 %v251, 7
    %v253 = vsub.s32 6, %v252
    %v254 = vrot.slane %v225, %v253
    %v255 = vlaneseq
    %v256 = vshrl.u32 %v255, 7
    %v257 = vsub.s32 7, %v256
    %v258 = vrot.slane %v225, %v257
    %267 = vmatprep.subr.mxu0 %v98
    %268 = vmatpush1.msra.mxu0 %v97
    %269 = vmatprep.subr.mxu0 %v106
    %270 = vmatpush1.msra.mxu0 %v105
    %271 = vmatprep.subr.mxu0 %v114
    %272 = vmatpush1.msra.mxu0 %v113
    %273 = vmatprep.subr.mxu0 %v122
    %274 = vmatpush1.msra.mxu0 %v121
    %275 = vmatprep.subr.mxu0 %v130
    %276 = vmatpush1.msra.mxu0 %v129
    %277 = vmatprep.subr.mxu0 %v138
    %278 = vmatpush1.msra.mxu0 %v137
    %279 = vmatprep.subr.mxu0 %v146
    %280 = vmatpush1.msra.mxu0 %v145
    %281 = vmatprep.subr.mxu0 %v154
    %282 = vmatpush1.msra.mxu0 %v153
    %283 = vmatprep.subr.mxu0 %v162
    %284 = vmatpush1.msra.mxu0 %v161
    %285 = vmatprep.subr.mxu0 %v170
    %286 = vmatpush1.msra.mxu0 %v169
    %287 = vmatprep.subr.mxu0 %v178
    %288 = vmatpush1.msra.mxu0 %v177
    %289 = vmatprep.subr.mxu0 %v186
    %290 = vmatpush1.msra.mxu0 %v185
    %291 = vmatprep.subr.mxu0 %v194
    %292 = vmatpush1.msra.mxu0 %v193
    %293 = vmatprep.subr.mxu0 %v202
    %294 = vmatpush1.msra.mxu0 %v201
    %295 = vmatprep.subr.mxu0 %v210
    %296 = vmatpush1.msra.mxu0 %v209
    %297 = vmatprep.subr.mxu0 %v218
    %298 = vmatpush1.msra.mxu0 %v217
    %299 = vmatprep.subr.mxu0 0.0
    %300 = vmatpush1.msra.mxu0 0.0
    %301 = vmatprep.subr.mxu0 0.0
    %302 = vmatpush1.msra.mxu0 0.0
    %303 = vmatprep.subr.mxu0 0.0
    %304 = vmatpush1.msra.mxu0 0.0
    %305 = vmatprep.subr.mxu0 0.0
    %306 = vmatpush1.msra.mxu0 0.0
    %307 = vmatprep.subr.mxu0 0.0
    %308 = vmatpush1.msra.mxu0 0.0
    %309 = vmatprep.subr.mxu0 0.0
    %310 = vmatpush1.msra.mxu0 0.0
    %311 = vmatprep.subr.mxu0 0.0
    %312 = vmatpush1.msra.mxu0 0.0
    %313 = vmatprep.subr.mxu0 0.0
    %314 = vmatpush1.msra.mxu0 0.0
    %315 = vmatprep.subr.mxu0 0.0
    %316 = vmatpush1.msra.mxu0 0.0
    %317 = vmatprep.subr.mxu0 0.0
    %318 = vmatpush1.msra.mxu0 0.0
    %319 = vmatprep.subr.mxu0 0.0
    %320 = vmatpush1.msra.mxu0 0.0
    %321 = vmatprep.subr.mxu0 0.0
    %322 = vmatpush1.msra.mxu0 0.0
    %323 = vmatprep.subr.mxu0 0.0
    %324 = vmatpush1.msra.mxu0 0.0
    %325 = vmatprep.subr.mxu0 0.0
    %326 = vmatpush1.msra.mxu0 0.0
    %327 = vmatprep.subr.mxu0 0.0
    %328 = vmatpush1.msra.mxu0 0.0
    %329 = vmatprep.subr.mxu0 0.0
    %330 = vmatpush1.msra.mxu0 0.0
    %331 = vmatprep.mubr.f32.mxu0 0.0
    %332 = vmatmul.mubr.f32.gmra.mrb[0].mxu0 %v89
    %v333 = vpop.f32.mrb[0].mxu0
    %v334 = vadd.f32 %v230, %v333
    %v335 = vpop.f32.mrb[0].mxu0
    %v336 = vadd.f32 %v234, %v335
    %337 = vmatprep.mubr.f32.mxu0 0.0
    %338 = vmatmul.mubr.f32.gmra.mrb[0].mxu0 %v90
    %v339 = vpop.f32.mrb[0].mxu0
    %v340 = vadd.f32 %v230, %v339
    %v341 = vpop.f32.mrb[0].mxu0
    %v342 = vadd.f32 %v234, %v341
    %343 = vmatprep.mubr.f32.mxu0 0.0
    %344 = vmatmul.mubr.f32.gmra.mrb[0].mxu0 %v91
    %v345 = vpop.f32.mrb[0].mxu0
    %v346 = vadd.f32 %v230, %v345
    %v347 = vpop.f32.mrb[0].mxu0
    %v348 = vadd.f32 %v234, %v347
    %349 = vmatprep.mubr.f32.mxu0 0.0
    %350 = vmatmul.mubr.f32.gmra.mrb[0].mxu0 %v92
    %v351 = vpop.f32.mrb[0].mxu0
    %v352 = vadd.f32 %v230, %v351
    %v353 = vpop.f32.mrb[0].mxu0
    %v354 = vadd.f32 %v234, %v353
    %355 = vmatprep.mubr.f32.mxu0 0.0
    %356 = vmatmul.mubr.f32.gmra.mrb[0].mxu0 %v93
    %v357 = vpop.f32.mrb[0].mxu0
    %v358 = vadd.f32 %v230, %v357
    %v359 = vpop.f32.mrb[0].mxu0
    %v360 = vadd.f32 %v234, %v359
    %361 = vmatprep.mubr.f32.mxu0 0.0
    %362 = vmatmul.mubr.f32.gmra.mrb[0].mxu0 %v94
    %v363 = vpop.f32.mrb[0].mxu0
    %v364 = vadd.f32 %v230, %v363
    %v365 = vpop.f32.mrb[0].mxu0
    %v366 = vadd.f32 %v234, %v365
    %367 = vmatprep.mubr.f32.mxu0 0.0
    %368 = vmatmul.mubr.f32.gmra.mrb[0].mxu0 %v95
    %v369 = vpop.f32.mrb[0].mxu0
    %v370 = vadd.f32 %v230, %v369
    %v371 = vpop.f32.mrb[0].mxu0
    %v372 = vadd.f32 %v234, %v371
    %373 = vmatprep.mubr.f32.mxu0 0.0
    %374 = vmatmul.mubr.f32.gmra.mrb[0].mxu0 %v96
    %v375 = vpop.f32.mrb[0].mxu0
    %v376 = vadd.f32 %v230, %v375
    %v377 = vpop.f32.mrb[0].mxu0
    %v378 = vadd.f32 %v234, %v377
    %379 = vdwg.mxu0
    %380 = vmatprep.subr.mxu0 %v100
    %381 = vmatpush1.msra.mxu0 %v99
    %382 = vmatprep.subr.mxu0 %v108
    %383 = vmatpush1.msra.mxu0 %v107
    %384 = vmatprep.subr.mxu0 %v116
    %385 = vmatpush1.msra.mxu0 %v115
    %386 = vmatprep.subr.mxu0 %v124
    %387 = vmatpush1.msra.mxu0 %v123
    %388 = vmatprep.subr.mxu0 %v132
    %389 = vmatpush1.msra.mxu0 %v131
    %390 = vmatprep.subr.mxu0 %v140
    %391 = vmatpush1.msra.mxu0 %v139
    %392 = vmatprep.subr.mxu0 %v148
    %393 = vmatpush1.msra.mxu0 %v147
    %394 = vmatprep.subr.mxu0 %v156
    %395 = vmatpush1.msra.mxu0 %v155
    %396 = vmatprep.subr.mxu0 %v164
    %397 = vmatpush1.msra.mxu0 %v163
    %398 = vmatprep.subr.mxu0 %v172
    %399 = vmatpush1.msra.mxu0 %v171
    %400 = vmatprep.subr.mxu0 %v180
    %401 = vmatpush1.msra.mxu0 %v179
    %402 = vmatprep.subr.mxu0 %v188
    %403 = vmatpush1.msra.mxu0 %v187
    %404 = vmatprep.subr.mxu0 %v196
    %405 = vmatpush1.msra.mxu0 %v195
    %406 = vmatprep.subr.mxu0 %v204
    %407 = vmatpush1.msra.mxu0 %v203
    %408 = vmatprep.subr.mxu0 %v212
    %409 = vmatpush1.msra.mxu0 %v211
    %410 = vmatprep.subr.mxu0 %v220
    %411 = vmatpush1.msra.mxu0 %v219
    %412 = vmatprep.subr.mxu0 0.0
    %413 = vmatpush1.msra.mxu0 0.0
    %414 = vmatprep.subr.mxu0 0.0
    %415 = vmatpush1.msra.mxu0 0.0
    %416 = vmatprep.subr.mxu0 0.0
    %417 = vmatpush1.msra.mxu0 0.0
    %418 = vmatprep.subr.mxu0 0.0
    %419 = vmatpush1.msra.mxu0 0.0
    %420 = vmatprep.subr.mxu0 0.0
    %421 = vmatpush1.msra.mxu0 0.0
    %422 = vmatprep.subr.mxu0 0.0
    %423 = vmatpush1.msra.mxu0 0.0
    %424 = vmatprep.subr.mxu0 0.0
    %425 = vmatpush1.msra.mxu0 0.0
    %426 = vmatprep.subr.mxu0 0.0
    %427 = vmatpush1.msra.mxu0 0.0
    %428 = vmatprep.subr.mxu0 0.0
    %429 = vmatpush1.msra.mxu0 0.0
    %430 = vmatprep.subr.mxu0 0.0
    %431 = vmatpush1.msra.mxu0 0.0
    %432 = vmatprep.subr.mxu0 0.0
    %433 = vmatpush1.msra.mxu0 0.0
    %434 = vmatprep.subr.mxu0 0.0
    %435 = vmatpush1.msra.mxu0 0.0
    %436 = vmatprep.subr.mxu0 0.0
    %437 = vmatpush1.msra.mxu0 0.0
    %438 = vmatprep.subr.mxu0 0.0
    %439 = vmatpush1.msra.mxu0 0.0
    %440 = vmatprep.subr.mxu0 0.0
    %441 = vmatpush1.msra.mxu0 0.0
    %442 = vmatprep.subr.mxu0 0.0
    %443 = vmatpush1.msra.mxu0 0.0
    %444 = vmatprep.mubr.f32.mxu0 0.0
    %445 = vmatmul.mubr.f32.gmra.mrb[0].mxu0 %v89
    %v446 = vpop.f32.mrb[0].mxu0
    %v447 = vadd.f32 %v238, %v446
    %v448 = vpop.f32.mrb[0].mxu0
    %v449 = vadd.f32 %v242, %v448
    %450 = vmatprep.mubr.f32.mxu0 0.0
    %451 = vmatmul.mubr.f32.gmra.mrb[0].mxu0 %v90
    %v452 = vpop.f32.mrb[0].mxu0
    %v453 = vadd.f32 %v238, %v452
    %v454 = vpop.f32.mrb[0].mxu0
    %v455 = vadd.f32 %v242, %v454
    %456 = vmatprep.mubr.f32.mxu0 0.0
    %457 = vmatmul.mubr.f32.gmra.mrb[0].mxu0 %v91
    %v458 = vpop.f32.mrb[0].mxu0
    %v459 = vadd.f32 %v238, %v458
    %v460 = vpop.f32.mrb[0].mxu0
    %v461 = vadd.f32 %v242, %v460
    %462 = vmatprep.mubr.f32.mxu0 0.0
    %463 = vmatmul.mubr.f32.gmra.mrb[0].mxu0 %v92
    %v464 = vpop.f32.mrb[0].mxu0
    %v465 = vadd.f32 %v238, %v464
    %v466 = vpop.f32.mrb[0].mxu0
    %v467 = vadd.f32 %v242, %v466
    %468 = vmatprep.mubr.f32.mxu0 0.0
    %469 = vmatmul.mubr.f32.gmra.mrb[0].mxu0 %v93
    %v470 = vpop.f32.mrb[0].mxu0
    %v471 = vadd.f32 %v238, %v470
    %v472 = vpop.f32.mrb[0].mxu0
    %v473 = vadd.f32 %v242, %v472
    %474 = vmatprep.mubr.f32.mxu0 0.0
    %475 = vmatmul.mubr.f32.gmra.mrb[0].mxu0 %v94
    %v476 = vpop.f32.mrb[0].mxu0
    %v477 = vadd.f32 %v238, %v476
    %v478 = vpop.f32.mrb[0].mxu0
    %v479 = vadd.f32 %v242, %v478
    %480 = vmatprep.mubr.f32.mxu0 0.0
    %481 = vmatmul.mubr.f32.gmra.mrb[0].mxu0 %v95
    %v482 = vpop.f32.mrb[0].mxu0
    %v483 = vadd.f32 %v238, %v482
    %v484 = vpop.f32.mrb[0].mxu0
    %v485 = vadd.f32 %v242, %v484
    %486 = vmatprep.mubr.f32.mxu0 0.0
    %487 = vmatmul.mubr.f32.gmra.mrb[0].mxu0 %v96
    %v488 = vpop.f32.mrb[0].mxu0
    %v489 = vadd.f32 %v238, %v488
    %v490 = vpop.f32.mrb[0].mxu0
    %v491 = vadd.f32 %v242, %v490
    %492 = vdwg.mxu0
    %493 = vmatprep.subr.mxu0 %v102
    %494 = vmatpush1.msra.mxu0 %v101
    %495 = vmatprep.subr.mxu0 %v110
    %496 = vmatpush1.msra.mxu0 %v109
    %497 = vmatprep.subr.mxu0 %v118
    %498 = vmatpush1.msra.mxu0 %v117
    %499 = vmatprep.subr.mxu0 %v126
    %500 = vmatpush1.msra.mxu0 %v125
    %501 = vmatprep.subr.mxu0 %v134
    %502 = vmatpush1.msra.mxu0 %v133
    %503 = vmatprep.subr.mxu0 %v142
    %504 = vmatpush1.msra.mxu0 %v141
    %505 = vmatprep.subr.mxu0 %v150
    %506 = vmatpush1.msra.mxu0 %v149
    %507 = vmatprep.subr.mxu0 %v158
    %508 = vmatpush1.msra.mxu0 %v157
    %509 = vmatprep.subr.mxu0 %v166
    %510 = vmatpush1.msra.mxu0 %v165
    %511 = vmatprep.subr.mxu0 %v174
    %512 = vmatpush1.msra.mxu0 %v173
    %513 = vmatprep.subr.mxu0 %v182
    %514 = vmatpush1.msra.mxu0 %v181
    %515 = vmatprep.subr.mxu0 %v190
    %516 = vmatpush1.msra.mxu0 %v189
    %517 = vmatprep.subr.mxu0 %v198
    %518 = vmatpush1.msra.mxu0 %v197
    %519 = vmatprep.subr.mxu0 %v206
    %520 = vmatpush1.msra.mxu0 %v205
    %521 = vmatprep.subr.mxu0 %v214
    %522 = vmatpush1.msra.mxu0 %v213
    %523 = vmatprep.subr.mxu0 %v222
    %524 = vmatpush1.msra.mxu0 %v221
    %525 = vmatprep.subr.mxu0 0.0
    %526 = vmatpush1.msra.mxu0 0.0
    %527 = vmatprep.subr.mxu0 0.0
    %528 = vmatpush1.msra.mxu0 0.0
    %529 = vmatprep.subr.mxu0 0.0
    %530 = vmatpush1.msra.mxu0 0.0
    %531 = vmatprep.subr.mxu0 0.0
    %532 = vmatpush1.msra.mxu0 0.0
    %533 = vmatprep.subr.mxu0 0.0
    %534 = vmatpush1.msra.mxu0 0.0
    %535 = vmatprep.subr.mxu0 0.0
    %536 = vmatpush1.msra.mxu0 0.0
    %537 = vmatprep.subr.mxu0 0.0
    %538 = vmatpush1.msra.mxu0 0.0
    %539 = vmatprep.subr.mxu0 0.0
    %540 = vmatpush1.msra.mxu0 0.0
    %541 = vmatprep.subr.mxu0 0.0
    %542 = vmatpush1.msra.mxu0 0.0
    %543 = vmatprep.subr.mxu0 0.0
    %544 = vmatpush1.msra.mxu0 0.0
    %545 = vmatprep.subr.mxu0 0.0
    %546 = vmatpush1.msra.mxu0 0.0
    %547 = vmatprep.subr.mxu0 0.0
    %548 = vmatpush1.msra.mxu0 0.0
    %549 = vmatprep.subr.mxu0 0.0
    %550 = vmatpush1.msra.mxu0 0.0
    %551 = vmatprep.subr.mxu0 0.0
    %552 = vmatpush1.msra.mxu0 0.0
    %553 = vmatprep.subr.mxu0 0.0
    %554 = vmatpush1.msra.mxu0 0.0
    %555 = vmatprep.subr.mxu0 0.0
    %556 = vmatpush1.msra.mxu0 0.0
    %557 = vmatprep.mubr.f32.mxu0 0.0
    %558 = vmatmul.mubr.f32.gmra.mrb[0].mxu0 %v89
    %v559 = vpop.f32.mrb[0].mxu0
    %v560 = vadd.f32 %v246, %v559
    %v561 = vpop.f32.mrb[0].mxu0
    %v562 = vadd.f32 %v250, %v561
    %563 = vmatprep.mubr.f32.mxu0 0.0
    %564 = vmatmul.mubr.f32.gmra.mrb[0].mxu0 %v90
    %v565 = vpop.f32.mrb[0].mxu0
    %v566 = vadd.f32 %v246, %v565
    %v567 = vpop.f32.mrb[0].mxu0
    %v568 = vadd.f32 %v250, %v567
    %569 = vmatprep.mubr.f32.mxu0 0.0
    %570 = vmatmul.mubr.f32.gmra.mrb[0].mxu0 %v91
    %v571 = vpop.f32.mrb[0].mxu0
    %v572 = vadd.f32 %v246, %v571
    %v573 = vpop.f32.mrb[0].mxu0
    %v574 = vadd.f32 %v250, %v573
    %575 = vmatprep.mubr.f32.mxu0 0.0
    %576 = vmatmul.mubr.f32.gmra.mrb[0].mxu0 %v92
    %v577 = vpop.f32.mrb[0].mxu0
    %v578 = vadd.f32 %v246, %v577
    %v579 = vpop.f32.mrb[0].mxu0
    %v580 = vadd.f32 %v250, %v579
    %581 = vmatprep.mubr.f32.mxu0 0.0
    %582 = vmatmul.mubr.f32.gmra.mrb[0].mxu0 %v93
    %v583 = vpop.f32.mrb[0].mxu0
    %v584 = vadd.f32 %v246, %v583
    %v585 = vpop.f32.mrb[0].mxu0
    %v586 = vadd.f32 %v250, %v585
    %587 = vmatprep.mubr.f32.mxu0 0.0
    %588 = vmatmul.mubr.f32.gmra.mrb[0].mxu0 %v94
    %v589 = vpop.f32.mrb[0].mxu0
    %v590 = vadd.f32 %v246, %v589
    %v591 = vpop.f32.mrb[0].mxu0
    %v592 = vadd.f32 %v250, %v591
    %593 = vmatprep.mubr.f32.mxu0 0.0
    %594 = vmatmul.mubr.f32.gmra.mrb[0].mxu0 %v95
    %v595 = vpop.f32.mrb[0].mxu0
    %v596 = vadd.f32 %v246, %v595
    %v597 = vpop.f32.mrb[0].mxu0
    %v598 = vadd.f32 %v250, %v597
    %599 = vmatprep.mubr.f32.mxu0 0.0
    %600 = vmatmul.mubr.f32.gmra.mrb[0].mxu0 %v96
    %v601 = vpop.f32.mrb[0].mxu0
    %v602 = vadd.f32 %v246, %v601
    %v603 = vpop.f32.mrb[0].mxu0
    %v604 = vadd.f32 %v250, %v603
    %605 = vdwg.mxu0
    %606 = vmatprep.subr.mxu0 %v104
    %607 = vmatpush1.msra.mxu0 %v103
    %608 = vmatprep.subr.mxu0 %v112
    %609 = vmatpush1.msra.mxu0 %v111
    %610 = vmatprep.subr.mxu0 %v120
    %611 = vmatpush1.msra.mxu0 %v119
    %612 = vmatprep.subr.mxu0 %v128
    %613 = vmatpush1.msra.mxu0 %v127
    %614 = vmatprep.subr.mxu0 %v136
    %615 = vmatpush1.msra.mxu0 %v135
    %616 = vmatprep.subr.mxu0 %v144
    %617 = vmatpush1.msra.mxu0 %v143
    %618 = vmatprep.subr.mxu0 %v152
    %619 = vmatpush1.msra.mxu0 %v151
    %620 = vmatprep.subr.mxu0 %v160
    %621 = vmatpush1.msra.mxu0 %v159
    %622 = vmatprep.subr.mxu0 %v168
    %623 = vmatpush1.msra.mxu0 %v167
    %624 = vmatprep.subr.mxu0 %v176
    %625 = vmatpush1.msra.mxu0 %v175
    %626 = vmatprep.subr.mxu0 %v184
    %627 = vmatpush1.msra.mxu0 %v183
    %628 = vmatprep.subr.mxu0 %v192
    %629 = vmatpush1.msra.mxu0 %v191
    %630 = vmatprep.subr.mxu0 %v200
    %631 = vmatpush1.msra.mxu0 %v199
    %632 = vmatprep.subr.mxu0 %v208
    %633 = vmatpush1.msra.mxu0 %v207
    %634 = vmatprep.subr.mxu0 %v216
    %635 = vmatpush1.msra.mxu0 %v215
    %636 = vmatprep.subr.mxu0 %v224
    %637 = vmatpush1.msra.mxu0 %v223
    %638 = vmatprep.subr.mxu0 0.0
    %639 = vmatpush1.msra.mxu0 0.0
    %640 = vmatprep.subr.mxu0 0.0
    %641 = vmatpush1.msra.mxu0 0.0
    %642 = vmatprep.subr.mxu0 0.0
    %643 = vmatpush1.msra.mxu0 0.0
    %644 = vmatprep.subr.mxu0 0.0
    %645 = vmatpush1.msra.mxu0 0.0
    %646 = vmatprep.subr.mxu0 0.0
    %647 = vmatpush1.msra.mxu0 0.0
    %648 = vmatprep.subr.mxu0 0.0
    %649 = vmatpush1.msra.mxu0 0.0
    %650 = vmatprep.subr.mxu0 0.0
    %651 = vmatpush1.msra.mxu0 0.0
    %652 = vmatprep.subr.mxu0 0.0
    %653 = vmatpush1.msra.mxu0 0.0
    %654 = vmatprep.subr.mxu0 0.0
    %655 = vmatpush1.msra.mxu0 0.0
    %656 = vmatprep.subr.mxu0 0.0
    %657 = vmatpush1.msra.mxu0 0.0
    %658 = vmatprep.subr.mxu0 0.0
    %659 = vmatpush1.msra.mxu0 0.0
    %660 = vmatprep.subr.mxu0 0.0
    %661 = vmatpush1.msra.mxu0 0.0
    %662 = vmatprep.subr.mxu0 0.0
    %663 = vmatpush1.msra.mxu0 0.0
    %664 = vmatprep.subr.mxu0 0.0
    %665 = vmatpush1.msra.mxu0 0.0
    %666 = vmatprep.subr.mxu0 0.0
    %667 = vmatpush1.msra.mxu0 0.0
    %668 = vmatprep.subr.mxu0 0.0
    %669 = vmatpush1.msra.mxu0 0.0
    %670 = vmatprep.mubr.f32.mxu0 0.0
    %671 = vmatmul.mubr.f32.gmra.mrb[0].mxu0 %v89
    %v672 = vpop.f32.mrb[0].mxu0
    %v673 = vadd.f32 %v254, %v672
    %v674 = vpop.f32.mrb[0].mxu0
    %v675 = vadd.f32 %v258, %v674
    %676 = vmatprep.mubr.f32.mxu0 0.0
    %677 = vmatmul.mubr.f32.gmra.mrb[0].mxu0 %v90
    %v678 = vpop.f32.mrb[0].mxu0
    %v679 = vadd.f32 %v254, %v678
    %v680 = vpop.f32.mrb[0].mxu0
    %v681 = vadd.f32 %v258, %v680
    %682 = vmatprep.mubr.f32.mxu0 0.0
    %683 = vmatmul.mubr.f32.gmra.mrb[0].mxu0 %v91
    %v684 = vpop.f32.mrb[0].mxu0
    %v685 = vadd.f32 %v254, %v684
    %v686 = vpop.f32.mrb[0].mxu0
    %v687 = vadd.f32 %v258, %v686
    %688 = vmatprep.mubr.f32.mxu0 0.0
    %689 = vmatmul.mubr.f32.gmra.mrb[0].mxu0 %v92
    %v690 = vpop.f32.mrb[0].mxu0
    %v691 = vadd.f32 %v254, %v690
    %v692 = vpop.f32.mrb[0].mxu0
    %v693 = vadd.f32 %v258, %v692
    %694 = vmatprep.mubr.f32.mxu0 0.0
    %695 = vmatmul.mubr.f32.gmra.mrb[0].mxu0 %v93
    %v696 = vpop.f32.mrb[0].mxu0
    %v697 = vadd.f32 %v254, %v696
    %v698 = vpop.f32.mrb[0].mxu0
    %v699 = vadd.f32 %v258, %v698
    %700 = vmatprep.mubr.f32.mxu0 0.0
    %701 = vmatmul.mubr.f32.gmra.mrb[0].mxu0 %v94
    %v702 = vpop.f32.mrb[0].mxu0
    %v703 = vadd.f32 %v254, %v702
    %v704 = vpop.f32.mrb[0].mxu0
    %v705 = vadd.f32 %v258, %v704
    %706 = vmatprep.mubr.f32.mxu0 0.0
    %707 = vmatmul.mubr.f32.gmra.mrb[0].mxu0 %v95
    %v708 = vpop.f32.mrb[0].mxu0
    %v709 = vadd.f32 %v254, %v708
    %v710 = vpop.f32.mrb[0].mxu0
    %v711 = vadd.f32 %v258, %v710
    %712 = vmatprep.mubr.f32.mxu0 0.0
    %713 = vmatmul.mubr.f32.gmra.mrb[0].mxu0 %v96
    %v714 = vpop.f32.mrb[0].mxu0
    %v715 = vadd.f32 %v254, %v714
    %v716 = vpop.f32.mrb[0].mxu0
    %v717 = vadd.f32 %v258, %v716
    %718 = vdwg.mxu0
    %719 = vst [vmem:[#allocation2] sm:$0xff] %v334
    %720 = vst [vmem:[#allocation2 + $0x8] sm:$0xff] %v336
    %721 = vst [vmem:[#allocation2 + $0x10] sm:$0xff] %v447
    %722 = vst [vmem:[#allocation2 + $0x18] sm:$0xff] %v449
    %723 = vst [vmem:[#allocation2 + $0x20] sm:$0xff] %v560
    %724 = vst [vmem:[#allocation2 + $0x28] sm:$0xff] %v562
    %725 = vst [vmem:[#allocation2 + $0x30] sm:$0xff] %v673
    %726 = vst [vmem:[#allocation2 + $0x38] sm:$0xff] %v675
    %727 = vst [vmem:[#allocation2 + $0x40] sm:$0xff] %v340
    %728 = vst [vmem:[#allocation2 + $0x48] sm:$0xff] %v342
    %729 = vst [vmem:[#allocation2 + $0x50] sm:$0xff] %v453
    %730 = vst [vmem:[#allocation2 + $0x58] sm:$0xff] %v455
    %731 = vst [vmem:[#allocation2 + $0x60] sm:$0xff] %v566
    %732 = vst [vmem:[#allocation2 + $0x68] sm:$0xff] %v568
    %733 = vst [vmem:[#allocation2 + $0x70] sm:$0xff] %v679
    %734 = vst [vmem:[#allocation2 + $0x78] sm:$0xff] %v681
    %735 = vst [vmem:[#allocation2 + $0x80] sm:$0xff] %v346
    %736 = vst [vmem:[#allocation2 + $0x88] sm:$0xff] %v348
    %737 = vst [vmem:[#allocation2 + $0x90] sm:$0xff] %v459
    %738 = vst [vmem:[#allocation2 + $0x98] sm:$0xff] %v461
    %739 = vst [vmem:[#allocation2 + $0xa0] sm:$0xff] %v572
    %740 = vst [vmem:[#allocation2 + $0xa8] sm:$0xff] %v574
    %741 = vst [vmem:[#allocation2 + $0xb0] sm:$0xff] %v685
    %742 = vst [vmem:[#allocation2 + $0xb8] sm:$0xff] %v687
    %743 = vst [vmem:[#allocation2 + $0xc0] sm:$0xff] %v352
    %744 = vst [vmem:[#allocation2 + $0xc8] sm:$0xff] %v354
    %745 = vst [vmem:[#allocation2 + $0xd0] sm:$0xff] %v465
    %746 = vst [vmem:[#allocation2 + $0xd8] sm:$0xff] %v467
    %747 = vst [vmem:[#allocation2 + $0xe0] sm:$0xff] %v578
    %748 = vst [vmem:[#allocation2 + $0xe8] sm:$0xff] %v580
    %749 = vst [vmem:[#allocation2 + $0xf0] sm:$0xff] %v691
    %750 = vst [vmem:[#allocation2 + $0xf8] sm:$0xff] %v693
    %751 = vst [vmem:[#allocation2 + $0x100] sm:$0xff] %v358
    %752 = vst [vmem:[#allocation2 + $0x108] sm:$0xff] %v360
    %753 = vst [vmem:[#allocation2 + $0x110] sm:$0xff] %v471
    %754 = vst [vmem:[#allocation2 + $0x118] sm:$0xff] %v473
    %755 = vst [vmem:[#allocation2 + $0x120] sm:$0xff] %v584
    %756 = vst [vmem:[#allocation2 + $0x128] sm:$0xff] %v586
    %757 = vst [vmem:[#allocation2 + $0x130] sm:$0xff] %v697
    %758 = vst [vmem:[#allocation2 + $0x138] sm:$0xff] %v699
    %759 = vst [vmem:[#allocation2 + $0x140] sm:$0xff] %v364
    %760 = vst [vmem:[#allocation2 + $0x148] sm:$0xff] %v366
    %761 = vst [vmem:[#allocation2 + $0x150] sm:$0xff] %v477
    %762 = vst [vmem:[#allocation2 + $0x158] sm:$0xff] %v479
    %763 = vst [vmem:[#allocation2 + $0x160] sm:$0xff] %v590
    %764 = vst [vmem:[#allocation2 + $0x168] sm:$0xff] %v592
    %765 = vst [vmem:[#allocation2 + $0x170] sm:$0xff] %v703
    %766 = vst [vmem:[#allocation2 + $0x178] sm:$0xff] %v705
    %767 = vst [vmem:[#allocation2 + $0x180] sm:$0xff] %v370
    %768 = vst [vmem:[#allocation2 + $0x188] sm:$0xff] %v372
    %769 = vst [vmem:[#allocation2 + $0x190] sm:$0xff] %v483
    %770 = vst [vmem:[#allocation2 + $0x198] sm:$0xff] %v485
    %771 = vst [vmem:[#allocation2 + $0x1a0] sm:$0xff] %v596
    %772 = vst [vmem:[#allocation2 + $0x1a8] sm:$0xff] %v598
    %773 = vst [vmem:[#allocation2 + $0x1b0] sm:$0xff] %v709
    %774 = vst [vmem:[#allocation2 + $0x1b8] sm:$0xff] %v711
    %775 = vst [vmem:[#allocation2 + $0x1c0] sm:$0xff] %v376
    %776 = vst [vmem:[#allocation2 + $0x1c8] sm:$0xff] %v378
    %777 = vst [vmem:[#allocation2 + $0x1d0] sm:$0xff] %v489
    %778 = vst [vmem:[#allocation2 + $0x1d8] sm:$0xff] %v491
    %779 = vst [vmem:[#allocation2 + $0x1e0] sm:$0xff] %v602
    %780 = vst [vmem:[#allocation2 + $0x1e8] sm:$0xff] %v604
    %781 = vst [vmem:[#allocation2 + $0x1f0] sm:$0xff] %v715
    %782 = vst [vmem:[#allocation2 + $0x1f8] sm:$0xff] %v717
    %v783 = vld [vmem:[#allocation9] sm:$0xff]
    %v784 = vld [vmem:[#allocation9 + $0x8] sm:$0xff]
    %v785 = vld [vmem:[#allocation9 + $0x10] sm:$0xff]
    %v786 = vld [vmem:[#allocation9 + $0x18] sm:$0xff]
    %v787 = vld [vmem:[#allocation9 + $0x20] sm:$0xff]
    %v788 = vld [vmem:[#allocation9 + $0x28] sm:$0xff]
    %v789 = vld [vmem:[#allocation9 + $0x30] sm:$0xff]
    %v790 = vld [vmem:[#allocation9 + $0x38] sm:$0xff]
    %v791 = vld [vmem:[#allocation9 + $0x40] sm:$0xff]
    %v792 = vld [vmem:[#allocation9 + $0x48] sm:$0xff]
    %v793 = vld [vmem:[#allocation9 + $0x50] sm:$0xff]
    %v794 = vld [vmem:[#allocation9 + $0x58] sm:$0xff]
    %v795 = vld [vmem:[#allocation9 + $0x60] sm:$0xff]
    %v796 = vld [vmem:[#allocation9 + $0x68] sm:$0xff]
    %v797 = vld [vmem:[#allocation9 + $0x70] sm:$0xff]
    %v798 = vld [vmem:[#allocation9 + $0x78] sm:$0xff]
    %v799 = vld [vmem:[#allocation9 + $0x80] sm:$0xff]
    %v800 = vld [vmem:[#allocation9 + $0x88] sm:$0xff]
    %v801 = vld [vmem:[#allocation9 + $0x90] sm:$0xff]
    %v802 = vld [vmem:[#allocation9 + $0x98] sm:$0xff]
    %v803 = vld [vmem:[#allocation9 + $0xa0] sm:$0xff]
    %v804 = vld [vmem:[#allocation9 + $0xa8] sm:$0xff]
    %v805 = vld [vmem:[#allocation9 + $0xb0] sm:$0xff]
    %v806 = vld [vmem:[#allocation9 + $0xb8] sm:$0xff]
    %v807 = vld [vmem:[#allocation9 + $0xc0] sm:$0xff]
    %v808 = vld [vmem:[#allocation9 + $0xc8] sm:$0xff]
    %v809 = vld [vmem:[#allocation9 + $0xd0] sm:$0xff]
    %v810 = vld [vmem:[#allocation9 + $0xd8] sm:$0xff]
    %v811 = vld [vmem:[#allocation9 + $0xe0] sm:$0xff]
    %v812 = vld [vmem:[#allocation9 + $0xe8] sm:$0xff]
    %v813 = vld [vmem:[#allocation9 + $0xf0] sm:$0xff]
    %v814 = vld [vmem:[#allocation9 + $0xf8] sm:$0xff]
    %v815 = vld [vmem:[#allocation9 + $0x100] sm:$0xff]
    %v816 = vld [vmem:[#allocation9 + $0x108] sm:$0xff]
    %v817 = vld [vmem:[#allocation9 + $0x110] sm:$0xff]
    %v818 = vld [vmem:[#allocation9 + $0x118] sm:$0xff]
    %v819 = vld [vmem:[#allocation9 + $0x120] sm:$0xff]
    %v820 = vld [vmem:[#allocation9 + $0x128] sm:$0xff]
    %v821 = vld [vmem:[#allocation9 + $0x130] sm:$0xff]
    %v822 = vld [vmem:[#allocation9 + $0x138] sm:$0xff]
    %v823 = vld [vmem:[#allocation9 + $0x140] sm:$0xff]
    %v824 = vld [vmem:[#allocation9 + $0x148] sm:$0xff]
    %v825 = vld [vmem:[#allocation9 + $0x150] sm:$0xff]
    %v826 = vld [vmem:[#allocation9 + $0x158] sm:$0xff]
    %v827 = vld [vmem:[#allocation9 + $0x160] sm:$0xff]
    %v828 = vld [vmem:[#allocation9 + $0x168] sm:$0xff]
    %v829 = vld [vmem:[#allocation9 + $0x170] sm:$0xff]
    %v830 = vld [vmem:[#allocation9 + $0x178] sm:$0xff]
    %v831 = vld [vmem:[#allocation9 + $0x180] sm:$0xff]
    %v832 = vld [vmem:[#allocation9 + $0x188] sm:$0xff]
    %v833 = vld [vmem:[#allocation9 + $0x190] sm:$0xff]
    %v834 = vld [vmem:[#allocation9 + $0x198] sm:$0xff]
    %v835 = vld [vmem:[#allocation9 + $0x1a0] sm:$0xff]
    %v836 = vld [vmem:[#allocation9 + $0x1a8] sm:$0xff]
    %v837 = vld [vmem:[#allocation9 + $0x1b0] sm:$0xff]
    %v838 = vld [vmem:[#allocation9 + $0x1b8] sm:$0xff]
    %v839 = vld [vmem:[#allocation9 + $0x1c0] sm:$0xff]
    %v840 = vld [vmem:[#allocation9 + $0x1c8] sm:$0xff]
    %v841 = vld [vmem:[#allocation9 + $0x1d0] sm:$0xff]
    %v842 = vld [vmem:[#allocation9 + $0x1d8] sm:$0xff]
    %v843 = vld [vmem:[#allocation9 + $0x1e0] sm:$0xff]
    %v844 = vld [vmem:[#allocation9 + $0x1e8] sm:$0xff]
    %v845 = vld [vmem:[#allocation9 + $0x1f0] sm:$0xff]
    %v846 = vld [vmem:[#allocation9 + $0x1f8] sm:$0xff]
    %v847 = vld [vmem:[#allocation9 + $0x200] sm:$0xff]
    %v848 = vld [vmem:[#allocation9 + $0x208] sm:$0xff]
    %v849 = vld [vmem:[#allocation9 + $0x210] sm:$0xff]
    %v850 = vld [vmem:[#allocation9 + $0x218] sm:$0xff]
    %v851 = vld [vmem:[#allocation9 + $0x220] sm:$0xff]
    %v852 = vld [vmem:[#allocation9 + $0x228] sm:$0xff]
    %v853 = vld [vmem:[#allocation9 + $0x230] sm:$0xff]
    %v854 = vld [vmem:[#allocation9 + $0x238] sm:$0xff]
    %v855 = vld [vmem:[#allocation9 + $0x240] sm:$0xff]
    %v856 = vld [vmem:[#allocation9 + $0x248] sm:$0xff]
    %v857 = vld [vmem:[#allocation9 + $0x250] sm:$0xff]
    %v858 = vld [vmem:[#allocation9 + $0x258] sm:$0xff]
    %v859 = vld [vmem:[#allocation9 + $0x260] sm:$0xff]
    %v860 = vld [vmem:[#allocation9 + $0x268] sm:$0xff]
    %v861 = vld [vmem:[#allocation9 + $0x270] sm:$0xff]
    %v862 = vld [vmem:[#allocation9 + $0x278] sm:$0xff]
    %v863 = vld [vmem:[#allocation9 + $0x280] sm:$0xff]
    %v864 = vld [vmem:[#allocation9 + $0x288] sm:$0xff]
    %v865 = vld [vmem:[#allocation9 + $0x290] sm:$0xff]
    %v866 = vld [vmem:[#allocation9 + $0x298] sm:$0xff]
    %v867 = vld [vmem:[#allocation9 + $0x2a0] sm:$0xff]
    %v868 = vld [vmem:[#allocation9 + $0x2a8] sm:$0xff]
    %v869 = vld [vmem:[#allocation9 + $0x2b0] sm:$0xff]
    %v870 = vld [vmem:[#allocation9 + $0x2b8] sm:$0xff]
    %v871 = vld [vmem:[#allocation9 + $0x2c0] sm:$0xff]
    %v872 = vld [vmem:[#allocation9 + $0x2c8] sm:$0xff]
    %v873 = vld [vmem:[#allocation9 + $0x2d0] sm:$0xff]
    %v874 = vld [vmem:[#allocation9 + $0x2d8] sm:$0xff]
    %v875 = vld [vmem:[#allocation9 + $0x2e0] sm:$0xff]
    %v876 = vld [vmem:[#allocation9 + $0x2e8] sm:$0xff]
    %v877 = vld [vmem:[#allocation9 + $0x2f0] sm:$0xff]
    %v878 = vld [vmem:[#allocation9 + $0x2f8] sm:$0xff]
    %v879 = vld [vmem:[#allocation9 + $0x300] sm:$0xff]
    %v880 = vld [vmem:[#allocation9 + $0x308] sm:$0xff]
    %v881 = vld [vmem:[#allocation9 + $0x310] sm:$0xff]
    %v882 = vld [vmem:[#allocation9 + $0x318] sm:$0xff]
    %v883 = vld [vmem:[#allocation9 + $0x320] sm:$0xff]
    %v884 = vld [vmem:[#allocation9 + $0x328] sm:$0xff]
    %v885 = vld [vmem:[#allocation9 + $0x330] sm:$0xff]
    %v886 = vld [vmem:[#allocation9 + $0x338] sm:$0xff]
    %v887 = vld [vmem:[#allocation9 + $0x340] sm:$0xff]
    %v888 = vld [vmem:[#allocation9 + $0x348] sm:$0xff]
    %v889 = vld [vmem:[#allocation9 + $0x350] sm:$0xff]
    %v890 = vld [vmem:[#allocation9 + $0x358] sm:$0xff]
    %v891 = vld [vmem:[#allocation9 + $0x360] sm:$0xff]
    %v892 = vld [vmem:[#allocation9 + $0x368] sm:$0xff]
    %v893 = vld [vmem:[#allocation9 + $0x370] sm:$0xff]
    %v894 = vld [vmem:[#allocation9 + $0x378] sm:$0xff]
    %v895 = vld [vmem:[#allocation9 + $0x380] sm:$0xff]
    %v896 = vld [vmem:[#allocation9 + $0x388] sm:$0xff]
    %v897 = vld [vmem:[#allocation9 + $0x390] sm:$0xff]
    %v898 = vld [vmem:[#allocation9 + $0x398] sm:$0xff]
    %v899 = vld [vmem:[#allocation9 + $0x3a0] sm:$0xff]
    %v900 = vld [vmem:[#allocation9 + $0x3a8] sm:$0xff]
    %v901 = vld [vmem:[#allocation9 + $0x3b0] sm:$0xff]
    %v902 = vld [vmem:[#allocation9 + $0x3b8] sm:$0xff]
    %v903 = vld [vmem:[#allocation9 + $0x3c0] sm:$0xff]
    %v904 = vld [vmem:[#allocation9 + $0x3c8] sm:$0xff]
    %v905 = vld [vmem:[#allocation9 + $0x3d0] sm:$0xff]
    %v906 = vld [vmem:[#allocation9 + $0x3d8] sm:$0xff]
    %v907 = vld [vmem:[#allocation9 + $0x3e0] sm:$0xff]
    %v908 = vld [vmem:[#allocation9 + $0x3e8] sm:$0xff]
    %v909 = vld [vmem:[#allocation9 + $0x3f0] sm:$0xff]
    %v910 = vld [vmem:[#allocation9 + $0x3f8] sm:$0xff]
    %v911 = vld [vmem:[#allocation9 + $0x400] sm:$0xff]
    %v912 = vld [vmem:[#allocation9 + $0x408] sm:$0xff]
    %v913 = vld [vmem:[#allocation9 + $0x410] sm:$0xff]
    %v914 = vld [vmem:[#allocation9 + $0x418] sm:$0xff]
    %v915 = vld [vmem:[#allocation9 + $0x420] sm:$0xff]
    %v916 = vld [vmem:[#allocation9 + $0x428] sm:$0xff]
    %v917 = vld [vmem:[#allocation9 + $0x430] sm:$0xff]
    %v918 = vld [vmem:[#allocation9 + $0x438] sm:$0xff]
    %v919 = vld [vmem:[#allocation9 + $0x440] sm:$0xff]
    %v920 = vld [vmem:[#allocation9 + $0x448] sm:$0xff]
    %v921 = vld [vmem:[#allocation9 + $0x450] sm:$0xff]
    %v922 = vld [vmem:[#allocation9 + $0x458] sm:$0xff]
    %v923 = vld [vmem:[#allocation9 + $0x460] sm:$0xff]
    %v924 = vld [vmem:[#allocation9 + $0x468] sm:$0xff]
    %v925 = vld [vmem:[#allocation9 + $0x470] sm:$0xff]
    %v926 = vld [vmem:[#allocation9 + $0x478] sm:$0xff]
    %v927 = vld [vmem:[#allocation9 + $0x480] sm:$0xff]
    %v928 = vld [vmem:[#allocation9 + $0x488] sm:$0xff]
    %v929 = vld [vmem:[#allocation9 + $0x490] sm:$0xff]
    %v930 = vld [vmem:[#allocation9 + $0x498] sm:$0xff]
    %v931 = vld [vmem:[#allocation9 + $0x4a0] sm:$0xff]
    %v932 = vld [vmem:[#allocation9 + $0x4a8] sm:$0xff]
    %v933 = vld [vmem:[#allocation9 + $0x4b0] sm:$0xff]
    %v934 = vld [vmem:[#allocation9 + $0x4b8] sm:$0xff]
    %v935 = vld [vmem:[#allocation9 + $0x4c0] sm:$0xff]
    %v936 = vld [vmem:[#allocation9 + $0x4c8] sm:$0xff]
    %v937 = vld [vmem:[#allocation9 + $0x4d0] sm:$0xff]
    %v938 = vld [vmem:[#allocation9 + $0x4d8] sm:$0xff]
    %v939 = vld [vmem:[#allocation9 + $0x4e0] sm:$0xff]
    %v940 = vld [vmem:[#allocation9 + $0x4e8] sm:$0xff]
    %v941 = vld [vmem:[#allocation9 + $0x4f0] sm:$0xff]
    %v942 = vld [vmem:[#allocation9 + $0x4f8] sm:$0xff]
    %v943 = vld [vmem:[#allocation9 + $0x500] sm:$0xff]
    %v944 = vld [vmem:[#allocation9 + $0x508] sm:$0xff]
    %v945 = vld [vmem:[#allocation9 + $0x510] sm:$0xff]
    %v946 = vld [vmem:[#allocation9 + $0x518] sm:$0xff]
    %v947 = vld [vmem:[#allocation9 + $0x520] sm:$0xff]
    %v948 = vld [vmem:[#allocation9 + $0x528] sm:$0xff]
    %v949 = vld [vmem:[#allocation9 + $0x530] sm:$0xff]
    %v950 = vld [vmem:[#allocation9 + $0x538] sm:$0xff]
    %v951 = vld [vmem:[#allocation9 + $0x540] sm:$0xff]
    %v952 = vld [vmem:[#allocation9 + $0x548] sm:$0xff]
    %v953 = vld [vmem:[#allocation9 + $0x550] sm:$0xff]
    %v954 = vld [vmem:[#allocation9 + $0x558] sm:$0xff]
    %v955 = vld [vmem:[#allocation9 + $0x560] sm:$0xff]
    %v956 = vld [vmem:[#allocation9 + $0x568] sm:$0xff]
    %v957 = vld [vmem:[#allocation9 + $0x570] sm:$0xff]
    %v958 = vld [vmem:[#allocation9 + $0x578] sm:$0xff]
    %v959 = vld [vmem:[#allocation9 + $0x580] sm:$0xff]
    %v960 = vld [vmem:[#allocation9 + $0x588] sm:$0xff]
    %v961 = vld [vmem:[#allocation9 + $0x590] sm:$0xff]
    %v962 = vld [vmem:[#allocation9 + $0x598] sm:$0xff]
    %v963 = vld [vmem:[#allocation9 + $0x5a0] sm:$0xff]
    %v964 = vld [vmem:[#allocation9 + $0x5a8] sm:$0xff]
    %v965 = vld [vmem:[#allocation9 + $0x5b0] sm:$0xff]
    %v966 = vld [vmem:[#allocation9 + $0x5b8] sm:$0xff]
    %v967 = vld [vmem:[#allocation9 + $0x5c0] sm:$0xff]
    %v968 = vld [vmem:[#allocation9 + $0x5c8] sm:$0xff]
    %v969 = vld [vmem:[#allocation9 + $0x5d0] sm:$0xff]
    %v970 = vld [vmem:[#allocation9 + $0x5d8] sm:$0xff]
    %v971 = vld [vmem:[#allocation9 + $0x5e0] sm:$0xff]
    %v972 = vld [vmem:[#allocation9 + $0x5e8] sm:$0xff]
    %v973 = vld [vmem:[#allocation9 + $0x5f0] sm:$0xff]
    %v974 = vld [vmem:[#allocation9 + $0x5f8] sm:$0xff]
    %v975 = vld [vmem:[#allocation9 + $0x600] sm:$0xff]
    %v976 = vld [vmem:[#allocation9 + $0x608] sm:$0xff]
    %v977 = vld [vmem:[#allocation9 + $0x610] sm:$0xff]
    %v978 = vld [vmem:[#allocation9 + $0x618] sm:$0xff]
    %v979 = vld [vmem:[#allocation9 + $0x620] sm:$0xff]
    %v980 = vld [vmem:[#allocation9 + $0x628] sm:$0xff]
    %v981 = vld [vmem:[#allocation9 + $0x630] sm:$0xff]
    %v982 = vld [vmem:[#allocation9 + $0x638] sm:$0xff]
    %v983 = vld [vmem:[#allocation9 + $0x640] sm:$0xff]
    %v984 = vld [vmem:[#allocation9 + $0x648] sm:$0xff]
    %v985 = vld [vmem:[#allocation9 + $0x650] sm:$0xff]
    %v986 = vld [vmem:[#allocation9 + $0x658] sm:$0xff]
    %v987 = vld [vmem:[#allocation9 + $0x660] sm:$0xff]
    %v988 = vld [vmem:[#allocation9 + $0x668] sm:$0xff]
    %v989 = vld [vmem:[#allocation9 + $0x670] sm:$0xff]
    %v990 = vld [vmem:[#allocation9 + $0x678] sm:$0xff]
    %v991 = vld [vmem:[#allocation9 + $0x680] sm:$0xff]
    %v992 = vld [vmem:[#allocation9 + $0x688] sm:$0xff]
    %v993 = vld [vmem:[#allocation9 + $0x690] sm:$0xff]
    %v994 = vld [vmem:[#allocation9 + $0x698] sm:$0xff]
    %v995 = vld [vmem:[#allocation9 + $0x6a0] sm:$0xff]
    %v996 = vld [vmem:[#allocation9 + $0x6a8] sm:$0xff]
    %v997 = vld [vmem:[#allocation9 + $0x6b0] sm:$0xff]
    %v998 = vld [vmem:[#allocation9 + $0x6b8] sm:$0xff]
    %v999 = vld [vmem:[#allocation9 + $0x6c0] sm:$0xff]
    %v1000 = vld [vmem:[#allocation9 + $0x6c8] sm:$0xff]
    %v1001 = vld [vmem:[#allocation9 + $0x6d0] sm:$0xff]
    %v1002 = vld [vmem:[#allocation9 + $0x6d8] sm:$0xff]
    %v1003 = vld [vmem:[#allocation9 + $0x6e0] sm:$0xff]
    %v1004 = vld [vmem:[#allocation9 + $0x6e8] sm:$0xff]
    %v1005 = vld [vmem:[#allocation9 + $0x6f0] sm:$0xff]
    %v1006 = vld [vmem:[#allocation9 + $0x6f8] sm:$0xff]
    %v1007 = vld [vmem:[#allocation9 + $0x700] sm:$0xff]
    %v1008 = vld [vmem:[#allocation9 + $0x708] sm:$0xff]
    %v1009 = vld [vmem:[#allocation9 + $0x710] sm:$0xff]
    %v1010 = vld [vmem:[#allocation9 + $0x718] sm:$0xff]
    %v1011 = vld [vmem:[#allocation9 + $0x720] sm:$0xff]
    %v1012 = vld [vmem:[#allocation9 + $0x728] sm:$0xff]
    %v1013 = vld [vmem:[#allocation9 + $0x730] sm:$0xff]
    %v1014 = vld [vmem:[#allocation9 + $0x738] sm:$0xff]
    %v1015 = vld [vmem:[#allocation9 + $0x740] sm:$0xff]
    %v1016 = vld [vmem:[#allocation9 + $0x748] sm:$0xff]
    %v1017 = vld [vmem:[#allocation9 + $0x750] sm:$0xff]
    %v1018 = vld [vmem:[#allocation9 + $0x758] sm:$0xff]
    %v1019 = vld [vmem:[#allocation9 + $0x760] sm:$0xff]
    %v1020 = vld [vmem:[#allocation9 + $0x768] sm:$0xff]
    %v1021 = vld [vmem:[#allocation9 + $0x770] sm:$0xff]
    %v1022 = vld [vmem:[#allocation9 + $0x778] sm:$0xff]
    %v1023 = vld [vmem:[#allocation9 + $0x780] sm:$0xff]
    %v1024 = vld [vmem:[#allocation9 + $0x788] sm:$0xff]
    %v1025 = vld [vmem:[#allocation9 + $0x790] sm:$0xff]
    %v1026 = vld [vmem:[#allocation9 + $0x798] sm:$0xff]
    %v1027 = vld [vmem:[#allocation9 + $0x7a0] sm:$0xff]
    %v1028 = vld [vmem:[#allocation9 + $0x7a8] sm:$0xff]
    %v1029 = vld [vmem:[#allocation9 + $0x7b0] sm:$0xff]
    %v1030 = vld [vmem:[#allocation9 + $0x7b8] sm:$0xff]
    %v1031 = vld [vmem:[#allocation9 + $0x7c0] sm:$0xff]
    %v1032 = vld [vmem:[#allocation9 + $0x7c8] sm:$0xff]
    %v1033 = vld [vmem:[#allocation9 + $0x7d0] sm:$0xff]
    %v1034 = vld [vmem:[#allocation9 + $0x7d8] sm:$0xff]
    %v1035 = vld [vmem:[#allocation9 + $0x7e0] sm:$0xff]
    %v1036 = vld [vmem:[#allocation9 + $0x7e8] sm:$0xff]
    %v1037 = vld [vmem:[#allocation9 + $0x7f0] sm:$0xff]
    %v1038 = vld [vmem:[#allocation9 + $0x7f8] sm:$0xff]
    %v1039 = vld [vmem:[#allocation2] sm:$0xff]
    %v1040 = vld [vmem:[#allocation2 + $0x8] sm:$0xff]
    %v1041 = vld [vmem:[#allocation2 + $0x10] sm:$0xff]
    %v1042 = vld [vmem:[#allocation2 + $0x18] sm:$0xff]
    %v1043 = vld [vmem:[#allocation2 + $0x20] sm:$0xff]
    %v1044 = vld [vmem:[#allocation2 + $0x28] sm:$0xff]
    %v1045 = vld [vmem:[#allocation2 + $0x30] sm:$0xff]
    %v1046 = vld [vmem:[#allocation2 + $0x38] sm:$0xff]
    %v1047 = vxor.u32 %v1039, 2147483648
    %v1048 = vxor.u32 %v1040, 2147483648
    %v1049 = vmul.f32 %v1047, 1.442695
    %v1050 = vpow.pop %v1049
    %v1051 = vmul.f32 %v1048, 1.442695
    %v1052 = vpow.pop %v1051
    %v1053 = vadd.f32 %v1050, 1.0
    %v1054 = vadd.f32 %v1052, 1.0
    %v1055 = vrcp.pop %v1053
    %v1056 = vmul.f32 1.0, %v1055
    %v1057 = vrcp.pop %v1054
    %v1058 = vmul.f32 1.0, %v1057
    %v1059 = vxor.u32 %v1041, 2147483648
    %v1060 = vxor.u32 %v1042, 2147483648
    %v1061 = vmul.f32 %v1059, 1.442695
    %v1062 = vpow.pop %v1061
    %v1063 = vmul.f32 %v1060, 1.442695
    %v1064 = vpow.pop %v1063
    %v1065 = vadd.f32 %v1062, 1.0
    %v1066 = vadd.f32 %v1064, 1.0
    %v1067 = vrcp.pop %v1065
    %v1068 = vmul.f32 1.0, %v1067
    %v1069 = vrcp.pop %v1066
    %v1070 = vmul.f32 1.0, %v1069
    %v1071 = vtanh.pop %v1043
    %v1072 = vtanh.pop %v1044
    %v1073 = vxor.u32 %v1045, 2147483648
    %v1074 = vxor.u32 %v1046, 2147483648
    %v1075 = vmul.f32 %v1073, 1.442695
    %v1076 = vpow.pop %v1075
    %v1077 = vmul.f32 %v1074, 1.442695
    %v1078 = vpow.pop %v1077
    %v1079 = vadd.f32 %v1076, 1.0
    %v1080 = vadd.f32 %v1078, 1.0
    %v1081 = vrcp.pop %v1079
    %v1082 = vmul.f32 1.0, %v1081
    %v1083 = vrcp.pop %v1080
    %v1084 = vmul.f32 1.0, %v1083
    %v1085 = vmul.f32 %v1068, 0.0
    %v1086 = vmul.f32 %v1070, 0.0
    %v1087 = vmul.f32 %v1056, %v1071
    %v1088 = vmul.f32 %v1058, %v1072
    %v1089 = vadd.f32 %v1085, %v1087
    %v1090 = vadd.f32 %v1086, %v1088
    %v1091 = vtanh.pop %v1089
    %v1092 = vtanh.pop %v1090
    %v1093 = vmul.f32 %v1082, %v1091
    %v1094 = vmul.f32 %v1084, %v1092
    %s1095 = smul.u32 8, 32
    %s1096 = smul.u32 %s1095, 8
    %s1097 = sshll.u32 %s1096, 4
    %1098 = dma.done [#allocation6], %s1097
    %v1099 = vld [vmem:[#allocation3] sm:$0xff]
    %v1100 = vld [vmem:[#allocation3 + $0x8] sm:$0xff]
    %v1101 = vld [vmem:[#allocation3 + $0x10] sm:$0xff]
    %v1102 = vld [vmem:[#allocation3 + $0x18] sm:$0xff]
    %v1103 = vld [vmem:[#allocation3 + $0x20] sm:$0xff]
    %v1104 = vld [vmem:[#allocation3 + $0x28] sm:$0xff]
    %v1105 = vld [vmem:[#allocation3 + $0x30] sm:$0xff]
    %v1106 = vld [vmem:[#allocation3 + $0x38] sm:$0xff]
    %v1107 = vld [vmem:[#allocation3 + $0x40] sm:$0xff]
    %v1108 = vld [vmem:[#allocation3 + $0x48] sm:$0xff]
    %v1109 = vld [vmem:[#allocation3 + $0x50] sm:$0xff]
    %v1110 = vld [vmem:[#allocation3 + $0x58] sm:$0xff]
    %v1111 = vld [vmem:[#allocation3 + $0x60] sm:$0xff]
    %v1112 = vld [vmem:[#allocation3 + $0x68] sm:$0xff]
    %v1113 = vld [vmem:[#allocation3 + $0x70] sm:$0xff]
    %v1114 = vld [vmem:[#allocation3 + $0x78] sm:$0xff]
    %v1115 = vld [vmem:[#allocation3 + $0x80] sm:$0xff]
    %v1116 = vld [vmem:[#allocation3 + $0x88] sm:$0xff]
    %v1117 = vld [vmem:[#allocation3 + $0x90] sm:$0xff]
    %v1118 = vld [vmem:[#allocation3 + $0x98] sm:$0xff]
    %v1119 = vld [vmem:[#allocation3 + $0xa0] sm:$0xff]
    %v1120 = vld [vmem:[#allocation3 + $0xa8] sm:$0xff]
    %v1121 = vld [vmem:[#allocation3 + $0xb0] sm:$0xff]
    %v1122 = vld [vmem:[#allocation3 + $0xb8] sm:$0xff]
    %v1123 = vld [vmem:[#allocation3 + $0xc0] sm:$0xff]
    %v1124 = vld [vmem:[#allocation3 + $0xc8] sm:$0xff]
    %v1125 = vld [vmem:[#allocation3 + $0xd0] sm:$0xff]
    %v1126 = vld [vmem:[#allocation3 + $0xd8] sm:$0xff]
    %v1127 = vld [vmem:[#allocation3 + $0xe0] sm:$0xff]
    %v1128 = vld [vmem:[#allocation3 + $0xe8] sm:$0xff]
    %v1129 = vld [vmem:[#allocation3 + $0xf0] sm:$0xff]
    %v1130 = vld [vmem:[#allocation3 + $0xf8] sm:$0xff]
    %v1131 = vld [vmem:[#allocation3 + $0x100] sm:$0xff]
    %v1132 = vld [vmem:[#allocation3 + $0x108] sm:$0xff]
    %v1133 = vld [vmem:[#allocation3 + $0x110] sm:$0xff]
    %v1134 = vld [vmem:[#allocation3 + $0x118] sm:$0xff]
    %v1135 = vld [vmem:[#allocation3 + $0x120] sm:$0xff]
    %v1136 = vld [vmem:[#allocation3 + $0x128] sm:$0xff]
    %v1137 = vld [vmem:[#allocation3 + $0x130] sm:$0xff]
    %v1138 = vld [vmem:[#allocation3 + $0x138] sm:$0xff]
    %v1139 = vld [vmem:[#allocation3 + $0x140] sm:$0xff]
    %v1140 = vld [vmem:[#allocation3 + $0x148] sm:$0xff]
    %v1141 = vld [vmem:[#allocation3 + $0x150] sm:$0xff]
    %v1142 = vld [vmem:[#allocation3 + $0x158] sm:$0xff]
    %v1143 = vld [vmem:[#allocation3 + $0x160] sm:$0xff]
    %v1144 = vld [vmem:[#allocation3 + $0x168] sm:$0xff]
    %v1145 = vld [vmem:[#allocation3 + $0x170] sm:$0xff]
    %v1146 = vld [vmem:[#allocation3 + $0x178] sm:$0xff]
    %v1147 = vld [vmem:[#allocation3 + $0x180] sm:$0xff]
    %v1148 = vld [vmem:[#allocation3 + $0x188] sm:$0xff]
    %v1149 = vld [vmem:[#allocation3 + $0x190] sm:$0xff]
    %v1150 = vld [vmem:[#allocation3 + $0x198] sm:$0xff]
    %v1151 = vld [vmem:[#allocation3 + $0x1a0] sm:$0xff]
    %v1152 = vld [vmem:[#allocation3 + $0x1a8] sm:$0xff]
    %v1153 = vld [vmem:[#allocation3 + $0x1b0] sm:$0xff]
    %v1154 = vld [vmem:[#allocation3 + $0x1b8] sm:$0xff]
    %v1155 = vld [vmem:[#allocation3 + $0x1c0] sm:$0xff]
    %v1156 = vld [vmem:[#allocation3 + $0x1c8] sm:$0xff]
    %v1157 = vld [vmem:[#allocation3 + $0x1d0] sm:$0xff]
    %v1158 = vld [vmem:[#allocation3 + $0x1d8] sm:$0xff]
    %v1159 = vld [vmem:[#allocation3 + $0x1e0] sm:$0xff]
    %v1160 = vld [vmem:[#allocation3 + $0x1e8] sm:$0xff]
    %v1161 = vld [vmem:[#allocation3 + $0x1f0] sm:$0xff]
    %v1162 = vld [vmem:[#allocation3 + $0x1f8] sm:$0xff]
    %v1163 = vld [vmem:[#allocation3 + $0x200] sm:$0xff]
    %v1164 = vld [vmem:[#allocation3 + $0x208] sm:$0xff]
    %v1165 = vld [vmem:[#allocation3 + $0x210] sm:$0xff]
    %v1166 = vld [vmem:[#allocation3 + $0x218] sm:$0xff]
    %v1167 = vld [vmem:[#allocation3 + $0x220] sm:$0xff]
    %v1168 = vld [vmem:[#allocation3 + $0x228] sm:$0xff]
    %v1169 = vld [vmem:[#allocation3 + $0x230] sm:$0xff]
    %v1170 = vld [vmem:[#allocation3 + $0x238] sm:$0xff]
    %v1171 = vld [vmem:[#allocation3 + $0x240] sm:$0xff]
    %v1172 = vld [vmem:[#allocation3 + $0x248] sm:$0xff]
    %v1173 = vld [vmem:[#allocation3 + $0x250] sm:$0xff]
    %v1174 = vld [vmem:[#allocation3 + $0x258] sm:$0xff]
    %v1175 = vld [vmem:[#allocation3 + $0x260] sm:$0xff]
    %v1176 = vld [vmem:[#allocation3 + $0x268] sm:$0xff]
    %v1177 = vld [vmem:[#allocation3 + $0x270] sm:$0xff]
    %v1178 = vld [vmem:[#allocation3 + $0x278] sm:$0xff]
    %v1179 = vld [vmem:[#allocation3 + $0x280] sm:$0xff]
    %v1180 = vld [vmem:[#allocation3 + $0x288] sm:$0xff]
    %v1181 = vld [vmem:[#allocation3 + $0x290] sm:$0xff]
    %v1182 = vld [vmem:[#allocation3 + $0x298] sm:$0xff]
    %v1183 = vld [vmem:[#allocation3 + $0x2a0] sm:$0xff]
    %v1184 = vld [vmem:[#allocation3 + $0x2a8] sm:$0xff]
    %v1185 = vld [vmem:[#allocation3 + $0x2b0] sm:$0xff]
    %v1186 = vld [vmem:[#allocation3 + $0x2b8] sm:$0xff]
    %v1187 = vld [vmem:[#allocation3 + $0x2c0] sm:$0xff]
    %v1188 = vld [vmem:[#allocation3 + $0x2c8] sm:$0xff]
    %v1189 = vld [vmem:[#allocation3 + $0x2d0] sm:$0xff]
    %v1190 = vld [vmem:[#allocation3 + $0x2d8] sm:$0xff]
    %v1191 = vld [vmem:[#allocation3 + $0x2e0] sm:$0xff]
    %v1192 = vld [vmem:[#allocation3 + $0x2e8] sm:$0xff]
    %v1193 = vld [vmem:[#allocation3 + $0x2f0] sm:$0xff]
    %v1194 = vld [vmem:[#allocation3 + $0x2f8] sm:$0xff]
    %v1195 = vld [vmem:[#allocation3 + $0x300] sm:$0xff]
    %v1196 = vld [vmem:[#allocation3 + $0x308] sm:$0xff]
    %v1197 = vld [vmem:[#allocation3 + $0x310] sm:$0xff]
    %v1198 = vld [vmem:[#allocation3 + $0x318] sm:$0xff]
    %v1199 = vld [vmem:[#allocation3 + $0x320] sm:$0xff]
    %v1200 = vld [vmem:[#allocation3 + $0x328] sm:$0xff]
    %v1201 = vld [vmem:[#allocation3 + $0x330] sm:$0xff]
    %v1202 = vld [vmem:[#allocation3 + $0x338] sm:$0xff]
    %v1203 = vld [vmem:[#allocation3 + $0x340] sm:$0xff]
    %v1204 = vld [vmem:[#allocation3 + $0x348] sm:$0xff]
    %v1205 = vld [vmem:[#allocation3 + $0x350] sm:$0xff]
    %v1206 = vld [vmem:[#allocation3 + $0x358] sm:$0xff]
    %v1207 = vld [vmem:[#allocation3 + $0x360] sm:$0xff]
    %v1208 = vld [vmem:[#allocation3 + $0x368] sm:$0xff]
    %v1209 = vld [vmem:[#allocation3 + $0x370] sm:$0xff]
    %v1210 = vld [vmem:[#allocation3 + $0x378] sm:$0xff]
    %v1211 = vld [vmem:[#allocation3 + $0x380] sm:$0xff]
    %v1212 = vld [vmem:[#allocation3 + $0x388] sm:$0xff]
    %v1213 = vld [vmem:[#allocation3 + $0x390] sm:$0xff]
    %v1214 = vld [vmem:[#allocation3 + $0x398] sm:$0xff]
    %v1215 = vld [vmem:[#allocation3 + $0x3a0] sm:$0xff]
    %v1216 = vld [vmem:[#allocation3 + $0x3a8] sm:$0xff]
    %v1217 = vld [vmem:[#allocation3 + $0x3b0] sm:$0xff]
    %v1218 = vld [vmem:[#allocation3 + $0x3b8] sm:$0xff]
    %v1219 = vld [vmem:[#allocation3 + $0x3c0] sm:$0xff]
    %v1220 = vld [vmem:[#allocation3 + $0x3c8] sm:$0xff]
    %v1221 = vld [vmem:[#allocation3 + $0x3d0] sm:$0xff]
    %v1222 = vld [vmem:[#allocation3 + $0x3d8] sm:$0xff]
    %v1223 = vld [vmem:[#allocation3 + $0x3e0] sm:$0xff]
    %v1224 = vld [vmem:[#allocation3 + $0x3e8] sm:$0xff]
    %v1225 = vld [vmem:[#allocation3 + $0x3f0] sm:$0xff]
    %v1226 = vld [vmem:[#allocation3 + $0x3f8] sm:$0xff]
    %v1227 = vld [vmem:[#allocation3 + $0x400] sm:$0xff]
    %v1228 = vld [vmem:[#allocation3 + $0x408] sm:$0xff]
    %v1229 = vld [vmem:[#allocation3 + $0x410] sm:$0xff]
    %v1230 = vld [vmem:[#allocation3 + $0x418] sm:$0xff]
    %v1231 = vld [vmem:[#allocation3 + $0x420] sm:$0xff]
    %v1232 = vld [vmem:[#allocation3 + $0x428] sm:$0xff]
    %v1233 = vld [vmem:[#allocation3 + $0x430] sm:$0xff]
    %v1234 = vld [vmem:[#allocation3 + $0x438] sm:$0xff]
    %v1235 = vld [vmem:[#allocation3 + $0x440] sm:$0xff]
    %v1236 = vld [vmem:[#allocation3 + $0x448] sm:$0xff]
    %v1237 = vld [vmem:[#allocation3 + $0x450] sm:$0xff]
    %v1238 = vld [vmem:[#allocation3 + $0x458] sm:$0xff]
    %v1239 = vld [vmem:[#allocation3 + $0x460] sm:$0xff]
    %v1240 = vld [vmem:[#allocation3 + $0x468] sm:$0xff]
    %v1241 = vld [vmem:[#allocation3 + $0x470] sm:$0xff]
    %v1242 = vld [vmem:[#allocation3 + $0x478] sm:$0xff]
    %v1243 = vld [vmem:[#allocation3 + $0x480] sm:$0xff]
    %v1244 = vld [vmem:[#allocation3 + $0x488] sm:$0xff]
    %v1245 = vld [vmem:[#allocation3 + $0x490] sm:$0xff]
    %v1246 = vld [vmem:[#allocation3 + $0x498] sm:$0xff]
    %v1247 = vld [vmem:[#allocation3 + $0x4a0] sm:$0xff]
    %v1248 = vld [vmem:[#allocation3 + $0x4a8] sm:$0xff]
    %v1249 = vld [vmem:[#allocation3 + $0x4b0] sm:$0xff]
    %v1250 = vld [vmem:[#allocation3 + $0x4b8] sm:$0xff]
    %v1251 = vld [vmem:[#allocation3 + $0x4c0] sm:$0xff]
    %v1252 = vld [vmem:[#allocation3 + $0x4c8] sm:$0xff]
    %v1253 = vld [vmem:[#allocation3 + $0x4d0] sm:$0xff]
    %v1254 = vld [vmem:[#allocation3 + $0x4d8] sm:$0xff]
    %v1255 = vld [vmem:[#allocation3 + $0x4e0] sm:$0xff]
    %v1256 = vld [vmem:[#allocation3 + $0x4e8] sm:$0xff]
    %v1257 = vld [vmem:[#allocation3 + $0x4f0] sm:$0xff]
    %v1258 = vld [vmem:[#allocation3 + $0x4f8] sm:$0xff]
    %v1259 = vld [vmem:[#allocation3 + $0x500] sm:$0xff]
    %v1260 = vld [vmem:[#allocation3 + $0x508] sm:$0xff]
    %v1261 = vld [vmem:[#allocation3 + $0x510] sm:$0xff]
    %v1262 = vld [vmem:[#allocation3 + $0x518] sm:$0xff]
    %v1263 = vld [vmem:[#allocation3 + $0x520] sm:$0xff]
    %v1264 = vld [vmem:[#allocation3 + $0x528] sm:$0xff]
    %v1265 = vld [vmem:[#allocation3 + $0x530] sm:$0xff]
    %v1266 = vld [vmem:[#allocation3 + $0x538] sm:$0xff]
    %v1267 = vld [vmem:[#allocation3 + $0x540] sm:$0xff]
    %v1268 = vld [vmem:[#allocation3 + $0x548] sm:$0xff]
    %v1269 = vld [vmem:[#allocation3 + $0x550] sm:$0xff]
    %v1270 = vld [vmem:[#allocation3 + $0x558] sm:$0xff]
    %v1271 = vld [vmem:[#allocation3 + $0x560] sm:$0xff]
    %v1272 = vld [vmem:[#allocation3 + $0x568] sm:$0xff]
    %v1273 = vld [vmem:[#allocation3 + $0x570] sm:$0xff]
    %v1274 = vld [vmem:[#allocation3 + $0x578] sm:$0xff]
    %v1275 = vld [vmem:[#allocation3 + $0x580] sm:$0xff]
    %v1276 = vld [vmem:[#allocation3 + $0x588] sm:$0xff]
    %v1277 = vld [vmem:[#allocation3 + $0x590] sm:$0xff]
    %v1278 = vld [vmem:[#allocation3 + $0x598] sm:$0xff]
    %v1279 = vld [vmem:[#allocation3 + $0x5a0] sm:$0xff]
    %v1280 = vld [vmem:[#allocation3 + $0x5a8] sm:$0xff]
    %v1281 = vld [vmem:[#allocation3 + $0x5b0] sm:$0xff]
    %v1282 = vld [vmem:[#allocation3 + $0x5b8] sm:$0xff]
    %v1283 = vld [vmem:[#allocation3 + $0x5c0] sm:$0xff]
    %v1284 = vld [vmem:[#allocation3 + $0x5c8] sm:$0xff]
    %v1285 = vld [vmem:[#allocation3 + $0x5d0] sm:$0xff]
    %v1286 = vld [vmem:[#allocation3 + $0x5d8] sm:$0xff]
    %v1287 = vld [vmem:[#allocation3 + $0x5e0] sm:$0xff]
    %v1288 = vld [vmem:[#allocation3 + $0x5e8] sm:$0xff]
    %v1289 = vld [vmem:[#allocation3 + $0x5f0] sm:$0xff]
    %v1290 = vld [vmem:[#allocation3 + $0x5f8] sm:$0xff]
    %v1291 = vld [vmem:[#allocation3 + $0x600] sm:$0xff]
    %v1292 = vld [vmem:[#allocation3 + $0x608] sm:$0xff]
    %v1293 = vld [vmem:[#allocation3 + $0x610] sm:$0xff]
    %v1294 = vld [vmem:[#allocation3 + $0x618] sm:$0xff]
    %v1295 = vld [vmem:[#allocation3 + $0x620] sm:$0xff]
    %v1296 = vld [vmem:[#allocation3 + $0x628] sm:$0xff]
    %v1297 = vld [vmem:[#allocation3 + $0x630] sm:$0xff]
    %v1298 = vld [vmem:[#allocation3 + $0x638] sm:$0xff]
    %v1299 = vld [vmem:[#allocation3 + $0x640] sm:$0xff]
    %v1300 = vld [vmem:[#allocation3 + $0x648] sm:$0xff]
    %v1301 = vld [vmem:[#allocation3 + $0x650] sm:$0xff]
    %v1302 = vld [vmem:[#allocation3 + $0x658] sm:$0xff]
    %v1303 = vld [vmem:[#allocation3 + $0x660] sm:$0xff]
    %v1304 = vld [vmem:[#allocation3 + $0x668] sm:$0xff]
    %v1305 = vld [vmem:[#allocation3 + $0x670] sm:$0xff]
    %v1306 = vld [vmem:[#allocation3 + $0x678] sm:$0xff]
    %v1307 = vld [vmem:[#allocation3 + $0x680] sm:$0xff]
    %v1308 = vld [vmem:[#allocation3 + $0x688] sm:$0xff]
    %v1309 = vld [vmem:[#allocation3 + $0x690] sm:$0xff]
    %v1310 = vld [vmem:[#allocation3 + $0x698] sm:$0xff]
    %v1311 = vld [vmem:[#allocation3 + $0x6a0] sm:$0xff]
    %v1312 = vld [vmem:[#allocation3 + $0x6a8] sm:$0xff]
    %v1313 = vld [vmem:[#allocation3 + $0x6b0] sm:$0xff]
    %v1314 = vld [vmem:[#allocation3 + $0x6b8] sm:$0xff]
    %v1315 = vld [vmem:[#allocation3 + $0x6c0] sm:$0xff]
    %v1316 = vld [vmem:[#allocation3 + $0x6c8] sm:$0xff]
    %v1317 = vld [vmem:[#allocation3 + $0x6d0] sm:$0xff]
    %v1318 = vld [vmem:[#allocation3 + $0x6d8] sm:$0xff]
    %v1319 = vld [vmem:[#allocation3 + $0x6e0] sm:$0xff]
    %v1320 = vld [vmem:[#allocation3 + $0x6e8] sm:$0xff]
    %v1321 = vld [vmem:[#allocation3 + $0x6f0] sm:$0xff]
    %v1322 = vld [vmem:[#allocation3 + $0x6f8] sm:$0xff]
    %v1323 = vld [vmem:[#allocation3 + $0x700] sm:$0xff]
    %v1324 = vld [vmem:[#allocation3 + $0x708] sm:$0xff]
    %v1325 = vld [vmem:[#allocation3 + $0x710] sm:$0xff]
    %v1326 = vld [vmem:[#allocation3 + $0x718] sm:$0xff]
    %v1327 = vld [vmem:[#allocation3 + $0x720] sm:$0xff]
    %v1328 = vld [vmem:[#allocation3 + $0x728] sm:$0xff]
    %v1329 = vld [vmem:[#allocation3 + $0x730] sm:$0xff]
    %v1330 = vld [vmem:[#allocation3 + $0x738] sm:$0xff]
    %v1331 = vld [vmem:[#allocation3 + $0x740] sm:$0xff]
    %v1332 = vld [vmem:[#allocation3 + $0x748] sm:$0xff]
    %v1333 = vld [vmem:[#allocation3 + $0x750] sm:$0xff]
    %v1334 = vld [vmem:[#allocation3 + $0x758] sm:$0xff]
    %v1335 = vld [vmem:[#allocation3 + $0x760] sm:$0xff]
    %v1336 = vld [vmem:[#allocation3 + $0x768] sm:$0xff]
    %v1337 = vld [vmem:[#allocation3 + $0x770] sm:$0xff]
    %v1338 = vld [vmem:[#allocation3 + $0x778] sm:$0xff]
    %v1339 = vld [vmem:[#allocation3 + $0x780] sm:$0xff]
    %v1340 = vld [vmem:[#allocation3 + $0x788] sm:$0xff]
    %v1341 = vld [vmem:[#allocation3 + $0x790] sm:$0xff]
    %v1342 = vld [vmem:[#allocation3 + $0x798] sm:$0xff]
    %v1343 = vld [vmem:[#allocation3 + $0x7a0] sm:$0xff]
    %v1344 = vld [vmem:[#allocation3 + $0x7a8] sm:$0xff]
    %v1345 = vld [vmem:[#allocation3 + $0x7b0] sm:$0xff]
    %v1346 = vld [vmem:[#allocation3 + $0x7b8] sm:$0xff]
    %v1347 = vld [vmem:[#allocation3 + $0x7c0] sm:$0xff]
    %v1348 = vld [vmem:[#allocation3 + $0x7c8] sm:$0xff]
    %v1349 = vld [vmem:[#allocation3 + $0x7d0] sm:$0xff]
    %v1350 = vld [vmem:[#allocation3 + $0x7d8] sm:$0xff]
    %v1351 = vld [vmem:[#allocation3 + $0x7e0] sm:$0xff]
    %v1352 = vld [vmem:[#allocation3 + $0x7e8] sm:$0xff]
    %v1353 = vld [vmem:[#allocation3 + $0x7f0] sm:$0xff]
    %v1354 = vld [vmem:[#allocation3 + $0x7f8] sm:$0xff]
    %v1355 = vld [vmem:[%s4] sm:$0xff]
    %v1357 = vlaneseq
    %v1358 = vshrl.u32 %v1357, 7
    %v1359 = vsub.s32 0, %v1358
    %v1360 = vrot.slane %v1355, %v1359
    %v1361 = vlaneseq
    %v1362 = vshrl.u32 %v1361, 7
    %v1363 = vsub.s32 1, %v1362
    %v1364 = vrot.slane %v1355, %v1363
    %v1365 = vlaneseq
    %v1366 = vshrl.u32 %v1365, 7
    %v1367 = vsub.s32 2, %v1366
    %v1368 = vrot.slane %v1355, %v1367
    %v1369 = vlaneseq
    %v1370 = vshrl.u32 %v1369, 7
    %v1371 = vsub.s32 3, %v1370
    %v1372 = vrot.slane %v1355, %v1371
    %v1373 = vlaneseq
    %v1374 = vshrl.u32 %v1373, 7
    %v1375 = vsub.s32 4, %v1374
    %v1376 = vrot.slane %v1355, %v1375
    %v1377 = vlaneseq
    %v1378 = vshrl.u32 %v1377, 7
    %v1379 = vsub.s32 5, %v1378
    %v1380 = vrot.slane %v1355, %v1379
    %v1381 = vlaneseq
    %v1382 = vshrl.u32 %v1381, 7
    %v1383 = vsub.s32 6, %v1382
    %v1384 = vrot.slane %v1355, %v1383
    %v1385 = vlaneseq
    %v1386 = vshrl.u32 %v1385, 7
    %v1387 = vsub.s32 7, %v1386
    %v1388 = vrot.slane %v1355, %v1387
    %1397 = vmatprep.subr.mxu0 %v1100
    %1398 = vmatpush1.msra.mxu0 %v1099
    %1399 = vmatprep.subr.mxu0 %v1108
    %1400 = vmatpush1.msra.mxu0 %v1107
    %1401 = vmatprep.subr.mxu0 %v1116
    %1402 = vmatpush1.msra.mxu0 %v1115
    %1403 = vmatprep.subr.mxu0 %v1124
    %1404 = vmatpush1.msra.mxu0 %v1123
    %1405 = vmatprep.subr.mxu0 %v1132
    %1406 = vmatpush1.msra.mxu0 %v1131
    %1407 = vmatprep.subr.mxu0 %v1140
    %1408 = vmatpush1.msra.mxu0 %v1139
    %1409 = vmatprep.subr.mxu0 %v1148
    %1410 = vmatpush1.msra.mxu0 %v1147
    %1411 = vmatprep.subr.mxu0 %v1156
    %1412 = vmatpush1.msra.mxu0 %v1155
    %1413 = vmatprep.subr.mxu0 %v1164
    %1414 = vmatpush1.msra.mxu0 %v1163
    %1415 = vmatprep.subr.mxu0 %v1172
    %1416 = vmatpush1.msra.mxu0 %v1171
    %1417 = vmatprep.subr.mxu0 %v1180
    %1418 = vmatpush1.msra.mxu0 %v1179
    %1419 = vmatprep.subr.mxu0 %v1188
    %1420 = vmatpush1.msra.mxu0 %v1187
    %1421 = vmatprep.subr.mxu0 %v1196
    %1422 = vmatpush1.msra.mxu0 %v1195
    %1423 = vmatprep.subr.mxu0 %v1204
    %1424 = vmatpush1.msra.mxu0 %v1203
    %1425 = vmatprep.subr.mxu0 %v1212
    %1426 = vmatpush1.msra.mxu0 %v1211
    %1427 = vmatprep.subr.mxu0 %v1220
    %1428 = vmatpush1.msra.mxu0 %v1219
    %1429 = vmatprep.subr.mxu0 %v1228
    %1430 = vmatpush1.msra.mxu0 %v1227
    %1431 = vmatprep.subr.mxu0 %v1236
    %1432 = vmatpush1.msra.mxu0 %v1235
    %1433 = vmatprep.subr.mxu0 %v1244
    %1434 = vmatpush1.msra.mxu0 %v1243
    %1435 = vmatprep.subr.mxu0 %v1252
    %1436 = vmatpush1.msra.mxu0 %v1251
    %1437 = vmatprep.subr.mxu0 %v1260
    %1438 = vmatpush1.msra.mxu0 %v1259
    %1439 = vmatprep.subr.mxu0 %v1268
    %1440 = vmatpush1.msra.mxu0 %v1267
    %1441 = vmatprep.subr.mxu0 %v1276
    %1442 = vmatpush1.msra.mxu0 %v1275
    %1443 = vmatprep.subr.mxu0 %v1284
    %1444 = vmatpush1.msra.mxu0 %v1283
    %1445 = vmatprep.subr.mxu0 %v1292
    %1446 = vmatpush1.msra.mxu0 %v1291
    %1447 = vmatprep.subr.mxu0 %v1300
    %1448 = vmatpush1.msra.mxu0 %v1299
    %1449 = vmatprep.subr.mxu0 %v1308
    %1450 = vmatpush1.msra.mxu0 %v1307
    %1451 = vmatprep.subr.mxu0 %v1316
    %1452 = vmatpush1.msra.mxu0 %v1315
    %1453 = vmatprep.subr.mxu0 %v1324
    %1454 = vmatpush1.msra.mxu0 %v1323
    %1455 = vmatprep.subr.mxu0 %v1332
    %1456 = vmatpush1.msra.mxu0 %v1331
    %1457 = vmatprep.subr.mxu0 %v1340
    %1458 = vmatpush1.msra.mxu0 %v1339
    %1459 = vmatprep.subr.mxu0 %v1348
    %1460 = vmatpush1.msra.mxu0 %v1347
    %1461 = vmatprep.mubr.f32.mxu0 %v1094
    %1462 = vmatmul.mubr.f32.gmra.mrb[0].mxu0 %v1093
    %v1463 = vpop.f32.mrb[0].mxu0
    %v1464 = vadd.f32 %v1360, %v1463
    %v1465 = vpop.f32.mrb[0].mxu0
    %v1466 = vadd.f32 %v1364, %v1465
    %1467 = vdwg.mxu0
    %1468 = vmatprep.subr.mxu0 %v1102
    %1469 = vmatpush1.msra.mxu0 %v1101
    %1470 = vmatprep.subr.mxu0 %v1110
    %1471 = vmatpush1.msra.mxu0 %v1109
    %1472 = vmatprep.subr.mxu0 %v1118
    %1473 = vmatpush1.msra.mxu0 %v1117
    %1474 = vmatprep.subr.mxu0 %v1126
    %1475 = vmatpush1.msra.mxu0 %v1125
    %1476 = vmatprep.subr.mxu0 %v1134
    %1477 = vmatpush1.msra.mxu0 %v1133
    %1478 = vmatprep.subr.mxu0 %v1142
    %1479 = vmatpush1.msra.mxu0 %v1141
    %1480 = vmatprep.subr.mxu0 %v1150
    %1481 = vmatpush1.msra.mxu0 %v1149
    %1482 = vmatprep.subr.mxu0 %v1158
    %1483 = vmatpush1.msra.mxu0 %v1157
    %1484 = vmatprep.subr.mxu0 %v1166
    %1485 = vmatpush1.msra.mxu0 %v1165
    %1486 = vmatprep.subr.mxu0 %v1174
    %1487 = vmatpush1.msra.mxu0 %v1173
    %1488 = vmatprep.subr.mxu0 %v1182
    %1489 = vmatpush1.msra.mxu0 %v1181
    %1490 = vmatprep.subr.mxu0 %v1190
    %1491 = vmatpush1.msra.mxu0 %v1189
    %1492 = vmatprep.subr.mxu0 %v1198
    %1493 = vmatpush1.msra.mxu0 %v1197
    %1494 = vmatprep.subr.mxu0 %v1206
    %1495 = vmatpush1.msra.mxu0 %v1205
    %1496 = vmatprep.subr.mxu0 %v1214
    %1497 = vmatpush1.msra.mxu0 %v1213
    %1498 = vmatprep.subr.mxu0 %v1222
    %1499 = vmatpush1.msra.mxu0 %v1221
    %1500 = vmatprep.subr.mxu0 %v1230
    %1501 = vmatpush1.msra.mxu0 %v1229
    %1502 = vmatprep.subr.mxu0 %v1238
    %1503 = vmatpush1.msra.mxu0 %v1237
    %1504 = vmatprep.subr.mxu0 %v1246
    %1505 = vmatpush1.msra.mxu0 %v1245
    %1506 = vmatprep.subr.mxu0 %v1254
    %1507 = vmatpush1.msra.mxu0 %v1253
    %1508 = vmatprep.subr.mxu0 %v1262
    %1509 = vmatpush1.msra.mxu0 %v1261
    %1510 = vmatprep.subr.mxu0 %v1270
    %1511 = vmatpush1.msra.mxu0 %v1269
    %1512 = vmatprep.subr.mxu0 %v1278
    %1513 = vmatpush1.msra.mxu0 %v1277
    %1514 = vmatprep.subr.mxu0 %v1286
    %1515 = vmatpush1.msra.mxu0 %v1285
    %1516 = vmatprep.subr.mxu0 %v1294
    %1517 = vmatpush1.msra.mxu0 %v1293
    %1518 = vmatprep.subr.mxu0 %v1302
    %1519 = vmatpush1.msra.mxu0 %v1301
    %1520 = vmatprep.subr.mxu0 %v1310
    %1521 = vmatpush1.msra.mxu0 %v1309
    %1522 = vmatprep.subr.mxu0 %v1318
    %1523 = vmatpush1.msra.mxu0 %v1317
    %1524 = vmatprep.subr.mxu0 %v1326
    %1525 = vmatpush1.msra.mxu0 %v1325
    %1526 = vmatprep.subr.mxu0 %v1334
    %1527 = vmatpush1.msra.mxu0 %v1333
    %1528 = vmatprep.subr.mxu0 %v1342
    %1529 = vmatpush1.msra.mxu0 %v1341
    %1530 = vmatprep.subr.mxu0 %v1350
    %1531 = vmatpush1.msra.mxu0 %v1349
    %1532 = vmatprep.mubr.f32.mxu0 %v1094
    %1533 = vmatmul.mubr.f32.gmra.mrb[0].mxu0 %v1093
    %v1534 = vpop.f32.mrb[0].mxu0
    %v1535 = vadd.f32 %v1368, %v1534
    %v1536 = vpop.f32.mrb[0].mxu0
    %v1537 = vadd.f32 %v1372, %v1536
    %1538 = vdwg.mxu0
    %1539 = vmatprep.subr.mxu0 %v1104
    %1540 = vmatpush1.msra.mxu0 %v1103
    %1541 = vmatprep.subr.mxu0 %v1112
    %1542 = vmatpush1.msra.mxu0 %v1111
    %1543 = vmatprep.subr.mxu0 %v1120
    %1544 = vmatpush1.msra.mxu0 %v1119
    %1545 = vmatprep.subr.mxu0 %v1128
    %1546 = vmatpush1.msra.mxu0 %v1127
    %1547 = vmatprep.subr.mxu0 %v1136
    %1548 = vmatpush1.msra.mxu0 %v1135
    %1549 = vmatprep.subr.mxu0 %v1144
    %1550 = vmatpush1.msra.mxu0 %v1143
    %1551 = vmatprep.subr.mxu0 %v1152
    %1552 = vmatpush1.msra.mxu0 %v1151
    %1553 = vmatprep.subr.mxu0 %v1160
    %1554 = vmatpush1.msra.mxu0 %v1159
    %1555 = vmatprep.subr.mxu0 %v1168
    %1556 = vmatpush1.msra.mxu0 %v1167
    %1557 = vmatprep.subr.mxu0 %v1176
    %1558 = vmatpush1.msra.mxu0 %v1175
    %1559 = vmatprep.subr.mxu0 %v1184
    %1560 = vmatpush1.msra.mxu0 %v1183
    %1561 = vmatprep.subr.mxu0 %v1192
    %1562 = vmatpush1.msra.mxu0 %v1191
    %1563 = vmatprep.subr.mxu0 %v1200
    %1564 = vmatpush1.msra.mxu0 %v1199
    %1565 = vmatprep.subr.mxu0 %v1208
    %1566 = vmatpush1.msra.mxu0 %v1207
    %1567 = vmatprep.subr.mxu0 %v1216
    %1568 = vmatpush1.msra.mxu0 %v1215
    %1569 = vmatprep.subr.mxu0 %v1224
    %1570 = vmatpush1.msra.mxu0 %v1223
    %1571 = vmatprep.subr.mxu0 %v1232
    %1572 = vmatpush1.msra.mxu0 %v1231
    %1573 = vmatprep.subr.mxu0 %v1240
    %1574 = vmatpush1.msra.mxu0 %v1239
    %1575 = vmatprep.subr.mxu0 %v1248
    %1576 = vmatpush1.msra.mxu0 %v1247
    %1577 = vmatprep.subr.mxu0 %v1256
    %1578 = vmatpush1.msra.mxu0 %v1255
    %1579 = vmatprep.subr.mxu0 %v1264
    %1580 = vmatpush1.msra.mxu0 %v1263
    %1581 = vmatprep.subr.mxu0 %v1272
    %1582 = vmatpush1.msra.mxu0 %v1271
    %1583 = vmatprep.subr.mxu0 %v1280
    %1584 = vmatpush1.msra.mxu0 %v1279
    %1585 = vmatprep.subr.mxu0 %v1288
    %1586 = vmatpush1.msra.mxu0 %v1287
    %1587 = vmatprep.subr.mxu0 %v1296
    %1588 = vmatpush1.msra.mxu0 %v1295
    %1589 = vmatprep.subr.mxu0 %v1304
    %1590 = vmatpush1.msra.mxu0 %v1303
    %1591 = vmatprep.subr.mxu0 %v1312
    %1592 = vmatpush1.msra.mxu0 %v1311
    %1593 = vmatprep.subr.mxu0 %v1320
    %1594 = vmatpush1.msra.mxu0 %v1319
    %1595 = vmatprep.subr.mxu0 %v1328
    %1596 = vmatpush1.msra.mxu0 %v1327
    %1597 = vmatprep.subr.mxu0 %v1336
    %1598 = vmatpush1.msra.mxu0 %v1335
    %1599 = vmatprep.subr.mxu0 %v1344
    %1600 = vmatpush1.msra.mxu0 %v1343
    %1601 = vmatprep.subr.mxu0 %v1352
    %1602 = vmatpush1.msra.mxu0 %v1351
    %1603 = vmatprep.mubr.f32.mxu0 %v1094
    %1604 = vmatmul.mubr.f32.gmra.mrb[0].mxu0 %v1093
    %v1605 = vpop.f32.mrb[0].mxu0
    %v1606 = vadd.f32 %v1376, %v1605
    %v1607 = vpop.f32.mrb[0].mxu0
    %v1608 = vadd.f32 %v1380, %v1607
    %1609 = vdwg.mxu0
    %1610 = vmatprep.subr.mxu0 %v1106
    %1611 = vmatpush1.msra.mxu0 %v1105
    %1612 = vmatprep.subr.mxu0 %v1114
    %1613 = vmatpush1.msra.mxu0 %v1113
    %1614 = vmatprep.subr.mxu0 %v1122
    %1615 = vmatpush1.msra.mxu0 %v1121
    %1616 = vmatprep.subr.mxu0 %v1130
    %1617 = vmatpush1.msra.mxu0 %v1129
    %1618 = vmatprep.subr.mxu0 %v1138
    %1619 = vmatpush1.msra.mxu0 %v1137
    %1620 = vmatprep.subr.mxu0 %v1146
    %1621 = vmatpush1.msra.mxu0 %v1145
    %1622 = vmatprep.subr.mxu0 %v1154
    %1623 = vmatpush1.msra.mxu0 %v1153
    %1624 = vmatprep.subr.mxu0 %v1162
    %1625 = vmatpush1.msra.mxu0 %v1161
    %1626 = vmatprep.subr.mxu0 %v1170
    %1627 = vmatpush1.msra.mxu0 %v1169
    %1628 = vmatprep.subr.mxu0 %v1178
    %1629 = vmatpush1.msra.mxu0 %v1177
    %1630 = vmatprep.subr.mxu0 %v1186
    %1631 = vmatpush1.msra.mxu0 %v1185
    %1632 = vmatprep.subr.mxu0 %v1194
    %1633 = vmatpush1.msra.mxu0 %v1193
    %1634 = vmatprep.subr.mxu0 %v1202
    %1635 = vmatpush1.msra.mxu0 %v1201
    %1636 = vmatprep.subr.mxu0 %v1210
    %1637 = vmatpush1.msra.mxu0 %v1209
    %1638 = vmatprep.subr.mxu0 %v1218
    %1639 = vmatpush1.msra.mxu0 %v1217
    %1640 = vmatprep.subr.mxu0 %v1226
    %1641 = vmatpush1.msra.mxu0 %v1225
    %1642 = vmatprep.subr.mxu0 %v1234
    %1643 = vmatpush1.msra.mxu0 %v1233
    %1644 = vmatprep.subr.mxu0 %v1242
    %1645 = vmatpush1.msra.mxu0 %v1241
    %1646 = vmatprep.subr.mxu0 %v1250
    %1647 = vmatpush1.msra.mxu0 %v1249
    %1648 = vmatprep.subr.mxu0 %v1258
    %1649 = vmatpush1.msra.mxu0 %v1257
    %1650 = vmatprep.subr.mxu0 %v1266
    %1651 = vmatpush1.msra.mxu0 %v1265
    %1652 = vmatprep.subr.mxu0 %v1274
    %1653 = vmatpush1.msra.mxu0 %v1273
    %1654 = vmatprep.subr.mxu0 %v1282
    %1655 = vmatpush1.msra.mxu0 %v1281
    %1656 = vmatprep.subr.mxu0 %v1290
    %1657 = vmatpush1.msra.mxu0 %v1289
    %1658 = vmatprep.subr.mxu0 %v1298
    %1659 = vmatpush1.msra.mxu0 %v1297
    %1660 = vmatprep.subr.mxu0 %v1306
    %1661 = vmatpush1.msra.mxu0 %v1305
    %1662 = vmatprep.subr.mxu0 %v1314
    %1663 = vmatpush1.msra.mxu0 %v1313
    %1664 = vmatprep.subr.mxu0 %v1322
    %1665 = vmatpush1.msra.mxu0 %v1321
    %1666 = vmatprep.subr.mxu0 %v1330
    %1667 = vmatpush1.msra.mxu0 %v1329
    %1668 = vmatprep.subr.mxu0 %v1338
    %1669 = vmatpush1.msra.mxu0 %v1337
    %1670 = vmatprep.subr.mxu0 %v1346
    %1671 = vmatpush1.msra.mxu0 %v1345
    %1672 = vmatprep.subr.mxu0 %v1354
    %1673 = vmatpush1.msra.mxu0 %v1353
    %1674 = vmatprep.mubr.f32.mxu0 %v1094
    %1675 = vmatmul.mubr.f32.gmra.mrb[0].mxu0 %v1093
    %v1676 = vpop.f32.mrb[0].mxu0
    %v1677 = vadd.f32 %v1384, %v1676
    %v1678 = vpop.f32.mrb[0].mxu0
    %v1679 = vadd.f32 %v1388, %v1678
    %1680 = vdwg.mxu0
    %v1681 = vld [vmem:[#allocation2 + $0x40] sm:$0xff]
    %v1682 = vld [vmem:[#allocation2 + $0x48] sm:$0xff]
    %v1683 = vld [vmem:[#allocation2 + $0x50] sm:$0xff]
    %v1684 = vld [vmem:[#allocation2 + $0x58] sm:$0xff]
    %v1685 = vld [vmem:[#allocation2 + $0x60] sm:$0xff]
    %v1686 = vld [vmem:[#allocation2 + $0x68] sm:$0xff]
    %v1687 = vld [vmem:[#allocation2 + $0x70] sm:$0xff]
    %v1688 = vld [vmem:[#allocation2 + $0x78] sm:$0xff]
    %1689 = vmatprep.subr.mxu0 %v784
    %1690 = vmatpush1.msra.mxu0 %v783
    %1691 = vmatprep.subr.mxu0 %v792
    %1692 = vmatpush1.msra.mxu0 %v791
    %1693 = vmatprep.subr.mxu0 %v800
    %1694 = vmatpush1.msra.mxu0 %v799
    %1695 = vmatprep.subr.mxu0 %v808
    %1696 = vmatpush1.msra.mxu0 %v807
    %1697 = vmatprep.subr.mxu0 %v816
    %1698 = vmatpush1.msra.mxu0 %v815
    %1699 = vmatprep.subr.mxu0 %v824
    %1700 = vmatpush1.msra.mxu0 %v823
    %1701 = vmatprep.subr.mxu0 %v832
    %1702 = vmatpush1.msra.mxu0 %v831
    %1703 = vmatprep.subr.mxu0 %v840
    %1704 = vmatpush1.msra.mxu0 %v839
    %1705 = vmatprep.subr.mxu0 %v848
    %1706 = vmatpush1.msra.mxu0 %v847
    %1707 = vmatprep.subr.mxu0 %v856
    %1708 = vmatpush1.msra.mxu0 %v855
    %1709 = vmatprep.subr.mxu0 %v864
    %1710 = vmatpush1.msra.mxu0 %v863
    %1711 = vmatprep.subr.mxu0 %v872
    %1712 = vmatpush1.msra.mxu0 %v871
    %1713 = vmatprep.subr.mxu0 %v880
    %1714 = vmatpush1.msra.mxu0 %v879
    %1715 = vmatprep.subr.mxu0 %v888
    %1716 = vmatpush1.msra.mxu0 %v887
    %1717 = vmatprep.subr.mxu0 %v896
    %1718 = vmatpush1.msra.mxu0 %v895
    %1719 = vmatprep.subr.mxu0 %v904
    %1720 = vmatpush1.msra.mxu0 %v903
    %1721 = vmatprep.subr.mxu0 %v912
    %1722 = vmatpush1.msra.mxu0 %v911
    %1723 = vmatprep.subr.mxu0 %v920
    %1724 = vmatpush1.msra.mxu0 %v919
    %1725 = vmatprep.subr.mxu0 %v928
    %1726 = vmatpush1.msra.mxu0 %v927
    %1727 = vmatprep.subr.mxu0 %v936
    %1728 = vmatpush1.msra.mxu0 %v935
    %1729 = vmatprep.subr.mxu0 %v944
    %1730 = vmatpush1.msra.mxu0 %v943
    %1731 = vmatprep.subr.mxu0 %v952
    %1732 = vmatpush1.msra.mxu0 %v951
    %1733 = vmatprep.subr.mxu0 %v960
    %1734 = vmatpush1.msra.mxu0 %v959
    %1735 = vmatprep.subr.mxu0 %v968
    %1736 = vmatpush1.msra.mxu0 %v967
    %1737 = vmatprep.subr.mxu0 %v976
    %1738 = vmatpush1.msra.mxu0 %v975
    %1739 = vmatprep.subr.mxu0 %v984
    %1740 = vmatpush1.msra.mxu0 %v983
    %1741 = vmatprep.subr.mxu0 %v992
    %1742 = vmatpush1.msra.mxu0 %v991
    %1743 = vmatprep.subr.mxu0 %v1000
    %1744 = vmatpush1.msra.mxu0 %v999
    %1745 = vmatprep.subr.mxu0 %v1008
    %1746 = vmatpush1.msra.mxu0 %v1007
    %1747 = vmatprep.subr.mxu0 %v1016
    %1748 = vmatpush1.msra.mxu0 %v1015
    %1749 = vmatprep.subr.mxu0 %v1024
    %1750 = vmatpush1.msra.mxu0 %v1023
    %1751 = vmatprep.subr.mxu0 %v1032
    %1752 = vmatpush1.msra.mxu0 %v1031
    %1753 = vmatprep.mubr.f32.mxu0 %v1094
    %1754 = vmatmul.mubr.f32.gmra.mrb[0].mxu0 %v1093
    %v1755 = vpop.f32.mrb[0].mxu0
    %v1756 = vadd.f32 0.0, %v1755
    %v1757 = vpop.f32.mrb[0].mxu0
    %v1758 = vadd.f32 0.0, %v1757
    %1759 = vdwg.mxu0
    %1760 = vmatprep.subr.mxu0 %v786
    %1761 = vmatpush1.msra.mxu0 %v785
    %1762 = vmatprep.subr.mxu0 %v794
    %1763 = vmatpush1.msra.mxu0 %v793
    %1764 = vmatprep.subr.mxu0 %v802
    %1765 = vmatpush1.msra.mxu0 %v801
    %1766 = vmatprep.subr.mxu0 %v810
    %1767 = vmatpush1.msra.mxu0 %v809
    %1768 = vmatprep.subr.mxu0 %v818
    %1769 = vmatpush1.msra.mxu0 %v817
    %1770 = vmatprep.subr.mxu0 %v826
    %1771 = vmatpush1.msra.mxu0 %v825
    %1772 = vmatprep.subr.mxu0 %v834
    %1773 = vmatpush1.msra.mxu0 %v833
    %1774 = vmatprep.subr.mxu0 %v842
    %1775 = vmatpush1.msra.mxu0 %v841
    %1776 = vmatprep.subr.mxu0 %v850
    %1777 = vmatpush1.msra.mxu0 %v849
    %1778 = vmatprep.subr.mxu0 %v858
    %1779 = vmatpush1.msra.mxu0 %v857
    %1780 = vmatprep.subr.mxu0 %v866
    %1781 = vmatpush1.msra.mxu0 %v865
    %1782 = vmatprep.subr.mxu0 %v874
    %1783 = vmatpush1.msra.mxu0 %v873
    %1784 = vmatprep.subr.mxu0 %v882
    %1785 = vmatpush1.msra.mxu0 %v881
    %1786 = vmatprep.subr.mxu0 %v890
    %1787 = vmatpush1.msra.mxu0 %v889
    %1788 = vmatprep.subr.mxu0 %v898
    %1789 = vmatpush1.msra.mxu0 %v897
    %1790 = vmatprep.subr.mxu0 %v906
    %1791 = vmatpush1.msra.mxu0 %v905
    %1792 = vmatprep.subr.mxu0 %v914
    %1793 = vmatpush1.msra.mxu0 %v913
    %1794 = vmatprep.subr.mxu0 %v922
    %1795 = vmatpush1.msra.mxu0 %v921
    %1796 = vmatprep.subr.mxu0 %v930
    %1797 = vmatpush1.msra.mxu0 %v929
    %1798 = vmatprep.subr.mxu0 %v938
    %1799 = vmatpush1.msra.mxu0 %v937
    %1800 = vmatprep.subr.mxu0 %v946
    %1801 = vmatpush1.msra.mxu0 %v945
    %1802 = vmatprep.subr.mxu0 %v954
    %1803 = vmatpush1.msra.mxu0 %v953
    %1804 = vmatprep.subr.mxu0 %v962
    %1805 = vmatpush1.msra.mxu0 %v961
    %1806 = vmatprep.subr.mxu0 %v970
    %1807 = vmatpush1.msra.mxu0 %v969
    %1808 = vmatprep.subr.mxu0 %v978
    %1809 = vmatpush1.msra.mxu0 %v977
    %1810 = vmatprep.subr.mxu0 %v986
    %1811 = vmatpush1.msra.mxu0 %v985
    %1812 = vmatprep.subr.mxu0 %v994
    %1813 = vmatpush1.msra.mxu0 %v993
    %1814 = vmatprep.subr.mxu0 %v1002
    %1815 = vmatpush1.msra.mxu0 %v1001
    %1816 = vmatprep.subr.mxu0 %v1010
    %1817 = vmatpush1.msra.mxu0 %v1009
    %1818 = vmatprep.subr.mxu0 %v1018
    %1819 = vmatpush1.msra.mxu0 %v1017
    %1820 = vmatprep.subr.mxu0 %v1026
    %1821 = vmatpush1.msra.mxu0 %v1025
    %1822 = vmatprep.subr.mxu0 %v1034
    %1823 = vmatpush1.msra.mxu0 %v1033
    %1824 = vmatprep.mubr.f32.mxu0 %v1094
    %1825 = vmatmul.mubr.f32.gmra.mrb[0].mxu0 %v1093
    %v1826 = vpop.f32.mrb[0].mxu0
    %v1827 = vadd.f32 0.0, %v1826
    %v1828 = vpop.f32.mrb[0].mxu0
    %v1829 = vadd.f32 0.0, %v1828
    %1830 = vdwg.mxu0
    %1831 = vmatprep.subr.mxu0 %v788
    %1832 = vmatpush1.msra.mxu0 %v787
    %1833 = vmatprep.subr.mxu0 %v796
    %1834 = vmatpush1.msra.mxu0 %v795
    %1835 = vmatprep.subr.mxu0 %v804
    %1836 = vmatpush1.msra.mxu0 %v803
    %1837 = vmatprep.subr.mxu0 %v812
    %1838 = vmatpush1.msra.mxu0 %v811
    %1839 = vmatprep.subr.mxu0 %v820
    %1840 = vmatpush1.msra.mxu0 %v819
    %1841 = vmatprep.subr.mxu0 %v828
    %1842 = vmatpush1.msra.mxu0 %v827
    %1843 = vmatprep.subr.mxu0 %v836
    %1844 = vmatpush1.msra.mxu0 %v835
    %1845 = vmatprep.subr.mxu0 %v844
    %1846 = vmatpush1.msra.mxu0 %v843
    %1847 = vmatprep.subr.mxu0 %v852
    %1848 = vmatpush1.msra.mxu0 %v851
    %1849 = vmatprep.subr.mxu0 %v860
    %1850 = vmatpush1.msra.mxu0 %v859
    %1851 = vmatprep.subr.mxu0 %v868
    %1852 = vmatpush1.msra.mxu0 %v867
    %1853 = vmatprep.subr.mxu0 %v876
    %1854 = vmatpush1.msra.mxu0 %v875
    %1855 = vmatprep.subr.mxu0 %v884
    %1856 = vmatpush1.msra.mxu0 %v883
    %1857 = vmatprep.subr.mxu0 %v892
    %1858 = vmatpush1.msra.mxu0 %v891
    %1859 = vmatprep.subr.mxu0 %v900
    %1860 = vmatpush1.msra.mxu0 %v899
    %1861 = vmatprep.subr.mxu0 %v908
    %1862 = vmatpush1.msra.mxu0 %v907
    %1863 = vmatprep.subr.mxu0 %v916
    %1864 = vmatpush1.msra.mxu0 %v915
    %1865 = vmatprep.subr.mxu0 %v924
    %1866 = vmatpush1.msra.mxu0 %v923
    %1867 = vmatprep.subr.mxu0 %v932
    %1868 = vmatpush1.msra.mxu0 %v931
    %1869 = vmatprep.subr.mxu0 %v940
    %1870 = vmatpush1.msra.mxu0 %v939
    %1871 = vmatprep.subr.mxu0 %v948
    %1872 = vmatpush1.msra.mxu0 %v947
    %1873 = vmatprep.subr.mxu0 %v956
    %1874 = vmatpush1.msra.mxu0 %v955
    %1875 = vmatprep.subr.mxu0 %v964
    %1876 = vmatpush1.msra.mxu0 %v963
    %1877 = vmatprep.subr.mxu0 %v972
    %1878 = vmatpush1.msra.mxu0 %v971
    %1879 = vmatprep.subr.mxu0 %v980
    %1880 = vmatpush1.msra.mxu0 %v979
    %1881 = vmatprep.subr.mxu0 %v988
    %1882 = vmatpush1.msra.mxu0 %v987
    %1883 = vmatprep.subr.mxu0 %v996
    %1884 = vmatpush1.msra.mxu0 %v995
    %1885 = vmatprep.subr.mxu0 %v1004
    %1886 = vmatpush1.msra.mxu0 %v1003
    %1887 = vmatprep.subr.mxu0 %v1012
    %1888 = vmatpush1.msra.mxu0 %v1011
    %1889 = vmatprep.subr.mxu0 %v1020
    %1890 = vmatpush1.msra.mxu0 %v1019
    %1891 = vmatprep.subr.mxu0 %v1028
    %1892 = vmatpush1.msra.mxu0 %v1027
    %1893 = vmatprep.subr.mxu0 %v1036
    %1894 = vmatpush1.msra.mxu0 %v1035
    %1895 = vmatprep.mubr.f32.mxu0 %v1094
    %1896 = vmatmul.mubr.f32.gmra.mrb[0].mxu0 %v1093
    %v1897 = vpop.f32.mrb[0].mxu0
    %v1898 = vadd.f32 0.0, %v1897
    %v1899 = vpop.f32.mrb[0].mxu0
    %v1900 = vadd.f32 0.0, %v1899
    %1901 = vdwg.mxu0
    %1902 = vmatprep.subr.mxu0 %v790
    %1903 = vmatpush1.msra.mxu0 %v789
    %1904 = vmatprep.subr.mxu0 %v798
    %1905 = vmatpush1.msra.mxu0 %v797
    %1906 = vmatprep.subr.mxu0 %v806
    %1907 = vmatpush1.msra.mxu0 %v805
    %1908 = vmatprep.subr.mxu0 %v814
    %1909 = vmatpush1.msra.mxu0 %v813
    %1910 = vmatprep.subr.mxu0 %v822
    %1911 = vmatpush1.msra.mxu0 %v821
    %1912 = vmatprep.subr.mxu0 %v830
    %1913 = vmatpush1.msra.mxu0 %v829
    %1914 = vmatprep.subr.mxu0 %v838
    %1915 = vmatpush1.msra.mxu0 %v837
    %1916 = vmatprep.subr.mxu0 %v846
    %1917 = vmatpush1.msra.mxu0 %v845
    %1918 = vmatprep.subr.mxu0 %v854
    %1919 = vmatpush1.msra.mxu0 %v853
    %1920 = vmatprep.subr.mxu0 %v862
    %1921 = vmatpush1.msra.mxu0 %v861
    %1922 = vmatprep.subr.mxu0 %v870
    %1923 = vmatpush1.msra.mxu0 %v869
    %1924 = vmatprep.subr.mxu0 %v878
    %1925 = vmatpush1.msra.mxu0 %v877
    %1926 = vmatprep.subr.mxu0 %v886
    %1927 = vmatpush1.msra.mxu0 %v885
    %1928 = vmatprep.subr.mxu0 %v894
    %1929 = vmatpush1.msra.mxu0 %v893
    %1930 = vmatprep.subr.mxu0 %v902
    %1931 = vmatpush1.msra.mxu0 %v901
    %1932 = vmatprep.subr.mxu0 %v910
    %1933 = vmatpush1.msra.mxu0 %v909
    %1934 = vmatprep.subr.mxu0 %v918
    %1935 = vmatpush1.msra.mxu0 %v917
    %1936 = vmatprep.subr.mxu0 %v926
    %1937 = vmatpush1.msra.mxu0 %v925
    %1938 = vmatprep.subr.mxu0 %v934
    %1939 = vmatpush1.msra.mxu0 %v933
    %1940 = vmatprep.subr.mxu0 %v942
    %1941 = vmatpush1.msra.mxu0 %v941
    %1942 = vmatprep.subr.mxu0 %v950
    %1943 = vmatpush1.msra.mxu0 %v949
    %1944 = vmatprep.subr.mxu0 %v958
    %1945 = vmatpush1.msra.mxu0 %v957
    %1946 = vmatprep.subr.mxu0 %v966
    %1947 = vmatpush1.msra.mxu0 %v965
    %1948 = vmatprep.subr.mxu0 %v974
    %1949 = vmatpush1.msra.mxu0 %v973
    %1950 = vmatprep.subr.mxu0 %v982
    %1951 = vmatpush1.msra.mxu0 %v981
    %1952 = vmatprep.subr.mxu0 %v990
    %1953 = vmatpush1.msra.mxu0 %v989
    %1954 = vmatprep.subr.mxu0 %v998
    %1955 = vmatpush1.msra.mxu0 %v997
    %1956 = vmatprep.subr.mxu0 %v1006
    %1957 = vmatpush1.msra.mxu0 %v1005
    %1958 = vmatprep.subr.mxu0 %v1014
    %1959 = vmatpush1.msra.mxu0 %v1013
    %1960 = vmatprep.subr.mxu0 %v1022
    %1961 = vmatpush1.msra.mxu0 %v1021
    %1962 = vmatprep.subr.mxu0 %v1030
    %1963 = vmatpush1.msra.mxu0 %v1029
    %1964 = vmatprep.subr.mxu0 %v1038
    %1965 = vmatpush1.msra.mxu0 %v1037
    %1966 = vmatprep.mubr.f32.mxu0 %v1094
    %1967 = vmatmul.mubr.f32.gmra.mrb[0].mxu0 %v1093
    %v1968 = vpop.f32.mrb[0].mxu0
    %v1969 = vadd.f32 0.0, %v1968
    %v1970 = vpop.f32.mrb[0].mxu0
    %v1971 = vadd.f32 0.0, %v1970
    %1972 = vdwg.mxu0
    %v1973 = vadd.f32 %v1681, %v1756
    %v1974 = vadd.f32 %v1682, %v1758
    %v1975 = vadd.f32 %v1683, %v1827
    %v1976 = vadd.f32 %v1684, %v1829
    %v1977 = vadd.f32 %v1685, %v1898
    %v1978 = vadd.f32 %v1686, %v1900
    %v1979 = vadd.f32 %v1687, %v1969
    %v1980 = vadd.f32 %v1688, %v1971
    %v1981 = vxor.u32 %v1973, 2147483648
    %v1982 = vxor.u32 %v1974, 2147483648
    %v1983 = vmul.f32 %v1981, 1.442695
    %v1984 = vpow.pop %v1983
    %v1985 = vmul.f32 %v1982, 1.442695
    %v1986 = vpow.pop %v1985
    %v1987 = vadd.f32 %v1984, 1.0
    %v1988 = vadd.f32 %v1986, 1.0
    %v1989 = vrcp.pop %v1987
    %v1990 = vmul.f32 1.0, %v1989
    %v1991 = vrcp.pop %v1988
    %v1992 = vmul.f32 1.0, %v1991
    %v1993 = vxor.u32 %v1975, 2147483648
    %v1994 = vxor.u32 %v1976, 2147483648
    %v1995 = vmul.f32 %v1993, 1.442695
    %v1996 = vpow.pop %v1995
    %v1997 = vmul.f32 %v1994, 1.442695
    %v1998 = vpow.pop %v1997
    %v1999 = vadd.f32 %v1996, 1.0
    %v2000 = vadd.f32 %v1998, 1.0
    %v2001 = vrcp.pop %v1999
    %v2002 = vmul.f32 1.0, %v2001
    %v2003 = vrcp.pop %v2000
    %v2004 = vmul.f32 1.0, %v2003
    %v2005 = vtanh.pop %v1977
    %v2006 = vtanh.pop %v1978
    %v2007 = vxor.u32 %v1979, 2147483648
    %v2008 = vxor.u32 %v1980, 2147483648
    %v2009 = vmul.f32 %v2007, 1.442695
    %v2010 = vpow.pop %v2009
    %v2011 = vmul.f32 %v2008, 1.442695
    %v2012 = vpow.pop %v2011
    %v2013 = vadd.f32 %v2010, 1.0
    %v2014 = vadd.f32 %v2012, 1.0
    %v2015 = vrcp.pop %v2013
    %v2016 = vmul.f32 1.0, %v2015
    %v2017 = vrcp.pop %v2014
    %v2018 = vmul.f32 1.0, %v2017
    %v2019 = vmul.f32 %v2002, %v1089
    %v2020 = vmul.f32 %v2004, %v1090
    %v2021 = vmul.f32 %v1990, %v2005
    %v2022 = vmul.f32 %v1992, %v2006
    %v2023 = vadd.f32 %v2019, %v2021
    %v2024 = vadd.f32 %v2020, %v2022
    %v2025 = vtanh.pop %v2023
    %v2026 = vtanh.pop %v2024
    %v2027 = vmul.f32 %v2016, %v2025
    %v2028 = vmul.f32 %v2018, %v2026
    %v2029 = vxor.u32 %v1464, 2147483648
    %v2030 = vxor.u32 %v1466, 2147483648
    %v2031 = vmul.f32 %v2029, 1.442695
    %v2032 = vpow.pop %v2031
    %v2033 = vmul.f32 %v2030, 1.442695
    %v2034 = vpow.pop %v2033
    %v2035 = vadd.f32 %v2032, 1.0
    %v2036 = vadd.f32 %v2034, 1.0
    %v2037 = vrcp.pop %v2035
    %v2038 = vmul.f32 1.0, %v2037
    %v2039 = vrcp.pop %v2036
    %v2040 = vmul.f32 1.0, %v2039
    %v2041 = vxor.u32 %v1535, 2147483648
    %v2042 = vxor.u32 %v1537, 2147483648
    %v2043 = vmul.f32 %v2041, 1.442695
    %v2044 = vpow.pop %v2043
    %v2045 = vmul.f32 %v2042, 1.442695
    %v2046 = vpow.pop %v2045
    %v2047 = vadd.f32 %v2044, 1.0
    %v2048 = vadd.f32 %v2046, 1.0
    %v2049 = vrcp.pop %v2047
    %v2050 = vmul.f32 1.0, %v2049
    %v2051 = vrcp.pop %v2048
    %v2052 = vmul.f32 1.0, %v2051
    %v2053 = vtanh.pop %v1606
    %v2054 = vtanh.pop %v1608
    %v2055 = vxor.u32 %v1677, 2147483648
    %v2056 = vxor.u32 %v1679, 2147483648
    %v2057 = vmul.f32 %v2055, 1.442695
    %v2058 = vpow.pop %v2057
    %v2059 = vmul.f32 %v2056, 1.442695
    %v2060 = vpow.pop %v2059
    %v2061 = vadd.f32 %v2058, 1.0
    %v2062 = vadd.f32 %v2060, 1.0
    %v2063 = vrcp.pop %v2061
    %v2064 = vmul.f32 1.0, %v2063
    %v2065 = vrcp.pop %v2062
    %v2066 = vmul.f32 1.0, %v2065
    %v2067 = vmul.f32 %v2050, 0.0
    %v2068 = vmul.f32 %v2052, 0.0
    %v2069 = vmul.f32 %v2038, %v2053
    %v2070 = vmul.f32 %v2040, %v2054
    %v2071 = vadd.f32 %v2067, %v2069
    %v2072 = vadd.f32 %v2068, %v2070
    %v2073 = vtanh.pop %v2071
    %v2074 = vtanh.pop %v2072
    %v2075 = vmul.f32 %v2064, %v2073
    %v2076 = vmul.f32 %v2066, %v2074
    %s2077 = sshll.u32 %s1096, 4
    %2078 = dma.done %s65, %s2077
    %v2079 = vld [vmem:[#allocation4] sm:$0xff]
    %v2080 = vld [vmem:[#allocation4 + $0x8] sm:$0xff]
    %v2081 = vld [vmem:[#allocation4 + $0x10] sm:$0xff]
    %v2082 = vld [vmem:[#allocation4 + $0x18] sm:$0xff]
    %v2083 = vld [vmem:[#allocation4 + $0x20] sm:$0xff]
    %v2084 = vld [vmem:[#allocation4 + $0x28] sm:$0xff]
    %v2085 = vld [vmem:[#allocation4 + $0x30] sm:$0xff]
    %v2086 = vld [vmem:[#allocation4 + $0x38] sm:$0xff]
    %v2087 = vld [vmem:[#allocation4 + $0x40] sm:$0xff]
    %v2088 = vld [vmem:[#allocation4 + $0x48] sm:$0xff]
    %v2089 = vld [vmem:[#allocation4 + $0x50] sm:$0xff]
    %v2090 = vld [vmem:[#allocation4 + $0x58] sm:$0xff]
    %v2091 = vld [vmem:[#allocation4 + $0x60] sm:$0xff]
    %v2092 = vld [vmem:[#allocation4 + $0x68] sm:$0xff]
    %v2093 = vld [vmem:[#allocation4 + $0x70] sm:$0xff]
    %v2094 = vld [vmem:[#allocation4 + $0x78] sm:$0xff]
    %v2095 = vld [vmem:[#allocation4 + $0x80] sm:$0xff]
    %v2096 = vld [vmem:[#allocation4 + $0x88] sm:$0xff]
    %v2097 = vld [vmem:[#allocation4 + $0x90] sm:$0xff]
    %v2098 = vld [vmem:[#allocation4 + $0x98] sm:$0xff]
    %v2099 = vld [vmem:[#allocation4 + $0xa0] sm:$0xff]
    %v2100 = vld [vmem:[#allocation4 + $0xa8] sm:$0xff]
    %v2101 = vld [vmem:[#allocation4 + $0xb0] sm:$0xff]
    %v2102 = vld [vmem:[#allocation4 + $0xb8] sm:$0xff]
    %v2103 = vld [vmem:[#allocation4 + $0xc0] sm:$0xff]
    %v2104 = vld [vmem:[#allocation4 + $0xc8] sm:$0xff]
    %v2105 = vld [vmem:[#allocation4 + $0xd0] sm:$0xff]
    %v2106 = vld [vmem:[#allocation4 + $0xd8] sm:$0xff]
    %v2107 = vld [vmem:[#allocation4 + $0xe0] sm:$0xff]
    %v2108 = vld [vmem:[#allocation4 + $0xe8] sm:$0xff]
    %v2109 = vld [vmem:[#allocation4 + $0xf0] sm:$0xff]
    %v2110 = vld [vmem:[#allocation4 + $0xf8] sm:$0xff]
    %v2111 = vld [vmem:[#allocation4 + $0x100] sm:$0xff]
    %v2112 = vld [vmem:[#allocation4 + $0x108] sm:$0xff]
    %v2113 = vld [vmem:[#allocation4 + $0x110] sm:$0xff]
    %v2114 = vld [vmem:[#allocation4 + $0x118] sm:$0xff]
    %v2115 = vld [vmem:[#allocation4 + $0x120] sm:$0xff]
    %v2116 = vld [vmem:[#allocation4 + $0x128] sm:$0xff]
    %v2117 = vld [vmem:[#allocation4 + $0x130] sm:$0xff]
    %v2118 = vld [vmem:[#allocation4 + $0x138] sm:$0xff]
    %v2119 = vld [vmem:[#allocation4 + $0x140] sm:$0xff]
    %v2120 = vld [vmem:[#allocation4 + $0x148] sm:$0xff]
    %v2121 = vld [vmem:[#allocation4 + $0x150] sm:$0xff]
    %v2122 = vld [vmem:[#allocation4 + $0x158] sm:$0xff]
    %v2123 = vld [vmem:[#allocation4 + $0x160] sm:$0xff]
    %v2124 = vld [vmem:[#allocation4 + $0x168] sm:$0xff]
    %v2125 = vld [vmem:[#allocation4 + $0x170] sm:$0xff]
    %v2126 = vld [vmem:[#allocation4 + $0x178] sm:$0xff]
    %v2127 = vld [vmem:[#allocation4 + $0x180] sm:$0xff]
    %v2128 = vld [vmem:[#allocation4 + $0x188] sm:$0xff]
    %v2129 = vld [vmem:[#allocation4 + $0x190] sm:$0xff]
    %v2130 = vld [vmem:[#allocation4 + $0x198] sm:$0xff]
    %v2131 = vld [vmem:[#allocation4 + $0x1a0] sm:$0xff]
    %v2132 = vld [vmem:[#allocation4 + $0x1a8] sm:$0xff]
    %v2133 = vld [vmem:[#allocation4 + $0x1b0] sm:$0xff]
    %v2134 = vld [vmem:[#allocation4 + $0x1b8] sm:$0xff]
    %v2135 = vld [vmem:[#allocation4 + $0x1c0] sm:$0xff]
    %v2136 = vld [vmem:[#allocation4 + $0x1c8] sm:$0xff]
    %v2137 = vld [vmem:[#allocation4 + $0x1d0] sm:$0xff]
    %v2138 = vld [vmem:[#allocation4 + $0x1d8] sm:$0xff]
    %v2139 = vld [vmem:[#allocation4 + $0x1e0] sm:$0xff]
    %v2140 = vld [vmem:[#allocation4 + $0x1e8] sm:$0xff]
    %v2141 = vld [vmem:[#allocation4 + $0x1f0] sm:$0xff]
    %v2142 = vld [vmem:[#allocation4 + $0x1f8] sm:$0xff]
    %v2143 = vld [vmem:[#allocation4 + $0x200] sm:$0xff]
    %v2144 = vld [vmem:[#allocation4 + $0x208] sm:$0xff]
    %v2145 = vld [vmem:[#allocation4 + $0x210] sm:$0xff]
    %v2146 = vld [vmem:[#allocation4 + $0x218] sm:$0xff]
    %v2147 = vld [vmem:[#allocation4 + $0x220] sm:$0xff]
    %v2148 = vld [vmem:[#allocation4 + $0x228] sm:$0xff]
    %v2149 = vld [vmem:[#allocation4 + $0x230] sm:$0xff]
    %v2150 = vld [vmem:[#allocation4 + $0x238] sm:$0xff]
    %v2151 = vld [vmem:[#allocation4 + $0x240] sm:$0xff]
    %v2152 = vld [vmem:[#allocation4 + $0x248] sm:$0xff]
    %v2153 = vld [vmem:[#allocation4 + $0x250] sm:$0xff]
    %v2154 = vld [vmem:[#allocation4 + $0x258] sm:$0xff]
    %v2155 = vld [vmem:[#allocation4 + $0x260] sm:$0xff]
    %v2156 = vld [vmem:[#allocation4 + $0x268] sm:$0xff]
    %v2157 = vld [vmem:[#allocation4 + $0x270] sm:$0xff]
    %v2158 = vld [vmem:[#allocation4 + $0x278] sm:$0xff]
    %v2159 = vld [vmem:[#allocation4 + $0x280] sm:$0xff]
    %v2160 = vld [vmem:[#allocation4 + $0x288] sm:$0xff]
    %v2161 = vld [vmem:[#allocation4 + $0x290] sm:$0xff]
    %v2162 = vld [vmem:[#allocation4 + $0x298] sm:$0xff]
    %v2163 = vld [vmem:[#allocation4 + $0x2a0] sm:$0xff]
    %v2164 = vld [vmem:[#allocation4 + $0x2a8] sm:$0xff]
    %v2165 = vld [vmem:[#allocation4 + $0x2b0] sm:$0xff]
    %v2166 = vld [vmem:[#allocation4 + $0x2b8] sm:$0xff]
    %v2167 = vld [vmem:[#allocation4 + $0x2c0] sm:$0xff]
    %v2168 = vld [vmem:[#allocation4 + $0x2c8] sm:$0xff]
    %v2169 = vld [vmem:[#allocation4 + $0x2d0] sm:$0xff]
    %v2170 = vld [vmem:[#allocation4 + $0x2d8] sm:$0xff]
    %v2171 = vld [vmem:[#allocation4 + $0x2e0] sm:$0xff]
    %v2172 = vld [vmem:[#allocation4 + $0x2e8] sm:$0xff]
    %v2173 = vld [vmem:[#allocation4 + $0x2f0] sm:$0xff]
    %v2174 = vld [vmem:[#allocation4 + $0x2f8] sm:$0xff]
    %v2175 = vld [vmem:[#allocation4 + $0x300] sm:$0xff]
    %v2176 = vld [vmem:[#allocation4 + $0x308] sm:$0xff]
    %v2177 = vld [vmem:[#allocation4 + $0x310] sm:$0xff]
    %v2178 = vld [vmem:[#allocation4 + $0x318] sm:$0xff]
    %v2179 = vld [vmem:[#allocation4 + $0x320] sm:$0xff]
    %v2180 = vld [vmem:[#allocation4 + $0x328] sm:$0xff]
    %v2181 = vld [vmem:[#allocation4 + $0x330] sm:$0xff]
    %v2182 = vld [vmem:[#allocation4 + $0x338] sm:$0xff]
    %v2183 = vld [vmem:[#allocation4 + $0x340] sm:$0xff]
    %v2184 = vld [vmem:[#allocation4 + $0x348] sm:$0xff]
    %v2185 = vld [vmem:[#allocation4 + $0x350] sm:$0xff]
    %v2186 = vld [vmem:[#allocation4 + $0x358] sm:$0xff]
    %v2187 = vld [vmem:[#allocation4 + $0x360] sm:$0xff]
    %v2188 = vld [vmem:[#allocation4 + $0x368] sm:$0xff]
    %v2189 = vld [vmem:[#allocation4 + $0x370] sm:$0xff]
    %v2190 = vld [vmem:[#allocation4 + $0x378] sm:$0xff]
    %v2191 = vld [vmem:[#allocation4 + $0x380] sm:$0xff]
    %v2192 = vld [vmem:[#allocation4 + $0x388] sm:$0xff]
    %v2193 = vld [vmem:[#allocation4 + $0x390] sm:$0xff]
    %v2194 = vld [vmem:[#allocation4 + $0x398] sm:$0xff]
    %v2195 = vld [vmem:[#allocation4 + $0x3a0] sm:$0xff]
    %v2196 = vld [vmem:[#allocation4 + $0x3a8] sm:$0xff]
    %v2197 = vld [vmem:[#allocation4 + $0x3b0] sm:$0xff]
    %v2198 = vld [vmem:[#allocation4 + $0x3b8] sm:$0xff]
    %v2199 = vld [vmem:[#allocation4 + $0x3c0] sm:$0xff]
    %v2200 = vld [vmem:[#allocation4 + $0x3c8] sm:$0xff]
    %v2201 = vld [vmem:[#allocation4 + $0x3d0] sm:$0xff]
    %v2202 = vld [vmem:[#allocation4 + $0x3d8] sm:$0xff]
    %v2203 = vld [vmem:[#allocation4 + $0x3e0] sm:$0xff]
    %v2204 = vld [vmem:[#allocation4 + $0x3e8] sm:$0xff]
    %v2205 = vld [vmem:[#allocation4 + $0x3f0] sm:$0xff]
    %v2206 = vld [vmem:[#allocation4 + $0x3f8] sm:$0xff]
    %v2207 = vld [vmem:[#allocation4 + $0x400] sm:$0xff]
    %v2208 = vld [vmem:[#allocation4 + $0x408] sm:$0xff]
    %v2209 = vld [vmem:[#allocation4 + $0x410] sm:$0xff]
    %v2210 = vld [vmem:[#allocation4 + $0x418] sm:$0xff]
    %v2211 = vld [vmem:[#allocation4 + $0x420] sm:$0xff]
    %v2212 = vld [vmem:[#allocation4 + $0x428] sm:$0xff]
    %v2213 = vld [vmem:[#allocation4 + $0x430] sm:$0xff]
    %v2214 = vld [vmem:[#allocation4 + $0x438] sm:$0xff]
    %v2215 = vld [vmem:[#allocation4 + $0x440] sm:$0xff]
    %v2216 = vld [vmem:[#allocation4 + $0x448] sm:$0xff]
    %v2217 = vld [vmem:[#allocation4 + $0x450] sm:$0xff]
    %v2218 = vld [vmem:[#allocation4 + $0x458] sm:$0xff]
    %v2219 = vld [vmem:[#allocation4 + $0x460] sm:$0xff]
    %v2220 = vld [vmem:[#allocation4 + $0x468] sm:$0xff]
    %v2221 = vld [vmem:[#allocation4 + $0x470] sm:$0xff]
    %v2222 = vld [vmem:[#allocation4 + $0x478] sm:$0xff]
    %v2223 = vld [vmem:[#allocation4 + $0x480] sm:$0xff]
    %v2224 = vld [vmem:[#allocation4 + $0x488] sm:$0xff]
    %v2225 = vld [vmem:[#allocation4 + $0x490] sm:$0xff]
    %v2226 = vld [vmem:[#allocation4 + $0x498] sm:$0xff]
    %v2227 = vld [vmem:[#allocation4 + $0x4a0] sm:$0xff]
    %v2228 = vld [vmem:[#allocation4 + $0x4a8] sm:$0xff]
    %v2229 = vld [vmem:[#allocation4 + $0x4b0] sm:$0xff]
    %v2230 = vld [vmem:[#allocation4 + $0x4b8] sm:$0xff]
    %v2231 = vld [vmem:[#allocation4 + $0x4c0] sm:$0xff]
    %v2232 = vld [vmem:[#allocation4 + $0x4c8] sm:$0xff]
    %v2233 = vld [vmem:[#allocation4 + $0x4d0] sm:$0xff]
    %v2234 = vld [vmem:[#allocation4 + $0x4d8] sm:$0xff]
    %v2235 = vld [vmem:[#allocation4 + $0x4e0] sm:$0xff]
    %v2236 = vld [vmem:[#allocation4 + $0x4e8] sm:$0xff]
    %v2237 = vld [vmem:[#allocation4 + $0x4f0] sm:$0xff]
    %v2238 = vld [vmem:[#allocation4 + $0x4f8] sm:$0xff]
    %v2239 = vld [vmem:[#allocation4 + $0x500] sm:$0xff]
    %v2240 = vld [vmem:[#allocation4 + $0x508] sm:$0xff]
    %v2241 = vld [vmem:[#allocation4 + $0x510] sm:$0xff]
    %v2242 = vld [vmem:[#allocation4 + $0x518] sm:$0xff]
    %v2243 = vld [vmem:[#allocation4 + $0x520] sm:$0xff]
    %v2244 = vld [vmem:[#allocation4 + $0x528] sm:$0xff]
    %v2245 = vld [vmem:[#allocation4 + $0x530] sm:$0xff]
    %v2246 = vld [vmem:[#allocation4 + $0x538] sm:$0xff]
    %v2247 = vld [vmem:[#allocation4 + $0x540] sm:$0xff]
    %v2248 = vld [vmem:[#allocation4 + $0x548] sm:$0xff]
    %v2249 = vld [vmem:[#allocation4 + $0x550] sm:$0xff]
    %v2250 = vld [vmem:[#allocation4 + $0x558] sm:$0xff]
    %v2251 = vld [vmem:[#allocation4 + $0x560] sm:$0xff]
    %v2252 = vld [vmem:[#allocation4 + $0x568] sm:$0xff]
    %v2253 = vld [vmem:[#allocation4 + $0x570] sm:$0xff]
    %v2254 = vld [vmem:[#allocation4 + $0x578] sm:$0xff]
    %v2255 = vld [vmem:[#allocation4 + $0x580] sm:$0xff]
    %v2256 = vld [vmem:[#allocation4 + $0x588] sm:$0xff]
    %v2257 = vld [vmem:[#allocation4 + $0x590] sm:$0xff]
    %v2258 = vld [vmem:[#allocation4 + $0x598] sm:$0xff]
    %v2259 = vld [vmem:[#allocation4 + $0x5a0] sm:$0xff]
    %v2260 = vld [vmem:[#allocation4 + $0x5a8] sm:$0xff]
    %v2261 = vld [vmem:[#allocation4 + $0x5b0] sm:$0xff]
    %v2262 = vld [vmem:[#allocation4 + $0x5b8] sm:$0xff]
    %v2263 = vld [vmem:[#allocation4 + $0x5c0] sm:$0xff]
    %v2264 = vld [vmem:[#allocation4 + $0x5c8] sm:$0xff]
    %v2265 = vld [vmem:[#allocation4 + $0x5d0] sm:$0xff]
    %v2266 = vld [vmem:[#allocation4 + $0x5d8] sm:$0xff]
    %v2267 = vld [vmem:[#allocation4 + $0x5e0] sm:$0xff]
    %v2268 = vld [vmem:[#allocation4 + $0x5e8] sm:$0xff]
    %v2269 = vld [vmem:[#allocation4 + $0x5f0] sm:$0xff]
    %v2270 = vld [vmem:[#allocation4 + $0x5f8] sm:$0xff]
    %v2271 = vld [vmem:[#allocation4 + $0x600] sm:$0xff]
    %v2272 = vld [vmem:[#allocation4 + $0x608] sm:$0xff]
    %v2273 = vld [vmem:[#allocation4 + $0x610] sm:$0xff]
    %v2274 = vld [vmem:[#allocation4 + $0x618] sm:$0xff]
    %v2275 = vld [vmem:[#allocation4 + $0x620] sm:$0xff]
    %v2276 = vld [vmem:[#allocation4 + $0x628] sm:$0xff]
    %v2277 = vld [vmem:[#allocation4 + $0x630] sm:$0xff]
    %v2278 = vld [vmem:[#allocation4 + $0x638] sm:$0xff]
    %v2279 = vld [vmem:[#allocation4 + $0x640] sm:$0xff]
    %v2280 = vld [vmem:[#allocation4 + $0x648] sm:$0xff]
    %v2281 = vld [vmem:[#allocation4 + $0x650] sm:$0xff]
    %v2282 = vld [vmem:[#allocation4 + $0x658] sm:$0xff]
    %v2283 = vld [vmem:[#allocation4 + $0x660] sm:$0xff]
    %v2284 = vld [vmem:[#allocation4 + $0x668] sm:$0xff]
    %v2285 = vld [vmem:[#allocation4 + $0x670] sm:$0xff]
    %v2286 = vld [vmem:[#allocation4 + $0x678] sm:$0xff]
    %v2287 = vld [vmem:[#allocation4 + $0x680] sm:$0xff]
    %v2288 = vld [vmem:[#allocation4 + $0x688] sm:$0xff]
    %v2289 = vld [vmem:[#allocation4 + $0x690] sm:$0xff]
    %v2290 = vld [vmem:[#allocation4 + $0x698] sm:$0xff]
    %v2291 = vld [vmem:[#allocation4 + $0x6a0] sm:$0xff]
    %v2292 = vld [vmem:[#allocation4 + $0x6a8] sm:$0xff]
    %v2293 = vld [vmem:[#allocation4 + $0x6b0] sm:$0xff]
    %v2294 = vld [vmem:[#allocation4 + $0x6b8] sm:$0xff]
    %v2295 = vld [vmem:[#allocation4 + $0x6c0] sm:$0xff]
    %v2296 = vld [vmem:[#allocation4 + $0x6c8] sm:$0xff]
    %v2297 = vld [vmem:[#allocation4 + $0x6d0] sm:$0xff]
    %v2298 = vld [vmem:[#allocation4 + $0x6d8] sm:$0xff]
    %v2299 = vld [vmem:[#allocation4 + $0x6e0] sm:$0xff]
    %v2300 = vld [vmem:[#allocation4 + $0x6e8] sm:$0xff]
    %v2301 = vld [vmem:[#allocation4 + $0x6f0] sm:$0xff]
    %v2302 = vld [vmem:[#allocation4 + $0x6f8] sm:$0xff]
    %v2303 = vld [vmem:[#allocation4 + $0x700] sm:$0xff]
    %v2304 = vld [vmem:[#allocation4 + $0x708] sm:$0xff]
    %v2305 = vld [vmem:[#allocation4 + $0x710] sm:$0xff]
    %v2306 = vld [vmem:[#allocation4 + $0x718] sm:$0xff]
    %v2307 = vld [vmem:[#allocation4 + $0x720] sm:$0xff]
    %v2308 = vld [vmem:[#allocation4 + $0x728] sm:$0xff]
    %v2309 = vld [vmem:[#allocation4 + $0x730] sm:$0xff]
    %v2310 = vld [vmem:[#allocation4 + $0x738] sm:$0xff]
    %v2311 = vld [vmem:[#allocation4 + $0x740] sm:$0xff]
    %v2312 = vld [vmem:[#allocation4 + $0x748] sm:$0xff]
    %v2313 = vld [vmem:[#allocation4 + $0x750] sm:$0xff]
    %v2314 = vld [vmem:[#allocation4 + $0x758] sm:$0xff]
    %v2315 = vld [vmem:[#allocation4 + $0x760] sm:$0xff]
    %v2316 = vld [vmem:[#allocation4 + $0x768] sm:$0xff]
    %v2317 = vld [vmem:[#allocation4 + $0x770] sm:$0xff]
    %v2318 = vld [vmem:[#allocation4 + $0x778] sm:$0xff]
    %v2319 = vld [vmem:[#allocation4 + $0x780] sm:$0xff]
    %v2320 = vld [vmem:[#allocation4 + $0x788] sm:$0xff]
    %v2321 = vld [vmem:[#allocation4 + $0x790] sm:$0xff]
    %v2322 = vld [vmem:[#allocation4 + $0x798] sm:$0xff]
    %v2323 = vld [vmem:[#allocation4 + $0x7a0] sm:$0xff]
    %v2324 = vld [vmem:[#allocation4 + $0x7a8] sm:$0xff]
    %v2325 = vld [vmem:[#allocation4 + $0x7b0] sm:$0xff]
    %v2326 = vld [vmem:[#allocation4 + $0x7b8] sm:$0xff]
    %v2327 = vld [vmem:[#allocation4 + $0x7c0] sm:$0xff]
    %v2328 = vld [vmem:[#allocation4 + $0x7c8] sm:$0xff]
    %v2329 = vld [vmem:[#allocation4 + $0x7d0] sm:$0xff]
    %v2330 = vld [vmem:[#allocation4 + $0x7d8] sm:$0xff]
    %v2331 = vld [vmem:[#allocation4 + $0x7e0] sm:$0xff]
    %v2332 = vld [vmem:[#allocation4 + $0x7e8] sm:$0xff]
    %v2333 = vld [vmem:[#allocation4 + $0x7f0] sm:$0xff]
    %v2334 = vld [vmem:[#allocation4 + $0x7f8] sm:$0xff]
    %2335 = vmatprep.subr.mxu0 %v1100
    %2336 = vmatpush1.msra.mxu0 %v1099
    %2337 = vmatprep.subr.mxu0 %v1108
    %2338 = vmatpush1.msra.mxu0 %v1107
    %2339 = vmatprep.subr.mxu0 %v1116
    %2340 = vmatpush1.msra.mxu0 %v1115
    %2341 = vmatprep.subr.mxu0 %v1124
    %2342 = vmatpush1.msra.mxu0 %v1123
    %2343 = vmatprep.subr.mxu0 %v1132
    %2344 = vmatpush1.msra.mxu0 %v1131
    %2345 = vmatprep.subr.mxu0 %v1140
    %2346 = vmatpush1.msra.mxu0 %v1139
    %2347 = vmatprep.subr.mxu0 %v1148
    %2348 = vmatpush1.msra.mxu0 %v1147
    %2349 = vmatprep.subr.mxu0 %v1156
    %2350 = vmatpush1.msra.mxu0 %v1155
    %2351 = vmatprep.subr.mxu0 %v1164
    %2352 = vmatpush1.msra.mxu0 %v1163
    %2353 = vmatprep.subr.mxu0 %v1172
    %2354 = vmatpush1.msra.mxu0 %v1171
    %2355 = vmatprep.subr.mxu0 %v1180
    %2356 = vmatpush1.msra.mxu0 %v1179
    %2357 = vmatprep.subr.mxu0 %v1188
    %2358 = vmatpush1.msra.mxu0 %v1187
    %2359 = vmatprep.subr.mxu0 %v1196
    %2360 = vmatpush1.msra.mxu0 %v1195
    %2361 = vmatprep.subr.mxu0 %v1204
    %2362 = vmatpush1.msra.mxu0 %v1203
    %2363 = vmatprep.subr.mxu0 %v1212
    %2364 = vmatpush1.msra.mxu0 %v1211
    %2365 = vmatprep.subr.mxu0 %v1220
    %2366 = vmatpush1.msra.mxu0 %v1219
    %2367 = vmatprep.subr.mxu0 %v1228
    %2368 = vmatpush1.msra.mxu0 %v1227
    %2369 = vmatprep.subr.mxu0 %v1236
    %2370 = vmatpush1.msra.mxu0 %v1235
    %2371 = vmatprep.subr.mxu0 %v1244
    %2372 = vmatpush1.msra.mxu0 %v1243
    %2373 = vmatprep.subr.mxu0 %v1252
    %2374 = vmatpush1.msra.mxu0 %v1251
    %2375 = vmatprep.subr.mxu0 %v1260
    %2376 = vmatpush1.msra.mxu0 %v1259
    %2377 = vmatprep.subr.mxu0 %v1268
    %2378 = vmatpush1.msra.mxu0 %v1267
    %2379 = vmatprep.subr.mxu0 %v1276
    %2380 = vmatpush1.msra.mxu0 %v1275
    %2381 = vmatprep.subr.mxu0 %v1284
    %2382 = vmatpush1.msra.mxu0 %v1283
    %2383 = vmatprep.subr.mxu0 %v1292
    %2384 = vmatpush1.msra.mxu0 %v1291
    %2385 = vmatprep.subr.mxu0 %v1300
    %2386 = vmatpush1.msra.mxu0 %v1299
    %2387 = vmatprep.subr.mxu0 %v1308
    %2388 = vmatpush1.msra.mxu0 %v1307
    %2389 = vmatprep.subr.mxu0 %v1316
    %2390 = vmatpush1.msra.mxu0 %v1315
    %2391 = vmatprep.subr.mxu0 %v1324
    %2392 = vmatpush1.msra.mxu0 %v1323
    %2393 = vmatprep.subr.mxu0 %v1332
    %2394 = vmatpush1.msra.mxu0 %v1331
    %2395 = vmatprep.subr.mxu0 %v1340
    %2396 = vmatpush1.msra.mxu0 %v1339
    %2397 = vmatprep.subr.mxu0 %v1348
    %2398 = vmatpush1.msra.mxu0 %v1347
    %2399 = vmatprep.mubr.f32.mxu0 %v2028
    %2400 = vmatmul.mubr.f32.gmra.mrb[0].mxu0 %v2027
    %v2401 = vpop.f32.mrb[0].mxu0
    %v2402 = vadd.f32 %v1360, %v2401
    %v2403 = vpop.f32.mrb[0].mxu0
    %v2404 = vadd.f32 %v1364, %v2403
    %2405 = vdwg.mxu0
    %2406 = vmatprep.subr.mxu0 %v1102
    %2407 = vmatpush1.msra.mxu0 %v1101
    %2408 = vmatprep.subr.mxu0 %v1110
    %2409 = vmatpush1.msra.mxu0 %v1109
    %2410 = vmatprep.subr.mxu0 %v1118
    %2411 = vmatpush1.msra.mxu0 %v1117
    %2412 = vmatprep.subr.mxu0 %v1126
    %2413 = vmatpush1.msra.mxu0 %v1125
    %2414 = vmatprep.subr.mxu0 %v1134
    %2415 = vmatpush1.msra.mxu0 %v1133
    %2416 = vmatprep.subr.mxu0 %v1142
    %2417 = vmatpush1.msra.mxu0 %v1141
    %2418 = vmatprep.subr.mxu0 %v1150
    %2419 = vmatpush1.msra.mxu0 %v1149
    %2420 = vmatprep.subr.mxu0 %v1158
    %2421 = vmatpush1.msra.mxu0 %v1157
    %2422 = vmatprep.subr.mxu0 %v1166
    %2423 = vmatpush1.msra.mxu0 %v1165
    %2424 = vmatprep.subr.mxu0 %v1174
    %2425 = vmatpush1.msra.mxu0 %v1173
    %2426 = vmatprep.subr.mxu0 %v1182
    %2427 = vmatpush1.msra.mxu0 %v1181
    %2428 = vmatprep.subr.mxu0 %v1190
    %2429 = vmatpush1.msra.mxu0 %v1189
    %2430 = vmatprep.subr.mxu0 %v1198
    %2431 = vmatpush1.msra.mxu0 %v1197
    %2432 = vmatprep.subr.mxu0 %v1206
    %2433 = vmatpush1.msra.mxu0 %v1205
    %2434 = vmatprep.subr.mxu0 %v1214
    %2435 = vmatpush1.msra.mxu0 %v1213
    %2436 = vmatprep.subr.mxu0 %v1222
    %2437 = vmatpush1.msra.mxu0 %v1221
    %2438 = vmatprep.subr.mxu0 %v1230
    %2439 = vmatpush1.msra.mxu0 %v1229
    %2440 = vmatprep.subr.mxu0 %v1238
    %2441 = vmatpush1.msra.mxu0 %v1237
    %2442 = vmatprep.subr.mxu0 %v1246
    %2443 = vmatpush1.msra.mxu0 %v1245
    %2444 = vmatprep.subr.mxu0 %v1254
    %2445 = vmatpush1.msra.mxu0 %v1253
    %2446 = vmatprep.subr.mxu0 %v1262
    %2447 = vmatpush1.msra.mxu0 %v1261
    %2448 = vmatprep.subr.mxu0 %v1270
    %2449 = vmatpush1.msra.mxu0 %v1269
    %2450 = vmatprep.subr.mxu0 %v1278
    %2451 = vmatpush1.msra.mxu0 %v1277
    %2452 = vmatprep.subr.mxu0 %v1286
    %2453 = vmatpush1.msra.mxu0 %v1285
    %2454 = vmatprep.subr.mxu0 %v1294
    %2455 = vmatpush1.msra.mxu0 %v1293
    %2456 = vmatprep.subr.mxu0 %v1302
    %2457 = vmatpush1.msra.mxu0 %v1301
    %2458 = vmatprep.subr.mxu0 %v1310
    %2459 = vmatpush1.msra.mxu0 %v1309
    %2460 = vmatprep.subr.mxu0 %v1318
    %2461 = vmatpush1.msra.mxu0 %v1317
    %2462 = vmatprep.subr.mxu0 %v1326
    %2463 = vmatpush1.msra.mxu0 %v1325
    %2464 = vmatprep.subr.mxu0 %v1334
    %2465 = vmatpush1.msra.mxu0 %v1333
    %2466 = vmatprep.subr.mxu0 %v1342
    %2467 = vmatpush1.msra.mxu0 %v1341
    %2468 = vmatprep.subr.mxu0 %v1350
    %2469 = vmatpush1.msra.mxu0 %v1349
    %2470 = vmatprep.mubr.f32.mxu0 %v2028
    %2471 = vmatmul.mubr.f32.gmra.mrb[0].mxu0 %v2027
    %v2472 = vpop.f32.mrb[0].mxu0
    %v2473 = vadd.f32 %v1368, %v2472
    %v2474 = vpop.f32.mrb[0].mxu0
    %v2475 = vadd.f32 %v1372, %v2474
    %2476 = vdwg.mxu0
    %2477 = vmatprep.subr.mxu0 %v1104
    %2478 = vmatpush1.msra.mxu0 %v1103
    %2479 = vmatprep.subr.mxu0 %v1112
    %2480 = vmatpush1.msra.mxu0 %v1111
    %2481 = vmatprep.subr.mxu0 %v1120
    %2482 = vmatpush1.msra.mxu0 %v1119
    %2483 = vmatprep.subr.mxu0 %v1128
    %2484 = vmatpush1.msra.mxu0 %v1127
    %2485 = vmatprep.subr.mxu0 %v1136
    %2486 = vmatpush1.msra.mxu0 %v1135
    %2487 = vmatprep.subr.mxu0 %v1144
    %2488 = vmatpush1.msra.mxu0 %v1143
    %2489 = vmatprep.subr.mxu0 %v1152
    %2490 = vmatpush1.msra.mxu0 %v1151
    %2491 = vmatprep.subr.mxu0 %v1160
    %2492 = vmatpush1.msra.mxu0 %v1159
    %2493 = vmatprep.subr.mxu0 %v1168
    %2494 = vmatpush1.msra.mxu0 %v1167
    %2495 = vmatprep.subr.mxu0 %v1176
    %2496 = vmatpush1.msra.mxu0 %v1175
    %2497 = vmatprep.subr.mxu0 %v1184
    %2498 = vmatpush1.msra.mxu0 %v1183
    %2499 = vmatprep.subr.mxu0 %v1192
    %2500 = vmatpush1.msra.mxu0 %v1191
    %2501 = vmatprep.subr.mxu0 %v1200
    %2502 = vmatpush1.msra.mxu0 %v1199
    %2503 = vmatprep.subr.mxu0 %v1208
    %2504 = vmatpush1.msra.mxu0 %v1207
    %2505 = vmatprep.subr.mxu0 %v1216
    %2506 = vmatpush1.msra.mxu0 %v1215
    %2507 = vmatprep.subr.mxu0 %v1224
    %2508 = vmatpush1.msra.mxu0 %v1223
    %2509 = vmatprep.subr.mxu0 %v1232
    %2510 = vmatpush1.msra.mxu0 %v1231
    %2511 = vmatprep.subr.mxu0 %v1240
    %2512 = vmatpush1.msra.mxu0 %v1239
    %2513 = vmatprep.subr.mxu0 %v1248
    %2514 = vmatpush1.msra.mxu0 %v1247
    %2515 = vmatprep.subr.mxu0 %v1256
    %2516 = vmatpush1.msra.mxu0 %v1255
    %2517 = vmatprep.subr.mxu0 %v1264
    %2518 = vmatpush1.msra.mxu0 %v1263
    %2519 = vmatprep.subr.mxu0 %v1272
    %2520 = vmatpush1.msra.mxu0 %v1271
    %2521 = vmatprep.subr.mxu0 %v1280
    %2522 = vmatpush1.msra.mxu0 %v1279
    %2523 = vmatprep.subr.mxu0 %v1288
    %2524 = vmatpush1.msra.mxu0 %v1287
    %2525 = vmatprep.subr.mxu0 %v1296
    %2526 = vmatpush1.msra.mxu0 %v1295
    %2527 = vmatprep.subr.mxu0 %v1304
    %2528 = vmatpush1.msra.mxu0 %v1303
    %2529 = vmatprep.subr.mxu0 %v1312
    %2530 = vmatpush1.msra.mxu0 %v1311
    %2531 = vmatprep.subr.mxu0 %v1320
    %2532 = vmatpush1.msra.mxu0 %v1319
    %2533 = vmatprep.subr.mxu0 %v1328
    %2534 = vmatpush1.msra.mxu0 %v1327
    %2535 = vmatprep.subr.mxu0 %v1336
    %2536 = vmatpush1.msra.mxu0 %v1335
    %2537 = vmatprep.subr.mxu0 %v1344
    %2538 = vmatpush1.msra.mxu0 %v1343
    %2539 = vmatprep.subr.mxu0 %v1352
    %2540 = vmatpush1.msra.mxu0 %v1351
    %2541 = vmatprep.mubr.f32.mxu0 %v2028
    %2542 = vmatmul.mubr.f32.gmra.mrb[0].mxu0 %v2027
    %v2543 = vpop.f32.mrb[0].mxu0
    %v2544 = vadd.f32 %v1376, %v2543
    %v2545 = vpop.f32.mrb[0].mxu0
    %v2546 = vadd.f32 %v1380, %v2545
    %2547 = vdwg.mxu0
    %2548 = vmatprep.subr.mxu0 %v1106
    %2549 = vmatpush1.msra.mxu0 %v1105
    %2550 = vmatprep.subr.mxu0 %v1114
    %2551 = vmatpush1.msra.mxu0 %v1113
    %2552 = vmatprep.subr.mxu0 %v1122
    %2553 = vmatpush1.msra.mxu0 %v1121
    %2554 = vmatprep.subr.mxu0 %v1130
    %2555 = vmatpush1.msra.mxu0 %v1129
    %2556 = vmatprep.subr.mxu0 %v1138
    %2557 = vmatpush1.msra.mxu0 %v1137
    %2558 = vmatprep.subr.mxu0 %v1146
    %2559 = vmatpush1.msra.mxu0 %v1145
    %2560 = vmatprep.subr.mxu0 %v1154
    %2561 = vmatpush1.msra.mxu0 %v1153
    %2562 = vmatprep.subr.mxu0 %v1162
    %2563 = vmatpush1.msra.mxu0 %v1161
    %2564 = vmatprep.subr.mxu0 %v1170
    %2565 = vmatpush1.msra.mxu0 %v1169
    %2566 = vmatprep.subr.mxu0 %v1178
    %2567 = vmatpush1.msra.mxu0 %v1177
    %2568 = vmatprep.subr.mxu0 %v1186
    %2569 = vmatpush1.msra.mxu0 %v1185
    %2570 = vmatprep.subr.mxu0 %v1194
    %2571 = vmatpush1.msra.mxu0 %v1193
    %2572 = vmatprep.subr.mxu0 %v1202
    %2573 = vmatpush1.msra.mxu0 %v1201
    %2574 = vmatprep.subr.mxu0 %v1210
    %2575 = vmatpush1.msra.mxu0 %v1209
    %2576 = vmatprep.subr.mxu0 %v1218
    %2577 = vmatpush1.msra.mxu0 %v1217
    %2578 = vmatprep.subr.mxu0 %v1226
    %2579 = vmatpush1.msra.mxu0 %v1225
    %2580 = vmatprep.subr.mxu0 %v1234
    %2581 = vmatpush1.msra.mxu0 %v1233
    %2582 = vmatprep.subr.mxu0 %v1242
    %2583 = vmatpush1.msra.mxu0 %v1241
    %2584 = vmatprep.subr.mxu0 %v1250
    %2585 = vmatpush1.msra.mxu0 %v1249
    %2586 = vmatprep.subr.mxu0 %v1258
    %2587 = vmatpush1.msra.mxu0 %v1257
    %2588 = vmatprep.subr.mxu0 %v1266
    %2589 = vmatpush1.msra.mxu0 %v1265
    %2590 = vmatprep.subr.mxu0 %v1274
    %2591 = vmatpush1.msra.mxu0 %v1273
    %2592 = vmatprep.subr.mxu0 %v1282
    %2593 = vmatpush1.msra.mxu0 %v1281
    %2594 = vmatprep.subr.mxu0 %v1290
    %2595 = vmatpush1.msra.mxu0 %v1289
    %2596 = vmatprep.subr.mxu0 %v1298
    %2597 = vmatpush1.msra.mxu0 %v1297
    %2598 = vmatprep.subr.mxu0 %v1306
    %2599 = vmatpush1.msra.mxu0 %v1305
    %2600 = vmatprep.subr.mxu0 %v1314
    %2601 = vmatpush1.msra.mxu0 %v1313
    %2602 = vmatprep.subr.mxu0 %v1322
    %2603 = vmatpush1.msra.mxu0 %v1321
    %2604 = vmatprep.subr.mxu0 %v1330
    %2605 = vmatpush1.msra.mxu0 %v1329
    %2606 = vmatprep.subr.mxu0 %v1338
    %2607 = vmatpush1.msra.mxu0 %v1337
    %2608 = vmatprep.subr.mxu0 %v1346
    %2609 = vmatpush1.msra.mxu0 %v1345
    %2610 = vmatprep.subr.mxu0 %v1354
    %2611 = vmatpush1.msra.mxu0 %v1353
    %2612 = vmatprep.mubr.f32.mxu0 %v2028
    %2613 = vmatmul.mubr.f32.gmra.mrb[0].mxu0 %v2027
    %v2614 = vpop.f32.mrb[0].mxu0
    %v2615 = vadd.f32 %v1384, %v2614
    %v2616 = vpop.f32.mrb[0].mxu0
    %v2617 = vadd.f32 %v1388, %v2616
    %2618 = vdwg.mxu0
    %2619 = vmatprep.subr.mxu0 %v2080
    %2620 = vmatpush1.msra.mxu0 %v2079
    %2621 = vmatprep.subr.mxu0 %v2088
    %2622 = vmatpush1.msra.mxu0 %v2087
    %2623 = vmatprep.subr.mxu0 %v2096
    %2624 = vmatpush1.msra.mxu0 %v2095
    %2625 = vmatprep.subr.mxu0 %v2104
    %2626 = vmatpush1.msra.mxu0 %v2103
    %2627 = vmatprep.subr.mxu0 %v2112
    %2628 = vmatpush1.msra.mxu0 %v2111
    %2629 = vmatprep.subr.mxu0 %v2120
    %2630 = vmatpush1.msra.mxu0 %v2119
    %2631 = vmatprep.subr.mxu0 %v2128
    %2632 = vmatpush1.msra.mxu0 %v2127
    %2633 = vmatprep.subr.mxu0 %v2136
    %2634 = vmatpush1.msra.mxu0 %v2135
    %2635 = vmatprep.subr.mxu0 %v2144
    %2636 = vmatpush1.msra.mxu0 %v2143
    %2637 = vmatprep.subr.mxu0 %v2152
    %2638 = vmatpush1.msra.mxu0 %v2151
    %2639 = vmatprep.subr.mxu0 %v2160
    %2640 = vmatpush1.msra.mxu0 %v2159
    %2641 = vmatprep.subr.mxu0 %v2168
    %2642 = vmatpush1.msra.mxu0 %v2167
    %2643 = vmatprep.subr.mxu0 %v2176
    %2644 = vmatpush1.msra.mxu0 %v2175
    %2645 = vmatprep.subr.mxu0 %v2184
    %2646 = vmatpush1.msra.mxu0 %v2183
    %2647 = vmatprep.subr.mxu0 %v2192
    %2648 = vmatpush1.msra.mxu0 %v2191
    %2649 = vmatprep.subr.mxu0 %v2200
    %2650 = vmatpush1.msra.mxu0 %v2199
    %2651 = vmatprep.subr.mxu0 %v2208
    %2652 = vmatpush1.msra.mxu0 %v2207
    %2653 = vmatprep.subr.mxu0 %v2216
    %2654 = vmatpush1.msra.mxu0 %v2215
    %2655 = vmatprep.subr.mxu0 %v2224
    %2656 = vmatpush1.msra.mxu0 %v2223
    %2657 = vmatprep.subr.mxu0 %v2232
    %2658 = vmatpush1.msra.mxu0 %v2231
    %2659 = vmatprep.subr.mxu0 %v2240
    %2660 = vmatpush1.msra.mxu0 %v2239
    %2661 = vmatprep.subr.mxu0 %v2248
    %2662 = vmatpush1.msra.mxu0 %v2247
    %2663 = vmatprep.subr.mxu0 %v2256
    %2664 = vmatpush1.msra.mxu0 %v2255
    %2665 = vmatprep.subr.mxu0 %v2264
    %2666 = vmatpush1.msra.mxu0 %v2263
    %2667 = vmatprep.subr.mxu0 %v2272
    %2668 = vmatpush1.msra.mxu0 %v2271
    %2669 = vmatprep.subr.mxu0 %v2280
    %2670 = vmatpush1.msra.mxu0 %v2279
    %2671 = vmatprep.subr.mxu0 %v2288
    %2672 = vmatpush1.msra.mxu0 %v2287
    %2673 = vmatprep.subr.mxu0 %v2296
    %2674 = vmatpush1.msra.mxu0 %v2295
    %2675 = vmatprep.subr.mxu0 %v2304
    %2676 = vmatpush1.msra.mxu0 %v2303
    %2677 = vmatprep.subr.mxu0 %v2312
    %2678 = vmatpush1.msra.mxu0 %v2311
    %2679 = vmatprep.subr.mxu0 %v2320
    %2680 = vmatpush1.msra.mxu0 %v2319
    %2681 = vmatprep.subr.mxu0 %v2328
    %2682 = vmatpush1.msra.mxu0 %v2327
    %2683 = vmatprep.mubr.f32.mxu0 %v2076
    %2684 = vmatmul.mubr.f32.gmra.mrb[0].mxu0 %v2075
    %v2685 = vpop.f32.mrb[0].mxu0
    %v2686 = vadd.f32 0.0, %v2685
    %v2687 = vpop.f32.mrb[0].mxu0
    %v2688 = vadd.f32 0.0, %v2687
    %2689 = vdwg.mxu0
    %2690 = vmatprep.subr.mxu0 %v2082
    %2691 = vmatpush1.msra.mxu0 %v2081
    %2692 = vmatprep.subr.mxu0 %v2090
    %2693 = vmatpush1.msra.mxu0 %v2089
    %2694 = vmatprep.subr.mxu0 %v2098
    %2695 = vmatpush1.msra.mxu0 %v2097
    %2696 = vmatprep.subr.mxu0 %v2106
    %2697 = vmatpush1.msra.mxu0 %v2105
    %2698 = vmatprep.subr.mxu0 %v2114
    %2699 = vmatpush1.msra.mxu0 %v2113
    %2700 = vmatprep.subr.mxu0 %v2122
    %2701 = vmatpush1.msra.mxu0 %v2121
    %2702 = vmatprep.subr.mxu0 %v2130
    %2703 = vmatpush1.msra.mxu0 %v2129
    %2704 = vmatprep.subr.mxu0 %v2138
    %2705 = vmatpush1.msra.mxu0 %v2137
    %2706 = vmatprep.subr.mxu0 %v2146
    %2707 = vmatpush1.msra.mxu0 %v2145
    %2708 = vmatprep.subr.mxu0 %v2154
    %2709 = vmatpush1.msra.mxu0 %v2153
    %2710 = vmatprep.subr.mxu0 %v2162
    %2711 = vmatpush1.msra.mxu0 %v2161
    %2712 = vmatprep.subr.mxu0 %v2170
    %2713 = vmatpush1.msra.mxu0 %v2169
    %2714 = vmatprep.subr.mxu0 %v2178
    %2715 = vmatpush1.msra.mxu0 %v2177
    %2716 = vmatprep.subr.mxu0 %v2186
    %2717 = vmatpush1.msra.mxu0 %v2185
    %2718 = vmatprep.subr.mxu0 %v2194
    %2719 = vmatpush1.msra.mxu0 %v2193
    %2720 = vmatprep.subr.mxu0 %v2202
    %2721 = vmatpush1.msra.mxu0 %v2201
    %2722 = vmatprep.subr.mxu0 %v2210
    %2723 = vmatpush1.msra.mxu0 %v2209
    %2724 = vmatprep.subr.mxu0 %v2218
    %2725 = vmatpush1.msra.mxu0 %v2217
    %2726 = vmatprep.subr.mxu0 %v2226
    %2727 = vmatpush1.msra.mxu0 %v2225
    %2728 = vmatprep.subr.mxu0 %v2234
    %2729 = vmatpush1.msra.mxu0 %v2233
    %2730 = vmatprep.subr.mxu0 %v2242
    %2731 = vmatpush1.msra.mxu0 %v2241
    %2732 = vmatprep.subr.mxu0 %v2250
    %2733 = vmatpush1.msra.mxu0 %v2249
    %2734 = vmatprep.subr.mxu0 %v2258
    %2735 = vmatpush1.msra.mxu0 %v2257
    %2736 = vmatprep.subr.mxu0 %v2266
    %2737 = vmatpush1.msra.mxu0 %v2265
    %2738 = vmatprep.subr.mxu0 %v2274
    %2739 = vmatpush1.msra.mxu0 %v2273
    %2740 = vmatprep.subr.mxu0 %v2282
    %2741 = vmatpush1.msra.mxu0 %v2281
    %2742 = vmatprep.subr.mxu0 %v2290
    %2743 = vmatpush1.msra.mxu0 %v2289
    %2744 = vmatprep.subr.mxu0 %v2298
    %2745 = vmatpush1.msra.mxu0 %v2297
    %2746 = vmatprep.subr.mxu0 %v2306
    %2747 = vmatpush1.msra.mxu0 %v2305
    %2748 = vmatprep.subr.mxu0 %v2314
    %2749 = vmatpush1.msra.mxu0 %v2313
    %2750 = vmatprep.subr.mxu0 %v2322
    %2751 = vmatpush1.msra.mxu0 %v2321
    %2752 = vmatprep.subr.mxu0 %v2330
    %2753 = vmatpush1.msra.mxu0 %v2329
    %2754 = vmatprep.mubr.f32.mxu0 %v2076
    %2755 = vmatmul.mubr.f32.gmra.mrb[0].mxu0 %v2075
    %v2756 = vpop.f32.mrb[0].mxu0
    %v2757 = vadd.f32 0.0, %v2756
    %v2758 = vpop.f32.mrb[0].mxu0
    %v2759 = vadd.f32 0.0, %v2758
    %2760 = vdwg.mxu0
    %2761 = vmatprep.subr.mxu0 %v2084
    %2762 = vmatpush1.msra.mxu0 %v2083
    %2763 = vmatprep.subr.mxu0 %v2092
    %2764 = vmatpush1.msra.mxu0 %v2091
    %2765 = vmatprep.subr.mxu0 %v2100
    %2766 = vmatpush1.msra.mxu0 %v2099
    %2767 = vmatprep.subr.mxu0 %v2108
    %2768 = vmatpush1.msra.mxu0 %v2107
    %2769 = vmatprep.subr.mxu0 %v2116
    %2770 = vmatpush1.msra.mxu0 %v2115
    %2771 = vmatprep.subr.mxu0 %v2124
    %2772 = vmatpush1.msra.mxu0 %v2123
    %2773 = vmatprep.subr.mxu0 %v2132
    %2774 = vmatpush1.msra.mxu0 %v2131
    %2775 = vmatprep.subr.mxu0 %v2140
    %2776 = vmatpush1.msra.mxu0 %v2139
    %2777 = vmatprep.subr.mxu0 %v2148
    %2778 = vmatpush1.msra.mxu0 %v2147
    %2779 = vmatprep.subr.mxu0 %v2156
    %2780 = vmatpush1.msra.mxu0 %v2155
    %2781 = vmatprep.subr.mxu0 %v2164
    %2782 = vmatpush1.msra.mxu0 %v2163
    %2783 = vmatprep.subr.mxu0 %v2172
    %2784 = vmatpush1.msra.mxu0 %v2171
    %2785 = vmatprep.subr.mxu0 %v2180
    %2786 = vmatpush1.msra.mxu0 %v2179
    %2787 = vmatprep.subr.mxu0 %v2188
    %2788 = vmatpush1.msra.mxu0 %v2187
    %2789 = vmatprep.subr.mxu0 %v2196
    %2790 = vmatpush1.msra.mxu0 %v2195
    %2791 = vmatprep.subr.mxu0 %v2204
    %2792 = vmatpush1.msra.mxu0 %v2203
    %2793 = vmatprep.subr.mxu0 %v2212
    %2794 = vmatpush1.msra.mxu0 %v2211
    %2795 = vmatprep.subr.mxu0 %v2220
    %2796 = vmatpush1.msra.mxu0 %v2219
    %2797 = vmatprep.subr.mxu0 %v2228
    %2798 = vmatpush1.msra.mxu0 %v2227
    %2799 = vmatprep.subr.mxu0 %v2236
    %2800 = vmatpush1.msra.mxu0 %v2235
    %2801 = vmatprep.subr.mxu0 %v2244
    %2802 = vmatpush1.msra.mxu0 %v2243
    %2803 = vmatprep.subr.mxu0 %v2252
    %2804 = vmatpush1.msra.mxu0 %v2251
    %2805 = vmatprep.subr.mxu0 %v2260
    %2806 = vmatpush1.msra.mxu0 %v2259
    %2807 = vmatprep.subr.mxu0 %v2268
    %2808 = vmatpush1.msra.mxu0 %v2267
    %2809 = vmatprep.subr.mxu0 %v2276
    %2810 = vmatpush1.msra.mxu0 %v2275
    %2811 = vmatprep.subr.mxu0 %v2284
    %2812 = vmatpush1.msra.mxu0 %v2283
    %2813 = vmatprep.subr.mxu0 %v2292
    %2814 = vmatpush1.msra.mxu0 %v2291
    %2815 = vmatprep.subr.mxu0 %v2300
    %2816 = vmatpush1.msra.mxu0 %v2299
    %2817 = vmatprep.subr.mxu0 %v2308
    %2818 = vmatpush1.msra.mxu0 %v2307
    %2819 = vmatprep.subr.mxu0 %v2316
    %2820 = vmatpush1.msra.mxu0 %v2315
    %2821 = vmatprep.subr.mxu0 %v2324
    %2822 = vmatpush1.msra.mxu0 %v2323
    %2823 = vmatprep.subr.mxu0 %v2332
    %2824 = vmatpush1.msra.mxu0 %v2331
    %2825 = vmatprep.mubr.f32.mxu0 %v2076
    %2826 = vmatmul.mubr.f32.gmra.mrb[0].mxu0 %v2075
    %v2827 = vpop.f32.mrb[0].mxu0
    %v2828 = vadd.f32 0.0, %v2827
    %v2829 = vpop.f32.mrb[0].mxu0
    %v2830 = vadd.f32 0.0, %v2829
    %2831 = vdwg.mxu0
    %2832 = vmatprep.subr.mxu0 %v2086
    %2833 = vmatpush1.msra.mxu0 %v2085
    %2834 = vmatprep.subr.mxu0 %v2094
    %2835 = vmatpush1.msra.mxu0 %v2093
    %2836 = vmatprep.subr.mxu0 %v2102
    %2837 = vmatpush1.msra.mxu0 %v2101
    %2838 = vmatprep.subr.mxu0 %v2110
    %2839 = vmatpush1.msra.mxu0 %v2109
    %2840 = vmatprep.subr.mxu0 %v2118
    %2841 = vmatpush1.msra.mxu0 %v2117
    %2842 = vmatprep.subr.mxu0 %v2126
    %2843 = vmatpush1.msra.mxu0 %v2125
    %2844 = vmatprep.subr.mxu0 %v2134
    %2845 = vmatpush1.msra.mxu0 %v2133
    %2846 = vmatprep.subr.mxu0 %v2142
    %2847 = vmatpush1.msra.mxu0 %v2141
    %2848 = vmatprep.subr.mxu0 %v2150
    %2849 = vmatpush1.msra.mxu0 %v2149
    %2850 = vmatprep.subr.mxu0 %v2158
    %2851 = vmatpush1.msra.mxu0 %v2157
    %2852 = vmatprep.subr.mxu0 %v2166
    %2853 = vmatpush1.msra.mxu0 %v2165
    %2854 = vmatprep.subr.mxu0 %v2174
    %2855 = vmatpush1.msra.mxu0 %v2173
    %2856 = vmatprep.subr.mxu0 %v2182
    %2857 = vmatpush1.msra.mxu0 %v2181
    %2858 = vmatprep.subr.mxu0 %v2190
    %2859 = vmatpush1.msra.mxu0 %v2189
    %2860 = vmatprep.subr.mxu0 %v2198
    %2861 = vmatpush1.msra.mxu0 %v2197
    %2862 = vmatprep.subr.mxu0 %v2206
    %2863 = vmatpush1.msra.mxu0 %v2205
    %2864 = vmatprep.subr.mxu0 %v2214
    %2865 = vmatpush1.msra.mxu0 %v2213
    %2866 = vmatprep.subr.mxu0 %v2222
    %2867 = vmatpush1.msra.mxu0 %v2221
    %2868 = vmatprep.subr.mxu0 %v2230
    %2869 = vmatpush1.msra.mxu0 %v2229
    %2870 = vmatprep.subr.mxu0 %v2238
    %2871 = vmatpush1.msra.mxu0 %v2237
    %2872 = vmatprep.subr.mxu0 %v2246
    %2873 = vmatpush1.msra.mxu0 %v2245
    %2874 = vmatprep.subr.mxu0 %v2254
    %2875 = vmatpush1.msra.mxu0 %v2253
    %2876 = vmatprep.subr.mxu0 %v2262
    %2877 = vmatpush1.msra.mxu0 %v2261
    %2878 = vmatprep.subr.mxu0 %v2270
    %2879 = vmatpush1.msra.mxu0 %v2269
    %2880 = vmatprep.subr.mxu0 %v2278
    %2881 = vmatpush1.msra.mxu0 %v2277
    %2882 = vmatprep.subr.mxu0 %v2286
    %2883 = vmatpush1.msra.mxu0 %v2285
    %2884 = vmatprep.subr.mxu0 %v2294
    %2885 = vmatpush1.msra.mxu0 %v2293
    %2886 = vmatprep.subr.mxu0 %v2302
    %2887 = vmatpush1.msra.mxu0 %v2301
    %2888 = vmatprep.subr.mxu0 %v2310
    %2889 = vmatpush1.msra.mxu0 %v2309
    %2890 = vmatprep.subr.mxu0 %v2318
    %2891 = vmatpush1.msra.mxu0 %v2317
    %2892 = vmatprep.subr.mxu0 %v2326
    %2893 = vmatpush1.msra.mxu0 %v2325
    %2894 = vmatprep.subr.mxu0 %v2334
    %2895 = vmatpush1.msra.mxu0 %v2333
    %2896 = vmatprep.mubr.f32.mxu0 %v2076
    %2897 = vmatmul.mubr.f32.gmra.mrb[0].mxu0 %v2075
    %v2898 = vpop.f32.mrb[0].mxu0
    %v2899 = vadd.f32 0.0, %v2898
    %v2900 = vpop.f32.mrb[0].mxu0
    %v2901 = vadd.f32 0.0, %v2900
    %2902 = vdwg.mxu0
    %v2903 = vadd.f32 %v2402, %v2686
    %v2904 = vadd.f32 %v2404, %v2688
    %v2905 = vadd.f32 %v2473, %v2757
    %v2906 = vadd.f32 %v2475, %v2759
    %v2907 = vadd.f32 %v2544, %v2828
    %v2908 = vadd.f32 %v2546, %v2830
    %v2909 = vadd.f32 %v2615, %v2899
    %v2910 = vadd.f32 %v2617, %v2901
    %v2911 = vld [vmem:[#allocation2 + $0x80] sm:$0xff]
    %v2912 = vld [vmem:[#allocation2 + $0x88] sm:$0xff]
    %v2913 = vld [vmem:[#allocation2 + $0x90] sm:$0xff]
    %v2914 = vld [vmem:[#allocation2 + $0x98] sm:$0xff]
    %v2915 = vld [vmem:[#allocation2 + $0xa0] sm:$0xff]
    %v2916 = vld [vmem:[#allocation2 + $0xa8] sm:$0xff]
    %v2917 = vld [vmem:[#allocation2 + $0xb0] sm:$0xff]
    %v2918 = vld [vmem:[#allocation2 + $0xb8] sm:$0xff]
    %2919 = vmatprep.subr.mxu0 %v784
    %2920 = vmatpush1.msra.mxu0 %v783
    %2921 = vmatprep.subr.mxu0 %v792
    %2922 = vmatpush1.msra.mxu0 %v791
    %2923 = vmatprep.subr.mxu0 %v800
    %2924 = vmatpush1.msra.mxu0 %v799
    %2925 = vmatprep.subr.mxu0 %v808
    %2926 = vmatpush1.msra.mxu0 %v807
    %2927 = vmatprep.subr.mxu0 %v816
    %2928 = vmatpush1.msra.mxu0 %v815
    %2929 = vmatprep.subr.mxu0 %v824
    %2930 = vmatpush1.msra.mxu0 %v823
    %2931 = vmatprep.subr.mxu0 %v832
    %2932 = vmatpush1.msra.mxu0 %v831
    %2933 = vmatprep.subr.mxu0 %v840
    %2934 = vmatpush1.msra.mxu0 %v839
    %2935 = vmatprep.subr.mxu0 %v848
    %2936 = vmatpush1.msra.mxu0 %v847
    %2937 = vmatprep.subr.mxu0 %v856
    %2938 = vmatpush1.msra.mxu0 %v855
    %2939 = vmatprep.subr.mxu0 %v864
    %2940 = vmatpush1.msra.mxu0 %v863
    %2941 = vmatprep.subr.mxu0 %v872
    %2942 = vmatpush1.msra.mxu0 %v871
    %2943 = vmatprep.subr.mxu0 %v880
    %2944 = vmatpush1.msra.mxu0 %v879
    %2945 = vmatprep.subr.mxu0 %v888
    %2946 = vmatpush1.msra.mxu0 %v887
    %2947 = vmatprep.subr.mxu0 %v896
    %2948 = vmatpush1.msra.mxu0 %v895
    %2949 = vmatprep.subr.mxu0 %v904
    %2950 = vmatpush1.msra.mxu0 %v903
    %2951 = vmatprep.subr.mxu0 %v912
    %2952 = vmatpush1.msra.mxu0 %v911
    %2953 = vmatprep.subr.mxu0 %v920
    %2954 = vmatpush1.msra.mxu0 %v919
    %2955 = vmatprep.subr.mxu0 %v928
    %2956 = vmatpush1.msra.mxu0 %v927
    %2957 = vmatprep.subr.mxu0 %v936
    %2958 = vmatpush1.msra.mxu0 %v935
    %2959 = vmatprep.subr.mxu0 %v944
    %2960 = vmatpush1.msra.mxu0 %v943
    %2961 = vmatprep.subr.mxu0 %v952
    %2962 = vmatpush1.msra.mxu0 %v951
    %2963 = vmatprep.subr.mxu0 %v960
    %2964 = vmatpush1.msra.mxu0 %v959
    %2965 = vmatprep.subr.mxu0 %v968
    %2966 = vmatpush1.msra.mxu0 %v967
    %2967 = vmatprep.subr.mxu0 %v976
    %2968 = vmatpush1.msra.mxu0 %v975
    %2969 = vmatprep.subr.mxu0 %v984
    %2970 = vmatpush1.msra.mxu0 %v983
    %2971 = vmatprep.subr.mxu0 %v992
    %2972 = vmatpush1.msra.mxu0 %v991
    %2973 = vmatprep.subr.mxu0 %v1000
    %2974 = vmatpush1.msra.mxu0 %v999
    %2975 = vmatprep.subr.mxu0 %v1008
    %2976 = vmatpush1.msra.mxu0 %v1007
    %2977 = vmatprep.subr.mxu0 %v1016
    %2978 = vmatpush1.msra.mxu0 %v1015
    %2979 = vmatprep.subr.mxu0 %v1024
    %2980 = vmatpush1.msra.mxu0 %v1023
    %2981 = vmatprep.subr.mxu0 %v1032
    %2982 = vmatpush1.msra.mxu0 %v1031
    %2983 = vmatprep.mubr.f32.mxu0 %v2028
    %2984 = vmatmul.mubr.f32.gmra.mrb[0].mxu0 %v2027
    %v2985 = vpop.f32.mrb[0].mxu0
    %v2986 = vadd.f32 0.0, %v2985
    %v2987 = vpop.f32.mrb[0].mxu0
    %v2988 = vadd.f32 0.0, %v2987
    %2989 = vdwg.mxu0
    %2990 = vmatprep.subr.mxu0 %v786
    %2991 = vmatpush1.msra.mxu0 %v785
    %2992 = vmatprep.subr.mxu0 %v794
    %2993 = vmatpush1.msra.mxu0 %v793
    %2994 = vmatprep.subr.mxu0 %v802
    %2995 = vmatpush1.msra.mxu0 %v801
    %2996 = vmatprep.subr.mxu0 %v810
    %2997 = vmatpush1.msra.mxu0 %v809
    %2998 = vmatprep.subr.mxu0 %v818
    %2999 = vmatpush1.msra.mxu0 %v817
    %3000 = vmatprep.subr.mxu0 %v826
    %3001 = vmatpush1.msra.mxu0 %v825
    %3002 = vmatprep.subr.mxu0 %v834
    %3003 = vmatpush1.msra.mxu0 %v833
    %3004 = vmatprep.subr.mxu0 %v842
    %3005 = vmatpush1.msra.mxu0 %v841
    %3006 = vmatprep.subr.mxu0 %v850
    %3007 = vmatpush1.msra.mxu0 %v849
    %3008 = vmatprep.subr.mxu0 %v858
    %3009 = vmatpush1.msra.mxu0 %v857
    %3010 = vmatprep.subr.mxu0 %v866
    %3011 = vmatpush1.msra.mxu0 %v865
    %3012 = vmatprep.subr.mxu0 %v874
    %3013 = vmatpush1.msra.mxu0 %v873
    %3014 = vmatprep.subr.mxu0 %v882
    %3015 = vmatpush1.msra.mxu0 %v881
    %3016 = vmatprep.subr.mxu0 %v890
    %3017 = vmatpush1.msra.mxu0 %v889
    %3018 = vmatprep.subr.mxu0 %v898
    %3019 = vmatpush1.msra.mxu0 %v897
    %3020 = vmatprep.subr.mxu0 %v906
    %3021 = vmatpush1.msra.mxu0 %v905
    %3022 = vmatprep.subr.mxu0 %v914
    %3023 = vmatpush1.msra.mxu0 %v913
    %3024 = vmatprep.subr.mxu0 %v922
    %3025 = vmatpush1.msra.mxu0 %v921
    %3026 = vmatprep.subr.mxu0 %v930
    %3027 = vmatpush1.msra.mxu0 %v929
    %3028 = vmatprep.subr.mxu0 %v938
    %3029 = vmatpush1.msra.mxu0 %v937
    %3030 = vmatprep.subr.mxu0 %v946
    %3031 = vmatpush1.msra.mxu0 %v945
    %3032 = vmatprep.subr.mxu0 %v954
    %3033 = vmatpush1.msra.mxu0 %v953
    %3034 = vmatprep.subr.mxu0 %v962
    %3035 = vmatpush1.msra.mxu0 %v961
    %3036 = vmatprep.subr.mxu0 %v970
    %3037 = vmatpush1.msra.mxu0 %v969
    %3038 = vmatprep.subr.mxu0 %v978
    %3039 = vmatpush1.msra.mxu0 %v977
    %3040 = vmatprep.subr.mxu0 %v986
    %3041 = vmatpush1.msra.mxu0 %v985
    %3042 = vmatprep.subr.mxu0 %v994
    %3043 = vmatpush1.msra.mxu0 %v993
    %3044 = vmatprep.subr.mxu0 %v1002
    %3045 = vmatpush1.msra.mxu0 %v1001
    %3046 = vmatprep.subr.mxu0 %v1010
    %3047 = vmatpush1.msra.mxu0 %v1009
    %3048 = vmatprep.subr.mxu0 %v1018
    %3049 = vmatpush1.msra.mxu0 %v1017
    %3050 = vmatprep.subr.mxu0 %v1026
    %3051 = vmatpush1.msra.mxu0 %v1025
    %3052 = vmatprep.subr.mxu0 %v1034
    %3053 = vmatpush1.msra.mxu0 %v1033
    %3054 = vmatprep.mubr.f32.mxu0 %v2028
    %3055 = vmatmul.mubr.f32.gmra.mrb[0].mxu0 %v2027
    %v3056 = vpop.f32.mrb[0].mxu0
    %v3057 = vadd.f32 0.0, %v3056
    %v3058 = vpop.f32.mrb[0].mxu0
    %v3059 = vadd.f32 0.0, %v3058
    %3060 = vdwg.mxu0
    %3061 = vmatprep.subr.mxu0 %v788
    %3062 = vmatpush1.msra.mxu0 %v787
    %3063 = vmatprep.subr.mxu0 %v796
    %3064 = vmatpush1.msra.mxu0 %v795
    %3065 = vmatprep.subr.mxu0 %v804
    %3066 = vmatpush1.msra.mxu0 %v803
    %3067 = vmatprep.subr.mxu0 %v812
    %3068 = vmatpush1.msra.mxu0 %v811
    %3069 = vmatprep.subr.mxu0 %v820
    %3070 = vmatpush1.msra.mxu0 %v819
    %3071 = vmatprep.subr.mxu0 %v828
    %3072 = vmatpush1.msra.mxu0 %v827
    %3073 = vmatprep.subr.mxu0 %v836
    %3074 = vmatpush1.msra.mxu0 %v835
    %3075 = vmatprep.subr.mxu0 %v844
    %3076 = vmatpush1.msra.mxu0 %v843
    %3077 = vmatprep.subr.mxu0 %v852
    %3078 = vmatpush1.msra.mxu0 %v851
    %3079 = vmatprep.subr.mxu0 %v860
    %3080 = vmatpush1.msra.mxu0 %v859
    %3081 = vmatprep.subr.mxu0 %v868
    %3082 = vmatpush1.msra.mxu0 %v867
    %3083 = vmatprep.subr.mxu0 %v876
    %3084 = vmatpush1.msra.mxu0 %v875
    %3085 = vmatprep.subr.mxu0 %v884
    %3086 = vmatpush1.msra.mxu0 %v883
    %3087 = vmatprep.subr.mxu0 %v892
    %3088 = vmatpush1.msra.mxu0 %v891
    %3089 = vmatprep.subr.mxu0 %v900
    %3090 = vmatpush1.msra.mxu0 %v899
    %3091 = vmatprep.subr.mxu0 %v908
    %3092 = vmatpush1.msra.mxu0 %v907
    %3093 = vmatprep.subr.mxu0 %v916
    %3094 = vmatpush1.msra.mxu0 %v915
    %3095 = vmatprep.subr.mxu0 %v924
    %3096 = vmatpush1.msra.mxu0 %v923
    %3097 = vmatprep.subr.mxu0 %v932
    %3098 = vmatpush1.msra.mxu0 %v931
    %3099 = vmatprep.subr.mxu0 %v940
    %3100 = vmatpush1.msra.mxu0 %v939
    %3101 = vmatprep.subr.mxu0 %v948
    %3102 = vmatpush1.msra.mxu0 %v947
    %3103 = vmatprep.subr.mxu0 %v956
    %3104 = vmatpush1.msra.mxu0 %v955
    %3105 = vmatprep.subr.mxu0 %v964
    %3106 = vmatpush1.msra.mxu0 %v963
    %3107 = vmatprep.subr.mxu0 %v972
    %3108 = vmatpush1.msra.mxu0 %v971
    %3109 = vmatprep.subr.mxu0 %v980
    %3110 = vmatpush1.msra.mxu0 %v979
    %3111 = vmatprep.subr.mxu0 %v988
    %3112 = vmatpush1.msra.mxu0 %v987
    %3113 = vmatprep.subr.mxu0 %v996
    %3114 = vmatpush1.msra.mxu0 %v995
    %3115 = vmatprep.subr.mxu0 %v1004
    %3116 = vmatpush1.msra.mxu0 %v1003
    %3117 = vmatprep.subr.mxu0 %v1012
    %3118 = vmatpush1.msra.mxu0 %v1011
    %3119 = vmatprep.subr.mxu0 %v1020
    %3120 = vmatpush1.msra.mxu0 %v1019
    %3121 = vmatprep.subr.mxu0 %v1028
    %3122 = vmatpush1.msra.mxu0 %v1027
    %3123 = vmatprep.subr.mxu0 %v1036
    %3124 = vmatpush1.msra.mxu0 %v1035
    %3125 = vmatprep.mubr.f32.mxu0 %v2028
    %3126 = vmatmul.mubr.f32.gmra.mrb[0].mxu0 %v2027
    %v3127 = vpop.f32.mrb[0].mxu0
    %v3128 = vadd.f32 0.0, %v3127
    %v3129 = vpop.f32.mrb[0].mxu0
    %v3130 = vadd.f32 0.0, %v3129
    %3131 = vdwg.mxu0
    %3132 = vmatprep.subr.mxu0 %v790
    %3133 = vmatpush1.msra.mxu0 %v789
    %3134 = vmatprep.subr.mxu0 %v798
    %3135 = vmatpush1.msra.mxu0 %v797
    %3136 = vmatprep.subr.mxu0 %v806
    %3137 = vmatpush1.msra.mxu0 %v805
    %3138 = vmatprep.subr.mxu0 %v814
    %3139 = vmatpush1.msra.mxu0 %v813
    %3140 = vmatprep.subr.mxu0 %v822
    %3141 = vmatpush1.msra.mxu0 %v821
    %3142 = vmatprep.subr.mxu0 %v830
    %3143 = vmatpush1.msra.mxu0 %v829
    %3144 = vmatprep.subr.mxu0 %v838
    %3145 = vmatpush1.msra.mxu0 %v837
    %3146 = vmatprep.subr.mxu0 %v846
    %3147 = vmatpush1.msra.mxu0 %v845
    %3148 = vmatprep.subr.mxu0 %v854
    %3149 = vmatpush1.msra.mxu0 %v853
    %3150 = vmatprep.subr.mxu0 %v862
    %3151 = vmatpush1.msra.mxu0 %v861
    %3152 = vmatprep.subr.mxu0 %v870
    %3153 = vmatpush1.msra.mxu0 %v869
    %3154 = vmatprep.subr.mxu0 %v878
    %3155 = vmatpush1.msra.mxu0 %v877
    %3156 = vmatprep.subr.mxu0 %v886
    %3157 = vmatpush1.msra.mxu0 %v885
    %3158 = vmatprep.subr.mxu0 %v894
    %3159 = vmatpush1.msra.mxu0 %v893
    %3160 = vmatprep.subr.mxu0 %v902
    %3161 = vmatpush1.msra.mxu0 %v901
    %3162 = vmatprep.subr.mxu0 %v910
    %3163 = vmatpush1.msra.mxu0 %v909
    %3164 = vmatprep.subr.mxu0 %v918
    %3165 = vmatpush1.msra.mxu0 %v917
    %3166 = vmatprep.subr.mxu0 %v926
    %3167 = vmatpush1.msra.mxu0 %v925
    %3168 = vmatprep.subr.mxu0 %v934
    %3169 = vmatpush1.msra.mxu0 %v933
    %3170 = vmatprep.subr.mxu0 %v942
    %3171 = vmatpush1.msra.mxu0 %v941
    %3172 = vmatprep.subr.mxu0 %v950
    %3173 = vmatpush1.msra.mxu0 %v949
    %3174 = vmatprep.subr.mxu0 %v958
    %3175 = vmatpush1.msra.mxu0 %v957
    %3176 = vmatprep.subr.mxu0 %v966
    %3177 = vmatpush1.msra.mxu0 %v965
    %3178 = vmatprep.subr.mxu0 %v974
    %3179 = vmatpush1.msra.mxu0 %v973
    %3180 = vmatprep.subr.mxu0 %v982
    %3181 = vmatpush1.msra.mxu0 %v981
    %3182 = vmatprep.subr.mxu0 %v990
    %3183 = vmatpush1.msra.mxu0 %v989
    %3184 = vmatprep.subr.mxu0 %v998
    %3185 = vmatpush1.msra.mxu0 %v997
    %3186 = vmatprep.subr.mxu0 %v1006
    %3187 = vmatpush1.msra.mxu0 %v1005
    %3188 = vmatprep.subr.mxu0 %v1014
    %3189 = vmatpush1.msra.mxu0 %v1013
    %3190 = vmatprep.subr.mxu0 %v1022
    %3191 = vmatpush1.msra.mxu0 %v1021
    %3192 = vmatprep.subr.mxu0 %v1030
    %3193 = vmatpush1.msra.mxu0 %v1029
    %3194 = vmatprep.subr.mxu0 %v1038
    %3195 = vmatpush1.msra.mxu0 %v1037
    %3196 = vmatprep.mubr.f32.mxu0 %v2028
    %3197 = vmatmul.mubr.f32.gmra.mrb[0].mxu0 %v2027
    %v3198 = vpop.f32.mrb[0].mxu0
    %v3199 = vadd.f32 0.0, %v3198
    %v3200 = vpop.f32.mrb[0].mxu0
    %v3201 = vadd.f32 0.0, %v3200
    %3202 = vdwg.mxu0
    %v3203 = vadd.f32 %v2911, %v2986
    %v3204 = vadd.f32 %v2912, %v2988
    %v3205 = vadd.f32 %v2913, %v3057
    %v3206 = vadd.f32 %v2914, %v3059
    %v3207 = vadd.f32 %v2915, %v3128
    %v3208 = vadd.f32 %v2916, %v3130
    %v3209 = vadd.f32 %v2917, %v3199
    %v3210 = vadd.f32 %v2918, %v3201
    %v3211 = vxor.u32 %v3203, 2147483648
    %v3212 = vxor.u32 %v3204, 2147483648
    %v3213 = vmul.f32 %v3211, 1.442695
    %v3214 = vpow.pop %v3213
    %v3215 = vmul.f32 %v3212, 1.442695
    %v3216 = vpow.pop %v3215
    %v3217 = vadd.f32 %v3214, 1.0
    %v3218 = vadd.f32 %v3216, 1.0
    %v3219 = vrcp.pop %v3217
    %v3220 = vmul.f32 1.0, %v3219
    %v3221 = vrcp.pop %v3218
    %v3222 = vmul.f32 1.0, %v3221
    %v3223 = vxor.u32 %v3205, 2147483648
    %v3224 = vxor.u32 %v3206, 2147483648
    %v3225 = vmul.f32 %v3223, 1.442695
    %v3226 = vpow.pop %v3225
    %v3227 = vmul.f32 %v3224, 1.442695
    %v3228 = vpow.pop %v3227
    %v3229 = vadd.f32 %v3226, 1.0
    %v3230 = vadd.f32 %v3228, 1.0
    %v3231 = vrcp.pop %v3229
    %v3232 = vmul.f32 1.0, %v3231
    %v3233 = vrcp.pop %v3230
    %v3234 = vmul.f32 1.0, %v3233
    %v3235 = vtanh.pop %v3207
    %v3236 = vtanh.pop %v3208
    %v3237 = vxor.u32 %v3209, 2147483648
    %v3238 = vxor.u32 %v3210, 2147483648
    %v3239 = vmul.f32 %v3237, 1.442695
    %v3240 = vpow.pop %v3239
    %v3241 = vmul.f32 %v3238, 1.442695
    %v3242 = vpow.pop %v3241
    %v3243 = vadd.f32 %v3240, 1.0
    %v3244 = vadd.f32 %v3242, 1.0
    %v3245 = vrcp.pop %v3243
    %v3246 = vmul.f32 1.0, %v3245
    %v3247 = vrcp.pop %v3244
    %v3248 = vmul.f32 1.0, %v3247
    %v3249 = vmul.f32 %v3232, %v2023
    %v3250 = vmul.f32 %v3234, %v2024
    %v3251 = vmul.f32 %v3220, %v3235
    %v3252 = vmul.f32 %v3222, %v3236
    %v3253 = vadd.f32 %v3249, %v3251
    %v3254 = vadd.f32 %v3250, %v3252
    %v3255 = vtanh.pop %v3253
    %v3256 = vtanh.pop %v3254
    %v3257 = vmul.f32 %v3246, %v3255
    %v3258 = vmul.f32 %v3248, %v3256
    %v3259 = vxor.u32 %v2903, 2147483648
    %v3260 = vxor.u32 %v2904, 2147483648
    %v3261 = vmul.f32 %v3259, 1.442695
    %v3262 = vpow.pop %v3261
    %v3263 = vmul.f32 %v3260, 1.442695
    %v3264 = vpow.pop %v3263
    %v3265 = vadd.f32 %v3262, 1.0
    %v3266 = vadd.f32 %v3264, 1.0
    %v3267 = vrcp.pop %v3265
    %v3268 = vmul.f32 1.0, %v3267
    %v3269 = vrcp.pop %v3266
    %v3270 = vmul.f32 1.0, %v3269
    %v3271 = vxor.u32 %v2905, 2147483648
    %v3272 = vxor.u32 %v2906, 2147483648
    %v3273 = vmul.f32 %v3271, 1.442695
    %v3274 = vpow.pop %v3273
    %v3275 = vmul.f32 %v3272, 1.442695
    %v3276 = vpow.pop %v3275
    %v3277 = vadd.f32 %v3274, 1.0
    %v3278 = vadd.f32 %v3276, 1.0
    %v3279 = vrcp.pop %v3277
    %v3280 = vmul.f32 1.0, %v3279
    %v3281 = vrcp.pop %v3278
    %v3282 = vmul.f32 1.0, %v3281
    %v3283 = vtanh.pop %v2907
    %v3284 = vtanh.pop %v2908
    %v3285 = vxor.u32 %v2909, 2147483648
    %v3286 = vxor.u32 %v2910, 2147483648
    %v3287 = vmul.f32 %v3285, 1.442695
    %v3288 = vpow.pop %v3287
    %v3289 = vmul.f32 %v3286, 1.442695
    %v3290 = vpow.pop %v3289
    %v3291 = vadd.f32 %v3288, 1.0
    %v3292 = vadd.f32 %v3290, 1.0
    %v3293 = vrcp.pop %v3291
    %v3294 = vmul.f32 1.0, %v3293
    %v3295 = vrcp.pop %v3292
    %v3296 = vmul.f32 1.0, %v3295
    %v3297 = vmul.f32 %v3280, %v2071
    %v3298 = vmul.f32 %v3282, %v2072
    %v3299 = vmul.f32 %v3268, %v3283
    %v3300 = vmul.f32 %v3270, %v3284
    %v3301 = vadd.f32 %v3297, %v3299
    %v3302 = vadd.f32 %v3298, %v3300
    %v3303 = vtanh.pop %v3301
    %v3304 = vtanh.pop %v3302
    %v3305 = vmul.f32 %v3294, %v3303
    %v3306 = vmul.f32 %v3296, %v3304
    %3307 = vmatprep.subr.mxu0 %v1100
    %3308 = vmatpush1.msra.mxu0 %v1099
    %3309 = vmatprep.subr.mxu0 %v1108
    %3310 = vmatpush1.msra.mxu0 %v1107
    %3311 = vmatprep.subr.mxu0 %v1116
    %3312 = vmatpush1.msra.mxu0 %v1115
    %3313 = vmatprep.subr.mxu0 %v1124
    %3314 = vmatpush1.msra.mxu0 %v1123
    %3315 = vmatprep.subr.mxu0 %v1132
    %3316 = vmatpush1.msra.mxu0 %v1131
    %3317 = vmatprep.subr.mxu0 %v1140
    %3318 = vmatpush1.msra.mxu0 %v1139
    %3319 = vmatprep.subr.mxu0 %v1148
    %3320 = vmatpush1.msra.mxu0 %v1147
    %3321 = vmatprep.subr.mxu0 %v1156
    %3322 = vmatpush1.msra.mxu0 %v1155
    %3323 = vmatprep.subr.mxu0 %v1164
    %3324 = vmatpush1.msra.mxu0 %v1163
    %3325 = vmatprep.subr.mxu0 %v1172
    %3326 = vmatpush1.msra.mxu0 %v1171
    %3327 = vmatprep.subr.mxu0 %v1180
    %3328 = vmatpush1.msra.mxu0 %v1179
    %3329 = vmatprep.subr.mxu0 %v1188
    %3330 = vmatpush1.msra.mxu0 %v1187
    %3331 = vmatprep.subr.mxu0 %v1196
    %3332 = vmatpush1.msra.mxu0 %v1195
    %3333 = vmatprep.subr.mxu0 %v1204
    %3334 = vmatpush1.msra.mxu0 %v1203
    %3335 = vmatprep.subr.mxu0 %v1212
    %3336 = vmatpush1.msra.mxu0 %v1211
    %3337 = vmatprep.subr.mxu0 %v1220
    %3338 = vmatpush1.msra.mxu0 %v1219
    %3339 = vmatprep.subr.mxu0 %v1228
    %3340 = vmatpush1.msra.mxu0 %v1227
    %3341 = vmatprep.subr.mxu0 %v1236
    %3342 = vmatpush1.msra.mxu0 %v1235
    %3343 = vmatprep.subr.mxu0 %v1244
    %3344 = vmatpush1.msra.mxu0 %v1243
    %3345 = vmatprep.subr.mxu0 %v1252
    %3346 = vmatpush1.msra.mxu0 %v1251
    %3347 = vmatprep.subr.mxu0 %v1260
    %3348 = vmatpush1.msra.mxu0 %v1259
    %3349 = vmatprep.subr.mxu0 %v1268
    %3350 = vmatpush1.msra.mxu0 %v1267
    %3351 = vmatprep.subr.mxu0 %v1276
    %3352 = vmatpush1.msra.mxu0 %v1275
    %3353 = vmatprep.subr.mxu0 %v1284
    %3354 = vmatpush1.msra.mxu0 %v1283
    %3355 = vmatprep.subr.mxu0 %v1292
    %3356 = vmatpush1.msra.mxu0 %v1291
    %3357 = vmatprep.subr.mxu0 %v1300
    %3358 = vmatpush1.msra.mxu0 %v1299
    %3359 = vmatprep.subr.mxu0 %v1308
    %3360 = vmatpush1.msra.mxu0 %v1307
    %3361 = vmatprep.subr.mxu0 %v1316
    %3362 = vmatpush1.msra.mxu0 %v1315
    %3363 = vmatprep.subr.mxu0 %v1324
    %3364 = vmatpush1.msra.mxu0 %v1323
    %3365 = vmatprep.subr.mxu0 %v1332
    %3366 = vmatpush1.msra.mxu0 %v1331
    %3367 = vmatprep.subr.mxu0 %v1340
    %3368 = vmatpush1.msra.mxu0 %v1339
    %3369 = vmatprep.subr.mxu0 %v1348
    %3370 = vmatpush1.msra.mxu0 %v1347
    %3371 = vmatprep.mubr.f32.mxu0 %v3258
    %3372 = vmatmul.mubr.f32.gmra.mrb[0].mxu0 %v3257
    %v3373 = vpop.f32.mrb[0].mxu0
    %v3374 = vadd.f32 %v1360, %v3373
    %v3375 = vpop.f32.mrb[0].mxu0
    %v3376 = vadd.f32 %v1364, %v3375
    %3377 = vdwg.mxu0
    %3378 = vmatprep.subr.mxu0 %v1102
    %3379 = vmatpush1.msra.mxu0 %v1101
    %3380 = vmatprep.subr.mxu0 %v1110
    %3381 = vmatpush1.msra.mxu0 %v1109
    %3382 = vmatprep.subr.mxu0 %v1118
    %3383 = vmatpush1.msra.mxu0 %v1117
    %3384 = vmatprep.subr.mxu0 %v1126
    %3385 = vmatpush1.msra.mxu0 %v1125
    %3386 = vmatprep.subr.mxu0 %v1134
    %3387 = vmatpush1.msra.mxu0 %v1133
    %3388 = vmatprep.subr.mxu0 %v1142
    %3389 = vmatpush1.msra.mxu0 %v1141
    %3390 = vmatprep.subr.mxu0 %v1150
    %3391 = vmatpush1.msra.mxu0 %v1149
    %3392 = vmatprep.subr.mxu0 %v1158
    %3393 = vmatpush1.msra.mxu0 %v1157
    %3394 = vmatprep.subr.mxu0 %v1166
    %3395 = vmatpush1.msra.mxu0 %v1165
    %3396 = vmatprep.subr.mxu0 %v1174
    %3397 = vmatpush1.msra.mxu0 %v1173
    %3398 = vmatprep.subr.mxu0 %v1182
    %3399 = vmatpush1.msra.mxu0 %v1181
    %3400 = vmatprep.subr.mxu0 %v1190
    %3401 = vmatpush1.msra.mxu0 %v1189
    %3402 = vmatprep.subr.mxu0 %v1198
    %3403 = vmatpush1.msra.mxu0 %v1197
    %3404 = vmatprep.subr.mxu0 %v1206
    %3405 = vmatpush1.msra.mxu0 %v1205
    %3406 = vmatprep.subr.mxu0 %v1214
    %3407 = vmatpush1.msra.mxu0 %v1213
    %3408 = vmatprep.subr.mxu0 %v1222
    %3409 = vmatpush1.msra.mxu0 %v1221
    %3410 = vmatprep.subr.mxu0 %v1230
    %3411 = vmatpush1.msra.mxu0 %v1229
    %3412 = vmatprep.subr.mxu0 %v1238
    %3413 = vmatpush1.msra.mxu0 %v1237
    %3414 = vmatprep.subr.mxu0 %v1246
    %3415 = vmatpush1.msra.mxu0 %v1245
    %3416 = vmatprep.subr.mxu0 %v1254
    %3417 = vmatpush1.msra.mxu0 %v1253
    %3418 = vmatprep.subr.mxu0 %v1262
    %3419 = vmatpush1.msra.mxu0 %v1261
    %3420 = vmatprep.subr.mxu0 %v1270
    %3421 = vmatpush1.msra.mxu0 %v1269
    %3422 = vmatprep.subr.mxu0 %v1278
    %3423 = vmatpush1.msra.mxu0 %v1277
    %3424 = vmatprep.subr.mxu0 %v1286
    %3425 = vmatpush1.msra.mxu0 %v1285
    %3426 = vmatprep.subr.mxu0 %v1294
    %3427 = vmatpush1.msra.mxu0 %v1293
    %3428 = vmatprep.subr.mxu0 %v1302
    %3429 = vmatpush1.msra.mxu0 %v1301
    %3430 = vmatprep.subr.mxu0 %v1310
    %3431 = vmatpush1.msra.mxu0 %v1309
    %3432 = vmatprep.subr.mxu0 %v1318
    %3433 = vmatpush1.msra.mxu0 %v1317
    %3434 = vmatprep.subr.mxu0 %v1326
    %3435 = vmatpush1.msra.mxu0 %v1325
    %3436 = vmatprep.subr.mxu0 %v1334
    %3437 = vmatpush1.msra.mxu0 %v1333
    %3438 = vmatprep.subr.mxu0 %v1342
    %3439 = vmatpush1.msra.mxu0 %v1341
    %3440 = vmatprep.subr.mxu0 %v1350
    %3441 = vmatpush1.msra.mxu0 %v1349
    %3442 = vmatprep.mubr.f32.mxu0 %v3258
    %3443 = vmatmul.mubr.f32.gmra.mrb[0].mxu0 %v3257
    %v3444 = vpop.f32.mrb[0].mxu0
    %v3445 = vadd.f32 %v1368, %v3444
    %v3446 = vpop.f32.mrb[0].mxu0
    %v3447 = vadd.f32 %v1372, %v3446
    %3448 = vdwg.mxu0
    %3449 = vmatprep.subr.mxu0 %v1104
    %3450 = vmatpush1.msra.mxu0 %v1103
    %3451 = vmatprep.subr.mxu0 %v1112
    %3452 = vmatpush1.msra.mxu0 %v1111
    %3453 = vmatprep.subr.mxu0 %v1120
    %3454 = vmatpush1.msra.mxu0 %v1119
    %3455 = vmatprep.subr.mxu0 %v1128
    %3456 = vmatpush1.msra.mxu0 %v1127
    %3457 = vmatprep.subr.mxu0 %v1136
    %3458 = vmatpush1.msra.mxu0 %v1135
    %3459 = vmatprep.subr.mxu0 %v1144
    %3460 = vmatpush1.msra.mxu0 %v1143
    %3461 = vmatprep.subr.mxu0 %v1152
    %3462 = vmatpush1.msra.mxu0 %v1151
    %3463 = vmatprep.subr.mxu0 %v1160
    %3464 = vmatpush1.msra.mxu0 %v1159
    %3465 = vmatprep.subr.mxu0 %v1168
    %3466 = vmatpush1.msra.mxu0 %v1167
    %3467 = vmatprep.subr.mxu0 %v1176
    %3468 = vmatpush1.msra.mxu0 %v1175
    %3469 = vmatprep.subr.mxu0 %v1184
    %3470 = vmatpush1.msra.mxu0 %v1183
    %3471 = vmatprep.subr.mxu0 %v1192
    %3472 = vmatpush1.msra.mxu0 %v1191
    %3473 = vmatprep.subr.mxu0 %v1200
    %3474 = vmatpush1.msra.mxu0 %v1199
    %3475 = vmatprep.subr.mxu0 %v1208
    %3476 = vmatpush1.msra.mxu0 %v1207
    %3477 = vmatprep.subr.mxu0 %v1216
    %3478 = vmatpush1.msra.mxu0 %v1215
    %3479 = vmatprep.subr.mxu0 %v1224
    %3480 = vmatpush1.msra.mxu0 %v1223
    %3481 = vmatprep.subr.mxu0 %v1232
    %3482 = vmatpush1.msra.mxu0 %v1231
    %3483 = vmatprep.subr.mxu0 %v1240
    %3484 = vmatpush1.msra.mxu0 %v1239
    %3485 = vmatprep.subr.mxu0 %v1248
    %3486 = vmatpush1.msra.mxu0 %v1247
    %3487 = vmatprep.subr.mxu0 %v1256
    %3488 = vmatpush1.msra.mxu0 %v1255
    %3489 = vmatprep.subr.mxu0 %v1264
    %3490 = vmatpush1.msra.mxu0 %v1263
    %3491 = vmatprep.subr.mxu0 %v1272
    %3492 = vmatpush1.msra.mxu0 %v1271
    %3493 = vmatprep.subr.mxu0 %v1280
    %3494 = vmatpush1.msra.mxu0 %v1279
    %3495 = vmatprep.subr.mxu0 %v1288
    %3496 = vmatpush1.msra.mxu0 %v1287
    %3497 = vmatprep.subr.mxu0 %v1296
    %3498 = vmatpush1.msra.mxu0 %v1295
    %3499 = vmatprep.subr.mxu0 %v1304
    %3500 = vmatpush1.msra.mxu0 %v1303
    %3501 = vmatprep.subr.mxu0 %v1312
    %3502 = vmatpush1.msra.mxu0 %v1311
    %3503 = vmatprep.subr.mxu0 %v1320
    %3504 = vmatpush1.msra.mxu0 %v1319
    %3505 = vmatprep.subr.mxu0 %v1328
    %3506 = vmatpush1.msra.mxu0 %v1327
    %3507 = vmatprep.subr.mxu0 %v1336
    %3508 = vmatpush1.msra.mxu0 %v1335
    %3509 = vmatprep.subr.mxu0 %v1344
    %3510 = vmatpush1.msra.mxu0 %v1343
    %3511 = vmatprep.subr.mxu0 %v1352
    %3512 = vmatpush1.msra.mxu0 %v1351
    %3513 = vmatprep.mubr.f32.mxu0 %v3258
    %3514 = vmatmul.mubr.f32.gmra.mrb[0].mxu0 %v3257
    %v3515 = vpop.f32.mrb[0].mxu0
    %v3516 = vadd.f32 %v1376, %v3515
    %v3517 = vpop.f32.mrb[0].mxu0
    %v3518 = vadd.f32 %v1380, %v3517
    %3519 = vdwg.mxu0
    %3520 = vmatprep.subr.mxu0 %v1106
    %3521 = vmatpush1.msra.mxu0 %v1105
    %3522 = vmatprep.subr.mxu0 %v1114
    %3523 = vmatpush1.msra.mxu0 %v1113
    %3524 = vmatprep.subr.mxu0 %v1122
    %3525 = vmatpush1.msra.mxu0 %v1121
    %3526 = vmatprep.subr.mxu0 %v1130
    %3527 = vmatpush1.msra.mxu0 %v1129
    %3528 = vmatprep.subr.mxu0 %v1138
    %3529 = vmatpush1.msra.mxu0 %v1137
    %3530 = vmatprep.subr.mxu0 %v1146
    %3531 = vmatpush1.msra.mxu0 %v1145
    %3532 = vmatprep.subr.mxu0 %v1154
    %3533 = vmatpush1.msra.mxu0 %v1153
    %3534 = vmatprep.subr.mxu0 %v1162
    %3535 = vmatpush1.msra.mxu0 %v1161
    %3536 = vmatprep.subr.mxu0 %v1170
    %3537 = vmatpush1.msra.mxu0 %v1169
    %3538 = vmatprep.subr.mxu0 %v1178
    %3539 = vmatpush1.msra.mxu0 %v1177
    %3540 = vmatprep.subr.mxu0 %v1186
    %3541 = vmatpush1.msra.mxu0 %v1185
    %3542 = vmatprep.subr.mxu0 %v1194
    %3543 = vmatpush1.msra.mxu0 %v1193
    %3544 = vmatprep.subr.mxu0 %v1202
    %3545 = vmatpush1.msra.mxu0 %v1201
    %3546 = vmatprep.subr.mxu0 %v1210
    %3547 = vmatpush1.msra.mxu0 %v1209
    %3548 = vmatprep.subr.mxu0 %v1218
    %3549 = vmatpush1.msra.mxu0 %v1217
    %3550 = vmatprep.subr.mxu0 %v1226
    %3551 = vmatpush1.msra.mxu0 %v1225
    %3552 = vmatprep.subr.mxu0 %v1234
    %3553 = vmatpush1.msra.mxu0 %v1233
    %3554 = vmatprep.subr.mxu0 %v1242
    %3555 = vmatpush1.msra.mxu0 %v1241
    %3556 = vmatprep.subr.mxu0 %v1250
    %3557 = vmatpush1.msra.mxu0 %v1249
    %3558 = vmatprep.subr.mxu0 %v1258
    %3559 = vmatpush1.msra.mxu0 %v1257
    %3560 = vmatprep.subr.mxu0 %v1266
    %3561 = vmatpush1.msra.mxu0 %v1265
    %3562 = vmatprep.subr.mxu0 %v1274
    %3563 = vmatpush1.msra.mxu0 %v1273
    %3564 = vmatprep.subr.mxu0 %v1282
    %3565 = vmatpush1.msra.mxu0 %v1281
    %3566 = vmatprep.subr.mxu0 %v1290
    %3567 = vmatpush1.msra.mxu0 %v1289
    %3568 = vmatprep.subr.mxu0 %v1298
    %3569 = vmatpush1.msra.mxu0 %v1297
    %3570 = vmatprep.subr.mxu0 %v1306
    %3571 = vmatpush1.msra.mxu0 %v1305
    %3572 = vmatprep.subr.mxu0 %v1314
    %3573 = vmatpush1.msra.mxu0 %v1313
    %3574 = vmatprep.subr.mxu0 %v1322
    %3575 = vmatpush1.msra.mxu0 %v1321
    %3576 = vmatprep.subr.mxu0 %v1330
    %3577 = vmatpush1.msra.mxu0 %v1329
    %3578 = vmatprep.subr.mxu0 %v1338
    %3579 = vmatpush1.msra.mxu0 %v1337
    %3580 = vmatprep.subr.mxu0 %v1346
    %3581 = vmatpush1.msra.mxu0 %v1345
    %3582 = vmatprep.subr.mxu0 %v1354
    %3583 = vmatpush1.msra.mxu0 %v1353
    %3584 = vmatprep.mubr.f32.mxu0 %v3258
    %3585 = vmatmul.mubr.f32.gmra.mrb[0].mxu0 %v3257
    %v3586 = vpop.f32.mrb[0].mxu0
    %v3587 = vadd.f32 %v1384, %v3586
    %v3588 = vpop.f32.mrb[0].mxu0
    %v3589 = vadd.f32 %v1388, %v3588
    %3590 = vdwg.mxu0
    %3591 = vmatprep.subr.mxu0 %v2080
    %3592 = vmatpush1.msra.mxu0 %v2079
    %3593 = vmatprep.subr.mxu0 %v2088
    %3594 = vmatpush1.msra.mxu0 %v2087
    %3595 = vmatprep.subr.mxu0 %v2096
    %3596 = vmatpush1.msra.mxu0 %v2095
    %3597 = vmatprep.subr.mxu0 %v2104
    %3598 = vmatpush1.msra.mxu0 %v2103
    %3599 = vmatprep.subr.mxu0 %v2112
    %3600 = vmatpush1.msra.mxu0 %v2111
    %3601 = vmatprep.subr.mxu0 %v2120
    %3602 = vmatpush1.msra.mxu0 %v2119
    %3603 = vmatprep.subr.mxu0 %v2128
    %3604 = vmatpush1.msra.mxu0 %v2127
    %3605 = vmatprep.subr.mxu0 %v2136
    %3606 = vmatpush1.msra.mxu0 %v2135
    %3607 = vmatprep.subr.mxu0 %v2144
    %3608 = vmatpush1.msra.mxu0 %v2143
    %3609 = vmatprep.subr.mxu0 %v2152
    %3610 = vmatpush1.msra.mxu0 %v2151
    %3611 = vmatprep.subr.mxu0 %v2160
    %3612 = vmatpush1.msra.mxu0 %v2159
    %3613 = vmatprep.subr.mxu0 %v2168
    %3614 = vmatpush1.msra.mxu0 %v2167
    %3615 = vmatprep.subr.mxu0 %v2176
    %3616 = vmatpush1.msra.mxu0 %v2175
    %3617 = vmatprep.subr.mxu0 %v2184
    %3618 = vmatpush1.msra.mxu0 %v2183
    %3619 = vmatprep.subr.mxu0 %v2192
    %3620 = vmatpush1.msra.mxu0 %v2191
    %3621 = vmatprep.subr.mxu0 %v2200
    %3622 = vmatpush1.msra.mxu0 %v2199
    %3623 = vmatprep.subr.mxu0 %v2208
    %3624 = vmatpush1.msra.mxu0 %v2207
    %3625 = vmatprep.subr.mxu0 %v2216
    %3626 = vmatpush1.msra.mxu0 %v2215
    %3627 = vmatprep.subr.mxu0 %v2224
    %3628 = vmatpush1.msra.mxu0 %v2223
    %3629 = vmatprep.subr.mxu0 %v2232
    %3630 = vmatpush1.msra.mxu0 %v2231
    %3631 = vmatprep.subr.mxu0 %v2240
    %3632 = vmatpush1.msra.mxu0 %v2239
    %3633 = vmatprep.subr.mxu0 %v2248
    %3634 = vmatpush1.msra.mxu0 %v2247
    %3635 = vmatprep.subr.mxu0 %v2256
    %3636 = vmatpush1.msra.mxu0 %v2255
    %3637 = vmatprep.subr.mxu0 %v2264
    %3638 = vmatpush1.msra.mxu0 %v2263
    %3639 = vmatprep.subr.mxu0 %v2272
    %3640 = vmatpush1.msra.mxu0 %v2271
    %3641 = vmatprep.subr.mxu0 %v2280
    %3642 = vmatpush1.msra.mxu0 %v2279
    %3643 = vmatprep.subr.mxu0 %v2288
    %3644 = vmatpush1.msra.mxu0 %v2287
    %3645 = vmatprep.subr.mxu0 %v2296
    %3646 = vmatpush1.msra.mxu0 %v2295
    %3647 = vmatprep.subr.mxu0 %v2304
    %3648 = vmatpush1.msra.mxu0 %v2303
    %3649 = vmatprep.subr.mxu0 %v2312
    %3650 = vmatpush1.msra.mxu0 %v2311
    %3651 = vmatprep.subr.mxu0 %v2320
    %3652 = vmatpush1.msra.mxu0 %v2319
    %3653 = vmatprep.subr.mxu0 %v2328
    %3654 = vmatpush1.msra.mxu0 %v2327
    %3655 = vmatprep.mubr.f32.mxu0 %v3306
    %3656 = vmatmul.mubr.f32.gmra.mrb[0].mxu0 %v3305
    %v3657 = vpop.f32.mrb[0].mxu0
    %v3658 = vadd.f32 0.0, %v3657
    %v3659 = vpop.f32.mrb[0].mxu0
    %v3660 = vadd.f32 0.0, %v3659
    %3661 = vdwg.mxu0
    %3662 = vmatprep.subr.mxu0 %v2082
    %3663 = vmatpush1.msra.mxu0 %v2081
    %3664 = vmatprep.subr.mxu0 %v2090
    %3665 = vmatpush1.msra.mxu0 %v2089
    %3666 = vmatprep.subr.mxu0 %v2098
    %3667 = vmatpush1.msra.mxu0 %v2097
    %3668 = vmatprep.subr.mxu0 %v2106
    %3669 = vmatpush1.msra.mxu0 %v2105
    %3670 = vmatprep.subr.mxu0 %v2114
    %3671 = vmatpush1.msra.mxu0 %v2113
    %3672 = vmatprep.subr.mxu0 %v2122
    %3673 = vmatpush1.msra.mxu0 %v2121
    %3674 = vmatprep.subr.mxu0 %v2130
    %3675 = vmatpush1.msra.mxu0 %v2129
    %3676 = vmatprep.subr.mxu0 %v2138
    %3677 = vmatpush1.msra.mxu0 %v2137
    %3678 = vmatprep.subr.mxu0 %v2146
    %3679 = vmatpush1.msra.mxu0 %v2145
    %3680 = vmatprep.subr.mxu0 %v2154
    %3681 = vmatpush1.msra.mxu0 %v2153
    %3682 = vmatprep.subr.mxu0 %v2162
    %3683 = vmatpush1.msra.mxu0 %v2161
    %3684 = vmatprep.subr.mxu0 %v2170
    %3685 = vmatpush1.msra.mxu0 %v2169
    %3686 = vmatprep.subr.mxu0 %v2178
    %3687 = vmatpush1.msra.mxu0 %v2177
    %3688 = vmatprep.subr.mxu0 %v2186
    %3689 = vmatpush1.msra.mxu0 %v2185
    %3690 = vmatprep.subr.mxu0 %v2194
    %3691 = vmatpush1.msra.mxu0 %v2193
    %3692 = vmatprep.subr.mxu0 %v2202
    %3693 = vmatpush1.msra.mxu0 %v2201
    %3694 = vmatprep.subr.mxu0 %v2210
    %3695 = vmatpush1.msra.mxu0 %v2209
    %3696 = vmatprep.subr.mxu0 %v2218
    %3697 = vmatpush1.msra.mxu0 %v2217
    %3698 = vmatprep.subr.mxu0 %v2226
    %3699 = vmatpush1.msra.mxu0 %v2225
    %3700 = vmatprep.subr.mxu0 %v2234
    %3701 = vmatpush1.msra.mxu0 %v2233
    %3702 = vmatprep.subr.mxu0 %v2242
    %3703 = vmatpush1.msra.mxu0 %v2241
    %3704 = vmatprep.subr.mxu0 %v2250
    %3705 = vmatpush1.msra.mxu0 %v2249
    %3706 = vmatprep.subr.mxu0 %v2258
    %3707 = vmatpush1.msra.mxu0 %v2257
    %3708 = vmatprep.subr.mxu0 %v2266
    %3709 = vmatpush1.msra.mxu0 %v2265
    %3710 = vmatprep.subr.mxu0 %v2274
    %3711 = vmatpush1.msra.mxu0 %v2273
    %3712 = vmatprep.subr.mxu0 %v2282
    %3713 = vmatpush1.msra.mxu0 %v2281
    %3714 = vmatprep.subr.mxu0 %v2290
    %3715 = vmatpush1.msra.mxu0 %v2289
    %3716 = vmatprep.subr.mxu0 %v2298
    %3717 = vmatpush1.msra.mxu0 %v2297
    %3718 = vmatprep.subr.mxu0 %v2306
    %3719 = vmatpush1.msra.mxu0 %v2305
    %3720 = vmatprep.subr.mxu0 %v2314
    %3721 = vmatpush1.msra.mxu0 %v2313
    %3722 = vmatprep.subr.mxu0 %v2322
    %3723 = vmatpush1.msra.mxu0 %v2321
    %3724 = vmatprep.subr.mxu0 %v2330
    %3725 = vmatpush1.msra.mxu0 %v2329
    %3726 = vmatprep.mubr.f32.mxu0 %v3306
    %3727 = vmatmul.mubr.f32.gmra.mrb[0].mxu0 %v3305
    %v3728 = vpop.f32.mrb[0].mxu0
    %v3729 = vadd.f32 0.0, %v3728
    %v3730 = vpop.f32.mrb[0].mxu0
    %v3731 = vadd.f32 0.0, %v3730
    %3732 = vdwg.mxu0
    %3733 = vmatprep.subr.mxu0 %v2084
    %3734 = vmatpush1.msra.mxu0 %v2083
    %3735 = vmatprep.subr.mxu0 %v2092
    %3736 = vmatpush1.msra.mxu0 %v2091
    %3737 = vmatprep.subr.mxu0 %v2100
    %3738 = vmatpush1.msra.mxu0 %v2099
    %3739 = vmatprep.subr.mxu0 %v2108
    %3740 = vmatpush1.msra.mxu0 %v2107
    %3741 = vmatprep.subr.mxu0 %v2116
    %3742 = vmatpush1.msra.mxu0 %v2115
    %3743 = vmatprep.subr.mxu0 %v2124
    %3744 = vmatpush1.msra.mxu0 %v2123
    %3745 = vmatprep.subr.mxu0 %v2132
    %3746 = vmatpush1.msra.mxu0 %v2131
    %3747 = vmatprep.subr.mxu0 %v2140
    %3748 = vmatpush1.msra.mxu0 %v2139
    %3749 = vmatprep.subr.mxu0 %v2148
    %3750 = vmatpush1.msra.mxu0 %v2147
    %3751 = vmatprep.subr.mxu0 %v2156
    %3752 = vmatpush1.msra.mxu0 %v2155
    %3753 = vmatprep.subr.mxu0 %v2164
    %3754 = vmatpush1.msra.mxu0 %v2163
    %3755 = vmatprep.subr.mxu0 %v2172
    %3756 = vmatpush1.msra.mxu0 %v2171
    %3757 = vmatprep.subr.mxu0 %v2180
    %3758 = vmatpush1.msra.mxu0 %v2179
    %3759 = vmatprep.subr.mxu0 %v2188
    %3760 = vmatpush1.msra.mxu0 %v2187
    %3761 = vmatprep.subr.mxu0 %v2196
    %3762 = vmatpush1.msra.mxu0 %v2195
    %3763 = vmatprep.subr.mxu0 %v2204
    %3764 = vmatpush1.msra.mxu0 %v2203
    %3765 = vmatprep.subr.mxu0 %v2212
    %3766 = vmatpush1.msra.mxu0 %v2211
    %3767 = vmatprep.subr.mxu0 %v2220
    %3768 = vmatpush1.msra.mxu0 %v2219
    %3769 = vmatprep.subr.mxu0 %v2228
    %3770 = vmatpush1.msra.mxu0 %v2227
    %3771 = vmatprep.subr.mxu0 %v2236
    %3772 = vmatpush1.msra.mxu0 %v2235
    %3773 = vmatprep.subr.mxu0 %v2244
    %3774 = vmatpush1.msra.mxu0 %v2243
    %3775 = vmatprep.subr.mxu0 %v2252
    %3776 = vmatpush1.msra.mxu0 %v2251
    %3777 = vmatprep.subr.mxu0 %v2260
    %3778 = vmatpush1.msra.mxu0 %v2259
    %3779 = vmatprep.subr.mxu0 %v2268
    %3780 = vmatpush1.msra.mxu0 %v2267
    %3781 = vmatprep.subr.mxu0 %v2276
    %3782 = vmatpush1.msra.mxu0 %v2275
    %3783 = vmatprep.subr.mxu0 %v2284
    %3784 = vmatpush1.msra.mxu0 %v2283
    %3785 = vmatprep.subr.mxu0 %v2292
    %3786 = vmatpush1.msra.mxu0 %v2291
    %3787 = vmatprep.subr.mxu0 %v2300
    %3788 = vmatpush1.msra.mxu0 %v2299
    %3789 = vmatprep.subr.mxu0 %v2308
    %3790 = vmatpush1.msra.mxu0 %v2307
    %3791 = vmatprep.subr.mxu0 %v2316
    %3792 = vmatpush1.msra.mxu0 %v2315
    %3793 = vmatprep.subr.mxu0 %v2324
    %3794 = vmatpush1.msra.mxu0 %v2323
    %3795 = vmatprep.subr.mxu0 %v2332
    %3796 = vmatpush1.msra.mxu0 %v2331
    %3797 = vmatprep.mubr.f32.mxu0 %v3306
    %3798 = vmatmul.mubr.f32.gmra.mrb[0].mxu0 %v3305
    %v3799 = vpop.f32.mrb[0].mxu0
    %v3800 = vadd.f32 0.0, %v3799
    %v3801 = vpop.f32.mrb[0].mxu0
    %v3802 = vadd.f32 0.0, %v3801
    %3803 = vdwg.mxu0
    %3804 = vmatprep.subr.mxu0 %v2086
    %3805 = vmatpush1.msra.mxu0 %v2085
    %3806 = vmatprep.subr.mxu0 %v2094
    %3807 = vmatpush1.msra.mxu0 %v2093
    %3808 = vmatprep.subr.mxu0 %v2102
    %3809 = vmatpush1.msra.mxu0 %v2101
    %3810 = vmatprep.subr.mxu0 %v2110
    %3811 = vmatpush1.msra.mxu0 %v2109
    %3812 = vmatprep.subr.mxu0 %v2118
    %3813 = vmatpush1.msra.mxu0 %v2117
    %3814 = vmatprep.subr.mxu0 %v2126
    %3815 = vmatpush1.msra.mxu0 %v2125
    %3816 = vmatprep.subr.mxu0 %v2134
    %3817 = vmatpush1.msra.mxu0 %v2133
    %3818 = vmatprep.subr.mxu0 %v2142
    %3819 = vmatpush1.msra.mxu0 %v2141
    %3820 = vmatprep.subr.mxu0 %v2150
    %3821 = vmatpush1.msra.mxu0 %v2149
    %3822 = vmatprep.subr.mxu0 %v2158
    %3823 = vmatpush1.msra.mxu0 %v2157
    %3824 = vmatprep.subr.mxu0 %v2166
    %3825 = vmatpush1.msra.mxu0 %v2165
    %3826 = vmatprep.subr.mxu0 %v2174
    %3827 = vmatpush1.msra.mxu0 %v2173
    %3828 = vmatprep.subr.mxu0 %v2182
    %3829 = vmatpush1.msra.mxu0 %v2181
    %3830 = vmatprep.subr.mxu0 %v2190
    %3831 = vmatpush1.msra.mxu0 %v2189
    %3832 = vmatprep.subr.mxu0 %v2198
    %3833 = vmatpush1.msra.mxu0 %v2197
    %3834 = vmatprep.subr.mxu0 %v2206
    %3835 = vmatpush1.msra.mxu0 %v2205
    %3836 = vmatprep.subr.mxu0 %v2214
    %3837 = vmatpush1.msra.mxu0 %v2213
    %3838 = vmatprep.subr.mxu0 %v2222
    %3839 = vmatpush1.msra.mxu0 %v2221
    %3840 = vmatprep.subr.mxu0 %v2230
    %3841 = vmatpush1.msra.mxu0 %v2229
    %3842 = vmatprep.subr.mxu0 %v2238
    %3843 = vmatpush1.msra.mxu0 %v2237
    %3844 = vmatprep.subr.mxu0 %v2246
    %3845 = vmatpush1.msra.mxu0 %v2245
    %3846 = vmatprep.subr.mxu0 %v2254
    %3847 = vmatpush1.msra.mxu0 %v2253
    %3848 = vmatprep.subr.mxu0 %v2262
    %3849 = vmatpush1.msra.mxu0 %v2261
    %3850 = vmatprep.subr.mxu0 %v2270
    %3851 = vmatpush1.msra.mxu0 %v2269
    %3852 = vmatprep.subr.mxu0 %v2278
    %3853 = vmatpush1.msra.mxu0 %v2277
    %3854 = vmatprep.subr.mxu0 %v2286
    %3855 = vmatpush1.msra.mxu0 %v2285
    %3856 = vmatprep.subr.mxu0 %v2294
    %3857 = vmatpush1.msra.mxu0 %v2293
    %3858 = vmatprep.subr.mxu0 %v2302
    %3859 = vmatpush1.msra.mxu0 %v2301
    %3860 = vmatprep.subr.mxu0 %v2310
    %3861 = vmatpush1.msra.mxu0 %v2309
    %3862 = vmatprep.subr.mxu0 %v2318
    %3863 = vmatpush1.msra.mxu0 %v2317
    %3864 = vmatprep.subr.mxu0 %v2326
    %3865 = vmatpush1.msra.mxu0 %v2325
    %3866 = vmatprep.subr.mxu0 %v2334
    %3867 = vmatpush1.msra.mxu0 %v2333
    %3868 = vmatprep.mubr.f32.mxu0 %v3306
    %3869 = vmatmul.mubr.f32.gmra.mrb[0].mxu0 %v3305
    %v3870 = vpop.f32.mrb[0].mxu0
    %v3871 = vadd.f32 0.0, %v3870
    %v3872 = vpop.f32.mrb[0].mxu0
    %v3873 = vadd.f32 0.0, %v3872
    %3874 = vdwg.mxu0
    %v3875 = vadd.f32 %v3374, %v3658
    %v3876 = vadd.f32 %v3376, %v3660
    %v3877 = vadd.f32 %v3445, %v3729
    %v3878 = vadd.f32 %v3447, %v3731
    %v3879 = vadd.f32 %v3516, %v3800
    %v3880 = vadd.f32 %v3518, %v3802
    %v3881 = vadd.f32 %v3587, %v3871
    %v3882 = vadd.f32 %v3589, %v3873
    %v3883 = vld [vmem:[#allocation2 + $0xc0] sm:$0xff]
    %v3884 = vld [vmem:[#allocation2 + $0xc8] sm:$0xff]
    %v3885 = vld [vmem:[#allocation2 + $0xd0] sm:$0xff]
    %v3886 = vld [vmem:[#allocation2 + $0xd8] sm:$0xff]
    %v3887 = vld [vmem:[#allocation2 + $0xe0] sm:$0xff]
    %v3888 = vld [vmem:[#allocation2 + $0xe8] sm:$0xff]
    %v3889 = vld [vmem:[#allocation2 + $0xf0] sm:$0xff]
    %v3890 = vld [vmem:[#allocation2 + $0xf8] sm:$0xff]
    %3891 = vmatprep.subr.mxu0 %v784
    %3892 = vmatpush1.msra.mxu0 %v783
    %3893 = vmatprep.subr.mxu0 %v792
    %3894 = vmatpush1.msra.mxu0 %v791
    %3895 = vmatprep.subr.mxu0 %v800
    %3896 = vmatpush1.msra.mxu0 %v799
    %3897 = vmatprep.subr.mxu0 %v808
    %3898 = vmatpush1.msra.mxu0 %v807
    %3899 = vmatprep.subr.mxu0 %v816
    %3900 = vmatpush1.msra.mxu0 %v815
    %3901 = vmatprep.subr.mxu0 %v824
    %3902 = vmatpush1.msra.mxu0 %v823
    %3903 = vmatprep.subr.mxu0 %v832
    %3904 = vmatpush1.msra.mxu0 %v831
    %3905 = vmatprep.subr.mxu0 %v840
    %3906 = vmatpush1.msra.mxu0 %v839
    %3907 = vmatprep.subr.mxu0 %v848
    %3908 = vmatpush1.msra.mxu0 %v847
    %3909 = vmatprep.subr.mxu0 %v856
    %3910 = vmatpush1.msra.mxu0 %v855
    %3911 = vmatprep.subr.mxu0 %v864
    %3912 = vmatpush1.msra.mxu0 %v863
    %3913 = vmatprep.subr.mxu0 %v872
    %3914 = vmatpush1.msra.mxu0 %v871
    %3915 = vmatprep.subr.mxu0 %v880
    %3916 = vmatpush1.msra.mxu0 %v879
    %3917 = vmatprep.subr.mxu0 %v888
    %3918 = vmatpush1.msra.mxu0 %v887
    %3919 = vmatprep.subr.mxu0 %v896
    %3920 = vmatpush1.msra.mxu0 %v895
    %3921 = vmatprep.subr.mxu0 %v904
    %3922 = vmatpush1.msra.mxu0 %v903
    %3923 = vmatprep.subr.mxu0 %v912
    %3924 = vmatpush1.msra.mxu0 %v911
    %3925 = vmatprep.subr.mxu0 %v920
    %3926 = vmatpush1.msra.mxu0 %v919
    %3927 = vmatprep.subr.mxu0 %v928
    %3928 = vmatpush1.msra.mxu0 %v927
    %3929 = vmatprep.subr.mxu0 %v936
    %3930 = vmatpush1.msra.mxu0 %v935
    %3931 = vmatprep.subr.mxu0 %v944
    %3932 = vmatpush1.msra.mxu0 %v943
    %3933 = vmatprep.subr.mxu0 %v952
    %3934 = vmatpush1.msra.mxu0 %v951
    %3935 = vmatprep.subr.mxu0 %v960
    %3936 = vmatpush1.msra.mxu0 %v959
    %3937 = vmatprep.subr.mxu0 %v968
    %3938 = vmatpush1.msra.mxu0 %v967
    %3939 = vmatprep.subr.mxu0 %v976
    %3940 = vmatpush1.msra.mxu0 %v975
    %3941 = vmatprep.subr.mxu0 %v984
    %3942 = vmatpush1.msra.mxu0 %v983
    %3943 = vmatprep.subr.mxu0 %v992
    %3944 = vmatpush1.msra.mxu0 %v991
    %3945 = vmatprep.subr.mxu0 %v1000
    %3946 = vmatpush1.msra.mxu0 %v999
    %3947 = vmatprep.subr.mxu0 %v1008
    %3948 = vmatpush1.msra.mxu0 %v1007
    %3949 = vmatprep.subr.mxu0 %v1016
    %3950 = vmatpush1.msra.mxu0 %v1015
    %3951 = vmatprep.subr.mxu0 %v1024
    %3952 = vmatpush1.msra.mxu0 %v1023
    %3953 = vmatprep.subr.mxu0 %v1032
    %3954 = vmatpush1.msra.mxu0 %v1031
    %3955 = vmatprep.mubr.f32.mxu0 %v3258
    %3956 = vmatmul.mubr.f32.gmra.mrb[0].mxu0 %v3257
    %v3957 = vpop.f32.mrb[0].mxu0
    %v3958 = vadd.f32 0.0, %v3957
    %v3959 = vpop.f32.mrb[0].mxu0
    %v3960 = vadd.f32 0.0, %v3959
    %3961 = vdwg.mxu0
    %3962 = vmatprep.subr.mxu0 %v786
    %3963 = vmatpush1.msra.mxu0 %v785
    %3964 = vmatprep.subr.mxu0 %v794
    %3965 = vmatpush1.msra.mxu0 %v793
    %3966 = vmatprep.subr.mxu0 %v802
    %3967 = vmatpush1.msra.mxu0 %v801
    %3968 = vmatprep.subr.mxu0 %v810
    %3969 = vmatpush1.msra.mxu0 %v809
    %3970 = vmatprep.subr.mxu0 %v818
    %3971 = vmatpush1.msra.mxu0 %v817
    %3972 = vmatprep.subr.mxu0 %v826
    %3973 = vmatpush1.msra.mxu0 %v825
    %3974 = vmatprep.subr.mxu0 %v834
    %3975 = vmatpush1.msra.mxu0 %v833
    %3976 = vmatprep.subr.mxu0 %v842
    %3977 = vmatpush1.msra.mxu0 %v841
    %3978 = vmatprep.subr.mxu0 %v850
    %3979 = vmatpush1.msra.mxu0 %v849
    %3980 = vmatprep.subr.mxu0 %v858
    %3981 = vmatpush1.msra.mxu0 %v857
    %3982 = vmatprep.subr.mxu0 %v866
    %3983 = vmatpush1.msra.mxu0 %v865
    %3984 = vmatprep.subr.mxu0 %v874
    %3985 = vmatpush1.msra.mxu0 %v873
    %3986 = vmatprep.subr.mxu0 %v882
    %3987 = vmatpush1.msra.mxu0 %v881
    %3988 = vmatprep.subr.mxu0 %v890
    %3989 = vmatpush1.msra.mxu0 %v889
    %3990 = vmatprep.subr.mxu0 %v898
    %3991 = vmatpush1.msra.mxu0 %v897
    %3992 = vmatprep.subr.mxu0 %v906
    %3993 = vmatpush1.msra.mxu0 %v905
    %3994 = vmatprep.subr.mxu0 %v914
    %3995 = vmatpush1.msra.mxu0 %v913
    %3996 = vmatprep.subr.mxu0 %v922
    %3997 = vmatpush1.msra.mxu0 %v921
    %3998 = vmatprep.subr.mxu0 %v930
    %3999 = vmatpush1.msra.mxu0 %v929
    %4000 = vmatprep.subr.mxu0 %v938
    %4001 = vmatpush1.msra.mxu0 %v937
    %4002 = vmatprep.subr.mxu0 %v946
    %4003 = vmatpush1.msra.mxu0 %v945
    %4004 = vmatprep.subr.mxu0 %v954
    %4005 = vmatpush1.msra.mxu0 %v953
    %4006 = vmatprep.subr.mxu0 %v962
    %4007 = vmatpush1.msra.mxu0 %v961
    %4008 = vmatprep.subr.mxu0 %v970
    %4009 = vmatpush1.msra.mxu0 %v969
    %4010 = vmatprep.subr.mxu0 %v978
    %4011 = vmatpush1.msra.mxu0 %v977
    %4012 = vmatprep.subr.mxu0 %v986
    %4013 = vmatpush1.msra.mxu0 %v985
    %4014 = vmatprep.subr.mxu0 %v994
    %4015 = vmatpush1.msra.mxu0 %v993
    %4016 = vmatprep.subr.mxu0 %v1002
    %4017 = vmatpush1.msra.mxu0 %v1001
    %4018 = vmatprep.subr.mxu0 %v1010
    %4019 = vmatpush1.msra.mxu0 %v1009
    %4020 = vmatprep.subr.mxu0 %v1018
    %4021 = vmatpush1.msra.mxu0 %v1017
    %4022 = vmatprep.subr.mxu0 %v1026
    %4023 = vmatpush1.msra.mxu0 %v1025
    %4024 = vmatprep.subr.mxu0 %v1034
    %4025 = vmatpush1.msra.mxu0 %v1033
    %4026 = vmatprep.mubr.f32.mxu0 %v3258
    %4027 = vmatmul.mubr.f32.gmra.mrb[0].mxu0 %v3257
    %v4028 = vpop.f32.mrb[0].mxu0
    %v4029 = vadd.f32 0.0, %v4028
    %v4030 = vpop.f32.mrb[0].mxu0
    %v4031 = vadd.f32 0.0, %v4030
    %4032 = vdwg.mxu0
    %4033 = vmatprep.subr.mxu0 %v788
    %4034 = vmatpush1.msra.mxu0 %v787
    %4035 = vmatprep.subr.mxu0 %v796
    %4036 = vmatpush1.msra.mxu0 %v795
    %4037 = vmatprep.subr.mxu0 %v804
    %4038 = vmatpush1.msra.mxu0 %v803
    %4039 = vmatprep.subr.mxu0 %v812
    %4040 = vmatpush1.msra.mxu0 %v811
    %4041 = vmatprep.subr.mxu0 %v820
    %4042 = vmatpush1.msra.mxu0 %v819
    %4043 = vmatprep.subr.mxu0 %v828
    %4044 = vmatpush1.msra.mxu0 %v827
    %4045 = vmatprep.subr.mxu0 %v836
    %4046 = vmatpush1.msra.mxu0 %v835
    %4047 = vmatprep.subr.mxu0 %v844
    %4048 = vmatpush1.msra.mxu0 %v843
    %4049 = vmatprep.subr.mxu0 %v852
    %4050 = vmatpush1.msra.mxu0 %v851
    %4051 = vmatprep.subr.mxu0 %v860
    %4052 = vmatpush1.msra.mxu0 %v859
    %4053 = vmatprep.subr.mxu0 %v868
    %4054 = vmatpush1.msra.mxu0 %v867
    %4055 = vmatprep.subr.mxu0 %v876
    %4056 = vmatpush1.msra.mxu0 %v875
    %4057 = vmatprep.subr.mxu0 %v884
    %4058 = vmatpush1.msra.mxu0 %v883
    %4059 = vmatprep.subr.mxu0 %v892
    %4060 = vmatpush1.msra.mxu0 %v891
    %4061 = vmatprep.subr.mxu0 %v900
    %4062 = vmatpush1.msra.mxu0 %v899
    %4063 = vmatprep.subr.mxu0 %v908
    %4064 = vmatpush1.msra.mxu0 %v907
    %4065 = vmatprep.subr.mxu0 %v916
    %4066 = vmatpush1.msra.mxu0 %v915
    %4067 = vmatprep.subr.mxu0 %v924
    %4068 = vmatpush1.msra.mxu0 %v923
    %4069 = vmatprep.subr.mxu0 %v932
    %4070 = vmatpush1.msra.mxu0 %v931
    %4071 = vmatprep.subr.mxu0 %v940
    %4072 = vmatpush1.msra.mxu0 %v939
    %4073 = vmatprep.subr.mxu0 %v948
    %4074 = vmatpush1.msra.mxu0 %v947
    %4075 = vmatprep.subr.mxu0 %v956
    %4076 = vmatpush1.msra.mxu0 %v955
    %4077 = vmatprep.subr.mxu0 %v964
    %4078 = vmatpush1.msra.mxu0 %v963
    %4079 = vmatprep.subr.mxu0 %v972
    %4080 = vmatpush1.msra.mxu0 %v971
    %4081 = vmatprep.subr.mxu0 %v980
    %4082 = vmatpush1.msra.mxu0 %v979
    %4083 = vmatprep.subr.mxu0 %v988
    %4084 = vmatpush1.msra.mxu0 %v987
    %4085 = vmatprep.subr.mxu0 %v996
    %4086 = vmatpush1.msra.mxu0 %v995
    %4087 = vmatprep.subr.mxu0 %v1004
    %4088 = vmatpush1.msra.mxu0 %v1003
    %4089 = vmatprep.subr.mxu0 %v1012
    %4090 = vmatpush1.msra.mxu0 %v1011
    %4091 = vmatprep.subr.mxu0 %v1020
    %4092 = vmatpush1.msra.mxu0 %v1019
    %4093 = vmatprep.subr.mxu0 %v1028
    %4094 = vmatpush1.msra.mxu0 %v1027
    %4095 = vmatprep.subr.mxu0 %v1036
    %4096 = vmatpush1.msra.mxu0 %v1035
    %4097 = vmatprep.mubr.f32.mxu0 %v3258
    %4098 = vmatmul.mubr.f32.gmra.mrb[0].mxu0 %v3257
    %v4099 = vpop.f32.mrb[0].mxu0
    %v4100 = vadd.f32 0.0, %v4099
    %v4101 = vpop.f32.mrb[0].mxu0
    %v4102 = vadd.f32 0.0, %v4101
    %4103 = vdwg.mxu0
    %4104 = vmatprep.subr.mxu0 %v790
    %4105 = vmatpush1.msra.mxu0 %v789
    %4106 = vmatprep.subr.mxu0 %v798
    %4107 = vmatpush1.msra.mxu0 %v797
    %4108 = vmatprep.subr.mxu0 %v806
    %4109 = vmatpush1.msra.mxu0 %v805
    %4110 = vmatprep.subr.mxu0 %v814
    %4111 = vmatpush1.msra.mxu0 %v813
    %4112 = vmatprep.subr.mxu0 %v822
    %4113 = vmatpush1.msra.mxu0 %v821
    %4114 = vmatprep.subr.mxu0 %v830
    %4115 = vmatpush1.msra.mxu0 %v829
    %4116 = vmatprep.subr.mxu0 %v838
    %4117 = vmatpush1.msra.mxu0 %v837
    %4118 = vmatprep.subr.mxu0 %v846
    %4119 = vmatpush1.msra.mxu0 %v845
    %4120 = vmatprep.subr.mxu0 %v854
    %4121 = vmatpush1.msra.mxu0 %v853
    %4122 = vmatprep.subr.mxu0 %v862
    %4123 = vmatpush1.msra.mxu0 %v861
    %4124 = vmatprep.subr.mxu0 %v870
    %4125 = vmatpush1.msra.mxu0 %v869
    %4126 = vmatprep.subr.mxu0 %v878
    %4127 = vmatpush1.msra.mxu0 %v877
    %4128 = vmatprep.subr.mxu0 %v886
    %4129 = vmatpush1.msra.mxu0 %v885
    %4130 = vmatprep.subr.mxu0 %v894
    %4131 = vmatpush1.msra.mxu0 %v893
    %4132 = vmatprep.subr.mxu0 %v902
    %4133 = vmatpush1.msra.mxu0 %v901
    %4134 = vmatprep.subr.mxu0 %v910
    %4135 = vmatpush1.msra.mxu0 %v909
    %4136 = vmatprep.subr.mxu0 %v918
    %4137 = vmatpush1.msra.mxu0 %v917
    %4138 = vmatprep.subr.mxu0 %v926
    %4139 = vmatpush1.msra.mxu0 %v925
    %4140 = vmatprep.subr.mxu0 %v934
    %4141 = vmatpush1.msra.mxu0 %v933
    %4142 = vmatprep.subr.mxu0 %v942
    %4143 = vmatpush1.msra.mxu0 %v941
    %4144 = vmatprep.subr.mxu0 %v950
    %4145 = vmatpush1.msra.mxu0 %v949
    %4146 = vmatprep.subr.mxu0 %v958
    %4147 = vmatpush1.msra.mxu0 %v957
    %4148 = vmatprep.subr.mxu0 %v966
    %4149 = vmatpush1.msra.mxu0 %v965
    %4150 = vmatprep.subr.mxu0 %v974
    %4151 = vmatpush1.msra.mxu0 %v973
    %4152 = vmatprep.subr.mxu0 %v982
    %4153 = vmatpush1.msra.mxu0 %v981
    %4154 = vmatprep.subr.mxu0 %v990
    %4155 = vmatpush1.msra.mxu0 %v989
    %4156 = vmatprep.subr.mxu0 %v998
    %4157 = vmatpush1.msra.mxu0 %v997
    %4158 = vmatprep.subr.mxu0 %v1006
    %4159 = vmatpush1.msra.mxu0 %v1005
    %4160 = vmatprep.subr.mxu0 %v1014
    %4161 = vmatpush1.msra.mxu0 %v1013
    %4162 = vmatprep.subr.mxu0 %v1022
    %4163 = vmatpush1.msra.mxu0 %v1021
    %4164 = vmatprep.subr.mxu0 %v1030
    %4165 = vmatpush1.msra.mxu0 %v1029
    %4166 = vmatprep.subr.mxu0 %v1038
    %4167 = vmatpush1.msra.mxu0 %v1037
    %4168 = vmatprep.mubr.f32.mxu0 %v3258
    %4169 = vmatmul.mubr.f32.gmra.mrb[0].mxu0 %v3257
    %v4170 = vpop.f32.mrb[0].mxu0
    %v4171 = vadd.f32 0.0, %v4170
    %v4172 = vpop.f32.mrb[0].mxu0
    %v4173 = vadd.f32 0.0, %v4172
    %4174 = vdwg.mxu0
    %v4175 = vadd.f32 %v3883, %v3958
    %v4176 = vadd.f32 %v3884, %v3960
    %v4177 = vadd.f32 %v3885, %v4029
    %v4178 = vadd.f32 %v3886, %v4031
    %v4179 = vadd.f32 %v3887, %v4100
    %v4180 = vadd.f32 %v3888, %v4102
    %v4181 = vadd.f32 %v3889, %v4171
    %v4182 = vadd.f32 %v3890, %v4173
    %v4183 = vxor.u32 %v4175, 2147483648
    %v4184 = vxor.u32 %v4176, 2147483648
    %v4185 = vmul.f32 %v4183, 1.442695
    %v4186 = vpow.pop %v4185
    %v4187 = vmul.f32 %v4184, 1.442695
    %v4188 = vpow.pop %v4187
    %v4189 = vadd.f32 %v4186, 1.0
    %v4190 = vadd.f32 %v4188, 1.0
    %v4191 = vrcp.pop %v4189
    %v4192 = vmul.f32 1.0, %v4191
    %v4193 = vrcp.pop %v4190
    %v4194 = vmul.f32 1.0, %v4193
    %v4195 = vxor.u32 %v4177, 2147483648
    %v4196 = vxor.u32 %v4178, 2147483648
    %v4197 = vmul.f32 %v4195, 1.442695
    %v4198 = vpow.pop %v4197
    %v4199 = vmul.f32 %v4196, 1.442695
    %v4200 = vpow.pop %v4199
    %v4201 = vadd.f32 %v4198, 1.0
    %v4202 = vadd.f32 %v4200, 1.0
    %v4203 = vrcp.pop %v4201
    %v4204 = vmul.f32 1.0, %v4203
    %v4205 = vrcp.pop %v4202
    %v4206 = vmul.f32 1.0, %v4205
    %v4207 = vtanh.pop %v4179
    %v4208 = vtanh.pop %v4180
    %v4209 = vxor.u32 %v4181, 2147483648
    %v4210 = vxor.u32 %v4182, 2147483648
    %v4211 = vmul.f32 %v4209, 1.442695
    %v4212 = vpow.pop %v4211
    %v4213 = vmul.f32 %v4210, 1.442695
    %v4214 = vpow.pop %v4213
    %v4215 = vadd.f32 %v4212, 1.0
    %v4216 = vadd.f32 %v4214, 1.0
    %v4217 = vrcp.pop %v4215
    %v4218 = vmul.f32 1.0, %v4217
    %v4219 = vrcp.pop %v4216
    %v4220 = vmul.f32 1.0, %v4219
    %v4221 = vmul.f32 %v4204, %v3253
    %v4222 = vmul.f32 %v4206, %v3254
    %v4223 = vmul.f32 %v4192, %v4207
    %v4224 = vmul.f32 %v4194, %v4208
    %v4225 = vadd.f32 %v4221, %v4223
    %v4226 = vadd.f32 %v4222, %v4224
    %v4227 = vtanh.pop %v4225
    %v4228 = vtanh.pop %v4226
    %v4229 = vmul.f32 %v4218, %v4227
    %v4230 = vmul.f32 %v4220, %v4228
    %v4231 = vxor.u32 %v3875, 2147483648
    %v4232 = vxor.u32 %v3876, 2147483648
    %v4233 = vmul.f32 %v4231, 1.442695
    %v4234 = vpow.pop %v4233
    %v4235 = vmul.f32 %v4232, 1.442695
    %v4236 = vpow.pop %v4235
    %v4237 = vadd.f32 %v4234, 1.0
    %v4238 = vadd.f32 %v4236, 1.0
    %v4239 = vrcp.pop %v4237
    %v4240 = vmul.f32 1.0, %v4239
    %v4241 = vrcp.pop %v4238
    %v4242 = vmul.f32 1.0, %v4241
    %v4243 = vxor.u32 %v3877, 2147483648
    %v4244 = vxor.u32 %v3878, 2147483648
    %v4245 = vmul.f32 %v4243, 1.442695
    %v4246 = vpow.pop %v4245
    %v4247 = vmul.f32 %v4244, 1.442695
    %v4248 = vpow.pop %v4247
    %v4249 = vadd.f32 %v4246, 1.0
    %v4250 = vadd.f32 %v4248, 1.0
    %v4251 = vrcp.pop %v4249
    %v4252 = vmul.f32 1.0, %v4251
    %v4253 = vrcp.pop %v4250
    %v4254 = vmul.f32 1.0, %v4253
    %v4255 = vtanh.pop %v3879
    %v4256 = vtanh.pop %v3880
    %v4257 = vxor.u32 %v3881, 2147483648
    %v4258 = vxor.u32 %v3882, 2147483648
    %v4259 = vmul.f32 %v4257, 1.442695
    %v4260 = vpow.pop %v4259
    %v4261 = vmul.f32 %v4258, 1.442695
    %v4262 = vpow.pop %v4261
    %v4263 = vadd.f32 %v4260, 1.0
    %v4264 = vadd.f32 %v4262, 1.0
    %v4265 = vrcp.pop %v4263
    %v4266 = vmul.f32 1.0, %v4265
    %v4267 = vrcp.pop %v4264
    %v4268 = vmul.f32 1.0, %v4267
    %v4269 = vmul.f32 %v4252, %v3301
    %v4270 = vmul.f32 %v4254, %v3302
    %v4271 = vmul.f32 %v4240, %v4255
    %v4272 = vmul.f32 %v4242, %v4256
    %v4273 = vadd.f32 %v4269, %v4271
    %v4274 = vadd.f32 %v4270, %v4272
    %v4275 = vtanh.pop %v4273
    %v4276 = vtanh.pop %v4274
    %v4277 = vmul.f32 %v4266, %v4275
    %v4278 = vmul.f32 %v4268, %v4276
    %4279 = vmatprep.subr.mxu0 %v1100
    %4280 = vmatpush1.msra.mxu0 %v1099
    %4281 = vmatprep.subr.mxu0 %v1108
    %4282 = vmatpush1.msra.mxu0 %v1107
    %4283 = vmatprep.subr.mxu0 %v1116
    %4284 = vmatpush1.msra.mxu0 %v1115
    %4285 = vmatprep.subr.mxu0 %v1124
    %4286 = vmatpush1.msra.mxu0 %v1123
    %4287 = vmatprep.subr.mxu0 %v1132
    %4288 = vmatpush1.msra.mxu0 %v1131
    %4289 = vmatprep.subr.mxu0 %v1140
    %4290 = vmatpush1.msra.mxu0 %v1139
    %4291 = vmatprep.subr.mxu0 %v1148
    %4292 = vmatpush1.msra.mxu0 %v1147
    %4293 = vmatprep.subr.mxu0 %v1156
    %4294 = vmatpush1.msra.mxu0 %v1155
    %4295 = vmatprep.subr.mxu0 %v1164
    %4296 = vmatpush1.msra.mxu0 %v1163
    %4297 = vmatprep.subr.mxu0 %v1172
    %4298 = vmatpush1.msra.mxu0 %v1171
    %4299 = vmatprep.subr.mxu0 %v1180
    %4300 = vmatpush1.msra.mxu0 %v1179
    %4301 = vmatprep.subr.mxu0 %v1188
    %4302 = vmatpush1.msra.mxu0 %v1187
    %4303 = vmatprep.subr.mxu0 %v1196
    %4304 = vmatpush1.msra.mxu0 %v1195
    %4305 = vmatprep.subr.mxu0 %v1204
    %4306 = vmatpush1.msra.mxu0 %v1203
    %4307 = vmatprep.subr.mxu0 %v1212
    %4308 = vmatpush1.msra.mxu0 %v1211
    %4309 = vmatprep.subr.mxu0 %v1220
    %4310 = vmatpush1.msra.mxu0 %v1219
    %4311 = vmatprep.subr.mxu0 %v1228
    %4312 = vmatpush1.msra.mxu0 %v1227
    %4313 = vmatprep.subr.mxu0 %v1236
    %4314 = vmatpush1.msra.mxu0 %v1235
    %4315 = vmatprep.subr.mxu0 %v1244
    %4316 = vmatpush1.msra.mxu0 %v1243
    %4317 = vmatprep.subr.mxu0 %v1252
    %4318 = vmatpush1.msra.mxu0 %v1251
    %4319 = vmatprep.subr.mxu0 %v1260
    %4320 = vmatpush1.msra.mxu0 %v1259
    %4321 = vmatprep.subr.mxu0 %v1268
    %4322 = vmatpush1.msra.mxu0 %v1267
    %4323 = vmatprep.subr.mxu0 %v1276
    %4324 = vmatpush1.msra.mxu0 %v1275
    %4325 = vmatprep.subr.mxu0 %v1284
    %4326 = vmatpush1.msra.mxu0 %v1283
    %4327 = vmatprep.subr.mxu0 %v1292
    %4328 = vmatpush1.msra.mxu0 %v1291
    %4329 = vmatprep.subr.mxu0 %v1300
    %4330 = vmatpush1.msra.mxu0 %v1299
    %4331 = vmatprep.subr.mxu0 %v1308
    %4332 = vmatpush1.msra.mxu0 %v1307
    %4333 = vmatprep.subr.mxu0 %v1316
    %4334 = vmatpush1.msra.mxu0 %v1315
    %4335 = vmatprep.subr.mxu0 %v1324
    %4336 = vmatpush1.msra.mxu0 %v1323
    %4337 = vmatprep.subr.mxu0 %v1332
    %4338 = vmatpush1.msra.mxu0 %v1331
    %4339 = vmatprep.subr.mxu0 %v1340
    %4340 = vmatpush1.msra.mxu0 %v1339
    %4341 = vmatprep.subr.mxu0 %v1348
    %4342 = vmatpush1.msra.mxu0 %v1347
    %4343 = vmatprep.mubr.f32.mxu0 %v4230
    %4344 = vmatmul.mubr.f32.gmra.mrb[0].mxu0 %v4229
    %v4345 = vpop.f32.mrb[0].mxu0
    %v4346 = vadd.f32 %v1360, %v4345
    %v4347 = vpop.f32.mrb[0].mxu0
    %v4348 = vadd.f32 %v1364, %v4347
    %4349 = vdwg.mxu0
    %4350 = vmatprep.subr.mxu0 %v1102
    %4351 = vmatpush1.msra.mxu0 %v1101
    %4352 = vmatprep.subr.mxu0 %v1110
    %4353 = vmatpush1.msra.mxu0 %v1109
    %4354 = vmatprep.subr.mxu0 %v1118
    %4355 = vmatpush1.msra.mxu0 %v1117
    %4356 = vmatprep.subr.mxu0 %v1126
    %4357 = vmatpush1.msra.mxu0 %v1125
    %4358 = vmatprep.subr.mxu0 %v1134
    %4359 = vmatpush1.msra.mxu0 %v1133
    %4360 = vmatprep.subr.mxu0 %v1142
    %4361 = vmatpush1.msra.mxu0 %v1141
    %4362 = vmatprep.subr.mxu0 %v1150
    %4363 = vmatpush1.msra.mxu0 %v1149
    %4364 = vmatprep.subr.mxu0 %v1158
    %4365 = vmatpush1.msra.mxu0 %v1157
    %4366 = vmatprep.subr.mxu0 %v1166
    %4367 = vmatpush1.msra.mxu0 %v1165
    %4368 = vmatprep.subr.mxu0 %v1174
    %4369 = vmatpush1.msra.mxu0 %v1173
    %4370 = vmatprep.subr.mxu0 %v1182
    %4371 = vmatpush1.msra.mxu0 %v1181
    %4372 = vmatprep.subr.mxu0 %v1190
    %4373 = vmatpush1.msra.mxu0 %v1189
    %4374 = vmatprep.subr.mxu0 %v1198
    %4375 = vmatpush1.msra.mxu0 %v1197
    %4376 = vmatprep.subr.mxu0 %v1206
    %4377 = vmatpush1.msra.mxu0 %v1205
    %4378 = vmatprep.subr.mxu0 %v1214
    %4379 = vmatpush1.msra.mxu0 %v1213
    %4380 = vmatprep.subr.mxu0 %v1222
    %4381 = vmatpush1.msra.mxu0 %v1221
    %4382 = vmatprep.subr.mxu0 %v1230
    %4383 = vmatpush1.msra.mxu0 %v1229
    %4384 = vmatprep.subr.mxu0 %v1238
    %4385 = vmatpush1.msra.mxu0 %v1237
    %4386 = vmatprep.subr.mxu0 %v1246
    %4387 = vmatpush1.msra.mxu0 %v1245
    %4388 = vmatprep.subr.mxu0 %v1254
    %4389 = vmatpush1.msra.mxu0 %v1253
    %4390 = vmatprep.subr.mxu0 %v1262
    %4391 = vmatpush1.msra.mxu0 %v1261
    %4392 = vmatprep.subr.mxu0 %v1270
    %4393 = vmatpush1.msra.mxu0 %v1269
    %4394 = vmatprep.subr.mxu0 %v1278
    %4395 = vmatpush1.msra.mxu0 %v1277
    %4396 = vmatprep.subr.mxu0 %v1286
    %4397 = vmatpush1.msra.mxu0 %v1285
    %4398 = vmatprep.subr.mxu0 %v1294
    %4399 = vmatpush1.msra.mxu0 %v1293
    %4400 = vmatprep.subr.mxu0 %v1302
    %4401 = vmatpush1.msra.mxu0 %v1301
    %4402 = vmatprep.subr.mxu0 %v1310
    %4403 = vmatpush1.msra.mxu0 %v1309
    %4404 = vmatprep.subr.mxu0 %v1318
    %4405 = vmatpush1.msra.mxu0 %v1317
    %4406 = vmatprep.subr.mxu0 %v1326
    %4407 = vmatpush1.msra.mxu0 %v1325
    %4408 = vmatprep.subr.mxu0 %v1334
    %4409 = vmatpush1.msra.mxu0 %v1333
    %4410 = vmatprep.subr.mxu0 %v1342
    %4411 = vmatpush1.msra.mxu0 %v1341
    %4412 = vmatprep.subr.mxu0 %v1350
    %4413 = vmatpush1.msra.mxu0 %v1349
    %4414 = vmatprep.mubr.f32.mxu0 %v4230
    %4415 = vmatmul.mubr.f32.gmra.mrb[0].mxu0 %v4229
    %v4416 = vpop.f32.mrb[0].mxu0
    %v4417 = vadd.f32 %v1368, %v4416
    %v4418 = vpop.f32.mrb[0].mxu0
    %v4419 = vadd.f32 %v1372, %v4418
    %4420 = vdwg.mxu0
    %4421 = vmatprep.subr.mxu0 %v1104
    %4422 = vmatpush1.msra.mxu0 %v1103
    %4423 = vmatprep.subr.mxu0 %v1112
    %4424 = vmatpush1.msra.mxu0 %v1111
    %4425 = vmatprep.subr.mxu0 %v1120
    %4426 = vmatpush1.msra.mxu0 %v1119
    %4427 = vmatprep.subr.mxu0 %v1128
    %4428 = vmatpush1.msra.mxu0 %v1127
    %4429 = vmatprep.subr.mxu0 %v1136
    %4430 = vmatpush1.msra.mxu0 %v1135
    %4431 = vmatprep.subr.mxu0 %v1144
    %4432 = vmatpush1.msra.mxu0 %v1143
    %4433 = vmatprep.subr.mxu0 %v1152
    %4434 = vmatpush1.msra.mxu0 %v1151
    %4435 = vmatprep.subr.mxu0 %v1160
    %4436 = vmatpush1.msra.mxu0 %v1159
    %4437 = vmatprep.subr.mxu0 %v1168
    %4438 = vmatpush1.msra.mxu0 %v1167
    %4439 = vmatprep.subr.mxu0 %v1176
    %4440 = vmatpush1.msra.mxu0 %v1175
    %4441 = vmatprep.subr.mxu0 %v1184
    %4442 = vmatpush1.msra.mxu0 %v1183
    %4443 = vmatprep.subr.mxu0 %v1192
    %4444 = vmatpush1.msra.mxu0 %v1191
    %4445 = vmatprep.subr.mxu0 %v1200
    %4446 = vmatpush1.msra.mxu0 %v1199
    %4447 = vmatprep.subr.mxu0 %v1208
    %4448 = vmatpush1.msra.mxu0 %v1207
    %4449 = vmatprep.subr.mxu0 %v1216
    %4450 = vmatpush1.msra.mxu0 %v1215
    %4451 = vmatprep.subr.mxu0 %v1224
    %4452 = vmatpush1.msra.mxu0 %v1223
    %4453 = vmatprep.subr.mxu0 %v1232
    %4454 = vmatpush1.msra.mxu0 %v1231
    %4455 = vmatprep.subr.mxu0 %v1240
    %4456 = vmatpush1.msra.mxu0 %v1239
    %4457 = vmatprep.subr.mxu0 %v1248
    %4458 = vmatpush1.msra.mxu0 %v1247
    %4459 = vmatprep.subr.mxu0 %v1256
    %4460 = vmatpush1.msra.mxu0 %v1255
    %4461 = vmatprep.subr.mxu0 %v1264
    %4462 = vmatpush1.msra.mxu0 %v1263
    %4463 = vmatprep.subr.mxu0 %v1272
    %4464 = vmatpush1.msra.mxu0 %v1271
    %4465 = vmatprep.subr.mxu0 %v1280
    %4466 = vmatpush1.msra.mxu0 %v1279
    %4467 = vmatprep.subr.mxu0 %v1288
    %4468 = vmatpush1.msra.mxu0 %v1287
    %4469 = vmatprep.subr.mxu0 %v1296
    %4470 = vmatpush1.msra.mxu0 %v1295
    %4471 = vmatprep.subr.mxu0 %v1304
    %4472 = vmatpush1.msra.mxu0 %v1303
    %4473 = vmatprep.subr.mxu0 %v1312
    %4474 = vmatpush1.msra.mxu0 %v1311
    %4475 = vmatprep.subr.mxu0 %v1320
    %4476 = vmatpush1.msra.mxu0 %v1319
    %4477 = vmatprep.subr.mxu0 %v1328
    %4478 = vmatpush1.msra.mxu0 %v1327
    %4479 = vmatprep.subr.mxu0 %v1336
    %4480 = vmatpush1.msra.mxu0 %v1335
    %4481 = vmatprep.subr.mxu0 %v1344
    %4482 = vmatpush1.msra.mxu0 %v1343
    %4483 = vmatprep.subr.mxu0 %v1352
    %4484 = vmatpush1.msra.mxu0 %v1351
    %4485 = vmatprep.mubr.f32.mxu0 %v4230
    %4486 = vmatmul.mubr.f32.gmra.mrb[0].mxu0 %v4229
    %v4487 = vpop.f32.mrb[0].mxu0
    %v4488 = vadd.f32 %v1376, %v4487
    %v4489 = vpop.f32.mrb[0].mxu0
    %v4490 = vadd.f32 %v1380, %v4489
    %4491 = vdwg.mxu0
    %4492 = vmatprep.subr.mxu0 %v1106
    %4493 = vmatpush1.msra.mxu0 %v1105
    %4494 = vmatprep.subr.mxu0 %v1114
    %4495 = vmatpush1.msra.mxu0 %v1113
    %4496 = vmatprep.subr.mxu0 %v1122
    %4497 = vmatpush1.msra.mxu0 %v1121
    %4498 = vmatprep.subr.mxu0 %v1130
    %4499 = vmatpush1.msra.mxu0 %v1129
    %4500 = vmatprep.subr.mxu0 %v1138
    %4501 = vmatpush1.msra.mxu0 %v1137
    %4502 = vmatprep.subr.mxu0 %v1146
    %4503 = vmatpush1.msra.mxu0 %v1145
    %4504 = vmatprep.subr.mxu0 %v1154
    %4505 = vmatpush1.msra.mxu0 %v1153
    %4506 = vmatprep.subr.mxu0 %v1162
    %4507 = vmatpush1.msra.mxu0 %v1161
    %4508 = vmatprep.subr.mxu0 %v1170
    %4509 = vmatpush1.msra.mxu0 %v1169
    %4510 = vmatprep.subr.mxu0 %v1178
    %4511 = vmatpush1.msra.mxu0 %v1177
    %4512 = vmatprep.subr.mxu0 %v1186
    %4513 = vmatpush1.msra.mxu0 %v1185
    %4514 = vmatprep.subr.mxu0 %v1194
    %4515 = vmatpush1.msra.mxu0 %v1193
    %4516 = vmatprep.subr.mxu0 %v1202
    %4517 = vmatpush1.msra.mxu0 %v1201
    %4518 = vmatprep.subr.mxu0 %v1210
    %4519 = vmatpush1.msra.mxu0 %v1209
    %4520 = vmatprep.subr.mxu0 %v1218
    %4521 = vmatpush1.msra.mxu0 %v1217
    %4522 = vmatprep.subr.mxu0 %v1226
    %4523 = vmatpush1.msra.mxu0 %v1225
    %4524 = vmatprep.subr.mxu0 %v1234
    %4525 = vmatpush1.msra.mxu0 %v1233
    %4526 = vmatprep.subr.mxu0 %v1242
    %4527 = vmatpush1.msra.mxu0 %v1241
    %4528 = vmatprep.subr.mxu0 %v1250
    %4529 = vmatpush1.msra.mxu0 %v1249
    %4530 = vmatprep.subr.mxu0 %v1258
    %4531 = vmatpush1.msra.mxu0 %v1257
    %4532 = vmatprep.subr.mxu0 %v1266
    %4533 = vmatpush1.msra.mxu0 %v1265
    %4534 = vmatprep.subr.mxu0 %v1274
    %4535 = vmatpush1.msra.mxu0 %v1273
    %4536 = vmatprep.subr.mxu0 %v1282
    %4537 = vmatpush1.msra.mxu0 %v1281
    %4538 = vmatprep.subr.mxu0 %v1290
    %4539 = vmatpush1.msra.mxu0 %v1289
    %4540 = vmatprep.subr.mxu0 %v1298
    %4541 = vmatpush1.msra.mxu0 %v1297
    %4542 = vmatprep.subr.mxu0 %v1306
    %4543 = vmatpush1.msra.mxu0 %v1305
    %4544 = vmatprep.subr.mxu0 %v1314
    %4545 = vmatpush1.msra.mxu0 %v1313
    %4546 = vmatprep.subr.mxu0 %v1322
    %4547 = vmatpush1.msra.mxu0 %v1321
    %4548 = vmatprep.subr.mxu0 %v1330
    %4549 = vmatpush1.msra.mxu0 %v1329
    %4550 = vmatprep.subr.mxu0 %v1338
    %4551 = vmatpush1.msra.mxu0 %v1337
    %4552 = vmatprep.subr.mxu0 %v1346
    %4553 = vmatpush1.msra.mxu0 %v1345
    %4554 = vmatprep.subr.mxu0 %v1354
    %4555 = vmatpush1.msra.mxu0 %v1353
    %4556 = vmatprep.mubr.f32.mxu0 %v4230
    %4557 = vmatmul.mubr.f32.gmra.mrb[0].mxu0 %v4229
    %v4558 = vpop.f32.mrb[0].mxu0
    %v4559 = vadd.f32 %v1384, %v4558
    %v4560 = vpop.f32.mrb[0].mxu0
    %v4561 = vadd.f32 %v1388, %v4560
    %4562 = vdwg.mxu0
    %4563 = vmatprep.subr.mxu0 %v2080
    %4564 = vmatpush1.msra.mxu0 %v2079
    %4565 = vmatprep.subr.mxu0 %v2088
    %4566 = vmatpush1.msra.mxu0 %v2087
    %4567 = vmatprep.subr.mxu0 %v2096
    %4568 = vmatpush1.msra.mxu0 %v2095
    %4569 = vmatprep.subr.mxu0 %v2104
    %4570 = vmatpush1.msra.mxu0 %v2103
    %4571 = vmatprep.subr.mxu0 %v2112
    %4572 = vmatpush1.msra.mxu0 %v2111
    %4573 = vmatprep.subr.mxu0 %v2120
    %4574 = vmatpush1.msra.mxu0 %v2119
    %4575 = vmatprep.subr.mxu0 %v2128
    %4576 = vmatpush1.msra.mxu0 %v2127
    %4577 = vmatprep.subr.mxu0 %v2136
    %4578 = vmatpush1.msra.mxu0 %v2135
    %4579 = vmatprep.subr.mxu0 %v2144
    %4580 = vmatpush1.msra.mxu0 %v2143
    %4581 = vmatprep.subr.mxu0 %v2152
    %4582 = vmatpush1.msra.mxu0 %v2151
    %4583 = vmatprep.subr.mxu0 %v2160
    %4584 = vmatpush1.msra.mxu0 %v2159
    %4585 = vmatprep.subr.mxu0 %v2168
    %4586 = vmatpush1.msra.mxu0 %v2167
    %4587 = vmatprep.subr.mxu0 %v2176
    %4588 = vmatpush1.msra.mxu0 %v2175
    %4589 = vmatprep.subr.mxu0 %v2184
    %4590 = vmatpush1.msra.mxu0 %v2183
    %4591 = vmatprep.subr.mxu0 %v2192
    %4592 = vmatpush1.msra.mxu0 %v2191
    %4593 = vmatprep.subr.mxu0 %v2200
    %4594 = vmatpush1.msra.mxu0 %v2199
    %4595 = vmatprep.subr.mxu0 %v2208
    %4596 = vmatpush1.msra.mxu0 %v2207
    %4597 = vmatprep.subr.mxu0 %v2216
    %4598 = vmatpush1.msra.mxu0 %v2215
    %4599 = vmatprep.subr.mxu0 %v2224
    %4600 = vmatpush1.msra.mxu0 %v2223
    %4601 = vmatprep.subr.mxu0 %v2232
    %4602 = vmatpush1.msra.mxu0 %v2231
    %4603 = vmatprep.subr.mxu0 %v2240
    %4604 = vmatpush1.msra.mxu0 %v2239
    %4605 = vmatprep.subr.mxu0 %v2248
    %4606 = vmatpush1.msra.mxu0 %v2247
    %4607 = vmatprep.subr.mxu0 %v2256
    %4608 = vmatpush1.msra.mxu0 %v2255
    %4609 = vmatprep.subr.mxu0 %v2264
    %4610 = vmatpush1.msra.mxu0 %v2263
    %4611 = vmatprep.subr.mxu0 %v2272
    %4612 = vmatpush1.msra.mxu0 %v2271
    %4613 = vmatprep.subr.mxu0 %v2280
    %4614 = vmatpush1.msra.mxu0 %v2279
    %4615 = vmatprep.subr.mxu0 %v2288
    %4616 = vmatpush1.msra.mxu0 %v2287
    %4617 = vmatprep.subr.mxu0 %v2296
    %4618 = vmatpush1.msra.mxu0 %v2295
    %4619 = vmatprep.subr.mxu0 %v2304
    %4620 = vmatpush1.msra.mxu0 %v2303
    %4621 = vmatprep.subr.mxu0 %v2312
    %4622 = vmatpush1.msra.mxu0 %v2311
    %4623 = vmatprep.subr.mxu0 %v2320
    %4624 = vmatpush1.msra.mxu0 %v2319
    %4625 = vmatprep.subr.mxu0 %v2328
    %4626 = vmatpush1.msra.mxu0 %v2327
    %4627 = vmatprep.mubr.f32.mxu0 %v4278
    %4628 = vmatmul.mubr.f32.gmra.mrb[0].mxu0 %v4277
    %v4629 = vpop.f32.mrb[0].mxu0
    %v4630 = vadd.f32 0.0, %v4629
    %v4631 = vpop.f32.mrb[0].mxu0
    %v4632 = vadd.f32 0.0, %v4631
    %4633 = vdwg.mxu0
    %4634 = vmatprep.subr.mxu0 %v2082
    %4635 = vmatpush1.msra.mxu0 %v2081
    %4636 = vmatprep.subr.mxu0 %v2090
    %4637 = vmatpush1.msra.mxu0 %v2089
    %4638 = vmatprep.subr.mxu0 %v2098
    %4639 = vmatpush1.msra.mxu0 %v2097
    %4640 = vmatprep.subr.mxu0 %v2106
    %4641 = vmatpush1.msra.mxu0 %v2105
    %4642 = vmatprep.subr.mxu0 %v2114
    %4643 = vmatpush1.msra.mxu0 %v2113
    %4644 = vmatprep.subr.mxu0 %v2122
    %4645 = vmatpush1.msra.mxu0 %v2121
    %4646 = vmatprep.subr.mxu0 %v2130
    %4647 = vmatpush1.msra.mxu0 %v2129
    %4648 = vmatprep.subr.mxu0 %v2138
    %4649 = vmatpush1.msra.mxu0 %v2137
    %4650 = vmatprep.subr.mxu0 %v2146
    %4651 = vmatpush1.msra.mxu0 %v2145
    %4652 = vmatprep.subr.mxu0 %v2154
    %4653 = vmatpush1.msra.mxu0 %v2153
    %4654 = vmatprep.subr.mxu0 %v2162
    %4655 = vmatpush1.msra.mxu0 %v2161
    %4656 = vmatprep.subr.mxu0 %v2170
    %4657 = vmatpush1.msra.mxu0 %v2169
    %4658 = vmatprep.subr.mxu0 %v2178
    %4659 = vmatpush1.msra.mxu0 %v2177
    %4660 = vmatprep.subr.mxu0 %v2186
    %4661 = vmatpush1.msra.mxu0 %v2185
    %4662 = vmatprep.subr.mxu0 %v2194
    %4663 = vmatpush1.msra.mxu0 %v2193
    %4664 = vmatprep.subr.mxu0 %v2202
    %4665 = vmatpush1.msra.mxu0 %v2201
    %4666 = vmatprep.subr.mxu0 %v2210
    %4667 = vmatpush1.msra.mxu0 %v2209
    %4668 = vmatprep.subr.mxu0 %v2218
    %4669 = vmatpush1.msra.mxu0 %v2217
    %4670 = vmatprep.subr.mxu0 %v2226
    %4671 = vmatpush1.msra.mxu0 %v2225
    %4672 = vmatprep.subr.mxu0 %v2234
    %4673 = vmatpush1.msra.mxu0 %v2233
    %4674 = vmatprep.subr.mxu0 %v2242
    %4675 = vmatpush1.msra.mxu0 %v2241
    %4676 = vmatprep.subr.mxu0 %v2250
    %4677 = vmatpush1.msra.mxu0 %v2249
    %4678 = vmatprep.subr.mxu0 %v2258
    %4679 = vmatpush1.msra.mxu0 %v2257
    %4680 = vmatprep.subr.mxu0 %v2266
    %4681 = vmatpush1.msra.mxu0 %v2265
    %4682 = vmatprep.subr.mxu0 %v2274
    %4683 = vmatpush1.msra.mxu0 %v2273
    %4684 = vmatprep.subr.mxu0 %v2282
    %4685 = vmatpush1.msra.mxu0 %v2281
    %4686 = vmatprep.subr.mxu0 %v2290
    %4687 = vmatpush1.msra.mxu0 %v2289
    %4688 = vmatprep.subr.mxu0 %v2298
    %4689 = vmatpush1.msra.mxu0 %v2297
    %4690 = vmatprep.subr.mxu0 %v2306
    %4691 = vmatpush1.msra.mxu0 %v2305
    %4692 = vmatprep.subr.mxu0 %v2314
    %4693 = vmatpush1.msra.mxu0 %v2313
    %4694 = vmatprep.subr.mxu0 %v2322
    %4695 = vmatpush1.msra.mxu0 %v2321
    %4696 = vmatprep.subr.mxu0 %v2330
    %4697 = vmatpush1.msra.mxu0 %v2329
    %4698 = vmatprep.mubr.f32.mxu0 %v4278
    %4699 = vmatmul.mubr.f32.gmra.mrb[0].mxu0 %v4277
    %v4700 = vpop.f32.mrb[0].mxu0
    %v4701 = vadd.f32 0.0, %v4700
    %v4702 = vpop.f32.mrb[0].mxu0
    %v4703 = vadd.f32 0.0, %v4702
    %4704 = vdwg.mxu0
    %4705 = vmatprep.subr.mxu0 %v2084
    %4706 = vmatpush1.msra.mxu0 %v2083
    %4707 = vmatprep.subr.mxu0 %v2092
    %4708 = vmatpush1.msra.mxu0 %v2091
    %4709 = vmatprep.subr.mxu0 %v2100
    %4710 = vmatpush1.msra.mxu0 %v2099
    %4711 = vmatprep.subr.mxu0 %v2108
    %4712 = vmatpush1.msra.mxu0 %v2107
    %4713 = vmatprep.subr.mxu0 %v2116
    %4714 = vmatpush1.msra.mxu0 %v2115
    %4715 = vmatprep.subr.mxu0 %v2124
    %4716 = vmatpush1.msra.mxu0 %v2123
    %4717 = vmatprep.subr.mxu0 %v2132
    %4718 = vmatpush1.msra.mxu0 %v2131
    %4719 = vmatprep.subr.mxu0 %v2140
    %4720 = vmatpush1.msra.mxu0 %v2139
    %4721 = vmatprep.subr.mxu0 %v2148
    %4722 = vmatpush1.msra.mxu0 %v2147
    %4723 = vmatprep.subr.mxu0 %v2156
    %4724 = vmatpush1.msra.mxu0 %v2155
    %4725 = vmatprep.subr.mxu0 %v2164
    %4726 = vmatpush1.msra.mxu0 %v2163
    %4727 = vmatprep.subr.mxu0 %v2172
    %4728 = vmatpush1.msra.mxu0 %v2171
    %4729 = vmatprep.subr.mxu0 %v2180
    %4730 = vmatpush1.msra.mxu0 %v2179
    %4731 = vmatprep.subr.mxu0 %v2188
    %4732 = vmatpush1.msra.mxu0 %v2187
    %4733 = vmatprep.subr.mxu0 %v2196
    %4734 = vmatpush1.msra.mxu0 %v2195
    %4735 = vmatprep.subr.mxu0 %v2204
    %4736 = vmatpush1.msra.mxu0 %v2203
    %4737 = vmatprep.subr.mxu0 %v2212
    %4738 = vmatpush1.msra.mxu0 %v2211
    %4739 = vmatprep.subr.mxu0 %v2220
    %4740 = vmatpush1.msra.mxu0 %v2219
    %4741 = vmatprep.subr.mxu0 %v2228
    %4742 = vmatpush1.msra.mxu0 %v2227
    %4743 = vmatprep.subr.mxu0 %v2236
    %4744 = vmatpush1.msra.mxu0 %v2235
    %4745 = vmatprep.subr.mxu0 %v2244
    %4746 = vmatpush1.msra.mxu0 %v2243
    %4747 = vmatprep.subr.mxu0 %v2252
    %4748 = vmatpush1.msra.mxu0 %v2251
    %4749 = vmatprep.subr.mxu0 %v2260
    %4750 = vmatpush1.msra.mxu0 %v2259
    %4751 = vmatprep.subr.mxu0 %v2268
    %4752 = vmatpush1.msra.mxu0 %v2267
    %4753 = vmatprep.subr.mxu0 %v2276
    %4754 = vmatpush1.msra.mxu0 %v2275
    %4755 = vmatprep.subr.mxu0 %v2284
    %4756 = vmatpush1.msra.mxu0 %v2283
    %4757 = vmatprep.subr.mxu0 %v2292
    %4758 = vmatpush1.msra.mxu0 %v2291
    %4759 = vmatprep.subr.mxu0 %v2300
    %4760 = vmatpush1.msra.mxu0 %v2299
    %4761 = vmatprep.subr.mxu0 %v2308
    %4762 = vmatpush1.msra.mxu0 %v2307
    %4763 = vmatprep.subr.mxu0 %v2316
    %4764 = vmatpush1.msra.mxu0 %v2315
    %4765 = vmatprep.subr.mxu0 %v2324
    %4766 = vmatpush1.msra.mxu0 %v2323
    %4767 = vmatprep.subr.mxu0 %v2332
    %4768 = vmatpush1.msra.mxu0 %v2331
    %4769 = vmatprep.mubr.f32.mxu0 %v4278
    %4770 = vmatmul.mubr.f32.gmra.mrb[0].mxu0 %v4277
    %v4771 = vpop.f32.mrb[0].mxu0
    %v4772 = vadd.f32 0.0, %v4771
    %v4773 = vpop.f32.mrb[0].mxu0
    %v4774 = vadd.f32 0.0, %v4773
    %4775 = vdwg.mxu0
    %4776 = vmatprep.subr.mxu0 %v2086
    %4777 = vmatpush1.msra.mxu0 %v2085
    %4778 = vmatprep.subr.mxu0 %v2094
    %4779 = vmatpush1.msra.mxu0 %v2093
    %4780 = vmatprep.subr.mxu0 %v2102
    %4781 = vmatpush1.msra.mxu0 %v2101
    %4782 = vmatprep.subr.mxu0 %v2110
    %4783 = vmatpush1.msra.mxu0 %v2109
    %4784 = vmatprep.subr.mxu0 %v2118
    %4785 = vmatpush1.msra.mxu0 %v2117
    %4786 = vmatprep.subr.mxu0 %v2126
    %4787 = vmatpush1.msra.mxu0 %v2125
    %4788 = vmatprep.subr.mxu0 %v2134
    %4789 = vmatpush1.msra.mxu0 %v2133
    %4790 = vmatprep.subr.mxu0 %v2142
    %4791 = vmatpush1.msra.mxu0 %v2141
    %4792 = vmatprep.subr.mxu0 %v2150
    %4793 = vmatpush1.msra.mxu0 %v2149
    %4794 = vmatprep.subr.mxu0 %v2158
    %4795 = vmatpush1.msra.mxu0 %v2157
    %4796 = vmatprep.subr.mxu0 %v2166
    %4797 = vmatpush1.msra.mxu0 %v2165
    %4798 = vmatprep.subr.mxu0 %v2174
    %4799 = vmatpush1.msra.mxu0 %v2173
    %4800 = vmatprep.subr.mxu0 %v2182
    %4801 = vmatpush1.msra.mxu0 %v2181
    %4802 = vmatprep.subr.mxu0 %v2190
    %4803 = vmatpush1.msra.mxu0 %v2189
    %4804 = vmatprep.subr.mxu0 %v2198
    %4805 = vmatpush1.msra.mxu0 %v2197
    %4806 = vmatprep.subr.mxu0 %v2206
    %4807 = vmatpush1.msra.mxu0 %v2205
    %4808 = vmatprep.subr.mxu0 %v2214
    %4809 = vmatpush1.msra.mxu0 %v2213
    %4810 = vmatprep.subr.mxu0 %v2222
    %4811 = vmatpush1.msra.mxu0 %v2221
    %4812 = vmatprep.subr.mxu0 %v2230
    %4813 = vmatpush1.msra.mxu0 %v2229
    %4814 = vmatprep.subr.mxu0 %v2238
    %4815 = vmatpush1.msra.mxu0 %v2237
    %4816 = vmatprep.subr.mxu0 %v2246
    %4817 = vmatpush1.msra.mxu0 %v2245
    %4818 = vmatprep.subr.mxu0 %v2254
    %4819 = vmatpush1.msra.mxu0 %v2253
    %4820 = vmatprep.subr.mxu0 %v2262
    %4821 = vmatpush1.msra.mxu0 %v2261
    %4822 = vmatprep.subr.mxu0 %v2270
    %4823 = vmatpush1.msra.mxu0 %v2269
    %4824 = vmatprep.subr.mxu0 %v2278
    %4825 = vmatpush1.msra.mxu0 %v2277
    %4826 = vmatprep.subr.mxu0 %v2286
    %4827 = vmatpush1.msra.mxu0 %v2285
    %4828 = vmatprep.subr.mxu0 %v2294
    %4829 = vmatpush1.msra.mxu0 %v2293
    %4830 = vmatprep.subr.mxu0 %v2302
    %4831 = vmatpush1.msra.mxu0 %v2301
    %4832 = vmatprep.subr.mxu0 %v2310
    %4833 = vmatpush1.msra.mxu0 %v2309
    %4834 = vmatprep.subr.mxu0 %v2318
    %4835 = vmatpush1.msra.mxu0 %v2317
    %4836 = vmatprep.subr.mxu0 %v2326
    %4837 = vmatpush1.msra.mxu0 %v2325
    %4838 = vmatprep.subr.mxu0 %v2334
    %4839 = vmatpush1.msra.mxu0 %v2333
    %4840 = vmatprep.mubr.f32.mxu0 %v4278
    %4841 = vmatmul.mubr.f32.gmra.mrb[0].mxu0 %v4277
    %v4842 = vpop.f32.mrb[0].mxu0
    %v4843 = vadd.f32 0.0, %v4842
    %v4844 = vpop.f32.mrb[0].mxu0
    %v4845 = vadd.f32 0.0, %v4844
    %4846 = vdwg.mxu0
    %v4847 = vadd.f32 %v4346, %v4630
    %v4848 = vadd.f32 %v4348, %v4632
    %v4849 = vadd.f32 %v4417, %v4701
    %v4850 = vadd.f32 %v4419, %v4703
    %v4851 = vadd.f32 %v4488, %v4772
    %v4852 = vadd.f32 %v4490, %v4774
    %v4853 = vadd.f32 %v4559, %v4843
    %v4854 = vadd.f32 %v4561, %v4845
    %v4855 = vld [vmem:[#allocation2 + $0x100] sm:$0xff]
    %v4856 = vld [vmem:[#allocation2 + $0x108] sm:$0xff]
    %v4857 = vld [vmem:[#allocation2 + $0x110] sm:$0xff]
    %v4858 = vld [vmem:[#allocation2 + $0x118] sm:$0xff]
    %v4859 = vld [vmem:[#allocation2 + $0x120] sm:$0xff]
    %v4860 = vld [vmem:[#allocation2 + $0x128] sm:$0xff]
    %v4861 = vld [vmem:[#allocation2 + $0x130] sm:$0xff]
    %v4862 = vld [vmem:[#allocation2 + $0x138] sm:$0xff]
    %4863 = vmatprep.subr.mxu0 %v784
    %4864 = vmatpush1.msra.mxu0 %v783
    %4865 = vmatprep.subr.mxu0 %v792
    %4866 = vmatpush1.msra.mxu0 %v791
    %4867 = vmatprep.subr.mxu0 %v800
    %4868 = vmatpush1.msra.mxu0 %v799
    %4869 = vmatprep.subr.mxu0 %v808
    %4870 = vmatpush1.msra.mxu0 %v807
    %4871 = vmatprep.subr.mxu0 %v816
    %4872 = vmatpush1.msra.mxu0 %v815
    %4873 = vmatprep.subr.mxu0 %v824
    %4874 = vmatpush1.msra.mxu0 %v823
    %4875 = vmatprep.subr.mxu0 %v832
    %4876 = vmatpush1.msra.mxu0 %v831
    %4877 = vmatprep.subr.mxu0 %v840
    %4878 = vmatpush1.msra.mxu0 %v839
    %4879 = vmatprep.subr.mxu0 %v848
    %4880 = vmatpush1.msra.mxu0 %v847
    %4881 = vmatprep.subr.mxu0 %v856
    %4882 = vmatpush1.msra.mxu0 %v855
    %4883 = vmatprep.subr.mxu0 %v864
    %4884 = vmatpush1.msra.mxu0 %v863
    %4885 = vmatprep.subr.mxu0 %v872
    %4886 = vmatpush1.msra.mxu0 %v871
    %4887 = vmatprep.subr.mxu0 %v880
    %4888 = vmatpush1.msra.mxu0 %v879
    %4889 = vmatprep.subr.mxu0 %v888
    %4890 = vmatpush1.msra.mxu0 %v887
    %4891 = vmatprep.subr.mxu0 %v896
    %4892 = vmatpush1.msra.mxu0 %v895
    %4893 = vmatprep.subr.mxu0 %v904
    %4894 = vmatpush1.msra.mxu0 %v903
    %4895 = vmatprep.subr.mxu0 %v912
    %4896 = vmatpush1.msra.mxu0 %v911
    %4897 = vmatprep.subr.mxu0 %v920
    %4898 = vmatpush1.msra.mxu0 %v919
    %4899 = vmatprep.subr.mxu0 %v928
    %4900 = vmatpush1.msra.mxu0 %v927
    %4901 = vmatprep.subr.mxu0 %v936
    %4902 = vmatpush1.msra.mxu0 %v935
    %4903 = vmatprep.subr.mxu0 %v944
    %4904 = vmatpush1.msra.mxu0 %v943
    %4905 = vmatprep.subr.mxu0 %v952
    %4906 = vmatpush1.msra.mxu0 %v951
    %4907 = vmatprep.subr.mxu0 %v960
    %4908 = vmatpush1.msra.mxu0 %v959
    %4909 = vmatprep.subr.mxu0 %v968
    %4910 = vmatpush1.msra.mxu0 %v967
    %4911 = vmatprep.subr.mxu0 %v976
    %4912 = vmatpush1.msra.mxu0 %v975
    %4913 = vmatprep.subr.mxu0 %v984
    %4914 = vmatpush1.msra.mxu0 %v983
    %4915 = vmatprep.subr.mxu0 %v992
    %4916 = vmatpush1.msra.mxu0 %v991
    %4917 = vmatprep.subr.mxu0 %v1000
    %4918 = vmatpush1.msra.mxu0 %v999
    %4919 = vmatprep.subr.mxu0 %v1008
    %4920 = vmatpush1.msra.mxu0 %v1007
    %4921 = vmatprep.subr.mxu0 %v1016
    %4922 = vmatpush1.msra.mxu0 %v1015
    %4923 = vmatprep.subr.mxu0 %v1024
    %4924 = vmatpush1.msra.mxu0 %v1023
    %4925 = vmatprep.subr.mxu0 %v1032
    %4926 = vmatpush1.msra.mxu0 %v1031
    %4927 = vmatprep.mubr.f32.mxu0 %v4230
    %4928 = vmatmul.mubr.f32.gmra.mrb[0].mxu0 %v4229
    %v4929 = vpop.f32.mrb[0].mxu0
    %v4930 = vadd.f32 0.0, %v4929
    %v4931 = vpop.f32.mrb[0].mxu0
    %v4932 = vadd.f32 0.0, %v4931
    %4933 = vdwg.mxu0
    %4934 = vmatprep.subr.mxu0 %v786
    %4935 = vmatpush1.msra.mxu0 %v785
    %4936 = vmatprep.subr.mxu0 %v794
    %4937 = vmatpush1.msra.mxu0 %v793
    %4938 = vmatprep.subr.mxu0 %v802
    %4939 = vmatpush1.msra.mxu0 %v801
    %4940 = vmatprep.subr.mxu0 %v810
    %4941 = vmatpush1.msra.mxu0 %v809
    %4942 = vmatprep.subr.mxu0 %v818
    %4943 = vmatpush1.msra.mxu0 %v817
    %4944 = vmatprep.subr.mxu0 %v826
    %4945 = vmatpush1.msra.mxu0 %v825
    %4946 = vmatprep.subr.mxu0 %v834
    %4947 = vmatpush1.msra.mxu0 %v833
    %4948 = vmatprep.subr.mxu0 %v842
    %4949 = vmatpush1.msra.mxu0 %v841
    %4950 = vmatprep.subr.mxu0 %v850
    %4951 = vmatpush1.msra.mxu0 %v849
    %4952 = vmatprep.subr.mxu0 %v858
    %4953 = vmatpush1.msra.mxu0 %v857
    %4954 = vmatprep.subr.mxu0 %v866
    %4955 = vmatpush1.msra.mxu0 %v865
    %4956 = vmatprep.subr.mxu0 %v874
    %4957 = vmatpush1.msra.mxu0 %v873
    %4958 = vmatprep.subr.mxu0 %v882
    %4959 = vmatpush1.msra.mxu0 %v881
    %4960 = vmatprep.subr.mxu0 %v890
    %4961 = vmatpush1.msra.mxu0 %v889
    %4962 = vmatprep.subr.mxu0 %v898
    %4963 = vmatpush1.msra.mxu0 %v897
    %4964 = vmatprep.subr.mxu0 %v906
    %4965 = vmatpush1.msra.mxu0 %v905
    %4966 = vmatprep.subr.mxu0 %v914
    %4967 = vmatpush1.msra.mxu0 %v913
    %4968 = vmatprep.subr.mxu0 %v922
    %4969 = vmatpush1.msra.mxu0 %v921
    %4970 = vmatprep.subr.mxu0 %v930
    %4971 = vmatpush1.msra.mxu0 %v929
    %4972 = vmatprep.subr.mxu0 %v938
    %4973 = vmatpush1.msra.mxu0 %v937
    %4974 = vmatprep.subr.mxu0 %v946
    %4975 = vmatpush1.msra.mxu0 %v945
    %4976 = vmatprep.subr.mxu0 %v954
    %4977 = vmatpush1.msra.mxu0 %v953
    %4978 = vmatprep.subr.mxu0 %v962
    %4979 = vmatpush1.msra.mxu0 %v961
    %4980 = vmatprep.subr.mxu0 %v970
    %4981 = vmatpush1.msra.mxu0 %v969
    %4982 = vmatprep.subr.mxu0 %v978
    %4983 = vmatpush1.msra.mxu0 %v977
    %4984 = vmatprep.subr.mxu0 %v986
    %4985 = vmatpush1.msra.mxu0 %v985
    %4986 = vmatprep.subr.mxu0 %v994
    %4987 = vmatpush1.msra.mxu0 %v993
    %4988 = vmatprep.subr.mxu0 %v1002
    %4989 = vmatpush1.msra.mxu0 %v1001
    %4990 = vmatprep.subr.mxu0 %v1010
    %4991 = vmatpush1.msra.mxu0 %v1009
    %4992 = vmatprep.subr.mxu0 %v1018
    %4993 = vmatpush1.msra.mxu0 %v1017
    %4994 = vmatprep.subr.mxu0 %v1026
    %4995 = vmatpush1.msra.mxu0 %v1025
    %4996 = vmatprep.subr.mxu0 %v1034
    %4997 = vmatpush1.msra.mxu0 %v1033
    %4998 = vmatprep.mubr.f32.mxu0 %v4230
    %4999 = vmatmul.mubr.f32.gmra.mrb[0].mxu0 %v4229
    %v5000 = vpop.f32.mrb[0].mxu0
    %v5001 = vadd.f32 0.0, %v5000
    %v5002 = vpop.f32.mrb[0].mxu0
    %v5003 = vadd.f32 0.0, %v5002
    %5004 = vdwg.mxu0
    %5005 = vmatprep.subr.mxu0 %v788
    %5006 = vmatpush1.msra.mxu0 %v787
    %5007 = vmatprep.subr.mxu0 %v796
    %5008 = vmatpush1.msra.mxu0 %v795
    %5009 = vmatprep.subr.mxu0 %v804
    %5010 = vmatpush1.msra.mxu0 %v803
    %5011 = vmatprep.subr.mxu0 %v812
    %5012 = vmatpush1.msra.mxu0 %v811
    %5013 = vmatprep.subr.mxu0 %v820
    %5014 = vmatpush1.msra.mxu0 %v819
    %5015 = vmatprep.subr.mxu0 %v828
    %5016 = vmatpush1.msra.mxu0 %v827
    %5017 = vmatprep.subr.mxu0 %v836
    %5018 = vmatpush1.msra.mxu0 %v835
    %5019 = vmatprep.subr.mxu0 %v844
    %5020 = vmatpush1.msra.mxu0 %v843
    %5021 = vmatprep.subr.mxu0 %v852
    %5022 = vmatpush1.msra.mxu0 %v851
    %5023 = vmatprep.subr.mxu0 %v860
    %5024 = vmatpush1.msra.mxu0 %v859
    %5025 = vmatprep.subr.mxu0 %v868
    %5026 = vmatpush1.msra.mxu0 %v867
    %5027 = vmatprep.subr.mxu0 %v876
    %5028 = vmatpush1.msra.mxu0 %v875
    %5029 = vmatprep.subr.mxu0 %v884
    %5030 = vmatpush1.msra.mxu0 %v883
    %5031 = vmatprep.subr.mxu0 %v892
    %5032 = vmatpush1.msra.mxu0 %v891
    %5033 = vmatprep.subr.mxu0 %v900
    %5034 = vmatpush1.msra.mxu0 %v899
    %5035 = vmatprep.subr.mxu0 %v908
    %5036 = vmatpush1.msra.mxu0 %v907
    %5037 = vmatprep.subr.mxu0 %v916
    %5038 = vmatpush1.msra.mxu0 %v915
    %5039 = vmatprep.subr.mxu0 %v924
    %5040 = vmatpush1.msra.mxu0 %v923
    %5041 = vmatprep.subr.mxu0 %v932
    %5042 = vmatpush1.msra.mxu0 %v931
    %5043 = vmatprep.subr.mxu0 %v940
    %5044 = vmatpush1.msra.mxu0 %v939
    %5045 = vmatprep.subr.mxu0 %v948
    %5046 = vmatpush1.msra.mxu0 %v947
    %5047 = vmatprep.subr.mxu0 %v956
    %5048 = vmatpush1.msra.mxu0 %v955
    %5049 = vmatprep.subr.mxu0 %v964
    %5050 = vmatpush1.msra.mxu0 %v963
    %5051 = vmatprep.subr.mxu0 %v972
    %5052 = vmatpush1.msra.mxu0 %v971
    %5053 = vmatprep.subr.mxu0 %v980
    %5054 = vmatpush1.msra.mxu0 %v979
    %5055 = vmatprep.subr.mxu0 %v988
    %5056 = vmatpush1.msra.mxu0 %v987
    %5057 = vmatprep.subr.mxu0 %v996
    %5058 = vmatpush1.msra.mxu0 %v995
    %5059 = vmatprep.subr.mxu0 %v1004
    %5060 = vmatpush1.msra.mxu0 %v1003
    %5061 = vmatprep.subr.mxu0 %v1012
    %5062 = vmatpush1.msra.mxu0 %v1011
    %5063 = vmatprep.subr.mxu0 %v1020
    %5064 = vmatpush1.msra.mxu0 %v1019
    %5065 = vmatprep.subr.mxu0 %v1028
    %5066 = vmatpush1.msra.mxu0 %v1027
    %5067 = vmatprep.subr.mxu0 %v1036
    %5068 = vmatpush1.msra.mxu0 %v1035
    %5069 = vmatprep.mubr.f32.mxu0 %v4230
    %5070 = vmatmul.mubr.f32.gmra.mrb[0].mxu0 %v4229
    %v5071 = vpop.f32.mrb[0].mxu0
    %v5072 = vadd.f32 0.0, %v5071
    %v5073 = vpop.f32.mrb[0].mxu0
    %v5074 = vadd.f32 0.0, %v5073
    %5075 = vdwg.mxu0
    %5076 = vmatprep.subr.mxu0 %v790
    %5077 = vmatpush1.msra.mxu0 %v789
    %5078 = vmatprep.subr.mxu0 %v798
    %5079 = vmatpush1.msra.mxu0 %v797
    %5080 = vmatprep.subr.mxu0 %v806
    %5081 = vmatpush1.msra.mxu0 %v805
    %5082 = vmatprep.subr.mxu0 %v814
    %5083 = vmatpush1.msra.mxu0 %v813
    %5084 = vmatprep.subr.mxu0 %v822
    %5085 = vmatpush1.msra.mxu0 %v821
    %5086 = vmatprep.subr.mxu0 %v830
    %5087 = vmatpush1.msra.mxu0 %v829
    %5088 = vmatprep.subr.mxu0 %v838
    %5089 = vmatpush1.msra.mxu0 %v837
    %5090 = vmatprep.subr.mxu0 %v846
    %5091 = vmatpush1.msra.mxu0 %v845
    %5092 = vmatprep.subr.mxu0 %v854
    %5093 = vmatpush1.msra.mxu0 %v853
    %5094 = vmatprep.subr.mxu0 %v862
    %5095 = vmatpush1.msra.mxu0 %v861
    %5096 = vmatprep.subr.mxu0 %v870
    %5097 = vmatpush1.msra.mxu0 %v869
    %5098 = vmatprep.subr.mxu0 %v878
    %5099 = vmatpush1.msra.mxu0 %v877
    %5100 = vmatprep.subr.mxu0 %v886
    %5101 = vmatpush1.msra.mxu0 %v885
    %5102 = vmatprep.subr.mxu0 %v894
    %5103 = vmatpush1.msra.mxu0 %v893
    %5104 = vmatprep.subr.mxu0 %v902
    %5105 = vmatpush1.msra.mxu0 %v901
    %5106 = vmatprep.subr.mxu0 %v910
    %5107 = vmatpush1.msra.mxu0 %v909
    %5108 = vmatprep.subr.mxu0 %v918
    %5109 = vmatpush1.msra.mxu0 %v917
    %5110 = vmatprep.subr.mxu0 %v926
    %5111 = vmatpush1.msra.mxu0 %v925
    %5112 = vmatprep.subr.mxu0 %v934
    %5113 = vmatpush1.msra.mxu0 %v933
    %5114 = vmatprep.subr.mxu0 %v942
    %5115 = vmatpush1.msra.mxu0 %v941
    %5116 = vmatprep.subr.mxu0 %v950
    %5117 = vmatpush1.msra.mxu0 %v949
    %5118 = vmatprep.subr.mxu0 %v958
    %5119 = vmatpush1.msra.mxu0 %v957
    %5120 = vmatprep.subr.mxu0 %v966
    %5121 = vmatpush1.msra.mxu0 %v965
    %5122 = vmatprep.subr.mxu0 %v974
    %5123 = vmatpush1.msra.mxu0 %v973
    %5124 = vmatprep.subr.mxu0 %v982
    %5125 = vmatpush1.msra.mxu0 %v981
    %5126 = vmatprep.subr.mxu0 %v990
    %5127 = vmatpush1.msra.mxu0 %v989
    %5128 = vmatprep.subr.mxu0 %v998
    %5129 = vmatpush1.msra.mxu0 %v997
    %5130 = vmatprep.subr.mxu0 %v1006
    %5131 = vmatpush1.msra.mxu0 %v1005
    %5132 = vmatprep.subr.mxu0 %v1014
    %5133 = vmatpush1.msra.mxu0 %v1013
    %5134 = vmatprep.subr.mxu0 %v1022
    %5135 = vmatpush1.msra.mxu0 %v1021
    %5136 = vmatprep.subr.mxu0 %v1030
    %5137 = vmatpush1.msra.mxu0 %v1029
    %5138 = vmatprep.subr.mxu0 %v1038
    %5139 = vmatpush1.msra.mxu0 %v1037
    %5140 = vmatprep.mubr.f32.mxu0 %v4230
    %5141 = vmatmul.mubr.f32.gmra.mrb[0].mxu0 %v4229
    %v5142 = vpop.f32.mrb[0].mxu0
    %v5143 = vadd.f32 0.0, %v5142
    %v5144 = vpop.f32.mrb[0].mxu0
    %v5145 = vadd.f32 0.0, %v5144
    %5146 = vdwg.mxu0
    %v5147 = vadd.f32 %v4855, %v4930
    %v5148 = vadd.f32 %v4856, %v4932
    %v5149 = vadd.f32 %v4857, %v5001
    %v5150 = vadd.f32 %v4858, %v5003
    %v5151 = vadd.f32 %v4859, %v5072
    %v5152 = vadd.f32 %v4860, %v5074
    %v5153 = vadd.f32 %v4861, %v5143
    %v5154 = vadd.f32 %v4862, %v5145
    %v5155 = vxor.u32 %v5147, 2147483648
    %v5156 = vxor.u32 %v5148, 2147483648
    %v5157 = vmul.f32 %v5155, 1.442695
    %v5158 = vpow.pop %v5157
    %v5159 = vmul.f32 %v5156, 1.442695
    %v5160 = vpow.pop %v5159
    %v5161 = vadd.f32 %v5158, 1.0
    %v5162 = vadd.f32 %v5160, 1.0
    %v5163 = vrcp.pop %v5161
    %v5164 = vmul.f32 1.0, %v5163
    %v5165 = vrcp.pop %v5162
    %v5166 = vmul.f32 1.0, %v5165
    %v5167 = vxor.u32 %v5149, 2147483648
    %v5168 = vxor.u32 %v5150, 2147483648
    %v5169 = vmul.f32 %v5167, 1.442695
    %v5170 = vpow.pop %v5169
    %v5171 = vmul.f32 %v5168, 1.442695
    %v5172 = vpow.pop %v5171
    %v5173 = vadd.f32 %v5170, 1.0
    %v5174 = vadd.f32 %v5172, 1.0
    %v5175 = vrcp.pop %v5173
    %v5176 = vmul.f32 1.0, %v5175
    %v5177 = vrcp.pop %v5174
    %v5178 = vmul.f32 1.0, %v5177
    %v5179 = vtanh.pop %v5151
    %v5180 = vtanh.pop %v5152
    %v5181 = vxor.u32 %v5153, 2147483648
    %v5182 = vxor.u32 %v5154, 2147483648
    %v5183 = vmul.f32 %v5181, 1.442695
    %v5184 = vpow.pop %v5183
    %v5185 = vmul.f32 %v5182, 1.442695
    %v5186 = vpow.pop %v5185
    %v5187 = vadd.f32 %v5184, 1.0
    %v5188 = vadd.f32 %v5186, 1.0
    %v5189 = vrcp.pop %v5187
    %v5190 = vmul.f32 1.0, %v5189
    %v5191 = vrcp.pop %v5188
    %v5192 = vmul.f32 1.0, %v5191
    %v5193 = vmul.f32 %v5176, %v4225
    %v5194 = vmul.f32 %v5178, %v4226
    %v5195 = vmul.f32 %v5164, %v5179
    %v5196 = vmul.f32 %v5166, %v5180
    %v5197 = vadd.f32 %v5193, %v5195
    %v5198 = vadd.f32 %v5194, %v5196
    %v5199 = vtanh.pop %v5197
    %v5200 = vtanh.pop %v5198
    %v5201 = vmul.f32 %v5190, %v5199
    %v5202 = vmul.f32 %v5192, %v5200
    %v5203 = vxor.u32 %v4847, 2147483648
    %v5204 = vxor.u32 %v4848, 2147483648
    %v5205 = vmul.f32 %v5203, 1.442695
    %v5206 = vpow.pop %v5205
    %v5207 = vmul.f32 %v5204, 1.442695
    %v5208 = vpow.pop %v5207
    %v5209 = vadd.f32 %v5206, 1.0
    %v5210 = vadd.f32 %v5208, 1.0
    %v5211 = vrcp.pop %v5209
    %v5212 = vmul.f32 1.0, %v5211
    %v5213 = vrcp.pop %v5210
    %v5214 = vmul.f32 1.0, %v5213
    %v5215 = vxor.u32 %v4849, 2147483648
    %v5216 = vxor.u32 %v4850, 2147483648
    %v5217 = vmul.f32 %v5215, 1.442695
    %v5218 = vpow.pop %v5217
    %v5219 = vmul.f32 %v5216, 1.442695
    %v5220 = vpow.pop %v5219
    %v5221 = vadd.f32 %v5218, 1.0
    %v5222 = vadd.f32 %v5220, 1.0
    %v5223 = vrcp.pop %v5221
    %v5224 = vmul.f32 1.0, %v5223
    %v5225 = vrcp.pop %v5222
    %v5226 = vmul.f32 1.0, %v5225
    %v5227 = vtanh.pop %v4851
    %v5228 = vtanh.pop %v4852
    %v5229 = vxor.u32 %v4853, 2147483648
    %v5230 = vxor.u32 %v4854, 2147483648
    %v5231 = vmul.f32 %v5229, 1.442695
    %v5232 = vpow.pop %v5231
    %v5233 = vmul.f32 %v5230, 1.442695
    %v5234 = vpow.pop %v5233
    %v5235 = vadd.f32 %v5232, 1.0
    %v5236 = vadd.f32 %v5234, 1.0
    %v5237 = vrcp.pop %v5235
    %v5238 = vmul.f32 1.0, %v5237
    %v5239 = vrcp.pop %v5236
    %v5240 = vmul.f32 1.0, %v5239
    %v5241 = vmul.f32 %v5224, %v4273
    %v5242 = vmul.f32 %v5226, %v4274
    %v5243 = vmul.f32 %v5212, %v5227
    %v5244 = vmul.f32 %v5214, %v5228
    %v5245 = vadd.f32 %v5241, %v5243
    %v5246 = vadd.f32 %v5242, %v5244
    %v5247 = vtanh.pop %v5245
    %v5248 = vtanh.pop %v5246
    %v5249 = vmul.f32 %v5238, %v5247
    %v5250 = vmul.f32 %v5240, %v5248
    %5251 = vmatprep.subr.mxu0 %v1100
    %5252 = vmatpush1.msra.mxu0 %v1099
    %5253 = vmatprep.subr.mxu0 %v1108
    %5254 = vmatpush1.msra.mxu0 %v1107
    %5255 = vmatprep.subr.mxu0 %v1116
    %5256 = vmatpush1.msra.mxu0 %v1115
    %5257 = vmatprep.subr.mxu0 %v1124
    %5258 = vmatpush1.msra.mxu0 %v1123
    %5259 = vmatprep.subr.mxu0 %v1132
    %5260 = vmatpush1.msra.mxu0 %v1131
    %5261 = vmatprep.subr.mxu0 %v1140
    %5262 = vmatpush1.msra.mxu0 %v1139
    %5263 = vmatprep.subr.mxu0 %v1148
    %5264 = vmatpush1.msra.mxu0 %v1147
    %5265 = vmatprep.subr.mxu0 %v1156
    %5266 = vmatpush1.msra.mxu0 %v1155
    %5267 = vmatprep.subr.mxu0 %v1164
    %5268 = vmatpush1.msra.mxu0 %v1163
    %5269 = vmatprep.subr.mxu0 %v1172
    %5270 = vmatpush1.msra.mxu0 %v1171
    %5271 = vmatprep.subr.mxu0 %v1180
    %5272 = vmatpush1.msra.mxu0 %v1179
    %5273 = vmatprep.subr.mxu0 %v1188
    %5274 = vmatpush1.msra.mxu0 %v1187
    %5275 = vmatprep.subr.mxu0 %v1196
    %5276 = vmatpush1.msra.mxu0 %v1195
    %5277 = vmatprep.subr.mxu0 %v1204
    %5278 = vmatpush1.msra.mxu0 %v1203
    %5279 = vmatprep.subr.mxu0 %v1212
    %5280 = vmatpush1.msra.mxu0 %v1211
    %5281 = vmatprep.subr.mxu0 %v1220
    %5282 = vmatpush1.msra.mxu0 %v1219
    %5283 = vmatprep.subr.mxu0 %v1228
    %5284 = vmatpush1.msra.mxu0 %v1227
    %5285 = vmatprep.subr.mxu0 %v1236
    %5286 = vmatpush1.msra.mxu0 %v1235
    %5287 = vmatprep.subr.mxu0 %v1244
    %5288 = vmatpush1.msra.mxu0 %v1243
    %5289 = vmatprep.subr.mxu0 %v1252
    %5290 = vmatpush1.msra.mxu0 %v1251
    %5291 = vmatprep.subr.mxu0 %v1260
    %5292 = vmatpush1.msra.mxu0 %v1259
    %5293 = vmatprep.subr.mxu0 %v1268
    %5294 = vmatpush1.msra.mxu0 %v1267
    %5295 = vmatprep.subr.mxu0 %v1276
    %5296 = vmatpush1.msra.mxu0 %v1275
    %5297 = vmatprep.subr.mxu0 %v1284
    %5298 = vmatpush1.msra.mxu0 %v1283
    %5299 = vmatprep.subr.mxu0 %v1292
    %5300 = vmatpush1.msra.mxu0 %v1291
    %5301 = vmatprep.subr.mxu0 %v1300
    %5302 = vmatpush1.msra.mxu0 %v1299
    %5303 = vmatprep.subr.mxu0 %v1308
    %5304 = vmatpush1.msra.mxu0 %v1307
    %5305 = vmatprep.subr.mxu0 %v1316
    %5306 = vmatpush1.msra.mxu0 %v1315
    %5307 = vmatprep.subr.mxu0 %v1324
    %5308 = vmatpush1.msra.mxu0 %v1323
    %5309 = vmatprep.subr.mxu0 %v1332
    %5310 = vmatpush1.msra.mxu0 %v1331
    %5311 = vmatprep.subr.mxu0 %v1340
    %5312 = vmatpush1.msra.mxu0 %v1339
    %5313 = vmatprep.subr.mxu0 %v1348
    %5314 = vmatpush1.msra.mxu0 %v1347
    %5315 = vmatprep.mubr.f32.mxu0 %v5202
    %5316 = vmatmul.mubr.f32.gmra.mrb[0].mxu0 %v5201
    %v5317 = vpop.f32.mrb[0].mxu0
    %v5318 = vadd.f32 %v1360, %v5317
    %v5319 = vpop.f32.mrb[0].mxu0
    %v5320 = vadd.f32 %v1364, %v5319
    %5321 = vdwg.mxu0
    %5322 = vmatprep.subr.mxu0 %v1102
    %5323 = vmatpush1.msra.mxu0 %v1101
    %5324 = vmatprep.subr.mxu0 %v1110
    %5325 = vmatpush1.msra.mxu0 %v1109
    %5326 = vmatprep.subr.mxu0 %v1118
    %5327 = vmatpush1.msra.mxu0 %v1117
    %5328 = vmatprep.subr.mxu0 %v1126
    %5329 = vmatpush1.msra.mxu0 %v1125
    %5330 = vmatprep.subr.mxu0 %v1134
    %5331 = vmatpush1.msra.mxu0 %v1133
    %5332 = vmatprep.subr.mxu0 %v1142
    %5333 = vmatpush1.msra.mxu0 %v1141
    %5334 = vmatprep.subr.mxu0 %v1150
    %5335 = vmatpush1.msra.mxu0 %v1149
    %5336 = vmatprep.subr.mxu0 %v1158
    %5337 = vmatpush1.msra.mxu0 %v1157
    %5338 = vmatprep.subr.mxu0 %v1166
    %5339 = vmatpush1.msra.mxu0 %v1165
    %5340 = vmatprep.subr.mxu0 %v1174
    %5341 = vmatpush1.msra.mxu0 %v1173
    %5342 = vmatprep.subr.mxu0 %v1182
    %5343 = vmatpush1.msra.mxu0 %v1181
    %5344 = vmatprep.subr.mxu0 %v1190
    %5345 = vmatpush1.msra.mxu0 %v1189
    %5346 = vmatprep.subr.mxu0 %v1198
    %5347 = vmatpush1.msra.mxu0 %v1197
    %5348 = vmatprep.subr.mxu0 %v1206
    %5349 = vmatpush1.msra.mxu0 %v1205
    %5350 = vmatprep.subr.mxu0 %v1214
    %5351 = vmatpush1.msra.mxu0 %v1213
    %5352 = vmatprep.subr.mxu0 %v1222
    %5353 = vmatpush1.msra.mxu0 %v1221
    %5354 = vmatprep.subr.mxu0 %v1230
    %5355 = vmatpush1.msra.mxu0 %v1229
    %5356 = vmatprep.subr.mxu0 %v1238
    %5357 = vmatpush1.msra.mxu0 %v1237
    %5358 = vmatprep.subr.mxu0 %v1246
    %5359 = vmatpush1.msra.mxu0 %v1245
    %5360 = vmatprep.subr.mxu0 %v1254
    %5361 = vmatpush1.msra.mxu0 %v1253
    %5362 = vmatprep.subr.mxu0 %v1262
    %5363 = vmatpush1.msra.mxu0 %v1261
    %5364 = vmatprep.subr.mxu0 %v1270
    %5365 = vmatpush1.msra.mxu0 %v1269
    %5366 = vmatprep.subr.mxu0 %v1278
    %5367 = vmatpush1.msra.mxu0 %v1277
    %5368 = vmatprep.subr.mxu0 %v1286
    %5369 = vmatpush1.msra.mxu0 %v1285
    %5370 = vmatprep.subr.mxu0 %v1294
    %5371 = vmatpush1.msra.mxu0 %v1293
    %5372 = vmatprep.subr.mxu0 %v1302
    %5373 = vmatpush1.msra.mxu0 %v1301
    %5374 = vmatprep.subr.mxu0 %v1310
    %5375 = vmatpush1.msra.mxu0 %v1309
    %5376 = vmatprep.subr.mxu0 %v1318
    %5377 = vmatpush1.msra.mxu0 %v1317
    %5378 = vmatprep.subr.mxu0 %v1326
    %5379 = vmatpush1.msra.mxu0 %v1325
    %5380 = vmatprep.subr.mxu0 %v1334
    %5381 = vmatpush1.msra.mxu0 %v1333
    %5382 = vmatprep.subr.mxu0 %v1342
    %5383 = vmatpush1.msra.mxu0 %v1341
    %5384 = vmatprep.subr.mxu0 %v1350
    %5385 = vmatpush1.msra.mxu0 %v1349
    %5386 = vmatprep.mubr.f32.mxu0 %v5202
    %5387 = vmatmul.mubr.f32.gmra.mrb[0].mxu0 %v5201
    %v5388 = vpop.f32.mrb[0].mxu0
    %v5389 = vadd.f32 %v1368, %v5388
    %v5390 = vpop.f32.mrb[0].mxu0
    %v5391 = vadd.f32 %v1372, %v5390
    %5392 = vdwg.mxu0
    %5393 = vmatprep.subr.mxu0 %v1104
    %5394 = vmatpush1.msra.mxu0 %v1103
    %5395 = vmatprep.subr.mxu0 %v1112
    %5396 = vmatpush1.msra.mxu0 %v1111
    %5397 = vmatprep.subr.mxu0 %v1120
    %5398 = vmatpush1.msra.mxu0 %v1119
    %5399 = vmatprep.subr.mxu0 %v1128
    %5400 = vmatpush1.msra.mxu0 %v1127
    %5401 = vmatprep.subr.mxu0 %v1136
    %5402 = vmatpush1.msra.mxu0 %v1135
    %5403 = vmatprep.subr.mxu0 %v1144
    %5404 = vmatpush1.msra.mxu0 %v1143
    %5405 = vmatprep.subr.mxu0 %v1152
    %5406 = vmatpush1.msra.mxu0 %v1151
    %5407 = vmatprep.subr.mxu0 %v1160
    %5408 = vmatpush1.msra.mxu0 %v1159
    %5409 = vmatprep.subr.mxu0 %v1168
    %5410 = vmatpush1.msra.mxu0 %v1167
    %5411 = vmatprep.subr.mxu0 %v1176
    %5412 = vmatpush1.msra.mxu0 %v1175
    %5413 = vmatprep.subr.mxu0 %v1184
    %5414 = vmatpush1.msra.mxu0 %v1183
    %5415 = vmatprep.subr.mxu0 %v1192
    %5416 = vmatpush1.msra.mxu0 %v1191
    %5417 = vmatprep.subr.mxu0 %v1200
    %5418 = vmatpush1.msra.mxu0 %v1199
    %5419 = vmatprep.subr.mxu0 %v1208
    %5420 = vmatpush1.msra.mxu0 %v1207
    %5421 = vmatprep.subr.mxu0 %v1216
    %5422 = vmatpush1.msra.mxu0 %v1215
    %5423 = vmatprep.subr.mxu0 %v1224
    %5424 = vmatpush1.msra.mxu0 %v1223
    %5425 = vmatprep.subr.mxu0 %v1232
    %5426 = vmatpush1.msra.mxu0 %v1231
    %5427 = vmatprep.subr.mxu0 %v1240
    %5428 = vmatpush1.msra.mxu0 %v1239
    %5429 = vmatprep.subr.mxu0 %v1248
    %5430 = vmatpush1.msra.mxu0 %v1247
    %5431 = vmatprep.subr.mxu0 %v1256
    %5432 = vmatpush1.msra.mxu0 %v1255
    %5433 = vmatprep.subr.mxu0 %v1264
    %5434 = vmatpush1.msra.mxu0 %v1263
    %5435 = vmatprep.subr.mxu0 %v1272
    %5436 = vmatpush1.msra.mxu0 %v1271
    %5437 = vmatprep.subr.mxu0 %v1280
    %5438 = vmatpush1.msra.mxu0 %v1279
    %5439 = vmatprep.subr.mxu0 %v1288
    %5440 = vmatpush1.msra.mxu0 %v1287
    %5441 = vmatprep.subr.mxu0 %v1296
    %5442 = vmatpush1.msra.mxu0 %v1295
    %5443 = vmatprep.subr.mxu0 %v1304
    %5444 = vmatpush1.msra.mxu0 %v1303
    %5445 = vmatprep.subr.mxu0 %v1312
    %5446 = vmatpush1.msra.mxu0 %v1311
    %5447 = vmatprep.subr.mxu0 %v1320
    %5448 = vmatpush1.msra.mxu0 %v1319
    %5449 = vmatprep.subr.mxu0 %v1328
    %5450 = vmatpush1.msra.mxu0 %v1327
    %5451 = vmatprep.subr.mxu0 %v1336
    %5452 = vmatpush1.msra.mxu0 %v1335
    %5453 = vmatprep.subr.mxu0 %v1344
    %5454 = vmatpush1.msra.mxu0 %v1343
    %5455 = vmatprep.subr.mxu0 %v1352
    %5456 = vmatpush1.msra.mxu0 %v1351
    %5457 = vmatprep.mubr.f32.mxu0 %v5202
    %5458 = vmatmul.mubr.f32.gmra.mrb[0].mxu0 %v5201
    %v5459 = vpop.f32.mrb[0].mxu0
    %v5460 = vadd.f32 %v1376, %v5459
    %v5461 = vpop.f32.mrb[0].mxu0
    %v5462 = vadd.f32 %v1380, %v5461
    %5463 = vdwg.mxu0
    %5464 = vmatprep.subr.mxu0 %v1106
    %5465 = vmatpush1.msra.mxu0 %v1105
    %5466 = vmatprep.subr.mxu0 %v1114
    %5467 = vmatpush1.msra.mxu0 %v1113
    %5468 = vmatprep.subr.mxu0 %v1122
    %5469 = vmatpush1.msra.mxu0 %v1121
    %5470 = vmatprep.subr.mxu0 %v1130
    %5471 = vmatpush1.msra.mxu0 %v1129
    %5472 = vmatprep.subr.mxu0 %v1138
    %5473 = vmatpush1.msra.mxu0 %v1137
    %5474 = vmatprep.subr.mxu0 %v1146
    %5475 = vmatpush1.msra.mxu0 %v1145
    %5476 = vmatprep.subr.mxu0 %v1154
    %5477 = vmatpush1.msra.mxu0 %v1153
    %5478 = vmatprep.subr.mxu0 %v1162
    %5479 = vmatpush1.msra.mxu0 %v1161
    %5480 = vmatprep.subr.mxu0 %v1170
    %5481 = vmatpush1.msra.mxu0 %v1169
    %5482 = vmatprep.subr.mxu0 %v1178
    %5483 = vmatpush1.msra.mxu0 %v1177
    %5484 = vmatprep.subr.mxu0 %v1186
    %5485 = vmatpush1.msra.mxu0 %v1185
    %5486 = vmatprep.subr.mxu0 %v1194
    %5487 = vmatpush1.msra.mxu0 %v1193
    %5488 = vmatprep.subr.mxu0 %v1202
    %5489 = vmatpush1.msra.mxu0 %v1201
    %5490 = vmatprep.subr.mxu0 %v1210
    %5491 = vmatpush1.msra.mxu0 %v1209
    %5492 = vmatprep.subr.mxu0 %v1218
    %5493 = vmatpush1.msra.mxu0 %v1217
    %5494 = vmatprep.subr.mxu0 %v1226
    %5495 = vmatpush1.msra.mxu0 %v1225
    %5496 = vmatprep.subr.mxu0 %v1234
    %5497 = vmatpush1.msra.mxu0 %v1233
    %5498 = vmatprep.subr.mxu0 %v1242
    %5499 = vmatpush1.msra.mxu0 %v1241
    %5500 = vmatprep.subr.mxu0 %v1250
    %5501 = vmatpush1.msra.mxu0 %v1249
    %5502 = vmatprep.subr.mxu0 %v1258
    %5503 = vmatpush1.msra.mxu0 %v1257
    %5504 = vmatprep.subr.mxu0 %v1266
    %5505 = vmatpush1.msra.mxu0 %v1265
    %5506 = vmatprep.subr.mxu0 %v1274
    %5507 = vmatpush1.msra.mxu0 %v1273
    %5508 = vmatprep.subr.mxu0 %v1282
    %5509 = vmatpush1.msra.mxu0 %v1281
    %5510 = vmatprep.subr.mxu0 %v1290
    %5511 = vmatpush1.msra.mxu0 %v1289
    %5512 = vmatprep.subr.mxu0 %v1298
    %5513 = vmatpush1.msra.mxu0 %v1297
    %5514 = vmatprep.subr.mxu0 %v1306
    %5515 = vmatpush1.msra.mxu0 %v1305
    %5516 = vmatprep.subr.mxu0 %v1314
    %5517 = vmatpush1.msra.mxu0 %v1313
    %5518 = vmatprep.subr.mxu0 %v1322
    %5519 = vmatpush1.msra.mxu0 %v1321
    %5520 = vmatprep.subr.mxu0 %v1330
    %5521 = vmatpush1.msra.mxu0 %v1329
    %5522 = vmatprep.subr.mxu0 %v1338
    %5523 = vmatpush1.msra.mxu0 %v1337
    %5524 = vmatprep.subr.mxu0 %v1346
    %5525 = vmatpush1.msra.mxu0 %v1345
    %5526 = vmatprep.subr.mxu0 %v1354
    %5527 = vmatpush1.msra.mxu0 %v1353
    %5528 = vmatprep.mubr.f32.mxu0 %v5202
    %5529 = vmatmul.mubr.f32.gmra.mrb[0].mxu0 %v5201
    %v5530 = vpop.f32.mrb[0].mxu0
    %v5531 = vadd.f32 %v1384, %v5530
    %v5532 = vpop.f32.mrb[0].mxu0
    %v5533 = vadd.f32 %v1388, %v5532
    %5534 = vdwg.mxu0
    %5535 = vmatprep.subr.mxu0 %v2080
    %5536 = vmatpush1.msra.mxu0 %v2079
    %5537 = vmatprep.subr.mxu0 %v2088
    %5538 = vmatpush1.msra.mxu0 %v2087
    %5539 = vmatprep.subr.mxu0 %v2096
    %5540 = vmatpush1.msra.mxu0 %v2095
    %5541 = vmatprep.subr.mxu0 %v2104
    %5542 = vmatpush1.msra.mxu0 %v2103
    %5543 = vmatprep.subr.mxu0 %v2112
    %5544 = vmatpush1.msra.mxu0 %v2111
    %5545 = vmatprep.subr.mxu0 %v2120
    %5546 = vmatpush1.msra.mxu0 %v2119
    %5547 = vmatprep.subr.mxu0 %v2128
    %5548 = vmatpush1.msra.mxu0 %v2127
    %5549 = vmatprep.subr.mxu0 %v2136
    %5550 = vmatpush1.msra.mxu0 %v2135
    %5551 = vmatprep.subr.mxu0 %v2144
    %5552 = vmatpush1.msra.mxu0 %v2143
    %5553 = vmatprep.subr.mxu0 %v2152
    %5554 = vmatpush1.msra.mxu0 %v2151
    %5555 = vmatprep.subr.mxu0 %v2160
    %5556 = vmatpush1.msra.mxu0 %v2159
    %5557 = vmatprep.subr.mxu0 %v2168
    %5558 = vmatpush1.msra.mxu0 %v2167
    %5559 = vmatprep.subr.mxu0 %v2176
    %5560 = vmatpush1.msra.mxu0 %v2175
    %5561 = vmatprep.subr.mxu0 %v2184
    %5562 = vmatpush1.msra.mxu0 %v2183
    %5563 = vmatprep.subr.mxu0 %v2192
    %5564 = vmatpush1.msra.mxu0 %v2191
    %5565 = vmatprep.subr.mxu0 %v2200
    %5566 = vmatpush1.msra.mxu0 %v2199
    %5567 = vmatprep.subr.mxu0 %v2208
    %5568 = vmatpush1.msra.mxu0 %v2207
    %5569 = vmatprep.subr.mxu0 %v2216
    %5570 = vmatpush1.msra.mxu0 %v2215
    %5571 = vmatprep.subr.mxu0 %v2224
    %5572 = vmatpush1.msra.mxu0 %v2223
    %5573 = vmatprep.subr.mxu0 %v2232
    %5574 = vmatpush1.msra.mxu0 %v2231
    %5575 = vmatprep.subr.mxu0 %v2240
    %5576 = vmatpush1.msra.mxu0 %v2239
    %5577 = vmatprep.subr.mxu0 %v2248
    %5578 = vmatpush1.msra.mxu0 %v2247
    %5579 = vmatprep.subr.mxu0 %v2256
    %5580 = vmatpush1.msra.mxu0 %v2255
    %5581 = vmatprep.subr.mxu0 %v2264
    %5582 = vmatpush1.msra.mxu0 %v2263
    %5583 = vmatprep.subr.mxu0 %v2272
    %5584 = vmatpush1.msra.mxu0 %v2271
    %5585 = vmatprep.subr.mxu0 %v2280
    %5586 = vmatpush1.msra.mxu0 %v2279
    %5587 = vmatprep.subr.mxu0 %v2288
    %5588 = vmatpush1.msra.mxu0 %v2287
    %5589 = vmatprep.subr.mxu0 %v2296
    %5590 = vmatpush1.msra.mxu0 %v2295
    %5591 = vmatprep.subr.mxu0 %v2304
    %5592 = vmatpush1.msra.mxu0 %v2303
    %5593 = vmatprep.subr.mxu0 %v2312
    %5594 = vmatpush1.msra.mxu0 %v2311
    %5595 = vmatprep.subr.mxu0 %v2320
    %5596 = vmatpush1.msra.mxu0 %v2319
    %5597 = vmatprep.subr.mxu0 %v2328
    %5598 = vmatpush1.msra.mxu0 %v2327
    %5599 = vmatprep.mubr.f32.mxu0 %v5250
    %5600 = vmatmul.mubr.f32.gmra.mrb[0].mxu0 %v5249
    %v5601 = vpop.f32.mrb[0].mxu0
    %v5602 = vadd.f32 0.0, %v5601
    %v5603 = vpop.f32.mrb[0].mxu0
    %v5604 = vadd.f32 0.0, %v5603
    %5605 = vdwg.mxu0
    %5606 = vmatprep.subr.mxu0 %v2082
    %5607 = vmatpush1.msra.mxu0 %v2081
    %5608 = vmatprep.subr.mxu0 %v2090
    %5609 = vmatpush1.msra.mxu0 %v2089
    %5610 = vmatprep.subr.mxu0 %v2098
    %5611 = vmatpush1.msra.mxu0 %v2097
    %5612 = vmatprep.subr.mxu0 %v2106
    %5613 = vmatpush1.msra.mxu0 %v2105
    %5614 = vmatprep.subr.mxu0 %v2114
    %5615 = vmatpush1.msra.mxu0 %v2113
    %5616 = vmatprep.subr.mxu0 %v2122
    %5617 = vmatpush1.msra.mxu0 %v2121
    %5618 = vmatprep.subr.mxu0 %v2130
    %5619 = vmatpush1.msra.mxu0 %v2129
    %5620 = vmatprep.subr.mxu0 %v2138
    %5621 = vmatpush1.msra.mxu0 %v2137
    %5622 = vmatprep.subr.mxu0 %v2146
    %5623 = vmatpush1.msra.mxu0 %v2145
    %5624 = vmatprep.subr.mxu0 %v2154
    %5625 = vmatpush1.msra.mxu0 %v2153
    %5626 = vmatprep.subr.mxu0 %v2162
    %5627 = vmatpush1.msra.mxu0 %v2161
    %5628 = vmatprep.subr.mxu0 %v2170
    %5629 = vmatpush1.msra.mxu0 %v2169
    %5630 = vmatprep.subr.mxu0 %v2178
    %5631 = vmatpush1.msra.mxu0 %v2177
    %5632 = vmatprep.subr.mxu0 %v2186
    %5633 = vmatpush1.msra.mxu0 %v2185
    %5634 = vmatprep.subr.mxu0 %v2194
    %5635 = vmatpush1.msra.mxu0 %v2193
    %5636 = vmatprep.subr.mxu0 %v2202
    %5637 = vmatpush1.msra.mxu0 %v2201
    %5638 = vmatprep.subr.mxu0 %v2210
    %5639 = vmatpush1.msra.mxu0 %v2209
    %5640 = vmatprep.subr.mxu0 %v2218
    %5641 = vmatpush1.msra.mxu0 %v2217
    %5642 = vmatprep.subr.mxu0 %v2226
    %5643 = vmatpush1.msra.mxu0 %v2225
    %5644 = vmatprep.subr.mxu0 %v2234
    %5645 = vmatpush1.msra.mxu0 %v2233
    %5646 = vmatprep.subr.mxu0 %v2242
    %5647 = vmatpush1.msra.mxu0 %v2241
    %5648 = vmatprep.subr.mxu0 %v2250
    %5649 = vmatpush1.msra.mxu0 %v2249
    %5650 = vmatprep.subr.mxu0 %v2258
    %5651 = vmatpush1.msra.mxu0 %v2257
    %5652 = vmatprep.subr.mxu0 %v2266
    %5653 = vmatpush1.msra.mxu0 %v2265
    %5654 = vmatprep.subr.mxu0 %v2274
    %5655 = vmatpush1.msra.mxu0 %v2273
    %5656 = vmatprep.subr.mxu0 %v2282
    %5657 = vmatpush1.msra.mxu0 %v2281
    %5658 = vmatprep.subr.mxu0 %v2290
    %5659 = vmatpush1.msra.mxu0 %v2289
    %5660 = vmatprep.subr.mxu0 %v2298
    %5661 = vmatpush1.msra.mxu0 %v2297
    %5662 = vmatprep.subr.mxu0 %v2306
    %5663 = vmatpush1.msra.mxu0 %v2305
    %5664 = vmatprep.subr.mxu0 %v2314
    %5665 = vmatpush1.msra.mxu0 %v2313
    %5666 = vmatprep.subr.mxu0 %v2322
    %5667 = vmatpush1.msra.mxu0 %v2321
    %5668 = vmatprep.subr.mxu0 %v2330
    %5669 = vmatpush1.msra.mxu0 %v2329
    %5670 = vmatprep.mubr.f32.mxu0 %v5250
    %5671 = vmatmul.mubr.f32.gmra.mrb[0].mxu0 %v5249
    %v5672 = vpop.f32.mrb[0].mxu0
    %v5673 = vadd.f32 0.0, %v5672
    %v5674 = vpop.f32.mrb[0].mxu0
    %v5675 = vadd.f32 0.0, %v5674
    %5676 = vdwg.mxu0
    %5677 = vmatprep.subr.mxu0 %v2084
    %5678 = vmatpush1.msra.mxu0 %v2083
    %5679 = vmatprep.subr.mxu0 %v2092
    %5680 = vmatpush1.msra.mxu0 %v2091
    %5681 = vmatprep.subr.mxu0 %v2100
    %5682 = vmatpush1.msra.mxu0 %v2099
    %5683 = vmatprep.subr.mxu0 %v2108
    %5684 = vmatpush1.msra.mxu0 %v2107
    %5685 = vmatprep.subr.mxu0 %v2116
    %5686 = vmatpush1.msra.mxu0 %v2115
    %5687 = vmatprep.subr.mxu0 %v2124
    %5688 = vmatpush1.msra.mxu0 %v2123
    %5689 = vmatprep.subr.mxu0 %v2132
    %5690 = vmatpush1.msra.mxu0 %v2131
    %5691 = vmatprep.subr.mxu0 %v2140
    %5692 = vmatpush1.msra.mxu0 %v2139
    %5693 = vmatprep.subr.mxu0 %v2148
    %5694 = vmatpush1.msra.mxu0 %v2147
    %5695 = vmatprep.subr.mxu0 %v2156
    %5696 = vmatpush1.msra.mxu0 %v2155
    %5697 = vmatprep.subr.mxu0 %v2164
    %5698 = vmatpush1.msra.mxu0 %v2163
    %5699 = vmatprep.subr.mxu0 %v2172
    %5700 = vmatpush1.msra.mxu0 %v2171
    %5701 = vmatprep.subr.mxu0 %v2180
    %5702 = vmatpush1.msra.mxu0 %v2179
    %5703 = vmatprep.subr.mxu0 %v2188
    %5704 = vmatpush1.msra.mxu0 %v2187
    %5705 = vmatprep.subr.mxu0 %v2196
    %5706 = vmatpush1.msra.mxu0 %v2195
    %5707 = vmatprep.subr.mxu0 %v2204
    %5708 = vmatpush1.msra.mxu0 %v2203
    %5709 = vmatprep.subr.mxu0 %v2212
    %5710 = vmatpush1.msra.mxu0 %v2211
    %5711 = vmatprep.subr.mxu0 %v2220
    %5712 = vmatpush1.msra.mxu0 %v2219
    %5713 = vmatprep.subr.mxu0 %v2228
    %5714 = vmatpush1.msra.mxu0 %v2227
    %5715 = vmatprep.subr.mxu0 %v2236
    %5716 = vmatpush1.msra.mxu0 %v2235
    %5717 = vmatprep.subr.mxu0 %v2244
    %5718 = vmatpush1.msra.mxu0 %v2243
    %5719 = vmatprep.subr.mxu0 %v2252
    %5720 = vmatpush1.msra.mxu0 %v2251
    %5721 = vmatprep.subr.mxu0 %v2260
    %5722 = vmatpush1.msra.mxu0 %v2259
    %5723 = vmatprep.subr.mxu0 %v2268
    %5724 = vmatpush1.msra.mxu0 %v2267
    %5725 = vmatprep.subr.mxu0 %v2276
    %5726 = vmatpush1.msra.mxu0 %v2275
    %5727 = vmatprep.subr.mxu0 %v2284
    %5728 = vmatpush1.msra.mxu0 %v2283
    %5729 = vmatprep.subr.mxu0 %v2292
    %5730 = vmatpush1.msra.mxu0 %v2291
    %5731 = vmatprep.subr.mxu0 %v2300
    %5732 = vmatpush1.msra.mxu0 %v2299
    %5733 = vmatprep.subr.mxu0 %v2308
    %5734 = vmatpush1.msra.mxu0 %v2307
    %5735 = vmatprep.subr.mxu0 %v2316
    %5736 = vmatpush1.msra.mxu0 %v2315
    %5737 = vmatprep.subr.mxu0 %v2324
    %5738 = vmatpush1.msra.mxu0 %v2323
    %5739 = vmatprep.subr.mxu0 %v2332
    %5740 = vmatpush1.msra.mxu0 %v2331
    %5741 = vmatprep.mubr.f32.mxu0 %v5250
    %5742 = vmatmul.mubr.f32.gmra.mrb[0].mxu0 %v5249
    %v5743 = vpop.f32.mrb[0].mxu0
    %v5744 = vadd.f32 0.0, %v5743
    %v5745 = vpop.f32.mrb[0].mxu0
    %v5746 = vadd.f32 0.0, %v5745
    %5747 = vdwg.mxu0
    %5748 = vmatprep.subr.mxu0 %v2086
    %5749 = vmatpush1.msra.mxu0 %v2085
    %5750 = vmatprep.subr.mxu0 %v2094
    %5751 = vmatpush1.msra.mxu0 %v2093
    %5752 = vmatprep.subr.mxu0 %v2102
    %5753 = vmatpush1.msra.mxu0 %v2101
    %5754 = vmatprep.subr.mxu0 %v2110
    %5755 = vmatpush1.msra.mxu0 %v2109
    %5756 = vmatprep.subr.mxu0 %v2118
    %5757 = vmatpush1.msra.mxu0 %v2117
    %5758 = vmatprep.subr.mxu0 %v2126
    %5759 = vmatpush1.msra.mxu0 %v2125
    %5760 = vmatprep.subr.mxu0 %v2134
    %5761 = vmatpush1.msra.mxu0 %v2133
    %5762 = vmatprep.subr.mxu0 %v2142
    %5763 = vmatpush1.msra.mxu0 %v2141
    %5764 = vmatprep.subr.mxu0 %v2150
    %5765 = vmatpush1.msra.mxu0 %v2149
    %5766 = vmatprep.subr.mxu0 %v2158
    %5767 = vmatpush1.msra.mxu0 %v2157
    %5768 = vmatprep.subr.mxu0 %v2166
    %5769 = vmatpush1.msra.mxu0 %v2165
    %5770 = vmatprep.subr.mxu0 %v2174
    %5771 = vmatpush1.msra.mxu0 %v2173
    %5772 = vmatprep.subr.mxu0 %v2182
    %5773 = vmatpush1.msra.mxu0 %v2181
    %5774 = vmatprep.subr.mxu0 %v2190
    %5775 = vmatpush1.msra.mxu0 %v2189
    %5776 = vmatprep.subr.mxu0 %v2198
    %5777 = vmatpush1.msra.mxu0 %v2197
    %5778 = vmatprep.subr.mxu0 %v2206
    %5779 = vmatpush1.msra.mxu0 %v2205
    %5780 = vmatprep.subr.mxu0 %v2214
    %5781 = vmatpush1.msra.mxu0 %v2213
    %5782 = vmatprep.subr.mxu0 %v2222
    %5783 = vmatpush1.msra.mxu0 %v2221
    %5784 = vmatprep.subr.mxu0 %v2230
    %5785 = vmatpush1.msra.mxu0 %v2229
    %5786 = vmatprep.subr.mxu0 %v2238
    %5787 = vmatpush1.msra.mxu0 %v2237
    %5788 = vmatprep.subr.mxu0 %v2246
    %5789 = vmatpush1.msra.mxu0 %v2245
    %5790 = vmatprep.subr.mxu0 %v2254
    %5791 = vmatpush1.msra.mxu0 %v2253
    %5792 = vmatprep.subr.mxu0 %v2262
    %5793 = vmatpush1.msra.mxu0 %v2261
    %5794 = vmatprep.subr.mxu0 %v2270
    %5795 = vmatpush1.msra.mxu0 %v2269
    %5796 = vmatprep.subr.mxu0 %v2278
    %5797 = vmatpush1.msra.mxu0 %v2277
    %5798 = vmatprep.subr.mxu0 %v2286
    %5799 = vmatpush1.msra.mxu0 %v2285
    %5800 = vmatprep.subr.mxu0 %v2294
    %5801 = vmatpush1.msra.mxu0 %v2293
    %5802 = vmatprep.subr.mxu0 %v2302
    %5803 = vmatpush1.msra.mxu0 %v2301
    %5804 = vmatprep.subr.mxu0 %v2310
    %5805 = vmatpush1.msra.mxu0 %v2309
    %5806 = vmatprep.subr.mxu0 %v2318
    %5807 = vmatpush1.msra.mxu0 %v2317
    %5808 = vmatprep.subr.mxu0 %v2326
    %5809 = vmatpush1.msra.mxu0 %v2325
    %5810 = vmatprep.subr.mxu0 %v2334
    %5811 = vmatpush1.msra.mxu0 %v2333
    %5812 = vmatprep.mubr.f32.mxu0 %v5250
    %5813 = vmatmul.mubr.f32.gmra.mrb[0].mxu0 %v5249
    %v5814 = vpop.f32.mrb[0].mxu0
    %v5815 = vadd.f32 0.0, %v5814
    %v5816 = vpop.f32.mrb[0].mxu0
    %v5817 = vadd.f32 0.0, %v5816
    %5818 = vdwg.mxu0
    %v5819 = vadd.f32 %v5318, %v5602
    %v5820 = vadd.f32 %v5320, %v5604
    %v5821 = vadd.f32 %v5389, %v5673
    %v5822 = vadd.f32 %v5391, %v5675
    %v5823 = vadd.f32 %v5460, %v5744
    %v5824 = vadd.f32 %v5462, %v5746
    %v5825 = vadd.f32 %v5531, %v5815
    %v5826 = vadd.f32 %v5533, %v5817
    %v5827 = vld [vmem:[#allocation2 + $0x140] sm:$0xff]
    %v5828 = vld [vmem:[#allocation2 + $0x148] sm:$0xff]
    %v5829 = vld [vmem:[#allocation2 + $0x150] sm:$0xff]
    %v5830 = vld [vmem:[#allocation2 + $0x158] sm:$0xff]
    %v5831 = vld [vmem:[#allocation2 + $0x160] sm:$0xff]
    %v5832 = vld [vmem:[#allocation2 + $0x168] sm:$0xff]
    %v5833 = vld [vmem:[#allocation2 + $0x170] sm:$0xff]
    %v5834 = vld [vmem:[#allocation2 + $0x178] sm:$0xff]
    %5835 = vmatprep.subr.mxu0 %v784
    %5836 = vmatpush1.msra.mxu0 %v783
    %5837 = vmatprep.subr.mxu0 %v792
    %5838 = vmatpush1.msra.mxu0 %v791
    %5839 = vmatprep.subr.mxu0 %v800
    %5840 = vmatpush1.msra.mxu0 %v799
    %5841 = vmatprep.subr.mxu0 %v808
    %5842 = vmatpush1.msra.mxu0 %v807
    %5843 = vmatprep.subr.mxu0 %v816
    %5844 = vmatpush1.msra.mxu0 %v815
    %5845 = vmatprep.subr.mxu0 %v824
    %5846 = vmatpush1.msra.mxu0 %v823
    %5847 = vmatprep.subr.mxu0 %v832
    %5848 = vmatpush1.msra.mxu0 %v831
    %5849 = vmatprep.subr.mxu0 %v840
    %5850 = vmatpush1.msra.mxu0 %v839
    %5851 = vmatprep.subr.mxu0 %v848
    %5852 = vmatpush1.msra.mxu0 %v847
    %5853 = vmatprep.subr.mxu0 %v856
    %5854 = vmatpush1.msra.mxu0 %v855
    %5855 = vmatprep.subr.mxu0 %v864
    %5856 = vmatpush1.msra.mxu0 %v863
    %5857 = vmatprep.subr.mxu0 %v872
    %5858 = vmatpush1.msra.mxu0 %v871
    %5859 = vmatprep.subr.mxu0 %v880
    %5860 = vmatpush1.msra.mxu0 %v879
    %5861 = vmatprep.subr.mxu0 %v888
    %5862 = vmatpush1.msra.mxu0 %v887
    %5863 = vmatprep.subr.mxu0 %v896
    %5864 = vmatpush1.msra.mxu0 %v895
    %5865 = vmatprep.subr.mxu0 %v904
    %5866 = vmatpush1.msra.mxu0 %v903
    %5867 = vmatprep.subr.mxu0 %v912
    %5868 = vmatpush1.msra.mxu0 %v911
    %5869 = vmatprep.subr.mxu0 %v920
    %5870 = vmatpush1.msra.mxu0 %v919
    %5871 = vmatprep.subr.mxu0 %v928
    %5872 = vmatpush1.msra.mxu0 %v927
    %5873 = vmatprep.subr.mxu0 %v936
    %5874 = vmatpush1.msra.mxu0 %v935
    %5875 = vmatprep.subr.mxu0 %v944
    %5876 = vmatpush1.msra.mxu0 %v943
    %5877 = vmatprep.subr.mxu0 %v952
    %5878 = vmatpush1.msra.mxu0 %v951
    %5879 = vmatprep.subr.mxu0 %v960
    %5880 = vmatpush1.msra.mxu0 %v959
    %5881 = vmatprep.subr.mxu0 %v968
    %5882 = vmatpush1.msra.mxu0 %v967
    %5883 = vmatprep.subr.mxu0 %v976
    %5884 = vmatpush1.msra.mxu0 %v975
    %5885 = vmatprep.subr.mxu0 %v984
    %5886 = vmatpush1.msra.mxu0 %v983
    %5887 = vmatprep.subr.mxu0 %v992
    %5888 = vmatpush1.msra.mxu0 %v991
    %5889 = vmatprep.subr.mxu0 %v1000
    %5890 = vmatpush1.msra.mxu0 %v999
    %5891 = vmatprep.subr.mxu0 %v1008
    %5892 = vmatpush1.msra.mxu0 %v1007
    %5893 = vmatprep.subr.mxu0 %v1016
    %5894 = vmatpush1.msra.mxu0 %v1015
    %5895 = vmatprep.subr.mxu0 %v1024
    %5896 = vmatpush1.msra.mxu0 %v1023
    %5897 = vmatprep.subr.mxu0 %v1032
    %5898 = vmatpush1.msra.mxu0 %v1031
    %5899 = vmatprep.mubr.f32.mxu0 %v5202
    %5900 = vmatmul.mubr.f32.gmra.mrb[0].mxu0 %v5201
    %v5901 = vpop.f32.mrb[0].mxu0
    %v5902 = vadd.f32 0.0, %v5901
    %v5903 = vpop.f32.mrb[0].mxu0
    %v5904 = vadd.f32 0.0, %v5903
    %5905 = vdwg.mxu0
    %5906 = vmatprep.subr.mxu0 %v786
    %5907 = vmatpush1.msra.mxu0 %v785
    %5908 = vmatprep.subr.mxu0 %v794
    %5909 = vmatpush1.msra.mxu0 %v793
    %5910 = vmatprep.subr.mxu0 %v802
    %5911 = vmatpush1.msra.mxu0 %v801
    %5912 = vmatprep.subr.mxu0 %v810
    %5913 = vmatpush1.msra.mxu0 %v809
    %5914 = vmatprep.subr.mxu0 %v818
    %5915 = vmatpush1.msra.mxu0 %v817
    %5916 = vmatprep.subr.mxu0 %v826
    %5917 = vmatpush1.msra.mxu0 %v825
    %5918 = vmatprep.subr.mxu0 %v834
    %5919 = vmatpush1.msra.mxu0 %v833
    %5920 = vmatprep.subr.mxu0 %v842
    %5921 = vmatpush1.msra.mxu0 %v841
    %5922 = vmatprep.subr.mxu0 %v850
    %5923 = vmatpush1.msra.mxu0 %v849
    %5924 = vmatprep.subr.mxu0 %v858
    %5925 = vmatpush1.msra.mxu0 %v857
    %5926 = vmatprep.subr.mxu0 %v866
    %5927 = vmatpush1.msra.mxu0 %v865
    %5928 = vmatprep.subr.mxu0 %v874
    %5929 = vmatpush1.msra.mxu0 %v873
    %5930 = vmatprep.subr.mxu0 %v882
    %5931 = vmatpush1.msra.mxu0 %v881
    %5932 = vmatprep.subr.mxu0 %v890
    %5933 = vmatpush1.msra.mxu0 %v889
    %5934 = vmatprep.subr.mxu0 %v898
    %5935 = vmatpush1.msra.mxu0 %v897
    %5936 = vmatprep.subr.mxu0 %v906
    %5937 = vmatpush1.msra.mxu0 %v905
    %5938 = vmatprep.subr.mxu0 %v914
    %5939 = vmatpush1.msra.mxu0 %v913
    %5940 = vmatprep.subr.mxu0 %v922
    %5941 = vmatpush1.msra.mxu0 %v921
    %5942 = vmatprep.subr.mxu0 %v930
    %5943 = vmatpush1.msra.mxu0 %v929
    %5944 = vmatprep.subr.mxu0 %v938
    %5945 = vmatpush1.msra.mxu0 %v937
    %5946 = vmatprep.subr.mxu0 %v946
    %5947 = vmatpush1.msra.mxu0 %v945
    %5948 = vmatprep.subr.mxu0 %v954
    %5949 = vmatpush1.msra.mxu0 %v953
    %5950 = vmatprep.subr.mxu0 %v962
    %5951 = vmatpush1.msra.mxu0 %v961
    %5952 = vmatprep.subr.mxu0 %v970
    %5953 = vmatpush1.msra.mxu0 %v969
    %5954 = vmatprep.subr.mxu0 %v978
    %5955 = vmatpush1.msra.mxu0 %v977
    %5956 = vmatprep.subr.mxu0 %v986
    %5957 = vmatpush1.msra.mxu0 %v985
    %5958 = vmatprep.subr.mxu0 %v994
    %5959 = vmatpush1.msra.mxu0 %v993
    %5960 = vmatprep.subr.mxu0 %v1002
    %5961 = vmatpush1.msra.mxu0 %v1001
    %5962 = vmatprep.subr.mxu0 %v1010
    %5963 = vmatpush1.msra.mxu0 %v1009
    %5964 = vmatprep.subr.mxu0 %v1018
    %5965 = vmatpush1.msra.mxu0 %v1017
    %5966 = vmatprep.subr.mxu0 %v1026
    %5967 = vmatpush1.msra.mxu0 %v1025
    %5968 = vmatprep.subr.mxu0 %v1034
    %5969 = vmatpush1.msra.mxu0 %v1033
    %5970 = vmatprep.mubr.f32.mxu0 %v5202
    %5971 = vmatmul.mubr.f32.gmra.mrb[0].mxu0 %v5201
    %v5972 = vpop.f32.mrb[0].mxu0
    %v5973 = vadd.f32 0.0, %v5972
    %v5974 = vpop.f32.mrb[0].mxu0
    %v5975 = vadd.f32 0.0, %v5974
    %5976 = vdwg.mxu0
    %5977 = vmatprep.subr.mxu0 %v788
    %5978 = vmatpush1.msra.mxu0 %v787
    %5979 = vmatprep.subr.mxu0 %v796
    %5980 = vmatpush1.msra.mxu0 %v795
    %5981 = vmatprep.subr.mxu0 %v804
    %5982 = vmatpush1.msra.mxu0 %v803
    %5983 = vmatprep.subr.mxu0 %v812
    %5984 = vmatpush1.msra.mxu0 %v811
    %5985 = vmatprep.subr.mxu0 %v820
    %5986 = vmatpush1.msra.mxu0 %v819
    %5987 = vmatprep.subr.mxu0 %v828
    %5988 = vmatpush1.msra.mxu0 %v827
    %5989 = vmatprep.subr.mxu0 %v836
    %5990 = vmatpush1.msra.mxu0 %v835
    %5991 = vmatprep.subr.mxu0 %v844
    %5992 = vmatpush1.msra.mxu0 %v843
    %5993 = vmatprep.subr.mxu0 %v852
    %5994 = vmatpush1.msra.mxu0 %v851
    %5995 = vmatprep.subr.mxu0 %v860
    %5996 = vmatpush1.msra.mxu0 %v859
    %5997 = vmatprep.subr.mxu0 %v868
    %5998 = vmatpush1.msra.mxu0 %v867
    %5999 = vmatprep.subr.mxu0 %v876
    %6000 = vmatpush1.msra.mxu0 %v875
    %6001 = vmatprep.subr.mxu0 %v884
    %6002 = vmatpush1.msra.mxu0 %v883
    %6003 = vmatprep.subr.mxu0 %v892
    %6004 = vmatpush1.msra.mxu0 %v891
    %6005 = vmatprep.subr.mxu0 %v900
    %6006 = vmatpush1.msra.mxu0 %v899
    %6007 = vmatprep.subr.mxu0 %v908
    %6008 = vmatpush1.msra.mxu0 %v907
    %6009 = vmatprep.subr.mxu0 %v916
    %6010 = vmatpush1.msra.mxu0 %v915
    %6011 = vmatprep.subr.mxu0 %v924
    %6012 = vmatpush1.msra.mxu0 %v923
    %6013 = vmatprep.subr.mxu0 %v932
    %6014 = vmatpush1.msra.mxu0 %v931
    %6015 = vmatprep.subr.mxu0 %v940
    %6016 = vmatpush1.msra.mxu0 %v939
    %6017 = vmatprep.subr.mxu0 %v948
    %6018 = vmatpush1.msra.mxu0 %v947
    %6019 = vmatprep.subr.mxu0 %v956
    %6020 = vmatpush1.msra.mxu0 %v955
    %6021 = vmatprep.subr.mxu0 %v964
    %6022 = vmatpush1.msra.mxu0 %v963
    %6023 = vmatprep.subr.mxu0 %v972
    %6024 = vmatpush1.msra.mxu0 %v971
    %6025 = vmatprep.subr.mxu0 %v980
    %6026 = vmatpush1.msra.mxu0 %v979
    %6027 = vmatprep.subr.mxu0 %v988
    %6028 = vmatpush1.msra.mxu0 %v987
    %6029 = vmatprep.subr.mxu0 %v996
    %6030 = vmatpush1.msra.mxu0 %v995
    %6031 = vmatprep.subr.mxu0 %v1004
    %6032 = vmatpush1.msra.mxu0 %v1003
    %6033 = vmatprep.subr.mxu0 %v1012
    %6034 = vmatpush1.msra.mxu0 %v1011
    %6035 = vmatprep.subr.mxu0 %v1020
    %6036 = vmatpush1.msra.mxu0 %v1019
    %6037 = vmatprep.subr.mxu0 %v1028
    %6038 = vmatpush1.msra.mxu0 %v1027
    %6039 = vmatprep.subr.mxu0 %v1036
    %6040 = vmatpush1.msra.mxu0 %v1035
    %6041 = vmatprep.mubr.f32.mxu0 %v5202
    %6042 = vmatmul.mubr.f32.gmra.mrb[0].mxu0 %v5201
    %v6043 = vpop.f32.mrb[0].mxu0
    %v6044 = vadd.f32 0.0, %v6043
    %v6045 = vpop.f32.mrb[0].mxu0
    %v6046 = vadd.f32 0.0, %v6045
    %6047 = vdwg.mxu0
    %6048 = vmatprep.subr.mxu0 %v790
    %6049 = vmatpush1.msra.mxu0 %v789
    %6050 = vmatprep.subr.mxu0 %v798
    %6051 = vmatpush1.msra.mxu0 %v797
    %6052 = vmatprep.subr.mxu0 %v806
    %6053 = vmatpush1.msra.mxu0 %v805
    %6054 = vmatprep.subr.mxu0 %v814
    %6055 = vmatpush1.msra.mxu0 %v813
    %6056 = vmatprep.subr.mxu0 %v822
    %6057 = vmatpush1.msra.mxu0 %v821
    %6058 = vmatprep.subr.mxu0 %v830
    %6059 = vmatpush1.msra.mxu0 %v829
    %6060 = vmatprep.subr.mxu0 %v838
    %6061 = vmatpush1.msra.mxu0 %v837
    %6062 = vmatprep.subr.mxu0 %v846
    %6063 = vmatpush1.msra.mxu0 %v845
    %6064 = vmatprep.subr.mxu0 %v854
    %6065 = vmatpush1.msra.mxu0 %v853
    %6066 = vmatprep.subr.mxu0 %v862
    %6067 = vmatpush1.msra.mxu0 %v861
    %6068 = vmatprep.subr.mxu0 %v870
    %6069 = vmatpush1.msra.mxu0 %v869
    %6070 = vmatprep.subr.mxu0 %v878
    %6071 = vmatpush1.msra.mxu0 %v877
    %6072 = vmatprep.subr.mxu0 %v886
    %6073 = vmatpush1.msra.mxu0 %v885
    %6074 = vmatprep.subr.mxu0 %v894
    %6075 = vmatpush1.msra.mxu0 %v893
    %6076 = vmatprep.subr.mxu0 %v902
    %6077 = vmatpush1.msra.mxu0 %v901
    %6078 = vmatprep.subr.mxu0 %v910
    %6079 = vmatpush1.msra.mxu0 %v909
    %6080 = vmatprep.subr.mxu0 %v918
    %6081 = vmatpush1.msra.mxu0 %v917
    %6082 = vmatprep.subr.mxu0 %v926
    %6083 = vmatpush1.msra.mxu0 %v925
    %6084 = vmatprep.subr.mxu0 %v934
    %6085 = vmatpush1.msra.mxu0 %v933
    %6086 = vmatprep.subr.mxu0 %v942
    %6087 = vmatpush1.msra.mxu0 %v941
    %6088 = vmatprep.subr.mxu0 %v950
    %6089 = vmatpush1.msra.mxu0 %v949
    %6090 = vmatprep.subr.mxu0 %v958
    %6091 = vmatpush1.msra.mxu0 %v957
    %6092 = vmatprep.subr.mxu0 %v966
    %6093 = vmatpush1.msra.mxu0 %v965
    %6094 = vmatprep.subr.mxu0 %v974
    %6095 = vmatpush1.msra.mxu0 %v973
    %6096 = vmatprep.subr.mxu0 %v982
    %6097 = vmatpush1.msra.mxu0 %v981
    %6098 = vmatprep.subr.mxu0 %v990
    %6099 = vmatpush1.msra.mxu0 %v989
    %6100 = vmatprep.subr.mxu0 %v998
    %6101 = vmatpush1.msra.mxu0 %v997
    %6102 = vmatprep.subr.mxu0 %v1006
    %6103 = vmatpush1.msra.mxu0 %v1005
    %6104 = vmatprep.subr.mxu0 %v1014
    %6105 = vmatpush1.msra.mxu0 %v1013
    %6106 = vmatprep.subr.mxu0 %v1022
    %6107 = vmatpush1.msra.mxu0 %v1021
    %6108 = vmatprep.subr.mxu0 %v1030
    %6109 = vmatpush1.msra.mxu0 %v1029
    %6110 = vmatprep.subr.mxu0 %v1038
    %6111 = vmatpush1.msra.mxu0 %v1037
    %6112 = vmatprep.mubr.f32.mxu0 %v5202
    %6113 = vmatmul.mubr.f32.gmra.mrb[0].mxu0 %v5201
    %v6114 = vpop.f32.mrb[0].mxu0
    %v6115 = vadd.f32 0.0, %v6114
    %v6116 = vpop.f32.mrb[0].mxu0
    %v6117 = vadd.f32 0.0, %v6116
    %6118 = vdwg.mxu0
    %v6119 = vadd.f32 %v5827, %v5902
    %v6120 = vadd.f32 %v5828, %v5904
    %v6121 = vadd.f32 %v5829, %v5973
    %v6122 = vadd.f32 %v5830, %v5975
    %v6123 = vadd.f32 %v5831, %v6044
    %v6124 = vadd.f32 %v5832, %v6046
    %v6125 = vadd.f32 %v5833, %v6115
    %v6126 = vadd.f32 %v5834, %v6117
    %v6127 = vxor.u32 %v6119, 2147483648
    %v6128 = vxor.u32 %v6120, 2147483648
    %v6129 = vmul.f32 %v6127, 1.442695
    %v6130 = vpow.pop %v6129
    %v6131 = vmul.f32 %v6128, 1.442695
    %v6132 = vpow.pop %v6131
    %v6133 = vadd.f32 %v6130, 1.0
    %v6134 = vadd.f32 %v6132, 1.0
    %v6135 = vrcp.pop %v6133
    %v6136 = vmul.f32 1.0, %v6135
    %v6137 = vrcp.pop %v6134
    %v6138 = vmul.f32 1.0, %v6137
    %v6139 = vxor.u32 %v6121, 2147483648
    %v6140 = vxor.u32 %v6122, 2147483648
    %v6141 = vmul.f32 %v6139, 1.442695
    %v6142 = vpow.pop %v6141
    %v6143 = vmul.f32 %v6140, 1.442695
    %v6144 = vpow.pop %v6143
    %v6145 = vadd.f32 %v6142, 1.0
    %v6146 = vadd.f32 %v6144, 1.0
    %v6147 = vrcp.pop %v6145
    %v6148 = vmul.f32 1.0, %v6147
    %v6149 = vrcp.pop %v6146
    %v6150 = vmul.f32 1.0, %v6149
    %v6151 = vtanh.pop %v6123
    %v6152 = vtanh.pop %v6124
    %v6153 = vxor.u32 %v6125, 2147483648
    %v6154 = vxor.u32 %v6126, 2147483648
    %v6155 = vmul.f32 %v6153, 1.442695
    %v6156 = vpow.pop %v6155
    %v6157 = vmul.f32 %v6154, 1.442695
    %v6158 = vpow.pop %v6157
    %v6159 = vadd.f32 %v6156, 1.0
    %v6160 = vadd.f32 %v6158, 1.0
    %v6161 = vrcp.pop %v6159
    %v6162 = vmul.f32 1.0, %v6161
    %v6163 = vrcp.pop %v6160
    %v6164 = vmul.f32 1.0, %v6163
    %v6165 = vmul.f32 %v6148, %v5197
    %v6166 = vmul.f32 %v6150, %v5198
    %v6167 = vmul.f32 %v6136, %v6151
    %v6168 = vmul.f32 %v6138, %v6152
    %v6169 = vadd.f32 %v6165, %v6167
    %v6170 = vadd.f32 %v6166, %v6168
    %v6171 = vtanh.pop %v6169
    %v6172 = vtanh.pop %v6170
    %v6173 = vmul.f32 %v6162, %v6171
    %v6174 = vmul.f32 %v6164, %v6172
    %v6175 = vxor.u32 %v5819, 2147483648
    %v6176 = vxor.u32 %v5820, 2147483648
    %v6177 = vmul.f32 %v6175, 1.442695
    %v6178 = vpow.pop %v6177
    %v6179 = vmul.f32 %v6176, 1.442695
    %v6180 = vpow.pop %v6179
    %v6181 = vadd.f32 %v6178, 1.0
    %v6182 = vadd.f32 %v6180, 1.0
    %v6183 = vrcp.pop %v6181
    %v6184 = vmul.f32 1.0, %v6183
    %v6185 = vrcp.pop %v6182
    %v6186 = vmul.f32 1.0, %v6185
    %v6187 = vxor.u32 %v5821, 2147483648
    %v6188 = vxor.u32 %v5822, 2147483648
    %v6189 = vmul.f32 %v6187, 1.442695
    %v6190 = vpow.pop %v6189
    %v6191 = vmul.f32 %v6188, 1.442695
    %v6192 = vpow.pop %v6191
    %v6193 = vadd.f32 %v6190, 1.0
    %v6194 = vadd.f32 %v6192, 1.0
    %v6195 = vrcp.pop %v6193
    %v6196 = vmul.f32 1.0, %v6195
    %v6197 = vrcp.pop %v6194
    %v6198 = vmul.f32 1.0, %v6197
    %v6199 = vtanh.pop %v5823
    %v6200 = vtanh.pop %v5824
    %v6201 = vxor.u32 %v5825, 2147483648
    %v6202 = vxor.u32 %v5826, 2147483648
    %v6203 = vmul.f32 %v6201, 1.442695
    %v6204 = vpow.pop %v6203
    %v6205 = vmul.f32 %v6202, 1.442695
    %v6206 = vpow.pop %v6205
    %v6207 = vadd.f32 %v6204, 1.0
    %v6208 = vadd.f32 %v6206, 1.0
    %v6209 = vrcp.pop %v6207
    %v6210 = vmul.f32 1.0, %v6209
    %v6211 = vrcp.pop %v6208
    %v6212 = vmul.f32 1.0, %v6211
    %v6213 = vmul.f32 %v6196, %v5245
    %v6214 = vmul.f32 %v6198, %v5246
    %v6215 = vmul.f32 %v6184, %v6199
    %v6216 = vmul.f32 %v6186, %v6200
    %v6217 = vadd.f32 %v6213, %v6215
    %v6218 = vadd.f32 %v6214, %v6216
    %v6219 = vtanh.pop %v6217
    %v6220 = vtanh.pop %v6218
    %v6221 = vmul.f32 %v6210, %v6219
    %v6222 = vmul.f32 %v6212, %v6220
    %6223 = vmatprep.subr.mxu0 %v1100
    %6224 = vmatpush1.msra.mxu0 %v1099
    %6225 = vmatprep.subr.mxu0 %v1108
    %6226 = vmatpush1.msra.mxu0 %v1107
    %6227 = vmatprep.subr.mxu0 %v1116
    %6228 = vmatpush1.msra.mxu0 %v1115
    %6229 = vmatprep.subr.mxu0 %v1124
    %6230 = vmatpush1.msra.mxu0 %v1123
    %6231 = vmatprep.subr.mxu0 %v1132
    %6232 = vmatpush1.msra.mxu0 %v1131
    %6233 = vmatprep.subr.mxu0 %v1140
    %6234 = vmatpush1.msra.mxu0 %v1139
    %6235 = vmatprep.subr.mxu0 %v1148
    %6236 = vmatpush1.msra.mxu0 %v1147
    %6237 = vmatprep.subr.mxu0 %v1156
    %6238 = vmatpush1.msra.mxu0 %v1155
    %6239 = vmatprep.subr.mxu0 %v1164
    %6240 = vmatpush1.msra.mxu0 %v1163
    %6241 = vmatprep.subr.mxu0 %v1172
    %6242 = vmatpush1.msra.mxu0 %v1171
    %6243 = vmatprep.subr.mxu0 %v1180
    %6244 = vmatpush1.msra.mxu0 %v1179
    %6245 = vmatprep.subr.mxu0 %v1188
    %6246 = vmatpush1.msra.mxu0 %v1187
    %6247 = vmatprep.subr.mxu0 %v1196
    %6248 = vmatpush1.msra.mxu0 %v1195
    %6249 = vmatprep.subr.mxu0 %v1204
    %6250 = vmatpush1.msra.mxu0 %v1203
    %6251 = vmatprep.subr.mxu0 %v1212
    %6252 = vmatpush1.msra.mxu0 %v1211
    %6253 = vmatprep.subr.mxu0 %v1220
    %6254 = vmatpush1.msra.mxu0 %v1219
    %6255 = vmatprep.subr.mxu0 %v1228
    %6256 = vmatpush1.msra.mxu0 %v1227
    %6257 = vmatprep.subr.mxu0 %v1236
    %6258 = vmatpush1.msra.mxu0 %v1235
    %6259 = vmatprep.subr.mxu0 %v1244
    %6260 = vmatpush1.msra.mxu0 %v1243
    %6261 = vmatprep.subr.mxu0 %v1252
    %6262 = vmatpush1.msra.mxu0 %v1251
    %6263 = vmatprep.subr.mxu0 %v1260
    %6264 = vmatpush1.msra.mxu0 %v1259
    %6265 = vmatprep.subr.mxu0 %v1268
    %6266 = vmatpush1.msra.mxu0 %v1267
    %6267 = vmatprep.subr.mxu0 %v1276
    %6268 = vmatpush1.msra.mxu0 %v1275
    %6269 = vmatprep.subr.mxu0 %v1284
    %6270 = vmatpush1.msra.mxu0 %v1283
    %6271 = vmatprep.subr.mxu0 %v1292
    %6272 = vmatpush1.msra.mxu0 %v1291
    %6273 = vmatprep.subr.mxu0 %v1300
    %6274 = vmatpush1.msra.mxu0 %v1299
    %6275 = vmatprep.subr.mxu0 %v1308
    %6276 = vmatpush1.msra.mxu0 %v1307
    %6277 = vmatprep.subr.mxu0 %v1316
    %6278 = vmatpush1.msra.mxu0 %v1315
    %6279 = vmatprep.subr.mxu0 %v1324
    %6280 = vmatpush1.msra.mxu0 %v1323
    %6281 = vmatprep.subr.mxu0 %v1332
    %6282 = vmatpush1.msra.mxu0 %v1331
    %6283 = vmatprep.subr.mxu0 %v1340
    %6284 = vmatpush1.msra.mxu0 %v1339
    %6285 = vmatprep.subr.mxu0 %v1348
    %6286 = vmatpush1.msra.mxu0 %v1347
    %6287 = vmatprep.mubr.f32.mxu0 %v6174
    %6288 = vmatmul.mubr.f32.gmra.mrb[0].mxu0 %v6173
    %v6289 = vpop.f32.mrb[0].mxu0
    %v6290 = vadd.f32 %v1360, %v6289
    %v6291 = vpop.f32.mrb[0].mxu0
    %v6292 = vadd.f32 %v1364, %v6291
    %6293 = vdwg.mxu0
    %6294 = vmatprep.subr.mxu0 %v1102
    %6295 = vmatpush1.msra.mxu0 %v1101
    %6296 = vmatprep.subr.mxu0 %v1110
    %6297 = vmatpush1.msra.mxu0 %v1109
    %6298 = vmatprep.subr.mxu0 %v1118
    %6299 = vmatpush1.msra.mxu0 %v1117
    %6300 = vmatprep.subr.mxu0 %v1126
    %6301 = vmatpush1.msra.mxu0 %v1125
    %6302 = vmatprep.subr.mxu0 %v1134
    %6303 = vmatpush1.msra.mxu0 %v1133
    %6304 = vmatprep.subr.mxu0 %v1142
    %6305 = vmatpush1.msra.mxu0 %v1141
    %6306 = vmatprep.subr.mxu0 %v1150
    %6307 = vmatpush1.msra.mxu0 %v1149
    %6308 = vmatprep.subr.mxu0 %v1158
    %6309 = vmatpush1.msra.mxu0 %v1157
    %6310 = vmatprep.subr.mxu0 %v1166
    %6311 = vmatpush1.msra.mxu0 %v1165
    %6312 = vmatprep.subr.mxu0 %v1174
    %6313 = vmatpush1.msra.mxu0 %v1173
    %6314 = vmatprep.subr.mxu0 %v1182
    %6315 = vmatpush1.msra.mxu0 %v1181
    %6316 = vmatprep.subr.mxu0 %v1190
    %6317 = vmatpush1.msra.mxu0 %v1189
    %6318 = vmatprep.subr.mxu0 %v1198
    %6319 = vmatpush1.msra.mxu0 %v1197
    %6320 = vmatprep.subr.mxu0 %v1206
    %6321 = vmatpush1.msra.mxu0 %v1205
    %6322 = vmatprep.subr.mxu0 %v1214
    %6323 = vmatpush1.msra.mxu0 %v1213
    %6324 = vmatprep.subr.mxu0 %v1222
    %6325 = vmatpush1.msra.mxu0 %v1221
    %6326 = vmatprep.subr.mxu0 %v1230
    %6327 = vmatpush1.msra.mxu0 %v1229
    %6328 = vmatprep.subr.mxu0 %v1238
    %6329 = vmatpush1.msra.mxu0 %v1237
    %6330 = vmatprep.subr.mxu0 %v1246
    %6331 = vmatpush1.msra.mxu0 %v1245
    %6332 = vmatprep.subr.mxu0 %v1254
    %6333 = vmatpush1.msra.mxu0 %v1253
    %6334 = vmatprep.subr.mxu0 %v1262
    %6335 = vmatpush1.msra.mxu0 %v1261
    %6336 = vmatprep.subr.mxu0 %v1270
    %6337 = vmatpush1.msra.mxu0 %v1269
    %6338 = vmatprep.subr.mxu0 %v1278
    %6339 = vmatpush1.msra.mxu0 %v1277
    %6340 = vmatprep.subr.mxu0 %v1286
    %6341 = vmatpush1.msra.mxu0 %v1285
    %6342 = vmatprep.subr.mxu0 %v1294
    %6343 = vmatpush1.msra.mxu0 %v1293
    %6344 = vmatprep.subr.mxu0 %v1302
    %6345 = vmatpush1.msra.mxu0 %v1301
    %6346 = vmatprep.subr.mxu0 %v1310
    %6347 = vmatpush1.msra.mxu0 %v1309
    %6348 = vmatprep.subr.mxu0 %v1318
    %6349 = vmatpush1.msra.mxu0 %v1317
    %6350 = vmatprep.subr.mxu0 %v1326
    %6351 = vmatpush1.msra.mxu0 %v1325
    %6352 = vmatprep.subr.mxu0 %v1334
    %6353 = vmatpush1.msra.mxu0 %v1333
    %6354 = vmatprep.subr.mxu0 %v1342
    %6355 = vmatpush1.msra.mxu0 %v1341
    %6356 = vmatprep.subr.mxu0 %v1350
    %6357 = vmatpush1.msra.mxu0 %v1349
    %6358 = vmatprep.mubr.f32.mxu0 %v6174
    %6359 = vmatmul.mubr.f32.gmra.mrb[0].mxu0 %v6173
    %v6360 = vpop.f32.mrb[0].mxu0
    %v6361 = vadd.f32 %v1368, %v6360
    %v6362 = vpop.f32.mrb[0].mxu0
    %v6363 = vadd.f32 %v1372, %v6362
    %6364 = vdwg.mxu0
    %6365 = vmatprep.subr.mxu0 %v1104
    %6366 = vmatpush1.msra.mxu0 %v1103
    %6367 = vmatprep.subr.mxu0 %v1112
    %6368 = vmatpush1.msra.mxu0 %v1111
    %6369 = vmatprep.subr.mxu0 %v1120
    %6370 = vmatpush1.msra.mxu0 %v1119
    %6371 = vmatprep.subr.mxu0 %v1128
    %6372 = vmatpush1.msra.mxu0 %v1127
    %6373 = vmatprep.subr.mxu0 %v1136
    %6374 = vmatpush1.msra.mxu0 %v1135
    %6375 = vmatprep.subr.mxu0 %v1144
    %6376 = vmatpush1.msra.mxu0 %v1143
    %6377 = vmatprep.subr.mxu0 %v1152
    %6378 = vmatpush1.msra.mxu0 %v1151
    %6379 = vmatprep.subr.mxu0 %v1160
    %6380 = vmatpush1.msra.mxu0 %v1159
    %6381 = vmatprep.subr.mxu0 %v1168
    %6382 = vmatpush1.msra.mxu0 %v1167
    %6383 = vmatprep.subr.mxu0 %v1176
    %6384 = vmatpush1.msra.mxu0 %v1175
    %6385 = vmatprep.subr.mxu0 %v1184
    %6386 = vmatpush1.msra.mxu0 %v1183
    %6387 = vmatprep.subr.mxu0 %v1192
    %6388 = vmatpush1.msra.mxu0 %v1191
    %6389 = vmatprep.subr.mxu0 %v1200
    %6390 = vmatpush1.msra.mxu0 %v1199
    %6391 = vmatprep.subr.mxu0 %v1208
    %6392 = vmatpush1.msra.mxu0 %v1207
    %6393 = vmatprep.subr.mxu0 %v1216
    %6394 = vmatpush1.msra.mxu0 %v1215
    %6395 = vmatprep.subr.mxu0 %v1224
    %6396 = vmatpush1.msra.mxu0 %v1223
    %6397 = vmatprep.subr.mxu0 %v1232
    %6398 = vmatpush1.msra.mxu0 %v1231
    %6399 = vmatprep.subr.mxu0 %v1240
    %6400 = vmatpush1.msra.mxu0 %v1239
    %6401 = vmatprep.subr.mxu0 %v1248
    %6402 = vmatpush1.msra.mxu0 %v1247
    %6403 = vmatprep.subr.mxu0 %v1256
    %6404 = vmatpush1.msra.mxu0 %v1255
    %6405 = vmatprep.subr.mxu0 %v1264
    %6406 = vmatpush1.msra.mxu0 %v1263
    %6407 = vmatprep.subr.mxu0 %v1272
    %6408 = vmatpush1.msra.mxu0 %v1271
    %6409 = vmatprep.subr.mxu0 %v1280
    %6410 = vmatpush1.msra.mxu0 %v1279
    %6411 = vmatprep.subr.mxu0 %v1288
    %6412 = vmatpush1.msra.mxu0 %v1287
    %6413 = vmatprep.subr.mxu0 %v1296
    %6414 = vmatpush1.msra.mxu0 %v1295
    %6415 = vmatprep.subr.mxu0 %v1304
    %6416 = vmatpush1.msra.mxu0 %v1303
    %6417 = vmatprep.subr.mxu0 %v1312
    %6418 = vmatpush1.msra.mxu0 %v1311
    %6419 = vmatprep.subr.mxu0 %v1320
    %6420 = vmatpush1.msra.mxu0 %v1319
    %6421 = vmatprep.subr.mxu0 %v1328
    %6422 = vmatpush1.msra.mxu0 %v1327
    %6423 = vmatprep.subr.mxu0 %v1336
    %6424 = vmatpush1.msra.mxu0 %v1335
    %6425 = vmatprep.subr.mxu0 %v1344
    %6426 = vmatpush1.msra.mxu0 %v1343
    %6427 = vmatprep.subr.mxu0 %v1352
    %6428 = vmatpush1.msra.mxu0 %v1351
    %6429 = vmatprep.mubr.f32.mxu0 %v6174
    %6430 = vmatmul.mubr.f32.gmra.mrb[0].mxu0 %v6173
    %v6431 = vpop.f32.mrb[0].mxu0
    %v6432 = vadd.f32 %v1376, %v6431
    %v6433 = vpop.f32.mrb[0].mxu0
    %v6434 = vadd.f32 %v1380, %v6433
    %6435 = vdwg.mxu0
    %6436 = vmatprep.subr.mxu0 %v1106
    %6437 = vmatpush1.msra.mxu0 %v1105
    %6438 = vmatprep.subr.mxu0 %v1114
    %6439 = vmatpush1.msra.mxu0 %v1113
    %6440 = vmatprep.subr.mxu0 %v1122
    %6441 = vmatpush1.msra.mxu0 %v1121
    %6442 = vmatprep.subr.mxu0 %v1130
    %6443 = vmatpush1.msra.mxu0 %v1129
    %6444 = vmatprep.subr.mxu0 %v1138
    %6445 = vmatpush1.msra.mxu0 %v1137
    %6446 = vmatprep.subr.mxu0 %v1146
    %6447 = vmatpush1.msra.mxu0 %v1145
    %6448 = vmatprep.subr.mxu0 %v1154
    %6449 = vmatpush1.msra.mxu0 %v1153
    %6450 = vmatprep.subr.mxu0 %v1162
    %6451 = vmatpush1.msra.mxu0 %v1161
    %6452 = vmatprep.subr.mxu0 %v1170
    %6453 = vmatpush1.msra.mxu0 %v1169
    %6454 = vmatprep.subr.mxu0 %v1178
    %6455 = vmatpush1.msra.mxu0 %v1177
    %6456 = vmatprep.subr.mxu0 %v1186
    %6457 = vmatpush1.msra.mxu0 %v1185
    %6458 = vmatprep.subr.mxu0 %v1194
    %6459 = vmatpush1.msra.mxu0 %v1193
    %6460 = vmatprep.subr.mxu0 %v1202
    %6461 = vmatpush1.msra.mxu0 %v1201
    %6462 = vmatprep.subr.mxu0 %v1210
    %6463 = vmatpush1.msra.mxu0 %v1209
    %6464 = vmatprep.subr.mxu0 %v1218
    %6465 = vmatpush1.msra.mxu0 %v1217
    %6466 = vmatprep.subr.mxu0 %v1226
    %6467 = vmatpush1.msra.mxu0 %v1225
    %6468 = vmatprep.subr.mxu0 %v1234
    %6469 = vmatpush1.msra.mxu0 %v1233
    %6470 = vmatprep.subr.mxu0 %v1242
    %6471 = vmatpush1.msra.mxu0 %v1241
    %6472 = vmatprep.subr.mxu0 %v1250
    %6473 = vmatpush1.msra.mxu0 %v1249
    %6474 = vmatprep.subr.mxu0 %v1258
    %6475 = vmatpush1.msra.mxu0 %v1257
    %6476 = vmatprep.subr.mxu0 %v1266
    %6477 = vmatpush1.msra.mxu0 %v1265
    %6478 = vmatprep.subr.mxu0 %v1274
    %6479 = vmatpush1.msra.mxu0 %v1273
    %6480 = vmatprep.subr.mxu0 %v1282
    %6481 = vmatpush1.msra.mxu0 %v1281
    %6482 = vmatprep.subr.mxu0 %v1290
    %6483 = vmatpush1.msra.mxu0 %v1289
    %6484 = vmatprep.subr.mxu0 %v1298
    %6485 = vmatpush1.msra.mxu0 %v1297
    %6486 = vmatprep.subr.mxu0 %v1306
    %6487 = vmatpush1.msra.mxu0 %v1305
    %6488 = vmatprep.subr.mxu0 %v1314
    %6489 = vmatpush1.msra.mxu0 %v1313
    %6490 = vmatprep.subr.mxu0 %v1322
    %6491 = vmatpush1.msra.mxu0 %v1321
    %6492 = vmatprep.subr.mxu0 %v1330
    %6493 = vmatpush1.msra.mxu0 %v1329
    %6494 = vmatprep.subr.mxu0 %v1338
    %6495 = vmatpush1.msra.mxu0 %v1337
    %6496 = vmatprep.subr.mxu0 %v1346
    %6497 = vmatpush1.msra.mxu0 %v1345
    %6498 = vmatprep.subr.mxu0 %v1354
    %6499 = vmatpush1.msra.mxu0 %v1353
    %6500 = vmatprep.mubr.f32.mxu0 %v6174
    %6501 = vmatmul.mubr.f32.gmra.mrb[0].mxu0 %v6173
    %v6502 = vpop.f32.mrb[0].mxu0
    %v6503 = vadd.f32 %v1384, %v6502
    %v6504 = vpop.f32.mrb[0].mxu0
    %v6505 = vadd.f32 %v1388, %v6504
    %6506 = vdwg.mxu0
    %6507 = vmatprep.subr.mxu0 %v2080
    %6508 = vmatpush1.msra.mxu0 %v2079
    %6509 = vmatprep.subr.mxu0 %v2088
    %6510 = vmatpush1.msra.mxu0 %v2087
    %6511 = vmatprep.subr.mxu0 %v2096
    %6512 = vmatpush1.msra.mxu0 %v2095
    %6513 = vmatprep.subr.mxu0 %v2104
    %6514 = vmatpush1.msra.mxu0 %v2103
    %6515 = vmatprep.subr.mxu0 %v2112
    %6516 = vmatpush1.msra.mxu0 %v2111
    %6517 = vmatprep.subr.mxu0 %v2120
    %6518 = vmatpush1.msra.mxu0 %v2119
    %6519 = vmatprep.subr.mxu0 %v2128
    %6520 = vmatpush1.msra.mxu0 %v2127
    %6521 = vmatprep.subr.mxu0 %v2136
    %6522 = vmatpush1.msra.mxu0 %v2135
    %6523 = vmatprep.subr.mxu0 %v2144
    %6524 = vmatpush1.msra.mxu0 %v2143
    %6525 = vmatprep.subr.mxu0 %v2152
    %6526 = vmatpush1.msra.mxu0 %v2151
    %6527 = vmatprep.subr.mxu0 %v2160
    %6528 = vmatpush1.msra.mxu0 %v2159
    %6529 = vmatprep.subr.mxu0 %v2168
    %6530 = vmatpush1.msra.mxu0 %v2167
    %6531 = vmatprep.subr.mxu0 %v2176
    %6532 = vmatpush1.msra.mxu0 %v2175
    %6533 = vmatprep.subr.mxu0 %v2184
    %6534 = vmatpush1.msra.mxu0 %v2183
    %6535 = vmatprep.subr.mxu0 %v2192
    %6536 = vmatpush1.msra.mxu0 %v2191
    %6537 = vmatprep.subr.mxu0 %v2200
    %6538 = vmatpush1.msra.mxu0 %v2199
    %6539 = vmatprep.subr.mxu0 %v2208
    %6540 = vmatpush1.msra.mxu0 %v2207
    %6541 = vmatprep.subr.mxu0 %v2216
    %6542 = vmatpush1.msra.mxu0 %v2215
    %6543 = vmatprep.subr.mxu0 %v2224
    %6544 = vmatpush1.msra.mxu0 %v2223
    %6545 = vmatprep.subr.mxu0 %v2232
    %6546 = vmatpush1.msra.mxu0 %v2231
    %6547 = vmatprep.subr.mxu0 %v2240
    %6548 = vmatpush1.msra.mxu0 %v2239
    %6549 = vmatprep.subr.mxu0 %v2248
    %6550 = vmatpush1.msra.mxu0 %v2247
    %6551 = vmatprep.subr.mxu0 %v2256
    %6552 = vmatpush1.msra.mxu0 %v2255
    %6553 = vmatprep.subr.mxu0 %v2264
    %6554 = vmatpush1.msra.mxu0 %v2263
    %6555 = vmatprep.subr.mxu0 %v2272
    %6556 = vmatpush1.msra.mxu0 %v2271
    %6557 = vmatprep.subr.mxu0 %v2280
    %6558 = vmatpush1.msra.mxu0 %v2279
    %6559 = vmatprep.subr.mxu0 %v2288
    %6560 = vmatpush1.msra.mxu0 %v2287
    %6561 = vmatprep.subr.mxu0 %v2296
    %6562 = vmatpush1.msra.mxu0 %v2295
    %6563 = vmatprep.subr.mxu0 %v2304
    %6564 = vmatpush1.msra.mxu0 %v2303
    %6565 = vmatprep.subr.mxu0 %v2312
    %6566 = vmatpush1.msra.mxu0 %v2311
    %6567 = vmatprep.subr.mxu0 %v2320
    %6568 = vmatpush1.msra.mxu0 %v2319
    %6569 = vmatprep.subr.mxu0 %v2328
    %6570 = vmatpush1.msra.mxu0 %v2327
    %6571 = vmatprep.mubr.f32.mxu0 %v6222
    %6572 = vmatmul.mubr.f32.gmra.mrb[0].mxu0 %v6221
    %v6573 = vpop.f32.mrb[0].mxu0
    %v6574 = vadd.f32 0.0, %v6573
    %v6575 = vpop.f32.mrb[0].mxu0
    %v6576 = vadd.f32 0.0, %v6575
    %6577 = vdwg.mxu0
    %6578 = vmatprep.subr.mxu0 %v2082
    %6579 = vmatpush1.msra.mxu0 %v2081
    %6580 = vmatprep.subr.mxu0 %v2090
    %6581 = vmatpush1.msra.mxu0 %v2089
    %6582 = vmatprep.subr.mxu0 %v2098
    %6583 = vmatpush1.msra.mxu0 %v2097
    %6584 = vmatprep.subr.mxu0 %v2106
    %6585 = vmatpush1.msra.mxu0 %v2105
    %6586 = vmatprep.subr.mxu0 %v2114
    %6587 = vmatpush1.msra.mxu0 %v2113
    %6588 = vmatprep.subr.mxu0 %v2122
    %6589 = vmatpush1.msra.mxu0 %v2121
    %6590 = vmatprep.subr.mxu0 %v2130
    %6591 = vmatpush1.msra.mxu0 %v2129
    %6592 = vmatprep.subr.mxu0 %v2138
    %6593 = vmatpush1.msra.mxu0 %v2137
    %6594 = vmatprep.subr.mxu0 %v2146
    %6595 = vmatpush1.msra.mxu0 %v2145
    %6596 = vmatprep.subr.mxu0 %v2154
    %6597 = vmatpush1.msra.mxu0 %v2153
    %6598 = vmatprep.subr.mxu0 %v2162
    %6599 = vmatpush1.msra.mxu0 %v2161
    %6600 = vmatprep.subr.mxu0 %v2170
    %6601 = vmatpush1.msra.mxu0 %v2169
    %6602 = vmatprep.subr.mxu0 %v2178
    %6603 = vmatpush1.msra.mxu0 %v2177
    %6604 = vmatprep.subr.mxu0 %v2186
    %6605 = vmatpush1.msra.mxu0 %v2185
    %6606 = vmatprep.subr.mxu0 %v2194
    %6607 = vmatpush1.msra.mxu0 %v2193
    %6608 = vmatprep.subr.mxu0 %v2202
    %6609 = vmatpush1.msra.mxu0 %v2201
    %6610 = vmatprep.subr.mxu0 %v2210
    %6611 = vmatpush1.msra.mxu0 %v2209
    %6612 = vmatprep.subr.mxu0 %v2218
    %6613 = vmatpush1.msra.mxu0 %v2217
    %6614 = vmatprep.subr.mxu0 %v2226
    %6615 = vmatpush1.msra.mxu0 %v2225
    %6616 = vmatprep.subr.mxu0 %v2234
    %6617 = vmatpush1.msra.mxu0 %v2233
    %6618 = vmatprep.subr.mxu0 %v2242
    %6619 = vmatpush1.msra.mxu0 %v2241
    %6620 = vmatprep.subr.mxu0 %v2250
    %6621 = vmatpush1.msra.mxu0 %v2249
    %6622 = vmatprep.subr.mxu0 %v2258
    %6623 = vmatpush1.msra.mxu0 %v2257
    %6624 = vmatprep.subr.mxu0 %v2266
    %6625 = vmatpush1.msra.mxu0 %v2265
    %6626 = vmatprep.subr.mxu0 %v2274
    %6627 = vmatpush1.msra.mxu0 %v2273
    %6628 = vmatprep.subr.mxu0 %v2282
    %6629 = vmatpush1.msra.mxu0 %v2281
    %6630 = vmatprep.subr.mxu0 %v2290
    %6631 = vmatpush1.msra.mxu0 %v2289
    %6632 = vmatprep.subr.mxu0 %v2298
    %6633 = vmatpush1.msra.mxu0 %v2297
    %6634 = vmatprep.subr.mxu0 %v2306
    %6635 = vmatpush1.msra.mxu0 %v2305
    %6636 = vmatprep.subr.mxu0 %v2314
    %6637 = vmatpush1.msra.mxu0 %v2313
    %6638 = vmatprep.subr.mxu0 %v2322
    %6639 = vmatpush1.msra.mxu0 %v2321
    %6640 = vmatprep.subr.mxu0 %v2330
    %6641 = vmatpush1.msra.mxu0 %v2329
    %6642 = vmatprep.mubr.f32.mxu0 %v6222
    %6643 = vmatmul.mubr.f32.gmra.mrb[0].mxu0 %v6221
    %v6644 = vpop.f32.mrb[0].mxu0
    %v6645 = vadd.f32 0.0, %v6644
    %v6646 = vpop.f32.mrb[0].mxu0
    %v6647 = vadd.f32 0.0, %v6646
    %6648 = vdwg.mxu0
    %6649 = vmatprep.subr.mxu0 %v2084
    %6650 = vmatpush1.msra.mxu0 %v2083
    %6651 = vmatprep.subr.mxu0 %v2092
    %6652 = vmatpush1.msra.mxu0 %v2091
    %6653 = vmatprep.subr.mxu0 %v2100
    %6654 = vmatpush1.msra.mxu0 %v2099
    %6655 = vmatprep.subr.mxu0 %v2108
    %6656 = vmatpush1.msra.mxu0 %v2107
    %6657 = vmatprep.subr.mxu0 %v2116
    %6658 = vmatpush1.msra.mxu0 %v2115
    %6659 = vmatprep.subr.mxu0 %v2124
    %6660 = vmatpush1.msra.mxu0 %v2123
    %6661 = vmatprep.subr.mxu0 %v2132
    %6662 = vmatpush1.msra.mxu0 %v2131
    %6663 = vmatprep.subr.mxu0 %v2140
    %6664 = vmatpush1.msra.mxu0 %v2139
    %6665 = vmatprep.subr.mxu0 %v2148
    %6666 = vmatpush1.msra.mxu0 %v2147
    %6667 = vmatprep.subr.mxu0 %v2156
    %6668 = vmatpush1.msra.mxu0 %v2155
    %6669 = vmatprep.subr.mxu0 %v2164
    %6670 = vmatpush1.msra.mxu0 %v2163
    %6671 = vmatprep.subr.mxu0 %v2172
    %6672 = vmatpush1.msra.mxu0 %v2171
    %6673 = vmatprep.subr.mxu0 %v2180
    %6674 = vmatpush1.msra.mxu0 %v2179
    %6675 = vmatprep.subr.mxu0 %v2188
    %6676 = vmatpush1.msra.mxu0 %v2187
    %6677 = vmatprep.subr.mxu0 %v2196
    %6678 = vmatpush1.msra.mxu0 %v2195
    %6679 = vmatprep.subr.mxu0 %v2204
    %6680 = vmatpush1.msra.mxu0 %v2203
    %6681 = vmatprep.subr.mxu0 %v2212
    %6682 = vmatpush1.msra.mxu0 %v2211
    %6683 = vmatprep.subr.mxu0 %v2220
    %6684 = vmatpush1.msra.mxu0 %v2219
    %6685 = vmatprep.subr.mxu0 %v2228
    %6686 = vmatpush1.msra.mxu0 %v2227
    %6687 = vmatprep.subr.mxu0 %v2236
    %6688 = vmatpush1.msra.mxu0 %v2235
    %6689 = vmatprep.subr.mxu0 %v2244
    %6690 = vmatpush1.msra.mxu0 %v2243
    %6691 = vmatprep.subr.mxu0 %v2252
    %6692 = vmatpush1.msra.mxu0 %v2251
    %6693 = vmatprep.subr.mxu0 %v2260
    %6694 = vmatpush1.msra.mxu0 %v2259
    %6695 = vmatprep.subr.mxu0 %v2268
    %6696 = vmatpush1.msra.mxu0 %v2267
    %6697 = vmatprep.subr.mxu0 %v2276
    %6698 = vmatpush1.msra.mxu0 %v2275
    %6699 = vmatprep.subr.mxu0 %v2284
    %6700 = vmatpush1.msra.mxu0 %v2283
    %6701 = vmatprep.subr.mxu0 %v2292
    %6702 = vmatpush1.msra.mxu0 %v2291
    %6703 = vmatprep.subr.mxu0 %v2300
    %6704 = vmatpush1.msra.mxu0 %v2299
    %6705 = vmatprep.subr.mxu0 %v2308
    %6706 = vmatpush1.msra.mxu0 %v2307
    %6707 = vmatprep.subr.mxu0 %v2316
    %6708 = vmatpush1.msra.mxu0 %v2315
    %6709 = vmatprep.subr.mxu0 %v2324
    %6710 = vmatpush1.msra.mxu0 %v2323
    %6711 = vmatprep.subr.mxu0 %v2332
    %6712 = vmatpush1.msra.mxu0 %v2331
    %6713 = vmatprep.mubr.f32.mxu0 %v6222
    %6714 = vmatmul.mubr.f32.gmra.mrb[0].mxu0 %v6221
    %v6715 = vpop.f32.mrb[0].mxu0
    %v6716 = vadd.f32 0.0, %v6715
    %v6717 = vpop.f32.mrb[0].mxu0
    %v6718 = vadd.f32 0.0, %v6717
    %6719 = vdwg.mxu0
    %6720 = vmatprep.subr.mxu0 %v2086
    %6721 = vmatpush1.msra.mxu0 %v2085
    %6722 = vmatprep.subr.mxu0 %v2094
    %6723 = vmatpush1.msra.mxu0 %v2093
    %6724 = vmatprep.subr.mxu0 %v2102
    %6725 = vmatpush1.msra.mxu0 %v2101
    %6726 = vmatprep.subr.mxu0 %v2110
    %6727 = vmatpush1.msra.mxu0 %v2109
    %6728 = vmatprep.subr.mxu0 %v2118
    %6729 = vmatpush1.msra.mxu0 %v2117
    %6730 = vmatprep.subr.mxu0 %v2126
    %6731 = vmatpush1.msra.mxu0 %v2125
    %6732 = vmatprep.subr.mxu0 %v2134
    %6733 = vmatpush1.msra.mxu0 %v2133
    %6734 = vmatprep.subr.mxu0 %v2142
    %6735 = vmatpush1.msra.mxu0 %v2141
    %6736 = vmatprep.subr.mxu0 %v2150
    %6737 = vmatpush1.msra.mxu0 %v2149
    %6738 = vmatprep.subr.mxu0 %v2158
    %6739 = vmatpush1.msra.mxu0 %v2157
    %6740 = vmatprep.subr.mxu0 %v2166
    %6741 = vmatpush1.msra.mxu0 %v2165
    %6742 = vmatprep.subr.mxu0 %v2174
    %6743 = vmatpush1.msra.mxu0 %v2173
    %6744 = vmatprep.subr.mxu0 %v2182
    %6745 = vmatpush1.msra.mxu0 %v2181
    %6746 = vmatprep.subr.mxu0 %v2190
    %6747 = vmatpush1.msra.mxu0 %v2189
    %6748 = vmatprep.subr.mxu0 %v2198
    %6749 = vmatpush1.msra.mxu0 %v2197
    %6750 = vmatprep.subr.mxu0 %v2206
    %6751 = vmatpush1.msra.mxu0 %v2205
    %6752 = vmatprep.subr.mxu0 %v2214
    %6753 = vmatpush1.msra.mxu0 %v2213
    %6754 = vmatprep.subr.mxu0 %v2222
    %6755 = vmatpush1.msra.mxu0 %v2221
    %6756 = vmatprep.subr.mxu0 %v2230
    %6757 = vmatpush1.msra.mxu0 %v2229
    %6758 = vmatprep.subr.mxu0 %v2238
    %6759 = vmatpush1.msra.mxu0 %v2237
    %6760 = vmatprep.subr.mxu0 %v2246
    %6761 = vmatpush1.msra.mxu0 %v2245
    %6762 = vmatprep.subr.mxu0 %v2254
    %6763 = vmatpush1.msra.mxu0 %v2253
    %6764 = vmatprep.subr.mxu0 %v2262
    %6765 = vmatpush1.msra.mxu0 %v2261
    %6766 = vmatprep.subr.mxu0 %v2270
    %6767 = vmatpush1.msra.mxu0 %v2269
    %6768 = vmatprep.subr.mxu0 %v2278
    %6769 = vmatpush1.msra.mxu0 %v2277
    %6770 = vmatprep.subr.mxu0 %v2286
    %6771 = vmatpush1.msra.mxu0 %v2285
    %6772 = vmatprep.subr.mxu0 %v2294
    %6773 = vmatpush1.msra.mxu0 %v2293
    %6774 = vmatprep.subr.mxu0 %v2302
    %6775 = vmatpush1.msra.mxu0 %v2301
    %6776 = vmatprep.subr.mxu0 %v2310
    %6777 = vmatpush1.msra.mxu0 %v2309
    %6778 = vmatprep.subr.mxu0 %v2318
    %6779 = vmatpush1.msra.mxu0 %v2317
    %6780 = vmatprep.subr.mxu0 %v2326
    %6781 = vmatpush1.msra.mxu0 %v2325
    %6782 = vmatprep.subr.mxu0 %v2334
    %6783 = vmatpush1.msra.mxu0 %v2333
    %6784 = vmatprep.mubr.f32.mxu0 %v6222
    %6785 = vmatmul.mubr.f32.gmra.mrb[0].mxu0 %v6221
    %v6786 = vpop.f32.mrb[0].mxu0
    %v6787 = vadd.f32 0.0, %v6786
    %v6788 = vpop.f32.mrb[0].mxu0
    %v6789 = vadd.f32 0.0, %v6788
    %6790 = vdwg.mxu0
    %v6791 = vadd.f32 %v6290, %v6574
    %v6792 = vadd.f32 %v6292, %v6576
    %v6793 = vadd.f32 %v6361, %v6645
    %v6794 = vadd.f32 %v6363, %v6647
    %v6795 = vadd.f32 %v6432, %v6716
    %v6796 = vadd.f32 %v6434, %v6718
    %v6797 = vadd.f32 %v6503, %v6787
    %v6798 = vadd.f32 %v6505, %v6789
    %v6799 = vld [vmem:[#allocation2 + $0x180] sm:$0xff]
    %v6800 = vld [vmem:[#allocation2 + $0x188] sm:$0xff]
    %v6801 = vld [vmem:[#allocation2 + $0x190] sm:$0xff]
    %v6802 = vld [vmem:[#allocation2 + $0x198] sm:$0xff]
    %v6803 = vld [vmem:[#allocation2 + $0x1a0] sm:$0xff]
    %v6804 = vld [vmem:[#allocation2 + $0x1a8] sm:$0xff]
    %v6805 = vld [vmem:[#allocation2 + $0x1b0] sm:$0xff]
    %v6806 = vld [vmem:[#allocation2 + $0x1b8] sm:$0xff]
    %6807 = vmatprep.subr.mxu0 %v784
    %6808 = vmatpush1.msra.mxu0 %v783
    %6809 = vmatprep.subr.mxu0 %v792
    %6810 = vmatpush1.msra.mxu0 %v791
    %6811 = vmatprep.subr.mxu0 %v800
    %6812 = vmatpush1.msra.mxu0 %v799
    %6813 = vmatprep.subr.mxu0 %v808
    %6814 = vmatpush1.msra.mxu0 %v807
    %6815 = vmatprep.subr.mxu0 %v816
    %6816 = vmatpush1.msra.mxu0 %v815
    %6817 = vmatprep.subr.mxu0 %v824
    %6818 = vmatpush1.msra.mxu0 %v823
    %6819 = vmatprep.subr.mxu0 %v832
    %6820 = vmatpush1.msra.mxu0 %v831
    %6821 = vmatprep.subr.mxu0 %v840
    %6822 = vmatpush1.msra.mxu0 %v839
    %6823 = vmatprep.subr.mxu0 %v848
    %6824 = vmatpush1.msra.mxu0 %v847
    %6825 = vmatprep.subr.mxu0 %v856
    %6826 = vmatpush1.msra.mxu0 %v855
    %6827 = vmatprep.subr.mxu0 %v864
    %6828 = vmatpush1.msra.mxu0 %v863
    %6829 = vmatprep.subr.mxu0 %v872
    %6830 = vmatpush1.msra.mxu0 %v871
    %6831 = vmatprep.subr.mxu0 %v880
    %6832 = vmatpush1.msra.mxu0 %v879
    %6833 = vmatprep.subr.mxu0 %v888
    %6834 = vmatpush1.msra.mxu0 %v887
    %6835 = vmatprep.subr.mxu0 %v896
    %6836 = vmatpush1.msra.mxu0 %v895
    %6837 = vmatprep.subr.mxu0 %v904
    %6838 = vmatpush1.msra.mxu0 %v903
    %6839 = vmatprep.subr.mxu0 %v912
    %6840 = vmatpush1.msra.mxu0 %v911
    %6841 = vmatprep.subr.mxu0 %v920
    %6842 = vmatpush1.msra.mxu0 %v919
    %6843 = vmatprep.subr.mxu0 %v928
    %6844 = vmatpush1.msra.mxu0 %v927
    %6845 = vmatprep.subr.mxu0 %v936
    %6846 = vmatpush1.msra.mxu0 %v935
    %6847 = vmatprep.subr.mxu0 %v944
    %6848 = vmatpush1.msra.mxu0 %v943
    %6849 = vmatprep.subr.mxu0 %v952
    %6850 = vmatpush1.msra.mxu0 %v951
    %6851 = vmatprep.subr.mxu0 %v960
    %6852 = vmatpush1.msra.mxu0 %v959
    %6853 = vmatprep.subr.mxu0 %v968
    %6854 = vmatpush1.msra.mxu0 %v967
    %6855 = vmatprep.subr.mxu0 %v976
    %6856 = vmatpush1.msra.mxu0 %v975
    %6857 = vmatprep.subr.mxu0 %v984
    %6858 = vmatpush1.msra.mxu0 %v983
    %6859 = vmatprep.subr.mxu0 %v992
    %6860 = vmatpush1.msra.mxu0 %v991
    %6861 = vmatprep.subr.mxu0 %v1000
    %6862 = vmatpush1.msra.mxu0 %v999
    %6863 = vmatprep.subr.mxu0 %v1008
    %6864 = vmatpush1.msra.mxu0 %v1007
    %6865 = vmatprep.subr.mxu0 %v1016
    %6866 = vmatpush1.msra.mxu0 %v1015
    %6867 = vmatprep.subr.mxu0 %v1024
    %6868 = vmatpush1.msra.mxu0 %v1023
    %6869 = vmatprep.subr.mxu0 %v1032
    %6870 = vmatpush1.msra.mxu0 %v1031
    %6871 = vmatprep.mubr.f32.mxu0 %v6174
    %6872 = vmatmul.mubr.f32.gmra.mrb[0].mxu0 %v6173
    %v6873 = vpop.f32.mrb[0].mxu0
    %v6874 = vadd.f32 0.0, %v6873
    %v6875 = vpop.f32.mrb[0].mxu0
    %v6876 = vadd.f32 0.0, %v6875
    %6877 = vdwg.mxu0
    %6878 = vmatprep.subr.mxu0 %v786
    %6879 = vmatpush1.msra.mxu0 %v785
    %6880 = vmatprep.subr.mxu0 %v794
    %6881 = vmatpush1.msra.mxu0 %v793
    %6882 = vmatprep.subr.mxu0 %v802
    %6883 = vmatpush1.msra.mxu0 %v801
    %6884 = vmatprep.subr.mxu0 %v810
    %6885 = vmatpush1.msra.mxu0 %v809
    %6886 = vmatprep.subr.mxu0 %v818
    %6887 = vmatpush1.msra.mxu0 %v817
    %6888 = vmatprep.subr.mxu0 %v826
    %6889 = vmatpush1.msra.mxu0 %v825
    %6890 = vmatprep.subr.mxu0 %v834
    %6891 = vmatpush1.msra.mxu0 %v833
    %6892 = vmatprep.subr.mxu0 %v842
    %6893 = vmatpush1.msra.mxu0 %v841
    %6894 = vmatprep.subr.mxu0 %v850
    %6895 = vmatpush1.msra.mxu0 %v849
    %6896 = vmatprep.subr.mxu0 %v858
    %6897 = vmatpush1.msra.mxu0 %v857
    %6898 = vmatprep.subr.mxu0 %v866
    %6899 = vmatpush1.msra.mxu0 %v865
    %6900 = vmatprep.subr.mxu0 %v874
    %6901 = vmatpush1.msra.mxu0 %v873
    %6902 = vmatprep.subr.mxu0 %v882
    %6903 = vmatpush1.msra.mxu0 %v881
    %6904 = vmatprep.subr.mxu0 %v890
    %6905 = vmatpush1.msra.mxu0 %v889
    %6906 = vmatprep.subr.mxu0 %v898
    %6907 = vmatpush1.msra.mxu0 %v897
    %6908 = vmatprep.subr.mxu0 %v906
    %6909 = vmatpush1.msra.mxu0 %v905
    %6910 = vmatprep.subr.mxu0 %v914
    %6911 = vmatpush1.msra.mxu0 %v913
    %6912 = vmatprep.subr.mxu0 %v922
    %6913 = vmatpush1.msra.mxu0 %v921
    %6914 = vmatprep.subr.mxu0 %v930
    %6915 = vmatpush1.msra.mxu0 %v929
    %6916 = vmatprep.subr.mxu0 %v938
    %6917 = vmatpush1.msra.mxu0 %v937
    %6918 = vmatprep.subr.mxu0 %v946
    %6919 = vmatpush1.msra.mxu0 %v945
    %6920 = vmatprep.subr.mxu0 %v954
    %6921 = vmatpush1.msra.mxu0 %v953
    %6922 = vmatprep.subr.mxu0 %v962
    %6923 = vmatpush1.msra.mxu0 %v961
    %6924 = vmatprep.subr.mxu0 %v970
    %6925 = vmatpush1.msra.mxu0 %v969
    %6926 = vmatprep.subr.mxu0 %v978
    %6927 = vmatpush1.msra.mxu0 %v977
    %6928 = vmatprep.subr.mxu0 %v986
    %6929 = vmatpush1.msra.mxu0 %v985
    %6930 = vmatprep.subr.mxu0 %v994
    %6931 = vmatpush1.msra.mxu0 %v993
    %6932 = vmatprep.subr.mxu0 %v1002
    %6933 = vmatpush1.msra.mxu0 %v1001
    %6934 = vmatprep.subr.mxu0 %v1010
    %6935 = vmatpush1.msra.mxu0 %v1009
    %6936 = vmatprep.subr.mxu0 %v1018
    %6937 = vmatpush1.msra.mxu0 %v1017
    %6938 = vmatprep.subr.mxu0 %v1026
    %6939 = vmatpush1.msra.mxu0 %v1025
    %6940 = vmatprep.subr.mxu0 %v1034
    %6941 = vmatpush1.msra.mxu0 %v1033
    %6942 = vmatprep.mubr.f32.mxu0 %v6174
    %6943 = vmatmul.mubr.f32.gmra.mrb[0].mxu0 %v6173
    %v6944 = vpop.f32.mrb[0].mxu0
    %v6945 = vadd.f32 0.0, %v6944
    %v6946 = vpop.f32.mrb[0].mxu0
    %v6947 = vadd.f32 0.0, %v6946
    %6948 = vdwg.mxu0
    %6949 = vmatprep.subr.mxu0 %v788
    %6950 = vmatpush1.msra.mxu0 %v787
    %6951 = vmatprep.subr.mxu0 %v796
    %6952 = vmatpush1.msra.mxu0 %v795
    %6953 = vmatprep.subr.mxu0 %v804
    %6954 = vmatpush1.msra.mxu0 %v803
    %6955 = vmatprep.subr.mxu0 %v812
    %6956 = vmatpush1.msra.mxu0 %v811
    %6957 = vmatprep.subr.mxu0 %v820
    %6958 = vmatpush1.msra.mxu0 %v819
    %6959 = vmatprep.subr.mxu0 %v828
    %6960 = vmatpush1.msra.mxu0 %v827
    %6961 = vmatprep.subr.mxu0 %v836
    %6962 = vmatpush1.msra.mxu0 %v835
    %6963 = vmatprep.subr.mxu0 %v844
    %6964 = vmatpush1.msra.mxu0 %v843
    %6965 = vmatprep.subr.mxu0 %v852
    %6966 = vmatpush1.msra.mxu0 %v851
    %6967 = vmatprep.subr.mxu0 %v860
    %6968 = vmatpush1.msra.mxu0 %v859
    %6969 = vmatprep.subr.mxu0 %v868
    %6970 = vmatpush1.msra.mxu0 %v867
    %6971 = vmatprep.subr.mxu0 %v876
    %6972 = vmatpush1.msra.mxu0 %v875
    %6973 = vmatprep.subr.mxu0 %v884
    %6974 = vmatpush1.msra.mxu0 %v883
    %6975 = vmatprep.subr.mxu0 %v892
    %6976 = vmatpush1.msra.mxu0 %v891
    %6977 = vmatprep.subr.mxu0 %v900
    %6978 = vmatpush1.msra.mxu0 %v899
    %6979 = vmatprep.subr.mxu0 %v908
    %6980 = vmatpush1.msra.mxu0 %v907
    %6981 = vmatprep.subr.mxu0 %v916
    %6982 = vmatpush1.msra.mxu0 %v915
    %6983 = vmatprep.subr.mxu0 %v924
    %6984 = vmatpush1.msra.mxu0 %v923
    %6985 = vmatprep.subr.mxu0 %v932
    %6986 = vmatpush1.msra.mxu0 %v931
    %6987 = vmatprep.subr.mxu0 %v940
    %6988 = vmatpush1.msra.mxu0 %v939
    %6989 = vmatprep.subr.mxu0 %v948
    %6990 = vmatpush1.msra.mxu0 %v947
    %6991 = vmatprep.subr.mxu0 %v956
    %6992 = vmatpush1.msra.mxu0 %v955
    %6993 = vmatprep.subr.mxu0 %v964
    %6994 = vmatpush1.msra.mxu0 %v963
    %6995 = vmatprep.subr.mxu0 %v972
    %6996 = vmatpush1.msra.mxu0 %v971
    %6997 = vmatprep.subr.mxu0 %v980
    %6998 = vmatpush1.msra.mxu0 %v979
    %6999 = vmatprep.subr.mxu0 %v988
    %7000 = vmatpush1.msra.mxu0 %v987
    %7001 = vmatprep.subr.mxu0 %v996
    %7002 = vmatpush1.msra.mxu0 %v995
    %7003 = vmatprep.subr.mxu0 %v1004
    %7004 = vmatpush1.msra.mxu0 %v1003
    %7005 = vmatprep.subr.mxu0 %v1012
    %7006 = vmatpush1.msra.mxu0 %v1011
    %7007 = vmatprep.subr.mxu0 %v1020
    %7008 = vmatpush1.msra.mxu0 %v1019
    %7009 = vmatprep.subr.mxu0 %v1028
    %7010 = vmatpush1.msra.mxu0 %v1027
    %7011 = vmatprep.subr.mxu0 %v1036
    %7012 = vmatpush1.msra.mxu0 %v1035
    %7013 = vmatprep.mubr.f32.mxu0 %v6174
    %7014 = vmatmul.mubr.f32.gmra.mrb[0].mxu0 %v6173
    %v7015 = vpop.f32.mrb[0].mxu0
    %v7016 = vadd.f32 0.0, %v7015
    %v7017 = vpop.f32.mrb[0].mxu0
    %v7018 = vadd.f32 0.0, %v7017
    %7019 = vdwg.mxu0
    %7020 = vmatprep.subr.mxu0 %v790
    %7021 = vmatpush1.msra.mxu0 %v789
    %7022 = vmatprep.subr.mxu0 %v798
    %7023 = vmatpush1.msra.mxu0 %v797
    %7024 = vmatprep.subr.mxu0 %v806
    %7025 = vmatpush1.msra.mxu0 %v805
    %7026 = vmatprep.subr.mxu0 %v814
    %7027 = vmatpush1.msra.mxu0 %v813
    %7028 = vmatprep.subr.mxu0 %v822
    %7029 = vmatpush1.msra.mxu0 %v821
    %7030 = vmatprep.subr.mxu0 %v830
    %7031 = vmatpush1.msra.mxu0 %v829
    %7032 = vmatprep.subr.mxu0 %v838
    %7033 = vmatpush1.msra.mxu0 %v837
    %7034 = vmatprep.subr.mxu0 %v846
    %7035 = vmatpush1.msra.mxu0 %v845
    %7036 = vmatprep.subr.mxu0 %v854
    %7037 = vmatpush1.msra.mxu0 %v853
    %7038 = vmatprep.subr.mxu0 %v862
    %7039 = vmatpush1.msra.mxu0 %v861
    %7040 = vmatprep.subr.mxu0 %v870
    %7041 = vmatpush1.msra.mxu0 %v869
    %7042 = vmatprep.subr.mxu0 %v878
    %7043 = vmatpush1.msra.mxu0 %v877
    %7044 = vmatprep.subr.mxu0 %v886
    %7045 = vmatpush1.msra.mxu0 %v885
    %7046 = vmatprep.subr.mxu0 %v894
    %7047 = vmatpush1.msra.mxu0 %v893
    %7048 = vmatprep.subr.mxu0 %v902
    %7049 = vmatpush1.msra.mxu0 %v901
    %7050 = vmatprep.subr.mxu0 %v910
    %7051 = vmatpush1.msra.mxu0 %v909
    %7052 = vmatprep.subr.mxu0 %v918
    %7053 = vmatpush1.msra.mxu0 %v917
    %7054 = vmatprep.subr.mxu0 %v926
    %7055 = vmatpush1.msra.mxu0 %v925
    %7056 = vmatprep.subr.mxu0 %v934
    %7057 = vmatpush1.msra.mxu0 %v933
    %7058 = vmatprep.subr.mxu0 %v942
    %7059 = vmatpush1.msra.mxu0 %v941
    %7060 = vmatprep.subr.mxu0 %v950
    %7061 = vmatpush1.msra.mxu0 %v949
    %7062 = vmatprep.subr.mxu0 %v958
    %7063 = vmatpush1.msra.mxu0 %v957
    %7064 = vmatprep.subr.mxu0 %v966
    %7065 = vmatpush1.msra.mxu0 %v965
    %7066 = vmatprep.subr.mxu0 %v974
    %7067 = vmatpush1.msra.mxu0 %v973
    %7068 = vmatprep.subr.mxu0 %v982
    %7069 = vmatpush1.msra.mxu0 %v981
    %7070 = vmatprep.subr.mxu0 %v990
    %7071 = vmatpush1.msra.mxu0 %v989
    %7072 = vmatprep.subr.mxu0 %v998
    %7073 = vmatpush1.msra.mxu0 %v997
    %7074 = vmatprep.subr.mxu0 %v1006
    %7075 = vmatpush1.msra.mxu0 %v1005
    %7076 = vmatprep.subr.mxu0 %v1014
    %7077 = vmatpush1.msra.mxu0 %v1013
    %7078 = vmatprep.subr.mxu0 %v1022
    %7079 = vmatpush1.msra.mxu0 %v1021
    %7080 = vmatprep.subr.mxu0 %v1030
    %7081 = vmatpush1.msra.mxu0 %v1029
    %7082 = vmatprep.subr.mxu0 %v1038
    %7083 = vmatpush1.msra.mxu0 %v1037
    %7084 = vmatprep.mubr.f32.mxu0 %v6174
    %7085 = vmatmul.mubr.f32.gmra.mrb[0].mxu0 %v6173
    %v7086 = vpop.f32.mrb[0].mxu0
    %v7087 = vadd.f32 0.0, %v7086
    %v7088 = vpop.f32.mrb[0].mxu0
    %v7089 = vadd.f32 0.0, %v7088
    %7090 = vdwg.mxu0
    %v7091 = vadd.f32 %v6799, %v6874
    %v7092 = vadd.f32 %v6800, %v6876
    %v7093 = vadd.f32 %v6801, %v6945
    %v7094 = vadd.f32 %v6802, %v6947
    %v7095 = vadd.f32 %v6803, %v7016
    %v7096 = vadd.f32 %v6804, %v7018
    %v7097 = vadd.f32 %v6805, %v7087
    %v7098 = vadd.f32 %v6806, %v7089
    %v7099 = vxor.u32 %v7091, 2147483648
    %v7100 = vxor.u32 %v7092, 2147483648
    %v7101 = vmul.f32 %v7099, 1.442695
    %v7102 = vpow.pop %v7101
    %v7103 = vmul.f32 %v7100, 1.442695
    %v7104 = vpow.pop %v7103
    %v7105 = vadd.f32 %v7102, 1.0
    %v7106 = vadd.f32 %v7104, 1.0
    %v7107 = vrcp.pop %v7105
    %v7108 = vmul.f32 1.0, %v7107
    %v7109 = vrcp.pop %v7106
    %v7110 = vmul.f32 1.0, %v7109
    %v7111 = vxor.u32 %v7093, 2147483648
    %v7112 = vxor.u32 %v7094, 2147483648
    %v7113 = vmul.f32 %v7111, 1.442695
    %v7114 = vpow.pop %v7113
    %v7115 = vmul.f32 %v7112, 1.442695
    %v7116 = vpow.pop %v7115
    %v7117 = vadd.f32 %v7114, 1.0
    %v7118 = vadd.f32 %v7116, 1.0
    %v7119 = vrcp.pop %v7117
    %v7120 = vmul.f32 1.0, %v7119
    %v7121 = vrcp.pop %v7118
    %v7122 = vmul.f32 1.0, %v7121
    %v7123 = vtanh.pop %v7095
    %v7124 = vtanh.pop %v7096
    %v7125 = vxor.u32 %v7097, 2147483648
    %v7126 = vxor.u32 %v7098, 2147483648
    %v7127 = vmul.f32 %v7125, 1.442695
    %v7128 = vpow.pop %v7127
    %v7129 = vmul.f32 %v7126, 1.442695
    %v7130 = vpow.pop %v7129
    %v7131 = vadd.f32 %v7128, 1.0
    %v7132 = vadd.f32 %v7130, 1.0
    %v7133 = vrcp.pop %v7131
    %v7134 = vmul.f32 1.0, %v7133
    %v7135 = vrcp.pop %v7132
    %v7136 = vmul.f32 1.0, %v7135
    %v7137 = vmul.f32 %v7120, %v6169
    %v7138 = vmul.f32 %v7122, %v6170
    %v7139 = vmul.f32 %v7108, %v7123
    %v7140 = vmul.f32 %v7110, %v7124
    %v7141 = vadd.f32 %v7137, %v7139
    %v7142 = vadd.f32 %v7138, %v7140
    %v7143 = vtanh.pop %v7141
    %v7144 = vtanh.pop %v7142
    %v7145 = vmul.f32 %v7134, %v7143
    %v7146 = vmul.f32 %v7136, %v7144
    %v7147 = vxor.u32 %v6791, 2147483648
    %v7148 = vxor.u32 %v6792, 2147483648
    %v7149 = vmul.f32 %v7147, 1.442695
    %v7150 = vpow.pop %v7149
    %v7151 = vmul.f32 %v7148, 1.442695
    %v7152 = vpow.pop %v7151
    %v7153 = vadd.f32 %v7150, 1.0
    %v7154 = vadd.f32 %v7152, 1.0
    %v7155 = vrcp.pop %v7153
    %v7156 = vmul.f32 1.0, %v7155
    %v7157 = vrcp.pop %v7154
    %v7158 = vmul.f32 1.0, %v7157
    %v7159 = vxor.u32 %v6793, 2147483648
    %v7160 = vxor.u32 %v6794, 2147483648
    %v7161 = vmul.f32 %v7159, 1.442695
    %v7162 = vpow.pop %v7161
    %v7163 = vmul.f32 %v7160, 1.442695
    %v7164 = vpow.pop %v7163
    %v7165 = vadd.f32 %v7162, 1.0
    %v7166 = vadd.f32 %v7164, 1.0
    %v7167 = vrcp.pop %v7165
    %v7168 = vmul.f32 1.0, %v7167
    %v7169 = vrcp.pop %v7166
    %v7170 = vmul.f32 1.0, %v7169
    %v7171 = vtanh.pop %v6795
    %v7172 = vtanh.pop %v6796
    %v7173 = vxor.u32 %v6797, 2147483648
    %v7174 = vxor.u32 %v6798, 2147483648
    %v7175 = vmul.f32 %v7173, 1.442695
    %v7176 = vpow.pop %v7175
    %v7177 = vmul.f32 %v7174, 1.442695
    %v7178 = vpow.pop %v7177
    %v7179 = vadd.f32 %v7176, 1.0
    %v7180 = vadd.f32 %v7178, 1.0
    %v7181 = vrcp.pop %v7179
    %v7182 = vmul.f32 1.0, %v7181
    %v7183 = vrcp.pop %v7180
    %v7184 = vmul.f32 1.0, %v7183
    %v7185 = vmul.f32 %v7168, %v6217
    %v7186 = vmul.f32 %v7170, %v6218
    %v7187 = vmul.f32 %v7156, %v7171
    %v7188 = vmul.f32 %v7158, %v7172
    %v7189 = vadd.f32 %v7185, %v7187
    %v7190 = vadd.f32 %v7186, %v7188
    %v7191 = vtanh.pop %v7189
    %v7192 = vtanh.pop %v7190
    %v7193 = vmul.f32 %v7182, %v7191
    %v7194 = vmul.f32 %v7184, %v7192
    %7195 = vmatprep.subr.mxu0 %v1100
    %7196 = vmatpush1.msra.mxu0 %v1099
    %7197 = vmatprep.subr.mxu0 %v1108
    %7198 = vmatpush1.msra.mxu0 %v1107
    %7199 = vmatprep.subr.mxu0 %v1116
    %7200 = vmatpush1.msra.mxu0 %v1115
    %7201 = vmatprep.subr.mxu0 %v1124
    %7202 = vmatpush1.msra.mxu0 %v1123
    %7203 = vmatprep.subr.mxu0 %v1132
    %7204 = vmatpush1.msra.mxu0 %v1131
    %7205 = vmatprep.subr.mxu0 %v1140
    %7206 = vmatpush1.msra.mxu0 %v1139
    %7207 = vmatprep.subr.mxu0 %v1148
    %7208 = vmatpush1.msra.mxu0 %v1147
    %7209 = vmatprep.subr.mxu0 %v1156
    %7210 = vmatpush1.msra.mxu0 %v1155
    %7211 = vmatprep.subr.mxu0 %v1164
    %7212 = vmatpush1.msra.mxu0 %v1163
    %7213 = vmatprep.subr.mxu0 %v1172
    %7214 = vmatpush1.msra.mxu0 %v1171
    %7215 = vmatprep.subr.mxu0 %v1180
    %7216 = vmatpush1.msra.mxu0 %v1179
    %7217 = vmatprep.subr.mxu0 %v1188
    %7218 = vmatpush1.msra.mxu0 %v1187
    %7219 = vmatprep.subr.mxu0 %v1196
    %7220 = vmatpush1.msra.mxu0 %v1195
    %7221 = vmatprep.subr.mxu0 %v1204
    %7222 = vmatpush1.msra.mxu0 %v1203
    %7223 = vmatprep.subr.mxu0 %v1212
    %7224 = vmatpush1.msra.mxu0 %v1211
    %7225 = vmatprep.subr.mxu0 %v1220
    %7226 = vmatpush1.msra.mxu0 %v1219
    %7227 = vmatprep.subr.mxu0 %v1228
    %7228 = vmatpush1.msra.mxu0 %v1227
    %7229 = vmatprep.subr.mxu0 %v1236
    %7230 = vmatpush1.msra.mxu0 %v1235
    %7231 = vmatprep.subr.mxu0 %v1244
    %7232 = vmatpush1.msra.mxu0 %v1243
    %7233 = vmatprep.subr.mxu0 %v1252
    %7234 = vmatpush1.msra.mxu0 %v1251
    %7235 = vmatprep.subr.mxu0 %v1260
    %7236 = vmatpush1.msra.mxu0 %v1259
    %7237 = vmatprep.subr.mxu0 %v1268
    %7238 = vmatpush1.msra.mxu0 %v1267
    %7239 = vmatprep.subr.mxu0 %v1276
    %7240 = vmatpush1.msra.mxu0 %v1275
    %7241 = vmatprep.subr.mxu0 %v1284
    %7242 = vmatpush1.msra.mxu0 %v1283
    %7243 = vmatprep.subr.mxu0 %v1292
    %7244 = vmatpush1.msra.mxu0 %v1291
    %7245 = vmatprep.subr.mxu0 %v1300
    %7246 = vmatpush1.msra.mxu0 %v1299
    %7247 = vmatprep.subr.mxu0 %v1308
    %7248 = vmatpush1.msra.mxu0 %v1307
    %7249 = vmatprep.subr.mxu0 %v1316
    %7250 = vmatpush1.msra.mxu0 %v1315
    %7251 = vmatprep.subr.mxu0 %v1324
    %7252 = vmatpush1.msra.mxu0 %v1323
    %7253 = vmatprep.subr.mxu0 %v1332
    %7254 = vmatpush1.msra.mxu0 %v1331
    %7255 = vmatprep.subr.mxu0 %v1340
    %7256 = vmatpush1.msra.mxu0 %v1339
    %7257 = vmatprep.subr.mxu0 %v1348
    %7258 = vmatpush1.msra.mxu0 %v1347
    %7259 = vmatprep.mubr.f32.mxu0 %v7146
    %7260 = vmatmul.mubr.f32.gmra.mrb[0].mxu0 %v7145
    %v7261 = vpop.f32.mrb[0].mxu0
    %v7262 = vadd.f32 %v1360, %v7261
    %v7263 = vpop.f32.mrb[0].mxu0
    %v7264 = vadd.f32 %v1364, %v7263
    %7265 = vdwg.mxu0
    %7266 = vmatprep.subr.mxu0 %v1102
    %7267 = vmatpush1.msra.mxu0 %v1101
    %7268 = vmatprep.subr.mxu0 %v1110
    %7269 = vmatpush1.msra.mxu0 %v1109
    %7270 = vmatprep.subr.mxu0 %v1118
    %7271 = vmatpush1.msra.mxu0 %v1117
    %7272 = vmatprep.subr.mxu0 %v1126
    %7273 = vmatpush1.msra.mxu0 %v1125
    %7274 = vmatprep.subr.mxu0 %v1134
    %7275 = vmatpush1.msra.mxu0 %v1133
    %7276 = vmatprep.subr.mxu0 %v1142
    %7277 = vmatpush1.msra.mxu0 %v1141
    %7278 = vmatprep.subr.mxu0 %v1150
    %7279 = vmatpush1.msra.mxu0 %v1149
    %7280 = vmatprep.subr.mxu0 %v1158
    %7281 = vmatpush1.msra.mxu0 %v1157
    %7282 = vmatprep.subr.mxu0 %v1166
    %7283 = vmatpush1.msra.mxu0 %v1165
    %7284 = vmatprep.subr.mxu0 %v1174
    %7285 = vmatpush1.msra.mxu0 %v1173
    %7286 = vmatprep.subr.mxu0 %v1182
    %7287 = vmatpush1.msra.mxu0 %v1181
    %7288 = vmatprep.subr.mxu0 %v1190
    %7289 = vmatpush1.msra.mxu0 %v1189
    %7290 = vmatprep.subr.mxu0 %v1198
    %7291 = vmatpush1.msra.mxu0 %v1197
    %7292 = vmatprep.subr.mxu0 %v1206
    %7293 = vmatpush1.msra.mxu0 %v1205
    %7294 = vmatprep.subr.mxu0 %v1214
    %7295 = vmatpush1.msra.mxu0 %v1213
    %7296 = vmatprep.subr.mxu0 %v1222
    %7297 = vmatpush1.msra.mxu0 %v1221
    %7298 = vmatprep.subr.mxu0 %v1230
    %7299 = vmatpush1.msra.mxu0 %v1229
    %7300 = vmatprep.subr.mxu0 %v1238
    %7301 = vmatpush1.msra.mxu0 %v1237
    %7302 = vmatprep.subr.mxu0 %v1246
    %7303 = vmatpush1.msra.mxu0 %v1245
    %7304 = vmatprep.subr.mxu0 %v1254
    %7305 = vmatpush1.msra.mxu0 %v1253
    %7306 = vmatprep.subr.mxu0 %v1262
    %7307 = vmatpush1.msra.mxu0 %v1261
    %7308 = vmatprep.subr.mxu0 %v1270
    %7309 = vmatpush1.msra.mxu0 %v1269
    %7310 = vmatprep.subr.mxu0 %v1278
    %7311 = vmatpush1.msra.mxu0 %v1277
    %7312 = vmatprep.subr.mxu0 %v1286
    %7313 = vmatpush1.msra.mxu0 %v1285
    %7314 = vmatprep.subr.mxu0 %v1294
    %7315 = vmatpush1.msra.mxu0 %v1293
    %7316 = vmatprep.subr.mxu0 %v1302
    %7317 = vmatpush1.msra.mxu0 %v1301
    %7318 = vmatprep.subr.mxu0 %v1310
    %7319 = vmatpush1.msra.mxu0 %v1309
    %7320 = vmatprep.subr.mxu0 %v1318
    %7321 = vmatpush1.msra.mxu0 %v1317
    %7322 = vmatprep.subr.mxu0 %v1326
    %7323 = vmatpush1.msra.mxu0 %v1325
    %7324 = vmatprep.subr.mxu0 %v1334
    %7325 = vmatpush1.msra.mxu0 %v1333
    %7326 = vmatprep.subr.mxu0 %v1342
    %7327 = vmatpush1.msra.mxu0 %v1341
    %7328 = vmatprep.subr.mxu0 %v1350
    %7329 = vmatpush1.msra.mxu0 %v1349
    %7330 = vmatprep.mubr.f32.mxu0 %v7146
    %7331 = vmatmul.mubr.f32.gmra.mrb[0].mxu0 %v7145
    %v7332 = vpop.f32.mrb[0].mxu0
    %v7333 = vadd.f32 %v1368, %v7332
    %v7334 = vpop.f32.mrb[0].mxu0
    %v7335 = vadd.f32 %v1372, %v7334
    %7336 = vdwg.mxu0
    %7337 = vmatprep.subr.mxu0 %v1104
    %7338 = vmatpush1.msra.mxu0 %v1103
    %7339 = vmatprep.subr.mxu0 %v1112
    %7340 = vmatpush1.msra.mxu0 %v1111
    %7341 = vmatprep.subr.mxu0 %v1120
    %7342 = vmatpush1.msra.mxu0 %v1119
    %7343 = vmatprep.subr.mxu0 %v1128
    %7344 = vmatpush1.msra.mxu0 %v1127
    %7345 = vmatprep.subr.mxu0 %v1136
    %7346 = vmatpush1.msra.mxu0 %v1135
    %7347 = vmatprep.subr.mxu0 %v1144
    %7348 = vmatpush1.msra.mxu0 %v1143
    %7349 = vmatprep.subr.mxu0 %v1152
    %7350 = vmatpush1.msra.mxu0 %v1151
    %7351 = vmatprep.subr.mxu0 %v1160
    %7352 = vmatpush1.msra.mxu0 %v1159
    %7353 = vmatprep.subr.mxu0 %v1168
    %7354 = vmatpush1.msra.mxu0 %v1167
    %7355 = vmatprep.subr.mxu0 %v1176
    %7356 = vmatpush1.msra.mxu0 %v1175
    %7357 = vmatprep.subr.mxu0 %v1184
    %7358 = vmatpush1.msra.mxu0 %v1183
    %7359 = vmatprep.subr.mxu0 %v1192
    %7360 = vmatpush1.msra.mxu0 %v1191
    %7361 = vmatprep.subr.mxu0 %v1200
    %7362 = vmatpush1.msra.mxu0 %v1199
    %7363 = vmatprep.subr.mxu0 %v1208
    %7364 = vmatpush1.msra.mxu0 %v1207
    %7365 = vmatprep.subr.mxu0 %v1216
    %7366 = vmatpush1.msra.mxu0 %v1215
    %7367 = vmatprep.subr.mxu0 %v1224
    %7368 = vmatpush1.msra.mxu0 %v1223
    %7369 = vmatprep.subr.mxu0 %v1232
    %7370 = vmatpush1.msra.mxu0 %v1231
    %7371 = vmatprep.subr.mxu0 %v1240
    %7372 = vmatpush1.msra.mxu0 %v1239
    %7373 = vmatprep.subr.mxu0 %v1248
    %7374 = vmatpush1.msra.mxu0 %v1247
    %7375 = vmatprep.subr.mxu0 %v1256
    %7376 = vmatpush1.msra.mxu0 %v1255
    %7377 = vmatprep.subr.mxu0 %v1264
    %7378 = vmatpush1.msra.mxu0 %v1263
    %7379 = vmatprep.subr.mxu0 %v1272
    %7380 = vmatpush1.msra.mxu0 %v1271
    %7381 = vmatprep.subr.mxu0 %v1280
    %7382 = vmatpush1.msra.mxu0 %v1279
    %7383 = vmatprep.subr.mxu0 %v1288
    %7384 = vmatpush1.msra.mxu0 %v1287
    %7385 = vmatprep.subr.mxu0 %v1296
    %7386 = vmatpush1.msra.mxu0 %v1295
    %7387 = vmatprep.subr.mxu0 %v1304
    %7388 = vmatpush1.msra.mxu0 %v1303
    %7389 = vmatprep.subr.mxu0 %v1312
    %7390 = vmatpush1.msra.mxu0 %v1311
    %7391 = vmatprep.subr.mxu0 %v1320
    %7392 = vmatpush1.msra.mxu0 %v1319
    %7393 = vmatprep.subr.mxu0 %v1328
    %7394 = vmatpush1.msra.mxu0 %v1327
    %7395 = vmatprep.subr.mxu0 %v1336
    %7396 = vmatpush1.msra.mxu0 %v1335
    %7397 = vmatprep.subr.mxu0 %v1344
    %7398 = vmatpush1.msra.mxu0 %v1343
    %7399 = vmatprep.subr.mxu0 %v1352
    %7400 = vmatpush1.msra.mxu0 %v1351
    %7401 = vmatprep.mubr.f32.mxu0 %v7146
    %7402 = vmatmul.mubr.f32.gmra.mrb[0].mxu0 %v7145
    %v7403 = vpop.f32.mrb[0].mxu0
    %v7404 = vadd.f32 %v1376, %v7403
    %v7405 = vpop.f32.mrb[0].mxu0
    %v7406 = vadd.f32 %v1380, %v7405
    %7407 = vdwg.mxu0
    %7408 = vmatprep.subr.mxu0 %v1106
    %7409 = vmatpush1.msra.mxu0 %v1105
    %7410 = vmatprep.subr.mxu0 %v1114
    %7411 = vmatpush1.msra.mxu0 %v1113
    %7412 = vmatprep.subr.mxu0 %v1122
    %7413 = vmatpush1.msra.mxu0 %v1121
    %7414 = vmatprep.subr.mxu0 %v1130
    %7415 = vmatpush1.msra.mxu0 %v1129
    %7416 = vmatprep.subr.mxu0 %v1138
    %7417 = vmatpush1.msra.mxu0 %v1137
    %7418 = vmatprep.subr.mxu0 %v1146
    %7419 = vmatpush1.msra.mxu0 %v1145
    %7420 = vmatprep.subr.mxu0 %v1154
    %7421 = vmatpush1.msra.mxu0 %v1153
    %7422 = vmatprep.subr.mxu0 %v1162
    %7423 = vmatpush1.msra.mxu0 %v1161
    %7424 = vmatprep.subr.mxu0 %v1170
    %7425 = vmatpush1.msra.mxu0 %v1169
    %7426 = vmatprep.subr.mxu0 %v1178
    %7427 = vmatpush1.msra.mxu0 %v1177
    %7428 = vmatprep.subr.mxu0 %v1186
    %7429 = vmatpush1.msra.mxu0 %v1185
    %7430 = vmatprep.subr.mxu0 %v1194
    %7431 = vmatpush1.msra.mxu0 %v1193
    %7432 = vmatprep.subr.mxu0 %v1202
    %7433 = vmatpush1.msra.mxu0 %v1201
    %7434 = vmatprep.subr.mxu0 %v1210
    %7435 = vmatpush1.msra.mxu0 %v1209
    %7436 = vmatprep.subr.mxu0 %v1218
    %7437 = vmatpush1.msra.mxu0 %v1217
    %7438 = vmatprep.subr.mxu0 %v1226
    %7439 = vmatpush1.msra.mxu0 %v1225
    %7440 = vmatprep.subr.mxu0 %v1234
    %7441 = vmatpush1.msra.mxu0 %v1233
    %7442 = vmatprep.subr.mxu0 %v1242
    %7443 = vmatpush1.msra.mxu0 %v1241
    %7444 = vmatprep.subr.mxu0 %v1250
    %7445 = vmatpush1.msra.mxu0 %v1249
    %7446 = vmatprep.subr.mxu0 %v1258
    %7447 = vmatpush1.msra.mxu0 %v1257
    %7448 = vmatprep.subr.mxu0 %v1266
    %7449 = vmatpush1.msra.mxu0 %v1265
    %7450 = vmatprep.subr.mxu0 %v1274
    %7451 = vmatpush1.msra.mxu0 %v1273
    %7452 = vmatprep.subr.mxu0 %v1282
    %7453 = vmatpush1.msra.mxu0 %v1281
    %7454 = vmatprep.subr.mxu0 %v1290
    %7455 = vmatpush1.msra.mxu0 %v1289
    %7456 = vmatprep.subr.mxu0 %v1298
    %7457 = vmatpush1.msra.mxu0 %v1297
    %7458 = vmatprep.subr.mxu0 %v1306
    %7459 = vmatpush1.msra.mxu0 %v1305
    %7460 = vmatprep.subr.mxu0 %v1314
    %7461 = vmatpush1.msra.mxu0 %v1313
    %7462 = vmatprep.subr.mxu0 %v1322
    %7463 = vmatpush1.msra.mxu0 %v1321
    %7464 = vmatprep.subr.mxu0 %v1330
    %7465 = vmatpush1.msra.mxu0 %v1329
    %7466 = vmatprep.subr.mxu0 %v1338
    %7467 = vmatpush1.msra.mxu0 %v1337
    %7468 = vmatprep.subr.mxu0 %v1346
    %7469 = vmatpush1.msra.mxu0 %v1345
    %7470 = vmatprep.subr.mxu0 %v1354
    %7471 = vmatpush1.msra.mxu0 %v1353
    %7472 = vmatprep.mubr.f32.mxu0 %v7146
    %7473 = vmatmul.mubr.f32.gmra.mrb[0].mxu0 %v7145
    %v7474 = vpop.f32.mrb[0].mxu0
    %v7475 = vadd.f32 %v1384, %v7474
    %v7476 = vpop.f32.mrb[0].mxu0
    %v7477 = vadd.f32 %v1388, %v7476
    %7478 = vdwg.mxu0
    %7479 = vmatprep.subr.mxu0 %v2080
    %7480 = vmatpush1.msra.mxu0 %v2079
    %7481 = vmatprep.subr.mxu0 %v2088
    %7482 = vmatpush1.msra.mxu0 %v2087
    %7483 = vmatprep.subr.mxu0 %v2096
    %7484 = vmatpush1.msra.mxu0 %v2095
    %7485 = vmatprep.subr.mxu0 %v2104
    %7486 = vmatpush1.msra.mxu0 %v2103
    %7487 = vmatprep.subr.mxu0 %v2112
    %7488 = vmatpush1.msra.mxu0 %v2111
    %7489 = vmatprep.subr.mxu0 %v2120
    %7490 = vmatpush1.msra.mxu0 %v2119
    %7491 = vmatprep.subr.mxu0 %v2128
    %7492 = vmatpush1.msra.mxu0 %v2127
    %7493 = vmatprep.subr.mxu0 %v2136
    %7494 = vmatpush1.msra.mxu0 %v2135
    %7495 = vmatprep.subr.mxu0 %v2144
    %7496 = vmatpush1.msra.mxu0 %v2143
    %7497 = vmatprep.subr.mxu0 %v2152
    %7498 = vmatpush1.msra.mxu0 %v2151
    %7499 = vmatprep.subr.mxu0 %v2160
    %7500 = vmatpush1.msra.mxu0 %v2159
    %7501 = vmatprep.subr.mxu0 %v2168
    %7502 = vmatpush1.msra.mxu0 %v2167
    %7503 = vmatprep.subr.mxu0 %v2176
    %7504 = vmatpush1.msra.mxu0 %v2175
    %7505 = vmatprep.subr.mxu0 %v2184
    %7506 = vmatpush1.msra.mxu0 %v2183
    %7507 = vmatprep.subr.mxu0 %v2192
    %7508 = vmatpush1.msra.mxu0 %v2191
    %7509 = vmatprep.subr.mxu0 %v2200
    %7510 = vmatpush1.msra.mxu0 %v2199
    %7511 = vmatprep.subr.mxu0 %v2208
    %7512 = vmatpush1.msra.mxu0 %v2207
    %7513 = vmatprep.subr.mxu0 %v2216
    %7514 = vmatpush1.msra.mxu0 %v2215
    %7515 = vmatprep.subr.mxu0 %v2224
    %7516 = vmatpush1.msra.mxu0 %v2223
    %7517 = vmatprep.subr.mxu0 %v2232
    %7518 = vmatpush1.msra.mxu0 %v2231
    %7519 = vmatprep.subr.mxu0 %v2240
    %7520 = vmatpush1.msra.mxu0 %v2239
    %7521 = vmatprep.subr.mxu0 %v2248
    %7522 = vmatpush1.msra.mxu0 %v2247
    %7523 = vmatprep.subr.mxu0 %v2256
    %7524 = vmatpush1.msra.mxu0 %v2255
    %7525 = vmatprep.subr.mxu0 %v2264
    %7526 = vmatpush1.msra.mxu0 %v2263
    %7527 = vmatprep.subr.mxu0 %v2272
    %7528 = vmatpush1.msra.mxu0 %v2271
    %7529 = vmatprep.subr.mxu0 %v2280
    %7530 = vmatpush1.msra.mxu0 %v2279
    %7531 = vmatprep.subr.mxu0 %v2288
    %7532 = vmatpush1.msra.mxu0 %v2287
    %7533 = vmatprep.subr.mxu0 %v2296
    %7534 = vmatpush1.msra.mxu0 %v2295
    %7535 = vmatprep.subr.mxu0 %v2304
    %7536 = vmatpush1.msra.mxu0 %v2303
    %7537 = vmatprep.subr.mxu0 %v2312
    %7538 = vmatpush1.msra.mxu0 %v2311
    %7539 = vmatprep.subr.mxu0 %v2320
    %7540 = vmatpush1.msra.mxu0 %v2319
    %7541 = vmatprep.subr.mxu0 %v2328
    %7542 = vmatpush1.msra.mxu0 %v2327
    %7543 = vmatprep.mubr.f32.mxu0 %v7194
    %7544 = vmatmul.mubr.f32.gmra.mrb[0].mxu0 %v7193
    %v7545 = vpop.f32.mrb[0].mxu0
    %v7546 = vadd.f32 0.0, %v7545
    %v7547 = vpop.f32.mrb[0].mxu0
    %v7548 = vadd.f32 0.0, %v7547
    %7549 = vdwg.mxu0
    %7550 = vmatprep.subr.mxu0 %v2082
    %7551 = vmatpush1.msra.mxu0 %v2081
    %7552 = vmatprep.subr.mxu0 %v2090
    %7553 = vmatpush1.msra.mxu0 %v2089
    %7554 = vmatprep.subr.mxu0 %v2098
    %7555 = vmatpush1.msra.mxu0 %v2097
    %7556 = vmatprep.subr.mxu0 %v2106
    %7557 = vmatpush1.msra.mxu0 %v2105
    %7558 = vmatprep.subr.mxu0 %v2114
    %7559 = vmatpush1.msra.mxu0 %v2113
    %7560 = vmatprep.subr.mxu0 %v2122
    %7561 = vmatpush1.msra.mxu0 %v2121
    %7562 = vmatprep.subr.mxu0 %v2130
    %7563 = vmatpush1.msra.mxu0 %v2129
    %7564 = vmatprep.subr.mxu0 %v2138
    %7565 = vmatpush1.msra.mxu0 %v2137
    %7566 = vmatprep.subr.mxu0 %v2146
    %7567 = vmatpush1.msra.mxu0 %v2145
    %7568 = vmatprep.subr.mxu0 %v2154
    %7569 = vmatpush1.msra.mxu0 %v2153
    %7570 = vmatprep.subr.mxu0 %v2162
    %7571 = vmatpush1.msra.mxu0 %v2161
    %7572 = vmatprep.subr.mxu0 %v2170
    %7573 = vmatpush1.msra.mxu0 %v2169
    %7574 = vmatprep.subr.mxu0 %v2178
    %7575 = vmatpush1.msra.mxu0 %v2177
    %7576 = vmatprep.subr.mxu0 %v2186
    %7577 = vmatpush1.msra.mxu0 %v2185
    %7578 = vmatprep.subr.mxu0 %v2194
    %7579 = vmatpush1.msra.mxu0 %v2193
    %7580 = vmatprep.subr.mxu0 %v2202
    %7581 = vmatpush1.msra.mxu0 %v2201
    %7582 = vmatprep.subr.mxu0 %v2210
    %7583 = vmatpush1.msra.mxu0 %v2209
    %7584 = vmatprep.subr.mxu0 %v2218
    %7585 = vmatpush1.msra.mxu0 %v2217
    %7586 = vmatprep.subr.mxu0 %v2226
    %7587 = vmatpush1.msra.mxu0 %v2225
    %7588 = vmatprep.subr.mxu0 %v2234
    %7589 = vmatpush1.msra.mxu0 %v2233
    %7590 = vmatprep.subr.mxu0 %v2242
    %7591 = vmatpush1.msra.mxu0 %v2241
    %7592 = vmatprep.subr.mxu0 %v2250
    %7593 = vmatpush1.msra.mxu0 %v2249
    %7594 = vmatprep.subr.mxu0 %v2258
    %7595 = vmatpush1.msra.mxu0 %v2257
    %7596 = vmatprep.subr.mxu0 %v2266
    %7597 = vmatpush1.msra.mxu0 %v2265
    %7598 = vmatprep.subr.mxu0 %v2274
    %7599 = vmatpush1.msra.mxu0 %v2273
    %7600 = vmatprep.subr.mxu0 %v2282
    %7601 = vmatpush1.msra.mxu0 %v2281
    %7602 = vmatprep.subr.mxu0 %v2290
    %7603 = vmatpush1.msra.mxu0 %v2289
    %7604 = vmatprep.subr.mxu0 %v2298
    %7605 = vmatpush1.msra.mxu0 %v2297
    %7606 = vmatprep.subr.mxu0 %v2306
    %7607 = vmatpush1.msra.mxu0 %v2305
    %7608 = vmatprep.subr.mxu0 %v2314
    %7609 = vmatpush1.msra.mxu0 %v2313
    %7610 = vmatprep.subr.mxu0 %v2322
    %7611 = vmatpush1.msra.mxu0 %v2321
    %7612 = vmatprep.subr.mxu0 %v2330
    %7613 = vmatpush1.msra.mxu0 %v2329
    %7614 = vmatprep.mubr.f32.mxu0 %v7194
    %7615 = vmatmul.mubr.f32.gmra.mrb[0].mxu0 %v7193
    %v7616 = vpop.f32.mrb[0].mxu0
    %v7617 = vadd.f32 0.0, %v7616
    %v7618 = vpop.f32.mrb[0].mxu0
    %v7619 = vadd.f32 0.0, %v7618
    %7620 = vdwg.mxu0
    %7621 = vmatprep.subr.mxu0 %v2084
    %7622 = vmatpush1.msra.mxu0 %v2083
    %7623 = vmatprep.subr.mxu0 %v2092
    %7624 = vmatpush1.msra.mxu0 %v2091
    %7625 = vmatprep.subr.mxu0 %v2100
    %7626 = vmatpush1.msra.mxu0 %v2099
    %7627 = vmatprep.subr.mxu0 %v2108
    %7628 = vmatpush1.msra.mxu0 %v2107
    %7629 = vmatprep.subr.mxu0 %v2116
    %7630 = vmatpush1.msra.mxu0 %v2115
    %7631 = vmatprep.subr.mxu0 %v2124
    %7632 = vmatpush1.msra.mxu0 %v2123
    %7633 = vmatprep.subr.mxu0 %v2132
    %7634 = vmatpush1.msra.mxu0 %v2131
    %7635 = vmatprep.subr.mxu0 %v2140
    %7636 = vmatpush1.msra.mxu0 %v2139
    %7637 = vmatprep.subr.mxu0 %v2148
    %7638 = vmatpush1.msra.mxu0 %v2147
    %7639 = vmatprep.subr.mxu0 %v2156
    %7640 = vmatpush1.msra.mxu0 %v2155
    %7641 = vmatprep.subr.mxu0 %v2164
    %7642 = vmatpush1.msra.mxu0 %v2163
    %7643 = vmatprep.subr.mxu0 %v2172
    %7644 = vmatpush1.msra.mxu0 %v2171
    %7645 = vmatprep.subr.mxu0 %v2180
    %7646 = vmatpush1.msra.mxu0 %v2179
    %7647 = vmatprep.subr.mxu0 %v2188
    %7648 = vmatpush1.msra.mxu0 %v2187
    %7649 = vmatprep.subr.mxu0 %v2196
    %7650 = vmatpush1.msra.mxu0 %v2195
    %7651 = vmatprep.subr.mxu0 %v2204
    %7652 = vmatpush1.msra.mxu0 %v2203
    %7653 = vmatprep.subr.mxu0 %v2212
    %7654 = vmatpush1.msra.mxu0 %v2211
    %7655 = vmatprep.subr.mxu0 %v2220
    %7656 = vmatpush1.msra.mxu0 %v2219
    %7657 = vmatprep.subr.mxu0 %v2228
    %7658 = vmatpush1.msra.mxu0 %v2227
    %7659 = vmatprep.subr.mxu0 %v2236
    %7660 = vmatpush1.msra.mxu0 %v2235
    %7661 = vmatprep.subr.mxu0 %v2244
    %7662 = vmatpush1.msra.mxu0 %v2243
    %7663 = vmatprep.subr.mxu0 %v2252
    %7664 = vmatpush1.msra.mxu0 %v2251
    %7665 = vmatprep.subr.mxu0 %v2260
    %7666 = vmatpush1.msra.mxu0 %v2259
    %7667 = vmatprep.subr.mxu0 %v2268
    %7668 = vmatpush1.msra.mxu0 %v2267
    %7669 = vmatprep.subr.mxu0 %v2276
    %7670 = vmatpush1.msra.mxu0 %v2275
    %7671 = vmatprep.subr.mxu0 %v2284
    %7672 = vmatpush1.msra.mxu0 %v2283
    %7673 = vmatprep.subr.mxu0 %v2292
    %7674 = vmatpush1.msra.mxu0 %v2291
    %7675 = vmatprep.subr.mxu0 %v2300
    %7676 = vmatpush1.msra.mxu0 %v2299
    %7677 = vmatprep.subr.mxu0 %v2308
    %7678 = vmatpush1.msra.mxu0 %v2307
    %7679 = vmatprep.subr.mxu0 %v2316
    %7680 = vmatpush1.msra.mxu0 %v2315
    %7681 = vmatprep.subr.mxu0 %v2324
    %7682 = vmatpush1.msra.mxu0 %v2323
    %7683 = vmatprep.subr.mxu0 %v2332
    %7684 = vmatpush1.msra.mxu0 %v2331
    %7685 = vmatprep.mubr.f32.mxu0 %v7194
    %7686 = vmatmul.mubr.f32.gmra.mrb[0].mxu0 %v7193
    %v7687 = vpop.f32.mrb[0].mxu0
    %v7688 = vadd.f32 0.0, %v7687
    %v7689 = vpop.f32.mrb[0].mxu0
    %v7690 = vadd.f32 0.0, %v7689
    %7691 = vdwg.mxu0
    %7692 = vmatprep.subr.mxu0 %v2086
    %7693 = vmatpush1.msra.mxu0 %v2085
    %7694 = vmatprep.subr.mxu0 %v2094
    %7695 = vmatpush1.msra.mxu0 %v2093
    %7696 = vmatprep.subr.mxu0 %v2102
    %7697 = vmatpush1.msra.mxu0 %v2101
    %7698 = vmatprep.subr.mxu0 %v2110
    %7699 = vmatpush1.msra.mxu0 %v2109
    %7700 = vmatprep.subr.mxu0 %v2118
    %7701 = vmatpush1.msra.mxu0 %v2117
    %7702 = vmatprep.subr.mxu0 %v2126
    %7703 = vmatpush1.msra.mxu0 %v2125
    %7704 = vmatprep.subr.mxu0 %v2134
    %7705 = vmatpush1.msra.mxu0 %v2133
    %7706 = vmatprep.subr.mxu0 %v2142
    %7707 = vmatpush1.msra.mxu0 %v2141
    %7708 = vmatprep.subr.mxu0 %v2150
    %7709 = vmatpush1.msra.mxu0 %v2149
    %7710 = vmatprep.subr.mxu0 %v2158
    %7711 = vmatpush1.msra.mxu0 %v2157
    %7712 = vmatprep.subr.mxu0 %v2166
    %7713 = vmatpush1.msra.mxu0 %v2165
    %7714 = vmatprep.subr.mxu0 %v2174
    %7715 = vmatpush1.msra.mxu0 %v2173
    %7716 = vmatprep.subr.mxu0 %v2182
    %7717 = vmatpush1.msra.mxu0 %v2181
    %7718 = vmatprep.subr.mxu0 %v2190
    %7719 = vmatpush1.msra.mxu0 %v2189
    %7720 = vmatprep.subr.mxu0 %v2198
    %7721 = vmatpush1.msra.mxu0 %v2197
    %7722 = vmatprep.subr.mxu0 %v2206
    %7723 = vmatpush1.msra.mxu0 %v2205
    %7724 = vmatprep.subr.mxu0 %v2214
    %7725 = vmatpush1.msra.mxu0 %v2213
    %7726 = vmatprep.subr.mxu0 %v2222
    %7727 = vmatpush1.msra.mxu0 %v2221
    %7728 = vmatprep.subr.mxu0 %v2230
    %7729 = vmatpush1.msra.mxu0 %v2229
    %7730 = vmatprep.subr.mxu0 %v2238
    %7731 = vmatpush1.msra.mxu0 %v2237
    %7732 = vmatprep.subr.mxu0 %v2246
    %7733 = vmatpush1.msra.mxu0 %v2245
    %7734 = vmatprep.subr.mxu0 %v2254
    %7735 = vmatpush1.msra.mxu0 %v2253
    %7736 = vmatprep.subr.mxu0 %v2262
    %7737 = vmatpush1.msra.mxu0 %v2261
    %7738 = vmatprep.subr.mxu0 %v2270
    %7739 = vmatpush1.msra.mxu0 %v2269
    %7740 = vmatprep.subr.mxu0 %v2278
    %7741 = vmatpush1.msra.mxu0 %v2277
    %7742 = vmatprep.subr.mxu0 %v2286
    %7743 = vmatpush1.msra.mxu0 %v2285
    %7744 = vmatprep.subr.mxu0 %v2294
    %7745 = vmatpush1.msra.mxu0 %v2293
    %7746 = vmatprep.subr.mxu0 %v2302
    %7747 = vmatpush1.msra.mxu0 %v2301
    %7748 = vmatprep.subr.mxu0 %v2310
    %7749 = vmatpush1.msra.mxu0 %v2309
    %7750 = vmatprep.subr.mxu0 %v2318
    %7751 = vmatpush1.msra.mxu0 %v2317
    %7752 = vmatprep.subr.mxu0 %v2326
    %7753 = vmatpush1.msra.mxu0 %v2325
    %7754 = vmatprep.subr.mxu0 %v2334
    %7755 = vmatpush1.msra.mxu0 %v2333
    %7756 = vmatprep.mubr.f32.mxu0 %v7194
    %7757 = vmatmul.mubr.f32.gmra.mrb[0].mxu0 %v7193
    %v7758 = vpop.f32.mrb[0].mxu0
    %v7759 = vadd.f32 0.0, %v7758
    %v7760 = vpop.f32.mrb[0].mxu0
    %v7761 = vadd.f32 0.0, %v7760
    %7762 = vdwg.mxu0
    %v7763 = vadd.f32 %v7262, %v7546
    %v7764 = vadd.f32 %v7264, %v7548
    %v7765 = vadd.f32 %v7333, %v7617
    %v7766 = vadd.f32 %v7335, %v7619
    %v7767 = vadd.f32 %v7404, %v7688
    %v7768 = vadd.f32 %v7406, %v7690
    %v7769 = vadd.f32 %v7475, %v7759
    %v7770 = vadd.f32 %v7477, %v7761
    %v7771 = vld [vmem:[#allocation2 + $0x1c0] sm:$0xff]
    %v7772 = vld [vmem:[#allocation2 + $0x1c8] sm:$0xff]
    %v7773 = vld [vmem:[#allocation2 + $0x1d0] sm:$0xff]
    %v7774 = vld [vmem:[#allocation2 + $0x1d8] sm:$0xff]
    %v7775 = vld [vmem:[#allocation2 + $0x1e0] sm:$0xff]
    %v7776 = vld [vmem:[#allocation2 + $0x1e8] sm:$0xff]
    %v7777 = vld [vmem:[#allocation2 + $0x1f0] sm:$0xff]
    %v7778 = vld [vmem:[#allocation2 + $0x1f8] sm:$0xff]
    %7779 = vmatprep.subr.mxu0 %v784
    %7780 = vmatpush1.msra.mxu0 %v783
    %7781 = vmatprep.subr.mxu0 %v792
    %7782 = vmatpush1.msra.mxu0 %v791
    %7783 = vmatprep.subr.mxu0 %v800
    %7784 = vmatpush1.msra.mxu0 %v799
    %7785 = vmatprep.subr.mxu0 %v808
    %7786 = vmatpush1.msra.mxu0 %v807
    %7787 = vmatprep.subr.mxu0 %v816
    %7788 = vmatpush1.msra.mxu0 %v815
    %7789 = vmatprep.subr.mxu0 %v824
    %7790 = vmatpush1.msra.mxu0 %v823
    %7791 = vmatprep.subr.mxu0 %v832
    %7792 = vmatpush1.msra.mxu0 %v831
    %7793 = vmatprep.subr.mxu0 %v840
    %7794 = vmatpush1.msra.mxu0 %v839
    %7795 = vmatprep.subr.mxu0 %v848
    %7796 = vmatpush1.msra.mxu0 %v847
    %7797 = vmatprep.subr.mxu0 %v856
    %7798 = vmatpush1.msra.mxu0 %v855
    %7799 = vmatprep.subr.mxu0 %v864
    %7800 = vmatpush1.msra.mxu0 %v863
    %7801 = vmatprep.subr.mxu0 %v872
    %7802 = vmatpush1.msra.mxu0 %v871
    %7803 = vmatprep.subr.mxu0 %v880
    %7804 = vmatpush1.msra.mxu0 %v879
    %7805 = vmatprep.subr.mxu0 %v888
    %7806 = vmatpush1.msra.mxu0 %v887
    %7807 = vmatprep.subr.mxu0 %v896
    %7808 = vmatpush1.msra.mxu0 %v895
    %7809 = vmatprep.subr.mxu0 %v904
    %7810 = vmatpush1.msra.mxu0 %v903
    %7811 = vmatprep.subr.mxu0 %v912
    %7812 = vmatpush1.msra.mxu0 %v911
    %7813 = vmatprep.subr.mxu0 %v920
    %7814 = vmatpush1.msra.mxu0 %v919
    %7815 = vmatprep.subr.mxu0 %v928
    %7816 = vmatpush1.msra.mxu0 %v927
    %7817 = vmatprep.subr.mxu0 %v936
    %7818 = vmatpush1.msra.mxu0 %v935
    %7819 = vmatprep.subr.mxu0 %v944
    %7820 = vmatpush1.msra.mxu0 %v943
    %7821 = vmatprep.subr.mxu0 %v952
    %7822 = vmatpush1.msra.mxu0 %v951
    %7823 = vmatprep.subr.mxu0 %v960
    %7824 = vmatpush1.msra.mxu0 %v959
    %7825 = vmatprep.subr.mxu0 %v968
    %7826 = vmatpush1.msra.mxu0 %v967
    %7827 = vmatprep.subr.mxu0 %v976
    %7828 = vmatpush1.msra.mxu0 %v975
    %7829 = vmatprep.subr.mxu0 %v984
    %7830 = vmatpush1.msra.mxu0 %v983
    %7831 = vmatprep.subr.mxu0 %v992
    %7832 = vmatpush1.msra.mxu0 %v991
    %7833 = vmatprep.subr.mxu0 %v1000
    %7834 = vmatpush1.msra.mxu0 %v999
    %7835 = vmatprep.subr.mxu0 %v1008
    %7836 = vmatpush1.msra.mxu0 %v1007
    %7837 = vmatprep.subr.mxu0 %v1016
    %7838 = vmatpush1.msra.mxu0 %v1015
    %7839 = vmatprep.subr.mxu0 %v1024
    %7840 = vmatpush1.msra.mxu0 %v1023
    %7841 = vmatprep.subr.mxu0 %v1032
    %7842 = vmatpush1.msra.mxu0 %v1031
    %7843 = vmatprep.mubr.f32.mxu0 %v7146
    %7844 = vmatmul.mubr.f32.gmra.mrb[0].mxu0 %v7145
    %v7845 = vpop.f32.mrb[0].mxu0
    %v7846 = vadd.f32 0.0, %v7845
    %v7847 = vpop.f32.mrb[0].mxu0
    %v7848 = vadd.f32 0.0, %v7847
    %7849 = vdwg.mxu0
    %7850 = vmatprep.subr.mxu0 %v786
    %7851 = vmatpush1.msra.mxu0 %v785
    %7852 = vmatprep.subr.mxu0 %v794
    %7853 = vmatpush1.msra.mxu0 %v793
    %7854 = vmatprep.subr.mxu0 %v802
    %7855 = vmatpush1.msra.mxu0 %v801
    %7856 = vmatprep.subr.mxu0 %v810
    %7857 = vmatpush1.msra.mxu0 %v809
    %7858 = vmatprep.subr.mxu0 %v818
    %7859 = vmatpush1.msra.mxu0 %v817
    %7860 = vmatprep.subr.mxu0 %v826
    %7861 = vmatpush1.msra.mxu0 %v825
    %7862 = vmatprep.subr.mxu0 %v834
    %7863 = vmatpush1.msra.mxu0 %v833
    %7864 = vmatprep.subr.mxu0 %v842
    %7865 = vmatpush1.msra.mxu0 %v841
    %7866 = vmatprep.subr.mxu0 %v850
    %7867 = vmatpush1.msra.mxu0 %v849
    %7868 = vmatprep.subr.mxu0 %v858
    %7869 = vmatpush1.msra.mxu0 %v857
    %7870 = vmatprep.subr.mxu0 %v866
    %7871 = vmatpush1.msra.mxu0 %v865
    %7872 = vmatprep.subr.mxu0 %v874
    %7873 = vmatpush1.msra.mxu0 %v873
    %7874 = vmatprep.subr.mxu0 %v882
    %7875 = vmatpush1.msra.mxu0 %v881
    %7876 = vmatprep.subr.mxu0 %v890
    %7877 = vmatpush1.msra.mxu0 %v889
    %7878 = vmatprep.subr.mxu0 %v898
    %7879 = vmatpush1.msra.mxu0 %v897
    %7880 = vmatprep.subr.mxu0 %v906
    %7881 = vmatpush1.msra.mxu0 %v905
    %7882 = vmatprep.subr.mxu0 %v914
    %7883 = vmatpush1.msra.mxu0 %v913
    %7884 = vmatprep.subr.mxu0 %v922
    %7885 = vmatpush1.msra.mxu0 %v921
    %7886 = vmatprep.subr.mxu0 %v930
    %7887 = vmatpush1.msra.mxu0 %v929
    %7888 = vmatprep.subr.mxu0 %v938
    %7889 = vmatpush1.msra.mxu0 %v937
    %7890 = vmatprep.subr.mxu0 %v946
    %7891 = vmatpush1.msra.mxu0 %v945
    %7892 = vmatprep.subr.mxu0 %v954
    %7893 = vmatpush1.msra.mxu0 %v953
    %7894 = vmatprep.subr.mxu0 %v962
    %7895 = vmatpush1.msra.mxu0 %v961
    %7896 = vmatprep.subr.mxu0 %v970
    %7897 = vmatpush1.msra.mxu0 %v969
    %7898 = vmatprep.subr.mxu0 %v978
    %7899 = vmatpush1.msra.mxu0 %v977
    %7900 = vmatprep.subr.mxu0 %v986
    %7901 = vmatpush1.msra.mxu0 %v985
    %7902 = vmatprep.subr.mxu0 %v994
    %7903 = vmatpush1.msra.mxu0 %v993
    %7904 = vmatprep.subr.mxu0 %v1002
    %7905 = vmatpush1.msra.mxu0 %v1001
    %7906 = vmatprep.subr.mxu0 %v1010
    %7907 = vmatpush1.msra.mxu0 %v1009
    %7908 = vmatprep.subr.mxu0 %v1018
    %7909 = vmatpush1.msra.mxu0 %v1017
    %7910 = vmatprep.subr.mxu0 %v1026
    %7911 = vmatpush1.msra.mxu0 %v1025
    %7912 = vmatprep.subr.mxu0 %v1034
    %7913 = vmatpush1.msra.mxu0 %v1033
    %7914 = vmatprep.mubr.f32.mxu0 %v7146
    %7915 = vmatmul.mubr.f32.gmra.mrb[0].mxu0 %v7145
    %v7916 = vpop.f32.mrb[0].mxu0
    %v7917 = vadd.f32 0.0, %v7916
    %v7918 = vpop.f32.mrb[0].mxu0
    %v7919 = vadd.f32 0.0, %v7918
    %7920 = vdwg.mxu0
    %7921 = vmatprep.subr.mxu0 %v788
    %7922 = vmatpush1.msra.mxu0 %v787
    %7923 = vmatprep.subr.mxu0 %v796
    %7924 = vmatpush1.msra.mxu0 %v795
    %7925 = vmatprep.subr.mxu0 %v804
    %7926 = vmatpush1.msra.mxu0 %v803
    %7927 = vmatprep.subr.mxu0 %v812
    %7928 = vmatpush1.msra.mxu0 %v811
    %7929 = vmatprep.subr.mxu0 %v820
    %7930 = vmatpush1.msra.mxu0 %v819
    %7931 = vmatprep.subr.mxu0 %v828
    %7932 = vmatpush1.msra.mxu0 %v827
    %7933 = vmatprep.subr.mxu0 %v836
    %7934 = vmatpush1.msra.mxu0 %v835
    %7935 = vmatprep.subr.mxu0 %v844
    %7936 = vmatpush1.msra.mxu0 %v843
    %7937 = vmatprep.subr.mxu0 %v852
    %7938 = vmatpush1.msra.mxu0 %v851
    %7939 = vmatprep.subr.mxu0 %v860
    %7940 = vmatpush1.msra.mxu0 %v859
    %7941 = vmatprep.subr.mxu0 %v868
    %7942 = vmatpush1.msra.mxu0 %v867
    %7943 = vmatprep.subr.mxu0 %v876
    %7944 = vmatpush1.msra.mxu0 %v875
    %7945 = vmatprep.subr.mxu0 %v884
    %7946 = vmatpush1.msra.mxu0 %v883
    %7947 = vmatprep.subr.mxu0 %v892
    %7948 = vmatpush1.msra.mxu0 %v891
    %7949 = vmatprep.subr.mxu0 %v900
    %7950 = vmatpush1.msra.mxu0 %v899
    %7951 = vmatprep.subr.mxu0 %v908
    %7952 = vmatpush1.msra.mxu0 %v907
    %7953 = vmatprep.subr.mxu0 %v916
    %7954 = vmatpush1.msra.mxu0 %v915
    %7955 = vmatprep.subr.mxu0 %v924
    %7956 = vmatpush1.msra.mxu0 %v923
    %7957 = vmatprep.subr.mxu0 %v932
    %7958 = vmatpush1.msra.mxu0 %v931
    %7959 = vmatprep.subr.mxu0 %v940
    %7960 = vmatpush1.msra.mxu0 %v939
    %7961 = vmatprep.subr.mxu0 %v948
    %7962 = vmatpush1.msra.mxu0 %v947
    %7963 = vmatprep.subr.mxu0 %v956
    %7964 = vmatpush1.msra.mxu0 %v955
    %7965 = vmatprep.subr.mxu0 %v964
    %7966 = vmatpush1.msra.mxu0 %v963
    %7967 = vmatprep.subr.mxu0 %v972
    %7968 = vmatpush1.msra.mxu0 %v971
    %7969 = vmatprep.subr.mxu0 %v980
    %7970 = vmatpush1.msra.mxu0 %v979
    %7971 = vmatprep.subr.mxu0 %v988
    %7972 = vmatpush1.msra.mxu0 %v987
    %7973 = vmatprep.subr.mxu0 %v996
    %7974 = vmatpush1.msra.mxu0 %v995
    %7975 = vmatprep.subr.mxu0 %v1004
    %7976 = vmatpush1.msra.mxu0 %v1003
    %7977 = vmatprep.subr.mxu0 %v1012
    %7978 = vmatpush1.msra.mxu0 %v1011
    %7979 = vmatprep.subr.mxu0 %v1020
    %7980 = vmatpush1.msra.mxu0 %v1019
    %7981 = vmatprep.subr.mxu0 %v1028
    %7982 = vmatpush1.msra.mxu0 %v1027
    %7983 = vmatprep.subr.mxu0 %v1036
    %7984 = vmatpush1.msra.mxu0 %v1035
    %7985 = vmatprep.mubr.f32.mxu0 %v7146
    %7986 = vmatmul.mubr.f32.gmra.mrb[0].mxu0 %v7145
    %v7987 = vpop.f32.mrb[0].mxu0
    %v7988 = vadd.f32 0.0, %v7987
    %v7989 = vpop.f32.mrb[0].mxu0
    %v7990 = vadd.f32 0.0, %v7989
    %7991 = vdwg.mxu0
    %7992 = vmatprep.subr.mxu0 %v790
    %7993 = vmatpush1.msra.mxu0 %v789
    %7994 = vmatprep.subr.mxu0 %v798
    %7995 = vmatpush1.msra.mxu0 %v797
    %7996 = vmatprep.subr.mxu0 %v806
    %7997 = vmatpush1.msra.mxu0 %v805
    %7998 = vmatprep.subr.mxu0 %v814
    %7999 = vmatpush1.msra.mxu0 %v813
    %8000 = vmatprep.subr.mxu0 %v822
    %8001 = vmatpush1.msra.mxu0 %v821
    %8002 = vmatprep.subr.mxu0 %v830
    %8003 = vmatpush1.msra.mxu0 %v829
    %8004 = vmatprep.subr.mxu0 %v838
    %8005 = vmatpush1.msra.mxu0 %v837
    %8006 = vmatprep.subr.mxu0 %v846
    %8007 = vmatpush1.msra.mxu0 %v845
    %8008 = vmatprep.subr.mxu0 %v854
    %8009 = vmatpush1.msra.mxu0 %v853
    %8010 = vmatprep.subr.mxu0 %v862
    %8011 = vmatpush1.msra.mxu0 %v861
    %8012 = vmatprep.subr.mxu0 %v870
    %8013 = vmatpush1.msra.mxu0 %v869
    %8014 = vmatprep.subr.mxu0 %v878
    %8015 = vmatpush1.msra.mxu0 %v877
    %8016 = vmatprep.subr.mxu0 %v886
    %8017 = vmatpush1.msra.mxu0 %v885
    %8018 = vmatprep.subr.mxu0 %v894
    %8019 = vmatpush1.msra.mxu0 %v893
    %8020 = vmatprep.subr.mxu0 %v902
    %8021 = vmatpush1.msra.mxu0 %v901
    %8022 = vmatprep.subr.mxu0 %v910
    %8023 = vmatpush1.msra.mxu0 %v909
    %8024 = vmatprep.subr.mxu0 %v918
    %8025 = vmatpush1.msra.mxu0 %v917
    %8026 = vmatprep.subr.mxu0 %v926
    %8027 = vmatpush1.msra.mxu0 %v925
    %8028 = vmatprep.subr.mxu0 %v934
    %8029 = vmatpush1.msra.mxu0 %v933
    %8030 = vmatprep.subr.mxu0 %v942
    %8031 = vmatpush1.msra.mxu0 %v941
    %8032 = vmatprep.subr.mxu0 %v950
    %8033 = vmatpush1.msra.mxu0 %v949
    %8034 = vmatprep.subr.mxu0 %v958
    %8035 = vmatpush1.msra.mxu0 %v957
    %8036 = vmatprep.subr.mxu0 %v966
    %8037 = vmatpush1.msra.mxu0 %v965
    %8038 = vmatprep.subr.mxu0 %v974
    %8039 = vmatpush1.msra.mxu0 %v973
    %8040 = vmatprep.subr.mxu0 %v982
    %8041 = vmatpush1.msra.mxu0 %v981
    %8042 = vmatprep.subr.mxu0 %v990
    %8043 = vmatpush1.msra.mxu0 %v989
    %8044 = vmatprep.subr.mxu0 %v998
    %8045 = vmatpush1.msra.mxu0 %v997
    %8046 = vmatprep.subr.mxu0 %v1006
    %8047 = vmatpush1.msra.mxu0 %v1005
    %8048 = vmatprep.subr.mxu0 %v1014
    %8049 = vmatpush1.msra.mxu0 %v1013
    %8050 = vmatprep.subr.mxu0 %v1022
    %8051 = vmatpush1.msra.mxu0 %v1021
    %8052 = vmatprep.subr.mxu0 %v1030
    %8053 = vmatpush1.msra.mxu0 %v1029
    %8054 = vmatprep.subr.mxu0 %v1038
    %8055 = vmatpush1.msra.mxu0 %v1037
    %8056 = vmatprep.mubr.f32.mxu0 %v7146
    %8057 = vmatmul.mubr.f32.gmra.mrb[0].mxu0 %v7145
    %v8058 = vpop.f32.mrb[0].mxu0
    %v8059 = vadd.f32 0.0, %v8058
    %v8060 = vpop.f32.mrb[0].mxu0
    %v8061 = vadd.f32 0.0, %v8060
    %8062 = vdwg.mxu0
    %v8063 = vadd.f32 %v7771, %v7846
    %v8064 = vadd.f32 %v7772, %v7848
    %v8065 = vadd.f32 %v7773, %v7917
    %v8066 = vadd.f32 %v7774, %v7919
    %v8067 = vadd.f32 %v7775, %v7988
    %v8068 = vadd.f32 %v7776, %v7990
    %v8069 = vadd.f32 %v7777, %v8059
    %v8070 = vadd.f32 %v7778, %v8061
    %v8071 = vxor.u32 %v8063, 2147483648
    %v8072 = vxor.u32 %v8064, 2147483648
    %v8073 = vmul.f32 %v8071, 1.442695
    %v8074 = vpow.pop %v8073
    %v8075 = vmul.f32 %v8072, 1.442695
    %v8076 = vpow.pop %v8075
    %v8077 = vadd.f32 %v8074, 1.0
    %v8078 = vadd.f32 %v8076, 1.0
    %v8079 = vrcp.pop %v8077
    %v8080 = vmul.f32 1.0, %v8079
    %v8081 = vrcp.pop %v8078
    %v8082 = vmul.f32 1.0, %v8081
    %v8083 = vxor.u32 %v8065, 2147483648
    %v8084 = vxor.u32 %v8066, 2147483648
    %v8085 = vmul.f32 %v8083, 1.442695
    %v8086 = vpow.pop %v8085
    %v8087 = vmul.f32 %v8084, 1.442695
    %v8088 = vpow.pop %v8087
    %v8089 = vadd.f32 %v8086, 1.0
    %v8090 = vadd.f32 %v8088, 1.0
    %v8091 = vrcp.pop %v8089
    %v8092 = vmul.f32 1.0, %v8091
    %v8093 = vrcp.pop %v8090
    %v8094 = vmul.f32 1.0, %v8093
    %v8095 = vtanh.pop %v8067
    %v8096 = vtanh.pop %v8068
    %v8097 = vxor.u32 %v8069, 2147483648
    %v8098 = vxor.u32 %v8070, 2147483648
    %v8099 = vmul.f32 %v8097, 1.442695
    %v8100 = vpow.pop %v8099
    %v8101 = vmul.f32 %v8098, 1.442695
    %v8102 = vpow.pop %v8101
    %v8103 = vadd.f32 %v8100, 1.0
    %v8104 = vadd.f32 %v8102, 1.0
    %v8105 = vrcp.pop %v8103
    %v8106 = vmul.f32 1.0, %v8105
    %v8107 = vrcp.pop %v8104
    %v8108 = vmul.f32 1.0, %v8107
    %v8109 = vmul.f32 %v8092, %v7141
    %v8110 = vmul.f32 %v8094, %v7142
    %v8111 = vmul.f32 %v8080, %v8095
    %v8112 = vmul.f32 %v8082, %v8096
    %v8113 = vadd.f32 %v8109, %v8111
    %v8114 = vadd.f32 %v8110, %v8112
    %v8115 = vtanh.pop %v8113
    %v8116 = vtanh.pop %v8114
    %v8117 = vmul.f32 %v8106, %v8115
    %v8118 = vmul.f32 %v8108, %v8116
    %v8119 = vxor.u32 %v7763, 2147483648
    %v8120 = vxor.u32 %v7764, 2147483648
    %v8121 = vmul.f32 %v8119, 1.442695
    %v8122 = vpow.pop %v8121
    %v8123 = vmul.f32 %v8120, 1.442695
    %v8124 = vpow.pop %v8123
    %v8125 = vadd.f32 %v8122, 1.0
    %v8126 = vadd.f32 %v8124, 1.0
    %v8127 = vrcp.pop %v8125
    %v8128 = vmul.f32 1.0, %v8127
    %v8129 = vrcp.pop %v8126
    %v8130 = vmul.f32 1.0, %v8129
    %v8131 = vxor.u32 %v7765, 2147483648
    %v8132 = vxor.u32 %v7766, 2147483648
    %v8133 = vmul.f32 %v8131, 1.442695
    %v8134 = vpow.pop %v8133
    %v8135 = vmul.f32 %v8132, 1.442695
    %v8136 = vpow.pop %v8135
    %v8137 = vadd.f32 %v8134, 1.0
    %v8138 = vadd.f32 %v8136, 1.0
    %v8139 = vrcp.pop %v8137
    %v8140 = vmul.f32 1.0, %v8139
    %v8141 = vrcp.pop %v8138
    %v8142 = vmul.f32 1.0, %v8141
    %v8143 = vtanh.pop %v7767
    %v8144 = vtanh.pop %v7768
    %v8145 = vxor.u32 %v7769, 2147483648
    %v8146 = vxor.u32 %v7770, 2147483648
    %v8147 = vmul.f32 %v8145, 1.442695
    %v8148 = vpow.pop %v8147
    %v8149 = vmul.f32 %v8146, 1.442695
    %v8150 = vpow.pop %v8149
    %v8151 = vadd.f32 %v8148, 1.0
    %v8152 = vadd.f32 %v8150, 1.0
    %v8153 = vrcp.pop %v8151
    %v8154 = vmul.f32 1.0, %v8153
    %v8155 = vrcp.pop %v8152
    %v8156 = vmul.f32 1.0, %v8155
    %v8157 = vmul.f32 %v8140, %v7189
    %v8158 = vmul.f32 %v8142, %v7190
    %v8159 = vmul.f32 %v8128, %v8143
    %v8160 = vmul.f32 %v8130, %v8144
    %v8161 = vadd.f32 %v8157, %v8159
    %v8162 = vadd.f32 %v8158, %v8160
    %v8163 = vtanh.pop %v8161
    %v8164 = vtanh.pop %v8162
    %v8165 = vmul.f32 %v8154, %v8163
    %v8166 = vmul.f32 %v8156, %v8164
    %8167 = vmatprep.subr.mxu0 %v1100
    %8168 = vmatpush1.msra.mxu0 %v1099
    %8169 = vmatprep.subr.mxu0 %v1108
    %8170 = vmatpush1.msra.mxu0 %v1107
    %8171 = vmatprep.subr.mxu0 %v1116
    %8172 = vmatpush1.msra.mxu0 %v1115
    %8173 = vmatprep.subr.mxu0 %v1124
    %8174 = vmatpush1.msra.mxu0 %v1123
    %8175 = vmatprep.subr.mxu0 %v1132
    %8176 = vmatpush1.msra.mxu0 %v1131
    %8177 = vmatprep.subr.mxu0 %v1140
    %8178 = vmatpush1.msra.mxu0 %v1139
    %8179 = vmatprep.subr.mxu0 %v1148
    %8180 = vmatpush1.msra.mxu0 %v1147
    %8181 = vmatprep.subr.mxu0 %v1156
    %8182 = vmatpush1.msra.mxu0 %v1155
    %8183 = vmatprep.subr.mxu0 %v1164
    %8184 = vmatpush1.msra.mxu0 %v1163
    %8185 = vmatprep.subr.mxu0 %v1172
    %8186 = vmatpush1.msra.mxu0 %v1171
    %8187 = vmatprep.subr.mxu0 %v1180
    %8188 = vmatpush1.msra.mxu0 %v1179
    %8189 = vmatprep.subr.mxu0 %v1188
    %8190 = vmatpush1.msra.mxu0 %v1187
    %8191 = vmatprep.subr.mxu0 %v1196
    %8192 = vmatpush1.msra.mxu0 %v1195
    %8193 = vmatprep.subr.mxu0 %v1204
    %8194 = vmatpush1.msra.mxu0 %v1203
    %8195 = vmatprep.subr.mxu0 %v1212
    %8196 = vmatpush1.msra.mxu0 %v1211
    %8197 = vmatprep.subr.mxu0 %v1220
    %8198 = vmatpush1.msra.mxu0 %v1219
    %8199 = vmatprep.subr.mxu0 %v1228
    %8200 = vmatpush1.msra.mxu0 %v1227
    %8201 = vmatprep.subr.mxu0 %v1236
    %8202 = vmatpush1.msra.mxu0 %v1235
    %8203 = vmatprep.subr.mxu0 %v1244
    %8204 = vmatpush1.msra.mxu0 %v1243
    %8205 = vmatprep.subr.mxu0 %v1252
    %8206 = vmatpush1.msra.mxu0 %v1251
    %8207 = vmatprep.subr.mxu0 %v1260
    %8208 = vmatpush1.msra.mxu0 %v1259
    %8209 = vmatprep.subr.mxu0 %v1268
    %8210 = vmatpush1.msra.mxu0 %v1267
    %8211 = vmatprep.subr.mxu0 %v1276
    %8212 = vmatpush1.msra.mxu0 %v1275
    %8213 = vmatprep.subr.mxu0 %v1284
    %8214 = vmatpush1.msra.mxu0 %v1283
    %8215 = vmatprep.subr.mxu0 %v1292
    %8216 = vmatpush1.msra.mxu0 %v1291
    %8217 = vmatprep.subr.mxu0 %v1300
    %8218 = vmatpush1.msra.mxu0 %v1299
    %8219 = vmatprep.subr.mxu0 %v1308
    %8220 = vmatpush1.msra.mxu0 %v1307
    %8221 = vmatprep.subr.mxu0 %v1316
    %8222 = vmatpush1.msra.mxu0 %v1315
    %8223 = vmatprep.subr.mxu0 %v1324
    %8224 = vmatpush1.msra.mxu0 %v1323
    %8225 = vmatprep.subr.mxu0 %v1332
    %8226 = vmatpush1.msra.mxu0 %v1331
    %8227 = vmatprep.subr.mxu0 %v1340
    %8228 = vmatpush1.msra.mxu0 %v1339
    %8229 = vmatprep.subr.mxu0 %v1348
    %8230 = vmatpush1.msra.mxu0 %v1347
    %8231 = vmatprep.mubr.f32.mxu0 %v8118
    %8232 = vmatmul.mubr.f32.gmra.mrb[0].mxu0 %v8117
    %v8233 = vpop.f32.mrb[0].mxu0
    %v8234 = vadd.f32 %v1360, %v8233
    %v8235 = vpop.f32.mrb[0].mxu0
    %v8236 = vadd.f32 %v1364, %v8235
    %8237 = vdwg.mxu0
    %8238 = vmatprep.subr.mxu0 %v1102
    %8239 = vmatpush1.msra.mxu0 %v1101
    %8240 = vmatprep.subr.mxu0 %v1110
    %8241 = vmatpush1.msra.mxu0 %v1109
    %8242 = vmatprep.subr.mxu0 %v1118
    %8243 = vmatpush1.msra.mxu0 %v1117
    %8244 = vmatprep.subr.mxu0 %v1126
    %8245 = vmatpush1.msra.mxu0 %v1125
    %8246 = vmatprep.subr.mxu0 %v1134
    %8247 = vmatpush1.msra.mxu0 %v1133
    %8248 = vmatprep.subr.mxu0 %v1142
    %8249 = vmatpush1.msra.mxu0 %v1141
    %8250 = vmatprep.subr.mxu0 %v1150
    %8251 = vmatpush1.msra.mxu0 %v1149
    %8252 = vmatprep.subr.mxu0 %v1158
    %8253 = vmatpush1.msra.mxu0 %v1157
    %8254 = vmatprep.subr.mxu0 %v1166
    %8255 = vmatpush1.msra.mxu0 %v1165
    %8256 = vmatprep.subr.mxu0 %v1174
    %8257 = vmatpush1.msra.mxu0 %v1173
    %8258 = vmatprep.subr.mxu0 %v1182
    %8259 = vmatpush1.msra.mxu0 %v1181
    %8260 = vmatprep.subr.mxu0 %v1190
    %8261 = vmatpush1.msra.mxu0 %v1189
    %8262 = vmatprep.subr.mxu0 %v1198
    %8263 = vmatpush1.msra.mxu0 %v1197
    %8264 = vmatprep.subr.mxu0 %v1206
    %8265 = vmatpush1.msra.mxu0 %v1205
    %8266 = vmatprep.subr.mxu0 %v1214
    %8267 = vmatpush1.msra.mxu0 %v1213
    %8268 = vmatprep.subr.mxu0 %v1222
    %8269 = vmatpush1.msra.mxu0 %v1221
    %8270 = vmatprep.subr.mxu0 %v1230
    %8271 = vmatpush1.msra.mxu0 %v1229
    %8272 = vmatprep.subr.mxu0 %v1238
    %8273 = vmatpush1.msra.mxu0 %v1237
    %8274 = vmatprep.subr.mxu0 %v1246
    %8275 = vmatpush1.msra.mxu0 %v1245
    %8276 = vmatprep.subr.mxu0 %v1254
    %8277 = vmatpush1.msra.mxu0 %v1253
    %8278 = vmatprep.subr.mxu0 %v1262
    %8279 = vmatpush1.msra.mxu0 %v1261
    %8280 = vmatprep.subr.mxu0 %v1270
    %8281 = vmatpush1.msra.mxu0 %v1269
    %8282 = vmatprep.subr.mxu0 %v1278
    %8283 = vmatpush1.msra.mxu0 %v1277
    %8284 = vmatprep.subr.mxu0 %v1286
    %8285 = vmatpush1.msra.mxu0 %v1285
    %8286 = vmatprep.subr.mxu0 %v1294
    %8287 = vmatpush1.msra.mxu0 %v1293
    %8288 = vmatprep.subr.mxu0 %v1302
    %8289 = vmatpush1.msra.mxu0 %v1301
    %8290 = vmatprep.subr.mxu0 %v1310
    %8291 = vmatpush1.msra.mxu0 %v1309
    %8292 = vmatprep.subr.mxu0 %v1318
    %8293 = vmatpush1.msra.mxu0 %v1317
    %8294 = vmatprep.subr.mxu0 %v1326
    %8295 = vmatpush1.msra.mxu0 %v1325
    %8296 = vmatprep.subr.mxu0 %v1334
    %8297 = vmatpush1.msra.mxu0 %v1333
    %8298 = vmatprep.subr.mxu0 %v1342
    %8299 = vmatpush1.msra.mxu0 %v1341
    %8300 = vmatprep.subr.mxu0 %v1350
    %8301 = vmatpush1.msra.mxu0 %v1349
    %8302 = vmatprep.mubr.f32.mxu0 %v8118
    %8303 = vmatmul.mubr.f32.gmra.mrb[0].mxu0 %v8117
    %v8304 = vpop.f32.mrb[0].mxu0
    %v8305 = vadd.f32 %v1368, %v8304
    %v8306 = vpop.f32.mrb[0].mxu0
    %v8307 = vadd.f32 %v1372, %v8306
    %8308 = vdwg.mxu0
    %8309 = vmatprep.subr.mxu0 %v1104
    %8310 = vmatpush1.msra.mxu0 %v1103
    %8311 = vmatprep.subr.mxu0 %v1112
    %8312 = vmatpush1.msra.mxu0 %v1111
    %8313 = vmatprep.subr.mxu0 %v1120
    %8314 = vmatpush1.msra.mxu0 %v1119
    %8315 = vmatprep.subr.mxu0 %v1128
    %8316 = vmatpush1.msra.mxu0 %v1127
    %8317 = vmatprep.subr.mxu0 %v1136
    %8318 = vmatpush1.msra.mxu0 %v1135
    %8319 = vmatprep.subr.mxu0 %v1144
    %8320 = vmatpush1.msra.mxu0 %v1143
    %8321 = vmatprep.subr.mxu0 %v1152
    %8322 = vmatpush1.msra.mxu0 %v1151
    %8323 = vmatprep.subr.mxu0 %v1160
    %8324 = vmatpush1.msra.mxu0 %v1159
    %8325 = vmatprep.subr.mxu0 %v1168
    %8326 = vmatpush1.msra.mxu0 %v1167
    %8327 = vmatprep.subr.mxu0 %v1176
    %8328 = vmatpush1.msra.mxu0 %v1175
    %8329 = vmatprep.subr.mxu0 %v1184
    %8330 = vmatpush1.msra.mxu0 %v1183
    %8331 = vmatprep.subr.mxu0 %v1192
    %8332 = vmatpush1.msra.mxu0 %v1191
    %8333 = vmatprep.subr.mxu0 %v1200
    %8334 = vmatpush1.msra.mxu0 %v1199
    %8335 = vmatprep.subr.mxu0 %v1208
    %8336 = vmatpush1.msra.mxu0 %v1207
    %8337 = vmatprep.subr.mxu0 %v1216
    %8338 = vmatpush1.msra.mxu0 %v1215
    %8339 = vmatprep.subr.mxu0 %v1224
    %8340 = vmatpush1.msra.mxu0 %v1223
    %8341 = vmatprep.subr.mxu0 %v1232
    %8342 = vmatpush1.msra.mxu0 %v1231
    %8343 = vmatprep.subr.mxu0 %v1240
    %8344 = vmatpush1.msra.mxu0 %v1239
    %8345 = vmatprep.subr.mxu0 %v1248
    %8346 = vmatpush1.msra.mxu0 %v1247
    %8347 = vmatprep.subr.mxu0 %v1256
    %8348 = vmatpush1.msra.mxu0 %v1255
    %8349 = vmatprep.subr.mxu0 %v1264
    %8350 = vmatpush1.msra.mxu0 %v1263
    %8351 = vmatprep.subr.mxu0 %v1272
    %8352 = vmatpush1.msra.mxu0 %v1271
    %8353 = vmatprep.subr.mxu0 %v1280
    %8354 = vmatpush1.msra.mxu0 %v1279
    %8355 = vmatprep.subr.mxu0 %v1288
    %8356 = vmatpush1.msra.mxu0 %v1287
    %8357 = vmatprep.subr.mxu0 %v1296
    %8358 = vmatpush1.msra.mxu0 %v1295
    %8359 = vmatprep.subr.mxu0 %v1304
    %8360 = vmatpush1.msra.mxu0 %v1303
    %8361 = vmatprep.subr.mxu0 %v1312
    %8362 = vmatpush1.msra.mxu0 %v1311
    %8363 = vmatprep.subr.mxu0 %v1320
    %8364 = vmatpush1.msra.mxu0 %v1319
    %8365 = vmatprep.subr.mxu0 %v1328
    %8366 = vmatpush1.msra.mxu0 %v1327
    %8367 = vmatprep.subr.mxu0 %v1336
    %8368 = vmatpush1.msra.mxu0 %v1335
    %8369 = vmatprep.subr.mxu0 %v1344
    %8370 = vmatpush1.msra.mxu0 %v1343
    %8371 = vmatprep.subr.mxu0 %v1352
    %8372 = vmatpush1.msra.mxu0 %v1351
    %8373 = vmatprep.mubr.f32.mxu0 %v8118
    %8374 = vmatmul.mubr.f32.gmra.mrb[0].mxu0 %v8117
    %v8375 = vpop.f32.mrb[0].mxu0
    %v8376 = vadd.f32 %v1376, %v8375
    %v8377 = vpop.f32.mrb[0].mxu0
    %v8378 = vadd.f32 %v1380, %v8377
    %8379 = vdwg.mxu0
    %8380 = vmatprep.subr.mxu0 %v1106
    %8381 = vmatpush1.msra.mxu0 %v1105
    %8382 = vmatprep.subr.mxu0 %v1114
    %8383 = vmatpush1.msra.mxu0 %v1113
    %8384 = vmatprep.subr.mxu0 %v1122
    %8385 = vmatpush1.msra.mxu0 %v1121
    %8386 = vmatprep.subr.mxu0 %v1130
    %8387 = vmatpush1.msra.mxu0 %v1129
    %8388 = vmatprep.subr.mxu0 %v1138
    %8389 = vmatpush1.msra.mxu0 %v1137
    %8390 = vmatprep.subr.mxu0 %v1146
    %8391 = vmatpush1.msra.mxu0 %v1145
    %8392 = vmatprep.subr.mxu0 %v1154
    %8393 = vmatpush1.msra.mxu0 %v1153
    %8394 = vmatprep.subr.mxu0 %v1162
    %8395 = vmatpush1.msra.mxu0 %v1161
    %8396 = vmatprep.subr.mxu0 %v1170
    %8397 = vmatpush1.msra.mxu0 %v1169
    %8398 = vmatprep.subr.mxu0 %v1178
    %8399 = vmatpush1.msra.mxu0 %v1177
    %8400 = vmatprep.subr.mxu0 %v1186
    %8401 = vmatpush1.msra.mxu0 %v1185
    %8402 = vmatprep.subr.mxu0 %v1194
    %8403 = vmatpush1.msra.mxu0 %v1193
    %8404 = vmatprep.subr.mxu0 %v1202
    %8405 = vmatpush1.msra.mxu0 %v1201
    %8406 = vmatprep.subr.mxu0 %v1210
    %8407 = vmatpush1.msra.mxu0 %v1209
    %8408 = vmatprep.subr.mxu0 %v1218
    %8409 = vmatpush1.msra.mxu0 %v1217
    %8410 = vmatprep.subr.mxu0 %v1226
    %8411 = vmatpush1.msra.mxu0 %v1225
    %8412 = vmatprep.subr.mxu0 %v1234
    %8413 = vmatpush1.msra.mxu0 %v1233
    %8414 = vmatprep.subr.mxu0 %v1242
    %8415 = vmatpush1.msra.mxu0 %v1241
    %8416 = vmatprep.subr.mxu0 %v1250
    %8417 = vmatpush1.msra.mxu0 %v1249
    %8418 = vmatprep.subr.mxu0 %v1258
    %8419 = vmatpush1.msra.mxu0 %v1257
    %8420 = vmatprep.subr.mxu0 %v1266
    %8421 = vmatpush1.msra.mxu0 %v1265
    %8422 = vmatprep.subr.mxu0 %v1274
    %8423 = vmatpush1.msra.mxu0 %v1273
    %8424 = vmatprep.subr.mxu0 %v1282
    %8425 = vmatpush1.msra.mxu0 %v1281
    %8426 = vmatprep.subr.mxu0 %v1290
    %8427 = vmatpush1.msra.mxu0 %v1289
    %8428 = vmatprep.subr.mxu0 %v1298
    %8429 = vmatpush1.msra.mxu0 %v1297
    %8430 = vmatprep.subr.mxu0 %v1306
    %8431 = vmatpush1.msra.mxu0 %v1305
    %8432 = vmatprep.subr.mxu0 %v1314
    %8433 = vmatpush1.msra.mxu0 %v1313
    %8434 = vmatprep.subr.mxu0 %v1322
    %8435 = vmatpush1.msra.mxu0 %v1321
    %8436 = vmatprep.subr.mxu0 %v1330
    %8437 = vmatpush1.msra.mxu0 %v1329
    %8438 = vmatprep.subr.mxu0 %v1338
    %8439 = vmatpush1.msra.mxu0 %v1337
    %8440 = vmatprep.subr.mxu0 %v1346
    %8441 = vmatpush1.msra.mxu0 %v1345
    %8442 = vmatprep.subr.mxu0 %v1354
    %8443 = vmatpush1.msra.mxu0 %v1353
    %8444 = vmatprep.mubr.f32.mxu0 %v8118
    %8445 = vmatmul.mubr.f32.gmra.mrb[0].mxu0 %v8117
    %v8446 = vpop.f32.mrb[0].mxu0
    %v8447 = vadd.f32 %v1384, %v8446
    %v8448 = vpop.f32.mrb[0].mxu0
    %v8449 = vadd.f32 %v1388, %v8448
    %8450 = vdwg.mxu0
    %8451 = vmatprep.subr.mxu0 %v2080
    %8452 = vmatpush1.msra.mxu0 %v2079
    %8453 = vmatprep.subr.mxu0 %v2088
    %8454 = vmatpush1.msra.mxu0 %v2087
    %8455 = vmatprep.subr.mxu0 %v2096
    %8456 = vmatpush1.msra.mxu0 %v2095
    %8457 = vmatprep.subr.mxu0 %v2104
    %8458 = vmatpush1.msra.mxu0 %v2103
    %8459 = vmatprep.subr.mxu0 %v2112
    %8460 = vmatpush1.msra.mxu0 %v2111
    %8461 = vmatprep.subr.mxu0 %v2120
    %8462 = vmatpush1.msra.mxu0 %v2119
    %8463 = vmatprep.subr.mxu0 %v2128
    %8464 = vmatpush1.msra.mxu0 %v2127
    %8465 = vmatprep.subr.mxu0 %v2136
    %8466 = vmatpush1.msra.mxu0 %v2135
    %8467 = vmatprep.subr.mxu0 %v2144
    %8468 = vmatpush1.msra.mxu0 %v2143
    %8469 = vmatprep.subr.mxu0 %v2152
    %8470 = vmatpush1.msra.mxu0 %v2151
    %8471 = vmatprep.subr.mxu0 %v2160
    %8472 = vmatpush1.msra.mxu0 %v2159
    %8473 = vmatprep.subr.mxu0 %v2168
    %8474 = vmatpush1.msra.mxu0 %v2167
    %8475 = vmatprep.subr.mxu0 %v2176
    %8476 = vmatpush1.msra.mxu0 %v2175
    %8477 = vmatprep.subr.mxu0 %v2184
    %8478 = vmatpush1.msra.mxu0 %v2183
    %8479 = vmatprep.subr.mxu0 %v2192
    %8480 = vmatpush1.msra.mxu0 %v2191
    %8481 = vmatprep.subr.mxu0 %v2200
    %8482 = vmatpush1.msra.mxu0 %v2199
    %8483 = vmatprep.subr.mxu0 %v2208
    %8484 = vmatpush1.msra.mxu0 %v2207
    %8485 = vmatprep.subr.mxu0 %v2216
    %8486 = vmatpush1.msra.mxu0 %v2215
    %8487 = vmatprep.subr.mxu0 %v2224
    %8488 = vmatpush1.msra.mxu0 %v2223
    %8489 = vmatprep.subr.mxu0 %v2232
    %8490 = vmatpush1.msra.mxu0 %v2231
    %8491 = vmatprep.subr.mxu0 %v2240
    %8492 = vmatpush1.msra.mxu0 %v2239
    %8493 = vmatprep.subr.mxu0 %v2248
    %8494 = vmatpush1.msra.mxu0 %v2247
    %8495 = vmatprep.subr.mxu0 %v2256
    %8496 = vmatpush1.msra.mxu0 %v2255
    %8497 = vmatprep.subr.mxu0 %v2264
    %8498 = vmatpush1.msra.mxu0 %v2263
    %8499 = vmatprep.subr.mxu0 %v2272
    %8500 = vmatpush1.msra.mxu0 %v2271
    %8501 = vmatprep.subr.mxu0 %v2280
    %8502 = vmatpush1.msra.mxu0 %v2279
    %8503 = vmatprep.subr.mxu0 %v2288
    %8504 = vmatpush1.msra.mxu0 %v2287
    %8505 = vmatprep.subr.mxu0 %v2296
    %8506 = vmatpush1.msra.mxu0 %v2295
    %8507 = vmatprep.subr.mxu0 %v2304
    %8508 = vmatpush1.msra.mxu0 %v2303
    %8509 = vmatprep.subr.mxu0 %v2312
    %8510 = vmatpush1.msra.mxu0 %v2311
    %8511 = vmatprep.subr.mxu0 %v2320
    %8512 = vmatpush1.msra.mxu0 %v2319
    %8513 = vmatprep.subr.mxu0 %v2328
    %8514 = vmatpush1.msra.mxu0 %v2327
    %8515 = vmatprep.mubr.f32.mxu0 %v8166
    %8516 = vmatmul.mubr.f32.gmra.mrb[0].mxu0 %v8165
    %v8517 = vpop.f32.mrb[0].mxu0
    %v8518 = vadd.f32 0.0, %v8517
    %v8519 = vpop.f32.mrb[0].mxu0
    %v8520 = vadd.f32 0.0, %v8519
    %8521 = vdwg.mxu0
    %8522 = vmatprep.subr.mxu0 %v2082
    %8523 = vmatpush1.msra.mxu0 %v2081
    %8524 = vmatprep.subr.mxu0 %v2090
    %8525 = vmatpush1.msra.mxu0 %v2089
    %8526 = vmatprep.subr.mxu0 %v2098
    %8527 = vmatpush1.msra.mxu0 %v2097
    %8528 = vmatprep.subr.mxu0 %v2106
    %8529 = vmatpush1.msra.mxu0 %v2105
    %8530 = vmatprep.subr.mxu0 %v2114
    %8531 = vmatpush1.msra.mxu0 %v2113
    %8532 = vmatprep.subr.mxu0 %v2122
    %8533 = vmatpush1.msra.mxu0 %v2121
    %8534 = vmatprep.subr.mxu0 %v2130
    %8535 = vmatpush1.msra.mxu0 %v2129
    %8536 = vmatprep.subr.mxu0 %v2138
    %8537 = vmatpush1.msra.mxu0 %v2137
    %8538 = vmatprep.subr.mxu0 %v2146
    %8539 = vmatpush1.msra.mxu0 %v2145
    %8540 = vmatprep.subr.mxu0 %v2154
    %8541 = vmatpush1.msra.mxu0 %v2153
    %8542 = vmatprep.subr.mxu0 %v2162
    %8543 = vmatpush1.msra.mxu0 %v2161
    %8544 = vmatprep.subr.mxu0 %v2170
    %8545 = vmatpush1.msra.mxu0 %v2169
    %8546 = vmatprep.subr.mxu0 %v2178
    %8547 = vmatpush1.msra.mxu0 %v2177
    %8548 = vmatprep.subr.mxu0 %v2186
    %8549 = vmatpush1.msra.mxu0 %v2185
    %8550 = vmatprep.subr.mxu0 %v2194
    %8551 = vmatpush1.msra.mxu0 %v2193
    %8552 = vmatprep.subr.mxu0 %v2202
    %8553 = vmatpush1.msra.mxu0 %v2201
    %8554 = vmatprep.subr.mxu0 %v2210
    %8555 = vmatpush1.msra.mxu0 %v2209
    %8556 = vmatprep.subr.mxu0 %v2218
    %8557 = vmatpush1.msra.mxu0 %v2217
    %8558 = vmatprep.subr.mxu0 %v2226
    %8559 = vmatpush1.msra.mxu0 %v2225
    %8560 = vmatprep.subr.mxu0 %v2234
    %8561 = vmatpush1.msra.mxu0 %v2233
    %8562 = vmatprep.subr.mxu0 %v2242
    %8563 = vmatpush1.msra.mxu0 %v2241
    %8564 = vmatprep.subr.mxu0 %v2250
    %8565 = vmatpush1.msra.mxu0 %v2249
    %8566 = vmatprep.subr.mxu0 %v2258
    %8567 = vmatpush1.msra.mxu0 %v2257
    %8568 = vmatprep.subr.mxu0 %v2266
    %8569 = vmatpush1.msra.mxu0 %v2265
    %8570 = vmatprep.subr.mxu0 %v2274
    %8571 = vmatpush1.msra.mxu0 %v2273
    %8572 = vmatprep.subr.mxu0 %v2282
    %8573 = vmatpush1.msra.mxu0 %v2281
    %8574 = vmatprep.subr.mxu0 %v2290
    %8575 = vmatpush1.msra.mxu0 %v2289
    %8576 = vmatprep.subr.mxu0 %v2298
    %8577 = vmatpush1.msra.mxu0 %v2297
    %8578 = vmatprep.subr.mxu0 %v2306
    %8579 = vmatpush1.msra.mxu0 %v2305
    %8580 = vmatprep.subr.mxu0 %v2314
    %8581 = vmatpush1.msra.mxu0 %v2313
    %8582 = vmatprep.subr.mxu0 %v2322
    %8583 = vmatpush1.msra.mxu0 %v2321
    %8584 = vmatprep.subr.mxu0 %v2330
    %8585 = vmatpush1.msra.mxu0 %v2329
    %8586 = vmatprep.mubr.f32.mxu0 %v8166
    %8587 = vmatmul.mubr.f32.gmra.mrb[0].mxu0 %v8165
    %v8588 = vpop.f32.mrb[0].mxu0
    %v8589 = vadd.f32 0.0, %v8588
    %v8590 = vpop.f32.mrb[0].mxu0
    %v8591 = vadd.f32 0.0, %v8590
    %8592 = vdwg.mxu0
    %8593 = vmatprep.subr.mxu0 %v2084
    %8594 = vmatpush1.msra.mxu0 %v2083
    %8595 = vmatprep.subr.mxu0 %v2092
    %8596 = vmatpush1.msra.mxu0 %v2091
    %8597 = vmatprep.subr.mxu0 %v2100
    %8598 = vmatpush1.msra.mxu0 %v2099
    %8599 = vmatprep.subr.mxu0 %v2108
    %8600 = vmatpush1.msra.mxu0 %v2107
    %8601 = vmatprep.subr.mxu0 %v2116
    %8602 = vmatpush1.msra.mxu0 %v2115
    %8603 = vmatprep.subr.mxu0 %v2124
    %8604 = vmatpush1.msra.mxu0 %v2123
    %8605 = vmatprep.subr.mxu0 %v2132
    %8606 = vmatpush1.msra.mxu0 %v2131
    %8607 = vmatprep.subr.mxu0 %v2140
    %8608 = vmatpush1.msra.mxu0 %v2139
    %8609 = vmatprep.subr.mxu0 %v2148
    %8610 = vmatpush1.msra.mxu0 %v2147
    %8611 = vmatprep.subr.mxu0 %v2156
    %8612 = vmatpush1.msra.mxu0 %v2155
    %8613 = vmatprep.subr.mxu0 %v2164
    %8614 = vmatpush1.msra.mxu0 %v2163
    %8615 = vmatprep.subr.mxu0 %v2172
    %8616 = vmatpush1.msra.mxu0 %v2171
    %8617 = vmatprep.subr.mxu0 %v2180
    %8618 = vmatpush1.msra.mxu0 %v2179
    %8619 = vmatprep.subr.mxu0 %v2188
    %8620 = vmatpush1.msra.mxu0 %v2187
    %8621 = vmatprep.subr.mxu0 %v2196
    %8622 = vmatpush1.msra.mxu0 %v2195
    %8623 = vmatprep.subr.mxu0 %v2204
    %8624 = vmatpush1.msra.mxu0 %v2203
    %8625 = vmatprep.subr.mxu0 %v2212
    %8626 = vmatpush1.msra.mxu0 %v2211
    %8627 = vmatprep.subr.mxu0 %v2220
    %8628 = vmatpush1.msra.mxu0 %v2219
    %8629 = vmatprep.subr.mxu0 %v2228
    %8630 = vmatpush1.msra.mxu0 %v2227
    %8631 = vmatprep.subr.mxu0 %v2236
    %8632 = vmatpush1.msra.mxu0 %v2235
    %8633 = vmatprep.subr.mxu0 %v2244
    %8634 = vmatpush1.msra.mxu0 %v2243
    %8635 = vmatprep.subr.mxu0 %v2252
    %8636 = vmatpush1.msra.mxu0 %v2251
    %8637 = vmatprep.subr.mxu0 %v2260
    %8638 = vmatpush1.msra.mxu0 %v2259
    %8639 = vmatprep.subr.mxu0 %v2268
    %8640 = vmatpush1.msra.mxu0 %v2267
    %8641 = vmatprep.subr.mxu0 %v2276
    %8642 = vmatpush1.msra.mxu0 %v2275
    %8643 = vmatprep.subr.mxu0 %v2284
    %8644 = vmatpush1.msra.mxu0 %v2283
    %8645 = vmatprep.subr.mxu0 %v2292
    %8646 = vmatpush1.msra.mxu0 %v2291
    %8647 = vmatprep.subr.mxu0 %v2300
    %8648 = vmatpush1.msra.mxu0 %v2299
    %8649 = vmatprep.subr.mxu0 %v2308
    %8650 = vmatpush1.msra.mxu0 %v2307
    %8651 = vmatprep.subr.mxu0 %v2316
    %8652 = vmatpush1.msra.mxu0 %v2315
    %8653 = vmatprep.subr.mxu0 %v2324
    %8654 = vmatpush1.msra.mxu0 %v2323
    %8655 = vmatprep.subr.mxu0 %v2332
    %8656 = vmatpush1.msra.mxu0 %v2331
    %8657 = vmatprep.mubr.f32.mxu0 %v8166
    %8658 = vmatmul.mubr.f32.gmra.mrb[0].mxu0 %v8165
    %v8659 = vpop.f32.mrb[0].mxu0
    %v8660 = vadd.f32 0.0, %v8659
    %v8661 = vpop.f32.mrb[0].mxu0
    %v8662 = vadd.f32 0.0, %v8661
    %8663 = vdwg.mxu0
    %8664 = vmatprep.subr.mxu0 %v2086
    %8665 = vmatpush1.msra.mxu0 %v2085
    %8666 = vmatprep.subr.mxu0 %v2094
    %8667 = vmatpush1.msra.mxu0 %v2093
    %8668 = vmatprep.subr.mxu0 %v2102
    %8669 = vmatpush1.msra.mxu0 %v2101
    %8670 = vmatprep.subr.mxu0 %v2110
    %8671 = vmatpush1.msra.mxu0 %v2109
    %8672 = vmatprep.subr.mxu0 %v2118
    %8673 = vmatpush1.msra.mxu0 %v2117
    %8674 = vmatprep.subr.mxu0 %v2126
    %8675 = vmatpush1.msra.mxu0 %v2125
    %8676 = vmatprep.subr.mxu0 %v2134
    %8677 = vmatpush1.msra.mxu0 %v2133
    %8678 = vmatprep.subr.mxu0 %v2142
    %8679 = vmatpush1.msra.mxu0 %v2141
    %8680 = vmatprep.subr.mxu0 %v2150
    %8681 = vmatpush1.msra.mxu0 %v2149
    %8682 = vmatprep.subr.mxu0 %v2158
    %8683 = vmatpush1.msra.mxu0 %v2157
    %8684 = vmatprep.subr.mxu0 %v2166
    %8685 = vmatpush1.msra.mxu0 %v2165
    %8686 = vmatprep.subr.mxu0 %v2174
    %8687 = vmatpush1.msra.mxu0 %v2173
    %8688 = vmatprep.subr.mxu0 %v2182
    %8689 = vmatpush1.msra.mxu0 %v2181
    %8690 = vmatprep.subr.mxu0 %v2190
    %8691 = vmatpush1.msra.mxu0 %v2189
    %8692 = vmatprep.subr.mxu0 %v2198
    %8693 = vmatpush1.msra.mxu0 %v2197
    %8694 = vmatprep.subr.mxu0 %v2206
    %8695 = vmatpush1.msra.mxu0 %v2205
    %8696 = vmatprep.subr.mxu0 %v2214
    %8697 = vmatpush1.msra.mxu0 %v2213
    %8698 = vmatprep.subr.mxu0 %v2222
    %8699 = vmatpush1.msra.mxu0 %v2221
    %8700 = vmatprep.subr.mxu0 %v2230
    %8701 = vmatpush1.msra.mxu0 %v2229
    %8702 = vmatprep.subr.mxu0 %v2238
    %8703 = vmatpush1.msra.mxu0 %v2237
    %8704 = vmatprep.subr.mxu0 %v2246
    %8705 = vmatpush1.msra.mxu0 %v2245
    %8706 = vmatprep.subr.mxu0 %v2254
    %8707 = vmatpush1.msra.mxu0 %v2253
    %8708 = vmatprep.subr.mxu0 %v2262
    %8709 = vmatpush1.msra.mxu0 %v2261
    %8710 = vmatprep.subr.mxu0 %v2270
    %8711 = vmatpush1.msra.mxu0 %v2269
    %8712 = vmatprep.subr.mxu0 %v2278
    %8713 = vmatpush1.msra.mxu0 %v2277
    %8714 = vmatprep.subr.mxu0 %v2286
    %8715 = vmatpush1.msra.mxu0 %v2285
    %8716 = vmatprep.subr.mxu0 %v2294
    %8717 = vmatpush1.msra.mxu0 %v2293
    %8718 = vmatprep.subr.mxu0 %v2302
    %8719 = vmatpush1.msra.mxu0 %v2301
    %8720 = vmatprep.subr.mxu0 %v2310
    %8721 = vmatpush1.msra.mxu0 %v2309
    %8722 = vmatprep.subr.mxu0 %v2318
    %8723 = vmatpush1.msra.mxu0 %v2317
    %8724 = vmatprep.subr.mxu0 %v2326
    %8725 = vmatpush1.msra.mxu0 %v2325
    %8726 = vmatprep.subr.mxu0 %v2334
    %8727 = vmatpush1.msra.mxu0 %v2333
    %8728 = vmatprep.mubr.f32.mxu0 %v8166
    %8729 = vmatmul.mubr.f32.gmra.mrb[0].mxu0 %v8165
    %v8730 = vpop.f32.mrb[0].mxu0
    %v8731 = vadd.f32 0.0, %v8730
    %v8732 = vpop.f32.mrb[0].mxu0
    %v8733 = vadd.f32 0.0, %v8732
    %8734 = vdwg.mxu0
    %v8735 = vadd.f32 %v8234, %v8518
    %v8736 = vadd.f32 %v8236, %v8520
    %v8737 = vadd.f32 %v8305, %v8589
    %v8738 = vadd.f32 %v8307, %v8591
    %v8739 = vadd.f32 %v8376, %v8660
    %v8740 = vadd.f32 %v8378, %v8662
    %v8741 = vadd.f32 %v8447, %v8731
    %v8742 = vadd.f32 %v8449, %v8733
    %v8743 = vxor.u32 %v8735, 2147483648
    %v8744 = vxor.u32 %v8736, 2147483648
    %v8745 = vmul.f32 %v8743, 1.442695
    %v8746 = vpow.pop %v8745
    %v8747 = vmul.f32 %v8744, 1.442695
    %v8748 = vpow.pop %v8747
    %v8749 = vadd.f32 %v8746, 1.0
    %v8750 = vadd.f32 %v8748, 1.0
    %v8751 = vrcp.pop %v8749
    %v8752 = vmul.f32 1.0, %v8751
    %v8753 = vrcp.pop %v8750
    %v8754 = vmul.f32 1.0, %v8753
    %v8755 = vxor.u32 %v8737, 2147483648
    %v8756 = vxor.u32 %v8738, 2147483648
    %v8757 = vmul.f32 %v8755, 1.442695
    %v8758 = vpow.pop %v8757
    %v8759 = vmul.f32 %v8756, 1.442695
    %v8760 = vpow.pop %v8759
    %v8761 = vadd.f32 %v8758, 1.0
    %v8762 = vadd.f32 %v8760, 1.0
    %v8763 = vrcp.pop %v8761
    %v8764 = vmul.f32 1.0, %v8763
    %v8765 = vrcp.pop %v8762
    %v8766 = vmul.f32 1.0, %v8765
    %v8767 = vtanh.pop %v8739
    %v8768 = vtanh.pop %v8740
    %v8769 = vxor.u32 %v8741, 2147483648
    %v8770 = vxor.u32 %v8742, 2147483648
    %v8771 = vmul.f32 %v8769, 1.442695
    %v8772 = vpow.pop %v8771
    %v8773 = vmul.f32 %v8770, 1.442695
    %v8774 = vpow.pop %v8773
    %v8775 = vadd.f32 %v8772, 1.0
    %v8776 = vadd.f32 %v8774, 1.0
    %v8777 = vrcp.pop %v8775
    %v8778 = vmul.f32 1.0, %v8777
    %v8779 = vrcp.pop %v8776
    %v8780 = vmul.f32 1.0, %v8779
    %v8781 = vmul.f32 %v8764, %v8161
    %v8782 = vmul.f32 %v8766, %v8162
    %v8783 = vmul.f32 %v8752, %v8767
    %v8784 = vmul.f32 %v8754, %v8768
    %v8785 = vadd.f32 %v8781, %v8783
    %v8786 = vadd.f32 %v8782, %v8784
    %v8787 = vtanh.pop %v8785
    %v8788 = vtanh.pop %v8786
    %v8789 = vmul.f32 %v8778, %v8787
    %v8790 = vmul.f32 %v8780, %v8788
    %s8791 = smul.u32 256, 1
    %s8792 = sshll.u32 %s8791, 4
    %8793 = dma.done %s77, %s8792
    %v8794 = vld [vmem:[#allocation5] sm:$0xff]
    %v8795 = vld [vmem:[#allocation5 + $0x8] sm:$0xff]
    %v8796 = vld [vmem:[#allocation5 + $0x10] sm:$0xff]
    %v8797 = vld [vmem:[#allocation5 + $0x18] sm:$0xff]
    %v8798 = vld [vmem:[#allocation5 + $0x20] sm:$0xff]
    %v8799 = vld [vmem:[#allocation5 + $0x28] sm:$0xff]
    %v8800 = vld [vmem:[#allocation5 + $0x30] sm:$0xff]
    %v8801 = vld [vmem:[#allocation5 + $0x38] sm:$0xff]
    %v8802 = vld [vmem:[#allocation5 + $0x40] sm:$0xff]
    %v8803 = vld [vmem:[#allocation5 + $0x48] sm:$0xff]
    %v8804 = vld [vmem:[#allocation5 + $0x50] sm:$0xff]
    %v8805 = vld [vmem:[#allocation5 + $0x58] sm:$0xff]
    %v8806 = vld [vmem:[#allocation5 + $0x60] sm:$0xff]
    %v8807 = vld [vmem:[#allocation5 + $0x68] sm:$0xff]
    %v8808 = vld [vmem:[#allocation5 + $0x70] sm:$0xff]
    %v8809 = vld [vmem:[#allocation5 + $0x78] sm:$0xff]
    %v8810 = vld [vmem:[#allocation5 + $0x80] sm:$0xff]
    %v8811 = vld [vmem:[#allocation5 + $0x88] sm:$0xff]
    %v8812 = vld [vmem:[#allocation5 + $0x90] sm:$0xff]
    %v8813 = vld [vmem:[#allocation5 + $0x98] sm:$0xff]
    %v8814 = vld [vmem:[#allocation5 + $0xa0] sm:$0xff]
    %v8815 = vld [vmem:[#allocation5 + $0xa8] sm:$0xff]
    %v8816 = vld [vmem:[#allocation5 + $0xb0] sm:$0xff]
    %v8817 = vld [vmem:[#allocation5 + $0xb8] sm:$0xff]
    %v8818 = vld [vmem:[#allocation5 + $0xc0] sm:$0xff]
    %v8819 = vld [vmem:[#allocation5 + $0xc8] sm:$0xff]
    %v8820 = vld [vmem:[#allocation5 + $0xd0] sm:$0xff]
    %v8821 = vld [vmem:[#allocation5 + $0xd8] sm:$0xff]
    %v8822 = vld [vmem:[#allocation5 + $0xe0] sm:$0xff]
    %v8823 = vld [vmem:[#allocation5 + $0xe8] sm:$0xff]
    %v8824 = vld [vmem:[#allocation5 + $0xf0] sm:$0xff]
    %v8825 = vld [vmem:[#allocation5 + $0xf8] sm:$0xff]
    %v8826 = vld [vmem:[%s5] sm:$0x1]
    %v8828 = vlaneseq
    %v8829 = vshrl.u32 %v8828, 7
    %v8830 = vsub.s32 0, %v8829
    %v8831 = vrot.slane %v8826, %v8830
    %8833 = vmatprep.subr.mxu0 0.0
    %8834 = vmatpush1.msra.mxu0 %v8794
    %8835 = vmatprep.subr.mxu0 0.0
    %8836 = vmatpush1.msra.mxu0 %v8795
    %8837 = vmatprep.subr.mxu0 0.0
    %8838 = vmatpush1.msra.mxu0 %v8796
    %8839 = vmatprep.subr.mxu0 0.0
    %8840 = vmatpush1.msra.mxu0 %v8797
    %8841 = vmatprep.subr.mxu0 0.0
    %8842 = vmatpush1.msra.mxu0 %v8798
    %8843 = vmatprep.subr.mxu0 0.0
    %8844 = vmatpush1.msra.mxu0 %v8799
    %8845 = vmatprep.subr.mxu0 0.0
    %8846 = vmatpush1.msra.mxu0 %v8800
    %8847 = vmatprep.subr.mxu0 0.0
    %8848 = vmatpush1.msra.mxu0 %v8801
    %8849 = vmatprep.subr.mxu0 0.0
    %8850 = vmatpush1.msra.mxu0 %v8802
    %8851 = vmatprep.subr.mxu0 0.0
    %8852 = vmatpush1.msra.mxu0 %v8803
    %8853 = vmatprep.subr.mxu0 0.0
    %8854 = vmatpush1.msra.mxu0 %v8804
    %8855 = vmatprep.subr.mxu0 0.0
    %8856 = vmatpush1.msra.mxu0 %v8805
    %8857 = vmatprep.subr.mxu0 0.0
    %8858 = vmatpush1.msra.mxu0 %v8806
    %8859 = vmatprep.subr.mxu0 0.0
    %8860 = vmatpush1.msra.mxu0 %v8807
    %8861 = vmatprep.subr.mxu0 0.0
    %8862 = vmatpush1.msra.mxu0 %v8808
    %8863 = vmatprep.subr.mxu0 0.0
    %8864 = vmatpush1.msra.mxu0 %v8809
    %8865 = vmatprep.subr.mxu0 0.0
    %8866 = vmatpush1.msra.mxu0 %v8810
    %8867 = vmatprep.subr.mxu0 0.0
    %8868 = vmatpush1.msra.mxu0 %v8811
    %8869 = vmatprep.subr.mxu0 0.0
    %8870 = vmatpush1.msra.mxu0 %v8812
    %8871 = vmatprep.subr.mxu0 0.0
    %8872 = vmatpush1.msra.mxu0 %v8813
    %8873 = vmatprep.subr.mxu0 0.0
    %8874 = vmatpush1.msra.mxu0 %v8814
    %8875 = vmatprep.subr.mxu0 0.0
    %8876 = vmatpush1.msra.mxu0 %v8815
    %8877 = vmatprep.subr.mxu0 0.0
    %8878 = vmatpush1.msra.mxu0 %v8816
    %8879 = vmatprep.subr.mxu0 0.0
    %8880 = vmatpush1.msra.mxu0 %v8817
    %8881 = vmatprep.subr.mxu0 0.0
    %8882 = vmatpush1.msra.mxu0 %v8818
    %8883 = vmatprep.subr.mxu0 0.0
    %8884 = vmatpush1.msra.mxu0 %v8819
    %8885 = vmatprep.subr.mxu0 0.0
    %8886 = vmatpush1.msra.mxu0 %v8820
    %8887 = vmatprep.subr.mxu0 0.0
    %8888 = vmatpush1.msra.mxu0 %v8821
    %8889 = vmatprep.subr.mxu0 0.0
    %8890 = vmatpush1.msra.mxu0 %v8822
    %8891 = vmatprep.subr.mxu0 0.0
    %8892 = vmatpush1.msra.mxu0 %v8823
    %8893 = vmatprep.subr.mxu0 0.0
    %8894 = vmatpush1.msra.mxu0 %v8824
    %8895 = vmatprep.subr.mxu0 0.0
    %8896 = vmatpush1.msra.mxu0 %v8825
    %8897 = vmatprep.mubr.f32.mxu0 %v8790
    %8898 = vmatmul.mubr.f32.gmra.mrb[0].mxu0 %v8789
    %v8899 = vpop.f32.mrb[0].mxu0
    %v8900 = vadd.f32 %v8831, %v8899
    %v8901 = vpop.f32.mrb[0].mxu0
    %8902 = vdwg.mxu0
    %v8903 = vxor.u32 %v8900, 2147483648
    %v8904 = vmul.f32 %v8903, 1.442695
    %v8905 = vpow.pop %v8904
    %v8906 = vadd.f32 %v8905, 1.0
    %v8907 = vrcp.pop %v8906
    %v8908 = vmul.f32 1.0, %v8907
    %8909 = vst [vmem:[%s9] sm:$0xff] %v8908
    // Predicated region
    $region46: #{mgl4mep_sr_forward.1} parent=1 // pred_check
      _
    $region47: #{mgl4mep_sr_forward.1} parent=1 // pred_check_branch
      %8911 = sbr.rel (0) target = $region49
    $region48: #{mgl4mep_sr_forward.1} parent=1 // pred_region
      _
    $region49: #{mgl4mep_sr_forward.1} parent=1 // pred_fallthru
      _
    // Predicated region
    $region50: #{mgl4mep_sr_forward.1} parent=1 // pred_check
      _
    $region51: #{mgl4mep_sr_forward.1} parent=1 // pred_check_branch
      %8913 = sbr.rel (0) target = $region53
    $region52: #{mgl4mep_sr_forward.1} parent=1 // pred_region
      _
    $region53: #{mgl4mep_sr_forward.1} parent=1 // pred_fallthru
      _
    %8914 = vsyncpa [#allocation8], 1
    %8915 = vsyncpa [#allocation10], 1
  %8916 = vsyncmov [#allocation6]
  %s8917 = vpop.sfrf %8916
  %p8918 = scmp.eq.s32.totalorder %s8917, 0
  %p8919 = pneg %p8918
  %8921 = shalt.err (%p8919)
  %s8922 = scalar_lea.sflag [#allocation6], 1
  %8923 = vsyncmov %s8922
  %s8924 = vpop.sfrf %8923
  %p8925 = scmp.eq.s32.totalorder %s8924, 0
  %p8926 = pneg %p8925
  %8928 = shalt.err (%p8926)
  %s8929 = scalar_lea.sflag [#allocation6], 2
  %8930 = vsyncmov %s8929
  %s8931 = vpop.sfrf %8930
  %p8932 = scmp.eq.s32.totalorder %s8931, 0
  %p8933 = pneg %p8932
  %8935 = shalt.err (%p8933)

</llo_original>
